<compile_context>
chip_gen: v7x
topology: tpu7x:2x2x1
jax: 0.10.0
libtpu: 0.0.40
codegen_flags: <defaults>
</compile_context>

<pallas_src>
import functools

import jax
import jax.numpy as jnp
from jax.experimental import pallas as pl
from jax.experimental.pallas import tpu as pltpu


# ----------------------------------------------------------------------------
# Pallas kernels:  out = act(A @ B + bias)
# ----------------------------------------------------------------------------
def _mm_bias_kernel_noacc(a_ref, b_ref, bias_ref, o_ref, *, apply_relu):
    """Single K-step fast path: no accumulator scratch, no pl.when."""
    r = jnp.dot(a_ref[...], b_ref[...], preferred_element_type=jnp.float32)
    r = r + bias_ref[...].astype(jnp.float32)
    if apply_relu:
        r = jnp.maximum(r, 0.0)
    o_ref[...] = r.astype(o_ref.dtype)


def _mm_bias_kernel_acc(a_ref, b_ref, bias_ref, o_ref, acc_ref, *, apply_relu):
    """Multi K-step path with f32 VMEM accumulator."""
    k = pl.program_id(2)

    @pl.when(k == 0)
    def _():
        acc_ref[...] = jnp.zeros_like(acc_ref)

    acc_ref[...] += jnp.dot(a_ref[...], b_ref[...],
                            preferred_element_type=jnp.float32)

    @pl.when(k == pl.num_programs(2) - 1)
    def _():
        r = acc_ref[...] + bias_ref[...].astype(jnp.float32)
        if apply_relu:
            r = jnp.maximum(r, 0.0)
        o_ref[...] = r.astype(o_ref.dtype)


def _pad_to(x, multiple, axis):
    size = x.shape[axis]
    pad = (-size) % multiple
    if pad == 0:
        return x
    widths = [(0, 0)] * x.ndim
    widths[axis] = (0, pad)
    return jnp.pad(x, widths)


def matmul_bias_act(a, b, bias2d, *, relu, tm, tn, tk,
                    out_dtype=jnp.float32, vmem_limit_bytes=None):
    """act(a @ b + bias2d).

    a: (M, K), b: (K, N).  bias2d is either (1, N) (per-column) or (M, 1)
    (per-row); it is broadcast inside the kernel.  The MXU accumulates in f32
    regardless of the operand dtypes.
    """
    M, K = a.shape
    K2, N = b.shape
    assert K == K2

    a_p = _pad_to(_pad_to(a, tm, 0), tk, 1)
    b_p = _pad_to(_pad_to(b, tk, 0), tn, 1)
    Mp, Kp = a_p.shape
    Np = b_p.shape[1]
    nk = Kp // tk

    bias_per_col = bias2d.shape[0] == 1
    if bias_per_col:
        bias_p = _pad_to(bias2d, tn, 1)
        bias_block = (1, tn)
    else:
        bias_p = _pad_to(bias2d, tm, 0)
        bias_block = (tm, 1)

    cost = pl.CostEstimate(
        flops=2 * Mp * Kp * Np,
        transcendentals=0,
        bytes_accessed=(a_p.size * a_p.dtype.itemsize
                        + b_p.size * b_p.dtype.itemsize
                        + Mp * Np * jnp.dtype(out_dtype).itemsize),
    )

    cp_kwargs = {}
    if vmem_limit_bytes is not None:
        cp_kwargs["vmem_limit_bytes"] = int(vmem_limit_bytes)

    if nk == 1:
        # Fast path: whole K reduction in a single MXU pass, no scratch.
        if bias_per_col:
            bias_map = lambda i, j: (0, j)
        else:
            bias_map = lambda i, j: (i, 0)
        out = pl.pallas_call(
            functools.partial(_mm_bias_kernel_noacc, apply_relu=relu),
            out_shape=jax.ShapeDtypeStruct((Mp, Np), out_dtype),
            grid_spec=pltpu.PrefetchScalarGridSpec(
                num_scalar_prefetch=0,
                grid=(Mp // tm, Np // tn),
                in_specs=[
                    pl.BlockSpec((tm, Kp), lambda i, j: (i, 0)),
                    pl.BlockSpec((Kp, tn), lambda i, j: (0, j)),
                    pl.BlockSpec(bias_block, bias_map),
                ],
                out_specs=pl.BlockSpec((tm, tn), lambda i, j: (i, j)),
            ),
            compiler_params=pltpu.CompilerParams(
                dimension_semantics=("parallel", "parallel"), **cp_kwargs),
            cost_estimate=cost,
        )(a_p, b_p, bias_p)
    else:
        if bias_per_col:
            bias_map = lambda i, j, k: (0, j)
        else:
            bias_map = lambda i, j, k: (i, 0)
        out = pl.pallas_call(
            functools.partial(_mm_bias_kernel_acc, apply_relu=relu),
            out_shape=jax.ShapeDtypeStruct((Mp, Np), out_dtype),
            grid_spec=pltpu.PrefetchScalarGridSpec(
                num_scalar_prefetch=0,
                grid=(Mp // tm, Np // tn, nk),
                in_specs=[
                    pl.BlockSpec((tm, tk), lambda i, j, k: (i, k)),
                    pl.BlockSpec((tk, tn), lambda i, j, k: (k, j)),
                    pl.BlockSpec(bias_block, bias_map),
                ],
                out_specs=pl.BlockSpec((tm, tn), lambda i, j, k: (i, j)),
                scratch_shapes=[pltpu.VMEM((tm, tn), jnp.float32)],
            ),
            compiler_params=pltpu.CompilerParams(
                dimension_semantics=("parallel", "parallel", "arbitrary"),
                **cp_kwargs),
            cost_estimate=cost,
        )(a_p, b_p, bias_p)

    if Mp != M or Np != N:
        out = out[:M, :N]
    return out


# ----------------------------------------------------------------------------
# Conv2d (valid padding, stride) = bf16 patches op + swapped Pallas GEMM
# ----------------------------------------------------------------------------
def conv2d_act(x, w, b, stride, *, relu=True, tn=512, out_dtype=jnp.bfloat16):
    """x: (B,C,H,W) NCHW, w: (OC,C,KH,KW), b: (OC,) -> (B,OC,OH,OW).

    The GEMM runs bf16 x bf16 with f32 accumulation; bias add + ReLU happen in
    f32 before the cast to out_dtype.
    """
    B, C, H, W = x.shape
    OC, _, KH, KW = w.shape
    OH = (H - KH) // stride + 1
    OW = (W - KW) // stride + 1
    K = C * KH * KW

    xb = x.astype(jnp.bfloat16)
    # Single fused XLA op for im2col, done in bf16 (halves the patch traffic).
    # Output layout (K, B, OH, OW) with the K axis ordered (c, kh, kw) --
    # matching w.reshape(OC, K).  The identity-kernel extraction has exactly
    # one nonzero tap per output, so it is exact at any precision.
    patches = jax.lax.conv_general_dilated_patches(
        xb, (KH, KW), (stride, stride), "VALID",
        dimension_numbers=("NCHW", "OIHW", "CNHW"))
    pm = patches.reshape(K, B * OH * OW)

    w2 = w.reshape(OC, K).astype(jnp.bfloat16)        # (OC, K)
    bias_col = b.reshape(OC, 1)                       # f32, added in f32
    # Swapped GEMM: N = B*OH*OW is the lane dimension (lane-dense stores).
    # K fits in a single block -> single-k fast path, no zero padding of K.
    y = matmul_bias_act(w2, pm, bias_col, relu=relu, tm=OC, tn=tn, tk=K,
                        out_dtype=out_dtype)
    return y.reshape(OC, B, OH, OW).transpose(1, 0, 2, 3)       # NCHW


# ----------------------------------------------------------------------------
# fc4 per-generation tiling
# ----------------------------------------------------------------------------
def _fc4_tile_config():
    """Returns (tn, tk, vmem_limit_bytes) for fc4's 73984 -> 512 GEMM."""
    try:
        vmem = pltpu.get_tpu_info().vmem_capacity_bytes
    except Exception:
        vmem = None
    if vmem is not None and vmem >= 100 * 1024 * 1024:
        # Single-TC 128 MiB chips (v5e/v6e): tn=512 reads fully contiguous
        # 1 KiB weight rows; grid = 2 steps; ~74 MB scoped VMEM.
        return 512, 36992, 100 * 1024 * 1024
    if vmem is not None and vmem >= 60 * 1024 * 1024:
        # v7x (64 MiB per-TC VMEM): tn=256 keeps two parallel j-tiles for the
        # two TensorCores; double-buffered weight blocks ~38 MB.
        return 256, 36992, 48 * 1024 * 1024
    # Unknown / small-VMEM chip: conservative tiling under the 16 MiB default.
    return 256, 4352, None


# ----------------------------------------------------------------------------
# DQN parameters + forward
# ----------------------------------------------------------------------------
def init_dqn_params(key, in_channels, num_actions,
                    fc1_units=64, fc2_units=64):  # fc*_units unused (as in torch)
    ks = jax.random.split(key, 10)

    def conv_w(k, oc, ic, kh, kw):
        fan_in = ic * kh * kw
        return jax.random.normal(k, (oc, ic, kh, kw), jnp.float32) / jnp.sqrt(fan_in)

    def lin_w(k, out_f, in_f):
        return jax.random.normal(k, (out_f, in_f), jnp.float32) / jnp.sqrt(in_f)

    w4 = lin_w(ks[6], 512, 73984)
    return {
        "w1": conv_w(ks[0], 32, in_channels, 8, 8),
        "b1": 0.01 * jax.random.normal(ks[1], (32,), jnp.float32),
        "w2": conv_w(ks[2], 64, 32, 4, 4),
        "b2": 0.01 * jax.random.normal(ks[3], (64,), jnp.float32),
        "w3": conv_w(ks[4], 64, 64, 3, 3),
        "b3": 0.01 * jax.random.normal(ks[5], (64,), jnp.float32),
        # fc4 weight pre-transposed to (in_features, out_features) and cast to
        # bf16 once: fc4 is a pure HBM weight stream, bf16 halves the traffic.
        "w4_t": w4.T.astype(jnp.bfloat16),
        "b4": 0.01 * jax.random.normal(ks[7], (512,), jnp.float32),
        "w5": lin_w(ks[8], num_actions, 512),
        "b5": 0.01 * jax.random.normal(ks[9], (num_actions,), jnp.float32),
    }


def dqn_forward(params, x):
    # x: (B, in_channels, 300, 300) NCHW, float32
    x = conv2d_act(x, params["w1"], params["b1"], stride=4, tn=1024)  # (B,32,74,74) bf16
    x = conv2d_act(x, params["w2"], params["b2"], stride=2, tn=512)   # (B,64,36,36) bf16
    x = conv2d_act(x, params["w3"], params["b3"], stride=1, tn=640)   # (B,64,34,34) bf16

    B = x.shape[0]
    flat = x.reshape(B, -1)              # (B, 73984) bf16, torch .view order (C,H,W)
    tm = 8 if B <= 8 else 256
    tn, tk, vmem_limit = _fc4_tile_config()
    # fc4: bf16 activations x bf16 weights, f32 accumulation.
    h = matmul_bias_act(flat, params["w4_t"], params["b4"].reshape(1, -1),
                        relu=True, tm=tm, tn=tn, tk=tk,
                        vmem_limit_bytes=vmem_limit)                  # (B, 512) f32

    # fc5 (512 -> num_actions): too tiny for a pallas_call; plain XLA dot.
    return jnp.dot(h, params["w5"].T,
                   preferred_element_type=jnp.float32) + params["b5"]


def dqn_reference(params, x):
    """Pure-JAX f32 reference (HIGHEST precision) for the numerics check."""
    def conv(x, w, b, s):
        y = jax.lax.conv_general_dilated(
            x, w, (s, s), "VALID",
            dimension_numbers=("NCHW", "OIHW", "NCHW"),
            precision=jax.lax.Precision.HIGHEST)
        return jnp.maximum(y + b.reshape(1, -1, 1, 1), 0.0)

    x = conv(x, params["w1"], params["b1"], 4)
    x = conv(x, params["w2"], params["b2"], 2)
    x = conv(x, params["w3"], params["b3"], 1)
    flat = x.reshape(x.shape[0], -1)
    h = jnp.maximum(
        jnp.dot(flat, params["w4_t"].astype(jnp.float32),
                precision=jax.lax.Precision.HIGHEST) + params["b4"], 0.0)
    return jnp.dot(h, params["w5"].T,
                   precision=jax.lax.Precision.HIGHEST) + params["b5"]


if __name__ == "__main__":
    in_channels = 4
    num_actions = 6
    batch = 2

    key = jax.random.PRNGKey(0)
    k_params, k_x = jax.random.split(key)

    params = init_dqn_params(k_params, in_channels, num_actions)
    # Spatial size 300 is forced by fc4's 73984 = 64*34*34 input features.
    x = jax.random.normal(k_x, (batch, in_channels, 300, 300), jnp.float32)

    fwd = jax.jit(dqn_forward)
    q_values = jax.block_until_ready(fwd(params, x))

    assert q_values.shape == (batch, num_actions), q_values.shape
    assert q_values.dtype == jnp.float32

    # Numerics check vs. a pure-JAX f32 reference: validates the im2col K-axis
    # ordering and bounds the bf16 operand-cast deviation (~1e-2 expected).
    q_ref = jax.block_until_ready(jax.jit(dqn_reference)(params, x))
    max_err = float(jnp.max(jnp.abs(q_values - q_ref)))
    assert max_err < 0.1, f"max |q - q_ref| = {max_err}"

    print("KERNEL_OK")
</pallas_src>

<mosaic_0001>
module attributes {stable_mosaic.version = 11 : i64} {
  func.func @_mm_bias_kernel_noacc(%arg0: i32, %arg1: i32, %arg2: memref<32x256xbf16, #tpu.memory_space<vmem>>, %arg3: memref<256x1024xbf16, #tpu.memory_space<vmem>>, %arg4: memref<32x1xf32, #tpu.memory_space<vmem>>, %arg5: memref<32x1024xbf16, #tpu.memory_space<vmem>>) attributes {dimension_semantics = [#tpu.dimension_semantics<parallel>, #tpu.dimension_semantics<parallel>], iteration_bounds = array<i64: 1, 11>, scalar_prefetch = 0 : i64, scratch_operands = 0 : i64, tpu.core_type = #tpu.core_type<tc>, window_params = [{transform_indices = @transform_0, window_bounds = array<i64: 32, 256>}, {transform_indices = @transform_1, window_bounds = array<i64: 256, 1024>}, {transform_indices = @transform_2, window_bounds = array<i64: 32, 1>}, {transform_indices = @transform_3, window_bounds = array<i64: 32, 1024>}]} {
    %c0 = arith.constant 0 : index
    %c0_0 = arith.constant 0 : index
    %0 = vector.load %arg2[%c0, %c0_0] : memref<32x256xbf16, #tpu.memory_space<vmem>>, vector<32x256xbf16>
    %c0_1 = arith.constant 0 : index
    %c0_2 = arith.constant 0 : index
    %1 = vector.load %arg3[%c0_1, %c0_2] : memref<256x1024xbf16, #tpu.memory_space<vmem>>, vector<256x1024xbf16>
    %cst = arith.constant dense<0.000000e+00> : vector<32x1024xf32>
    %2 = tpu.matmul %0, %1, %cst {dimension_numbers = #tpu.dot_dimension_numbers<[1], [0], [0], [1], [0, 0, 1, 1], [], []>} : vector<32x256xbf16>, vector<256x1024xbf16>, vector<32x1024xf32> -> vector<32x1024xf32>
    %c0_3 = arith.constant 0 : index
    %c0_4 = arith.constant 0 : index
    %3 = vector.load %arg4[%c0_3, %c0_4] : memref<32x1xf32, #tpu.memory_space<vmem>>, vector<32x1xf32>
    %4 = vector.broadcast %3 : vector<32x1xf32> to vector<32x1024xf32>
    %5 = arith.addf %2, %4 : vector<32x1024xf32>
    %cst_5 = arith.constant 0.000000e+00 : f32
    %6 = vector.broadcast %cst_5 : f32 to vector<32x1024xf32>
    %7 = arith.maximumf %5, %6 : vector<32x1024xf32>
    %8 = arith.truncf %7 : vector<32x1024xf32> to vector<32x1024xbf16>
    %c0_6 = arith.constant 0 : index
    %c0_7 = arith.constant 0 : index
    %9 = vector.load %arg5[%c0_6, %c0_7] : memref<32x1024xbf16, #tpu.memory_space<vmem>>, vector<32x1024xbf16>
    tpu.vector_store %arg5[%c0_6, %c0_7], %8 {strides = array<i32>} : memref<32x1024xbf16, #tpu.memory_space<vmem>>, vector<32x1024xbf16>,
    return
  }
  func.func @transform_0(%arg0: i32, %arg1: i32) -> (i32, i32) {
    %c0_i32 = arith.constant 0 : i32
    %c0_i32_0 = arith.constant 0 : i32
    return %arg0, %c0_i32 : i32, i32
  }
  func.func @transform_1(%arg0: i32, %arg1: i32) -> (i32, i32) {
    %c0_i32 = arith.constant 0 : i32
    %c0_i32_0 = arith.constant 0 : i32
    return %c0_i32, %arg1 : i32, i32
  }
  func.func @transform_2(%arg0: i32, %arg1: i32) -> (i32, i32) {
    %c0_i32 = arith.constant 0 : i32
    %c0_i32_0 = arith.constant 0 : i32
    return %arg0, %c0_i32 : i32, i32
  }
  func.func @transform_3(%arg0: i32, %arg1: i32) -> (i32, i32) {
    %c0_i32 = arith.constant 0 : i32
    return %arg0, %arg1 : i32, i32
  }
}

module attributes {stable_mosaic.version = 11 : i64} {
  func.func @_mm_bias_kernel_noacc(%arg0: i32, %arg1: i32, %arg2: memref<64x512xbf16, #tpu.memory_space<vmem>>, %arg3: memref<512x512xbf16, #tpu.memory_space<vmem>>, %arg4: memref<64x1xf32, #tpu.memory_space<vmem>>, %arg5: memref<64x512xbf16, #tpu.memory_space<vmem>>) attributes {dimension_semantics = [#tpu.dimension_semantics<parallel>, #tpu.dimension_semantics<parallel>], iteration_bounds = array<i64: 1, 6>, scalar_prefetch = 0 : i64, scratch_operands = 0 : i64, tpu.core_type = #tpu.core_type<tc>, window_params = [{transform_indices = @transform_0, window_bounds = array<i64: 64, 512>}, {transform_indices = @transform_1, window_bounds = array<i64: 512, 512>}, {transform_indices = @transform_2, window_bounds = array<i64: 64, 1>}, {transform_indices = @transform_3, window_bounds = array<i64: 64, 512>}]} {
    %c0 = arith.constant 0 : index
    %c0_0 = arith.constant 0 : index
    %0 = vector.load %arg2[%c0, %c0_0] : memref<64x512xbf16, #tpu.memory_space<vmem>>, vector<64x512xbf16>
    %c0_1 = arith.constant 0 : index
    %c0_2 = arith.constant 0 : index
    %1 = vector.load %arg3[%c0_1, %c0_2] : memref<512x512xbf16, #tpu.memory_space<vmem>>, vector<512x512xbf16>
    %cst = arith.constant dense<0.000000e+00> : vector<64x512xf32>
    %2 = tpu.matmul %0, %1, %cst {dimension_numbers = #tpu.dot_dimension_numbers<[1], [0], [0], [1], [0, 0, 1, 1], [], []>} : vector<64x512xbf16>, vector<512x512xbf16>, vector<64x512xf32> -> vector<64x512xf32>
    %c0_3 = arith.constant 0 : index
    %c0_4 = arith.constant 0 : index
    %3 = vector.load %arg4[%c0_3, %c0_4] : memref<64x1xf32, #tpu.memory_space<vmem>>, vector<64x1xf32>
    %4 = vector.broadcast %3 : vector<64x1xf32> to vector<64x512xf32>
    %5 = arith.addf %2, %4 : vector<64x512xf32>
    %cst_5 = arith.constant 0.000000e+00 : f32
    %6 = vector.broadcast %cst_5 : f32 to vector<64x512xf32>
    %7 = arith.maximumf %5, %6 : vector<64x512xf32>
    %8 = arith.truncf %7 : vector<64x512xf32> to vector<64x512xbf16>
    %c0_6 = arith.constant 0 : index
    %c0_7 = arith.constant 0 : index
    %9 = vector.load %arg5[%c0_6, %c0_7] : memref<64x512xbf16, #tpu.memory_space<vmem>>, vector<64x512xbf16>
    tpu.vector_store %arg5[%c0_6, %c0_7], %8 {strides = array<i32>} : memref<64x512xbf16, #tpu.memory_space<vmem>>, vector<64x512xbf16>,
    return
  }
  func.func @transform_0(%arg0: i32, %arg1: i32) -> (i32, i32) {
    %c0_i32 = arith.constant 0 : i32
    %c0_i32_0 = arith.constant 0 : i32
    return %arg0, %c0_i32 : i32, i32
  }
  func.func @transform_1(%arg0: i32, %arg1: i32) -> (i32, i32) {
    %c0_i32 = arith.constant 0 : i32
    %c0_i32_0 = arith.constant 0 : i32
    return %c0_i32, %arg1 : i32, i32
  }
  func.func @transform_2(%arg0: i32, %arg1: i32) -> (i32, i32) {
    %c0_i32 = arith.constant 0 : i32
    %c0_i32_0 = arith.constant 0 : i32
    return %arg0, %c0_i32 : i32, i32
  }
  func.func @transform_3(%arg0: i32, %arg1: i32) -> (i32, i32) {
    %c0_i32 = arith.constant 0 : i32
    return %arg0, %arg1 : i32, i32
  }
}

module attributes {stable_mosaic.version = 11 : i64} {
  func.func @_mm_bias_kernel_noacc(%arg0: i32, %arg1: i32, %arg2: memref<64x576xbf16, #tpu.memory_space<vmem>>, %arg3: memref<576x640xbf16, #tpu.memory_space<vmem>>, %arg4: memref<64x1xf32, #tpu.memory_space<vmem>>, %arg5: memref<64x640xbf16, #tpu.memory_space<vmem>>) attributes {dimension_semantics = [#tpu.dimension_semantics<parallel>, #tpu.dimension_semantics<parallel>], iteration_bounds = array<i64: 1, 4>, scalar_prefetch = 0 : i64, scratch_operands = 0 : i64, tpu.core_type = #tpu.core_type<tc>, window_params = [{transform_indices = @transform_0, window_bounds = array<i64: 64, 576>}, {transform_indices = @transform_1, window_bounds = array<i64: 576, 640>}, {transform_indices = @transform_2, window_bounds = array<i64: 64, 1>}, {transform_indices = @transform_3, window_bounds = array<i64: 64, 640>}]} {
    %c0 = arith.constant 0 : index
    %c0_0 = arith.constant 0 : index
    %0 = vector.load %arg2[%c0, %c0_0] : memref<64x576xbf16, #tpu.memory_space<vmem>>, vector<64x576xbf16>
    %c0_1 = arith.constant 0 : index
    %c0_2 = arith.constant 0 : index
    %1 = vector.load %arg3[%c0_1, %c0_2] : memref<576x640xbf16, #tpu.memory_space<vmem>>, vector<576x640xbf16>
    %cst = arith.constant dense<0.000000e+00> : vector<64x640xf32>
    %2 = tpu.matmul %0, %1, %cst {dimension_numbers = #tpu.dot_dimension_numbers<[1], [0], [0], [1], [0, 0, 1, 1], [], []>} : vector<64x576xbf16>, vector<576x640xbf16>, vector<64x640xf32> -> vector<64x640xf32>
    %c0_3 = arith.constant 0 : index
    %c0_4 = arith.constant 0 : index
    %3 = vector.load %arg4[%c0_3, %c0_4] : memref<64x1xf32, #tpu.memory_space<vmem>>, vector<64x1xf32>
    %4 = vector.broadcast %3 : vector<64x1xf32> to vector<64x640xf32>
    %5 = arith.addf %2, %4 : vector<64x640xf32>
    %cst_5 = arith.constant 0.000000e+00 : f32
    %6 = vector.broadcast %cst_5 : f32 to vector<64x640xf32>
    %7 = arith.maximumf %5, %6 : vector<64x640xf32>
    %8 = arith.truncf %7 : vector<64x640xf32> to vector<64x640xbf16>
    %c0_6 = arith.constant 0 : index
    %c0_7 = arith.constant 0 : index
    %9 = vector.load %arg5[%c0_6, %c0_7] : memref<64x640xbf16, #tpu.memory_space<vmem>>, vector<64x640xbf16>
    tpu.vector_store %arg5[%c0_6, %c0_7], %8 {strides = array<i32>} : memref<64x640xbf16, #tpu.memory_space<vmem>>, vector<64x640xbf16>,
    return
  }
  func.func @transform_0(%arg0: i32, %arg1: i32) -> (i32, i32) {
    %c0_i32 = arith.constant 0 : i32
    %c0_i32_0 = arith.constant 0 : i32
    return %arg0, %c0_i32 : i32, i32
  }
  func.func @transform_1(%arg0: i32, %arg1: i32) -> (i32, i32) {
    %c0_i32 = arith.constant 0 : i32
    %c0_i32_0 = arith.constant 0 : i32
    return %c0_i32, %arg1 : i32, i32
  }
  func.func @transform_2(%arg0: i32, %arg1: i32) -> (i32, i32) {
    %c0_i32 = arith.constant 0 : i32
    %c0_i32_0 = arith.constant 0 : i32
    return %arg0, %c0_i32 : i32, i32
  }
  func.func @transform_3(%arg0: i32, %arg1: i32) -> (i32, i32) {
    %c0_i32 = arith.constant 0 : i32
    return %arg0, %arg1 : i32, i32
  }
}

module attributes {stable_mosaic.version = 11 : i64} {
  func.func @_mm_bias_kernel_acc(%arg0: i32, %arg1: i32, %arg2: i32, %arg3: memref<8x4352xbf16, #tpu.memory_space<vmem>>, %arg4: memref<4352x256xbf16, #tpu.memory_space<vmem>>, %arg5: memref<1x256xf32, #tpu.memory_space<vmem>>, %arg6: memref<8x256xf32, #tpu.memory_space<vmem>>, %arg7: memref<8x256xf32, #tpu.memory_space<vmem>>) attributes {dimension_semantics = [#tpu.dimension_semantics<parallel>, #tpu.dimension_semantics<parallel>, #tpu.dimension_semantics<arbitrary>], iteration_bounds = array<i64: 1, 2, 17>, scalar_prefetch = 0 : i64, scratch_operands = 1 : i64, tpu.core_type = #tpu.core_type<tc>, window_params = [{transform_indices = @transform_0, window_bounds = array<i64: 8, 4352>}, {transform_indices = @transform_1, window_bounds = array<i64: 4352, 256>}, {transform_indices = @transform_2, window_bounds = array<i64: 1, 256>}, {transform_indices = @transform_3, window_bounds = array<i64: 8, 256>}]} {
    %c0_i32 = arith.constant 0 : i32
    %0 = arith.cmpi eq, %arg2, %c0_i32 : i32
    %1 = arith.extui %0 : i1 to i32
    %c0_i32_0 = arith.constant 0 : i32
    %2 = arith.cmpi ne, %1, %c0_i32_0 : i32
    scf.if %2 {
      %cst_9 = arith.constant 0.000000e+00 : f32
      %12 = vector.broadcast %cst_9 : f32 to vector<8x256xf32>
      %c0_10 = arith.constant 0 : index
      %c0_11 = arith.constant 0 : index
      %13 = vector.load %arg7[%c0_10, %c0_11] : memref<8x256xf32, #tpu.memory_space<vmem>>, vector<8x256xf32>
      tpu.vector_store %arg7[%c0_10, %c0_11], %12 {strides = array<i32>} : memref<8x256xf32, #tpu.memory_space<vmem>>, vector<8x256xf32>,
    } else {
    }
    %c0 = arith.constant 0 : index
    %c0_1 = arith.constant 0 : index
    %3 = vector.load %arg7[%c0, %c0_1] : memref<8x256xf32, #tpu.memory_space<vmem>>, vector<8x256xf32>
    %c0_2 = arith.constant 0 : index
    %c0_3 = arith.constant 0 : index
    %4 = vector.load %arg3[%c0_2, %c0_3] : memref<8x4352xbf16, #tpu.memory_space<vmem>>, vector<8x4352xbf16>
    %c0_4 = arith.constant 0 : index
    %c0_5 = arith.constant 0 : index
    %5 = vector.load %arg4[%c0_4, %c0_5] : memref<4352x256xbf16, #tpu.memory_space<vmem>>, vector<4352x256xbf16>
    %cst = arith.constant dense<0.000000e+00> : vector<8x256xf32>
    %6 = tpu.matmul %4, %5, %cst {dimension_numbers = #tpu.dot_dimension_numbers<[1], [0], [0], [1], [0, 0, 1, 1], [], []>} : vector<8x4352xbf16>, vector<4352x256xbf16>, vector<8x256xf32> -> vector<8x256xf32>
    %7 = arith.addf %3, %6 : vector<8x256xf32>
    %c0_6 = arith.constant 0 : index
    %c0_7 = arith.constant 0 : index
    %8 = vector.load %arg7[%c0_6, %c0_7] : memref<8x256xf32, #tpu.memory_space<vmem>>, vector<8x256xf32>
    tpu.vector_store %arg7[%c0_6, %c0_7], %7 {strides = array<i32>} : memref<8x256xf32, #tpu.memory_space<vmem>>, vector<8x256xf32>,
    %c16_i32 = arith.constant 16 : i32
    %9 = arith.cmpi eq, %arg2, %c16_i32 : i32
    %10 = arith.extui %9 : i1 to i32
    %c0_i32_8 = arith.constant 0 : i32
    %11 = arith.cmpi ne, %10, %c0_i32_8 : i32
    scf.if %11 {
      %c0_9 = arith.constant 0 : index
      %c0_10 = arith.constant 0 : index
      %12 = vector.load %arg7[%c0_9, %c0_10] : memref<8x256xf32, #tpu.memory_space<vmem>>, vector<8x256xf32>
      %c0_11 = arith.constant 0 : index
      %c0_12 = arith.constant 0 : index
      %13 = vector.load %arg5[%c0_11, %c0_12] : memref<1x256xf32, #tpu.memory_space<vmem>>, vector<1x256xf32>
      %14 = vector.broadcast %13 : vector<1x256xf32> to vector<8x256xf32>
      %15 = arith.addf %12, %14 : vector<8x256xf32>
      %cst_13 = arith.constant 0.000000e+00 : f32
      %16 = vector.broadcast %cst_13 : f32 to vector<8x256xf32>
      %17 = arith.maximumf %15, %16 : vector<8x256xf32>
      %c0_14 = arith.constant 0 : index
      %c0_15 = arith.constant 0 : index
      %18 = vector.load %arg6[%c0_14, %c0_15] : memref<8x256xf32, #tpu.memory_space<vmem>>, vector<8x256xf32>
      tpu.vector_store %arg6[%c0_14, %c0_15], %17 {strides = array<i32>} : memref<8x256xf32, #tpu.memory_space<vmem>>, vector<8x256xf32>,
    } else {
    }
    return
  }
  func.func @transform_0(%arg0: i32, %arg1: i32, %arg2: i32) -> (i32, i32) {
    %c0_i32 = arith.constant 0 : i32
    return %arg0, %arg2 : i32, i32
  }
  func.func @transform_1(%arg0: i32, %arg1: i32, %arg2: i32) -> (i32, i32) {
    %c0_i32 = arith.constant 0 : i32
    return %arg2, %arg1 : i32, i32
  }
  func.func @transform_2(%arg0: i32, %arg1: i32, %arg2: i32) -> (i32, i32) {
    %c0_i32 = arith.constant 0 : i32
    %c0_i32_0 = arith.constant 0 : i32
    return %c0_i32, %arg1 : i32, i32
  }
  func.func @transform_3(%arg0: i32, %arg1: i32, %arg2: i32) -> (i32, i32) {
    %c0_i32 = arith.constant 0 : i32
    return %arg0, %arg1 : i32, i32
  }
}

</mosaic_0001>

<llo_original>
// kernel: dqn_forward.4
$region0: #{dqn_forward.4}
  #allocation0 [shape = 'u32[]', space=smem, size = 0x4, offset = 0x4, fixed_abs, tag = 'smem constant byte address 0x4 - core index']
  #allocation1 [shape = 'u32[144,128]{1,0:T(1,128)}', space=vmem, size = 0x12000, scoped, tag = 'internal scratch']
  %s0 = inlined_call_operand.vmem [shape: bf16[32,256], index: 0, kind: input, shape index: {}]
  %s1 = inlined_call_operand.vmem [shape: bf16[256,11264], index: 1, kind: input, shape index: {}]
  %s2 = inlined_call_operand.vmem [shape: f32[32,1], index: 2, kind: input, shape index: {}]
  %s3 = inlined_call_operand.vmem [shape: bf16[32,11264], index: 3, kind: output, shape index: {}]
  %s4 = sld [smem:[#allocation0]]
  $region87: #{dqn_forward.4} parent=0
    _
  %s6 = ssub.s32 1, %s4
  %s7 = scalar_select 0, %s6, %s4
  $region1: #{dqn_forward.4} parent=0
    #allocation2 [shape = 'u8[1048576]{0}', space=vmem, size = 0x100000, scoped, tag = 'input window, operand 1']
    #allocation3 [shape = 'u8[131072]{0}', space=vmem, size = 0x20000, scoped, tag = 'output window, operand 0']
    loop: start=0, step=1, limit=13
    $region2: #{dqn_forward.4} parent=1 // loop_pre_header
      _
    $region3: #{dqn_forward.4} parent=1 // loop_header
      %s9 = sphi 0, %s13
      %p10 = scmp.ge.s32.totalorder %s9, 13
      %s16 = sphi 0, %s28
      %s17 = sphi 0, %s24
      %s18 = sphi 0, %s16
      %s19 = sphi 0, %s17
      %s20 = sphi 0, %s18
      %s21 = sphi 0, %s19
      %s31 = sphi 0, %s33
      %s34 = sphi 0, %s31
      %s35 = sphi 0, %s34
      %s51 = sphi 0, %s35
      %s57 = sphi 0, %s59
      %s60 = sphi 0, %s57
      %s61 = sphi 0, %s60
      %s77 = sphi 0, %s61
      %s83 = sphi 0, %s85
      %s86 = sphi 0, %s83
      %s87 = sphi 0, %s86
      %s103 = sphi 0, %s87
      %s111 = sphi 0, %s113
      %s114 = sphi 0, %s111
      %s115 = sphi 0, %s114
      %s131 = sphi 0, %s115
    $region4: #{dqn_forward.4} parent=1 // loop_header_branch
      %12 = sbr.rel (%p10) target = $region8
    $region5: #{dqn_forward.4} parent=1 // loop_body
      %s14 = ssub.s32 %s9, 1
      %s15 = ssub.s32 %s9, 2
      %s22 = sadd.s32 1, %s17
      %p23 = scmp.ge.s32.totalorder %s22, 11
      %s24 = scalar_select %p23, 0, %s22
      %s25 = sadd.s32 1, %s16
      %s26 = scalar_select %p23, %s25, %s16
      %p27 = scmp.ge.s32.totalorder %s26, 1
      %s28 = scalar_select %p27, 0, %s26
      %s29 = ssub.s32 %s16, %s28
      %p30 = scmp.eq.s32.totalorder %s29, 0
      %s32 = sadd.s32 %s31, 1
      %s33 = scalar_select %p30, %s31, %s32
      %p36 = pneg %p30
      %p37 = scmp.eq.s32.totalorder %s9, 10
      %p38 = por %p36, %p37
      %p39 = scmp.ne.s32.totalorder %s31, %s34
      %p40 = scmp.eq.s32.totalorder %s9, 0
      %p41 = por %p39, %p40
      %p42 = scmp.ne.s32.totalorder %s31, %s34
      %p43 = scmp.eq.s32.totalorder %s14, 10
      %p44 = por %p42, %p43
      %p45 = scmp.ne.s32.totalorder %s34, %s35
      %p46 = scmp.eq.s32.totalorder %s14, 0
      %p47 = por %p45, %p46
      %p48 = scmp.ne.s32.totalorder %s34, %s35
      %p49 = scmp.eq.s32.totalorder %s15, 10
      %p50 = por %p48, %p49
      %p52 = scmp.ne.s32.totalorder %s35, %s51
      %p53 = scmp.eq.s32.totalorder %s15, 0
      %p54 = por %p52, %p53
      %s55 = ssub.s32 %s17, %s24
      %p56 = scmp.eq.s32.totalorder %s55, 0
      %s58 = sadd.s32 %s57, 1
      %s59 = scalar_select %p56, %s57, %s58
      %p62 = pneg %p56
      %p63 = scmp.eq.s32.totalorder %s9, 10
      %p64 = por %p62, %p63
      %p65 = scmp.ne.s32.totalorder %s57, %s60
      %p66 = scmp.eq.s32.totalorder %s9, 0
      %p67 = por %p65, %p66
      %p68 = scmp.ne.s32.totalorder %s57, %s60
      %p69 = scmp.eq.s32.totalorder %s14, 10
      %p70 = por %p68, %p69
      %p71 = scmp.ne.s32.totalorder %s60, %s61
      %p72 = scmp.eq.s32.totalorder %s14, 0
      %p73 = por %p71, %p72
      %p74 = scmp.ne.s32.totalorder %s60, %s61
      %p75 = scmp.eq.s32.totalorder %s15, 10
      %p76 = por %p74, %p75
      %p78 = scmp.ne.s32.totalorder %s61, %s77
      %p79 = scmp.eq.s32.totalorder %s15, 0
      %p80 = por %p78, %p79
      %s81 = ssub.s32 %s16, %s28
      %p82 = scmp.eq.s32.totalorder %s81, 0
      %s84 = sadd.s32 %s83, 1
      %s85 = scalar_select %p82, %s83, %s84
      %p88 = pneg %p82
      %p89 = scmp.eq.s32.totalorder %s9, 10
      %p90 = por %p88, %p89
      %p91 = scmp.ne.s32.totalorder %s83, %s86
      %p92 = scmp.eq.s32.totalorder %s9, 0
      %p93 = por %p91, %p92
      %p94 = scmp.ne.s32.totalorder %s83, %s86
      %p95 = scmp.eq.s32.totalorder %s14, 10
      %p96 = por %p94, %p95
      %p97 = scmp.ne.s32.totalorder %s86, %s87
      %p98 = scmp.eq.s32.totalorder %s14, 0
      %p99 = por %p97, %p98
      %p100 = scmp.ne.s32.totalorder %s86, %s87
      %p101 = scmp.eq.s32.totalorder %s15, 10
      %p102 = por %p100, %p101
      %p104 = scmp.ne.s32.totalorder %s87, %s103
      %p105 = scmp.eq.s32.totalorder %s15, 0
      %p106 = por %p104, %p105
      %s107 = ssub.s32 %s16, %s28
      %s108 = ssub.s32 %s17, %s24
      %s109 = sor.u32 %s107, %s108
      %p110 = scmp.eq.s32.totalorder %s109, 0
      %s112 = sadd.s32 %s111, 1
      %s113 = scalar_select %p110, %s111, %s112
      %p116 = pneg %p110
      %p117 = scmp.eq.s32.totalorder %s9, 10
      %p118 = por %p116, %p117
      %p119 = scmp.ne.s32.totalorder %s111, %s114
      %p120 = scmp.eq.s32.totalorder %s9, 0
      %p121 = por %p119, %p120
      %p122 = scmp.ne.s32.totalorder %s111, %s114
      %p123 = scmp.eq.s32.totalorder %s14, 10
      %p124 = por %p122, %p123
      %p125 = scmp.ne.s32.totalorder %s114, %s115
      %p126 = scmp.eq.s32.totalorder %s14, 0
      %p127 = por %p125, %p126
      %p128 = scmp.ne.s32.totalorder %s114, %s115
      %p129 = scmp.eq.s32.totalorder %s15, 10
      %p130 = por %p128, %p129
      %p132 = scmp.ne.s32.totalorder %s115, %s131
      %p133 = scmp.eq.s32.totalorder %s15, 0
      %p134 = por %p132, %p133
      %p135 = scmp.le.s32.totalorder 1, %s9
      %p136 = scmp.lt.s32.totalorder %s9, 12
      %p137 = pnand %p135, %p136
      %p138 = pneg %p137
      // Predicated region
      $region9: #{dqn_forward.4} parent=5 // pred_check
        _
      $region10: #{dqn_forward.4} parent=5 // pred_check_branch
        %140 = sbr.rel (%p137) target = $region12
      $region11: #{dqn_forward.4} parent=5 // pred_region
        %s141 = ssub.s32 %s9, 1
        // Predicated region
        $region13: #{dqn_forward.4} parent=11 // pred_check
          %p142 = pneg %p47
        $region14: #{dqn_forward.4} parent=11 // pred_check_branch
          %144 = sbr.rel (%p142) target = $region16
        $region15: #{dqn_forward.4} parent=11 // pred_region
          %s145 = smul.u32 4, %s18
          %p146 = scmp.lt.s32.totalorder %s145, 3
          %s147 = scalar_select %p146, %s145, 3
          %s148 = smul.addr %s147, 2
          %s149 = smul.addr %s148, 4
          %s150 = scalar_lea.vmem %s0, %s149
          %s151 = smul.u32 4, %s18
        $region16: #{dqn_forward.4} parent=11 // pred_fallthru
          _
        // Predicated region
        $region17: #{dqn_forward.4} parent=11 // pred_check
          %p152 = pneg %p99
        $region18: #{dqn_forward.4} parent=11 // pred_check_branch
          %154 = sbr.rel (%p152) target = $region20
        $region19: #{dqn_forward.4} parent=11 // pred_region
          %s155 = smul.u32 4, %s18
          %p156 = scmp.lt.s32.totalorder %s155, 3
          %s157 = scalar_select %p156, %s155, 3
          %s158 = smul.addr %s157, 8
          %s159 = scalar_lea.vmem %s2, %s158
          %s160 = smul.u32 4, %s18
        $region20: #{dqn_forward.4} parent=11 // pred_fallthru
          _
      $region12: #{dqn_forward.4} parent=5 // pred_fallthru
        _
      %p161 = scmp.lt.s32.totalorder %s9, 11
      // Predicated region
      $region21: #{dqn_forward.4} parent=5 // pred_check
        %p162 = pneg %p161
      $region22: #{dqn_forward.4} parent=5 // pred_check_branch
        %164 = sbr.rel (%p162) target = $region24
      $region23: #{dqn_forward.4} parent=5 // pred_region
        // Predicated region
        $region25: #{dqn_forward.4} parent=23 // pred_check
          %p165 = pneg %p67
        $region26: #{dqn_forward.4} parent=23 // pred_check_branch
          %167 = sbr.rel (%p165) target = $region28
        $region27: #{dqn_forward.4} parent=23 // pred_region
          %s168 = sand.u32 %s57, 1
          %s169 = sand.u32 %s57, 1
          %s170 = smul.addr %s169, 1024
          %s171 = scalar_lea.vmem [#allocation2], %s170
          %s172 = smul.u32 8, %s17
          %s173 = smul.addr %s172, 4
          %s174 = scalar_lea.vmem %s1, %s173
          // Predicated region
          $region29: #{dqn_forward.4} parent=27 // pred_check
            _
          $region30: #{dqn_forward.4} parent=27 // pred_check_branch
            %176 = sbr.rel (0) target = $region32
          $region31: #{dqn_forward.4} parent=27 // pred_region
            // Predicated region
            $region33: #{dqn_forward.4} parent=31 // pred_check
              _
            $region34: #{dqn_forward.4} parent=31 // pred_check_branch
              %178 = sbr.rel (0) target = $region36
            $region35: #{dqn_forward.4} parent=31 // pred_region
              loop: start=0, step=1, limit=1
              $region37: #{dqn_forward.4} parent=35 // loop_pre_header
                _
              $region38: #{dqn_forward.4} parent=35 // loop_header
                %s180 = sphi 0, %s184
                %p181 = scmp.ge.s32.totalorder %s180, 1
                %s185 = sphi %s174, %s174
                %s186 = sphi %s171, %s171
              $region39: #{dqn_forward.4} parent=35 // loop_header_branch
                %183 = sbr.rel (%p181) target = $region43
              $region40: #{dqn_forward.4} parent=35 // loop_body
                %v187 = vld [vmem:[%s185] sm:$0xff]
                %188 = vst [vmem:[%s186] sm:$0xff] %v187
                %v189 = vld [vmem:[%s185 + $0x8] sm:$0xff]
                %190 = vst [vmem:[%s186 + $0x8] sm:$0xff] %v189
                %v191 = vld [vmem:[%s185 + $0x10] sm:$0xff]
                %192 = vst [vmem:[%s186 + $0x10] sm:$0xff] %v191
                %v193 = vld [vmem:[%s185 + $0x18] sm:$0xff]
                %194 = vst [vmem:[%s186 + $0x18] sm:$0xff] %v193
                %v195 = vld [vmem:[%s185 + $0x160] sm:$0xff]
                %196 = vst [vmem:[%s186 + $0x20] sm:$0xff] %v195
                %v197 = vld [vmem:[%s185 + $0x168] sm:$0xff]
                %198 = vst [vmem:[%s186 + $0x28] sm:$0xff] %v197
                %v199 = vld [vmem:[%s185 + $0x170] sm:$0xff]
                %200 = vst [vmem:[%s186 + $0x30] sm:$0xff] %v199
                %v201 = vld [vmem:[%s185 + $0x178] sm:$0xff]
                %202 = vst [vmem:[%s186 + $0x38] sm:$0xff] %v201
                %v203 = vld [vmem:[%s185 + $0x2c0] sm:$0xff]
                %204 = vst [vmem:[%s186 + $0x40] sm:$0xff] %v203
                %v205 = vld [vmem:[%s185 + $0x2c8] sm:$0xff]
                %206 = vst [vmem:[%s186 + $0x48] sm:$0xff] %v205
                %v207 = vld [vmem:[%s185 + $0x2d0] sm:$0xff]
                %208 = vst [vmem:[%s186 + $0x50] sm:$0xff] %v207
                %v209 = vld [vmem:[%s185 + $0x2d8] sm:$0xff]
                %210 = vst [vmem:[%s186 + $0x58] sm:$0xff] %v209
                %v211 = vld [vmem:[%s185 + $0x420] sm:$0xff]
                %212 = vst [vmem:[%s186 + $0x60] sm:$0xff] %v211
                %v213 = vld [vmem:[%s185 + $0x428] sm:$0xff]
                %214 = vst [vmem:[%s186 + $0x68] sm:$0xff] %v213
                %v215 = vld [vmem:[%s185 + $0x430] sm:$0xff]
                %216 = vst [vmem:[%s186 + $0x70] sm:$0xff] %v215
                %v217 = vld [vmem:[%s185 + $0x438] sm:$0xff]
                %218 = vst [vmem:[%s186 + $0x78] sm:$0xff] %v217
                %v219 = vld [vmem:[%s185 + $0x580] sm:$0xff]
                %220 = vst [vmem:[%s186 + $0x80] sm:$0xff] %v219
                %v221 = vld [vmem:[%s185 + $0x588] sm:$0xff]
                %222 = vst [vmem:[%s186 + $0x88] sm:$0xff] %v221
                %v223 = vld [vmem:[%s185 + $0x590] sm:$0xff]
                %224 = vst [vmem:[%s186 + $0x90] sm:$0xff] %v223
                %v225 = vld [vmem:[%s185 + $0x598] sm:$0xff]
                %226 = vst [vmem:[%s186 + $0x98] sm:$0xff] %v225
                %v227 = vld [vmem:[%s185 + $0x6e0] sm:$0xff]
                %228 = vst [vmem:[%s186 + $0xa0] sm:$0xff] %v227
                %v229 = vld [vmem:[%s185 + $0x6e8] sm:$0xff]
                %230 = vst [vmem:[%s186 + $0xa8] sm:$0xff] %v229
                %v231 = vld [vmem:[%s185 + $0x6f0] sm:$0xff]
                %232 = vst [vmem:[%s186 + $0xb0] sm:$0xff] %v231
                %v233 = vld [vmem:[%s185 + $0x6f8] sm:$0xff]
                %234 = vst [vmem:[%s186 + $0xb8] sm:$0xff] %v233
                %v235 = vld [vmem:[%s185 + $0x840] sm:$0xff]
                %236 = vst [vmem:[%s186 + $0xc0] sm:$0xff] %v235
                %v237 = vld [vmem:[%s185 + $0x848] sm:$0xff]
                %238 = vst [vmem:[%s186 + $0xc8] sm:$0xff] %v237
                %v239 = vld [vmem:[%s185 + $0x850] sm:$0xff]
                %240 = vst [vmem:[%s186 + $0xd0] sm:$0xff] %v239
                %v241 = vld [vmem:[%s185 + $0x858] sm:$0xff]
                %242 = vst [vmem:[%s186 + $0xd8] sm:$0xff] %v241
                %v243 = vld [vmem:[%s185 + $0x9a0] sm:$0xff]
                %244 = vst [vmem:[%s186 + $0xe0] sm:$0xff] %v243
                %v245 = vld [vmem:[%s185 + $0x9a8] sm:$0xff]
                %246 = vst [vmem:[%s186 + $0xe8] sm:$0xff] %v245
                %v247 = vld [vmem:[%s185 + $0x9b0] sm:$0xff]
                %248 = vst [vmem:[%s186 + $0xf0] sm:$0xff] %v247
                %v249 = vld [vmem:[%s185 + $0x9b8] sm:$0xff]
                %250 = vst [vmem:[%s186 + $0xf8] sm:$0xff] %v249
                %v251 = vld [vmem:[%s185 + $0xb00] sm:$0xff]
                %252 = vst [vmem:[%s186 + $0x100] sm:$0xff] %v251
                %v253 = vld [vmem:[%s185 + $0xb08] sm:$0xff]
                %254 = vst [vmem:[%s186 + $0x108] sm:$0xff] %v253
                %v255 = vld [vmem:[%s185 + $0xb10] sm:$0xff]
                %256 = vst [vmem:[%s186 + $0x110] sm:$0xff] %v255
                %v257 = vld [vmem:[%s185 + $0xb18] sm:$0xff]
                %258 = vst [vmem:[%s186 + $0x118] sm:$0xff] %v257
                %v259 = vld [vmem:[%s185 + $0xc60] sm:$0xff]
                %260 = vst [vmem:[%s186 + $0x120] sm:$0xff] %v259
                %v261 = vld [vmem:[%s185 + $0xc68] sm:$0xff]
                %262 = vst [vmem:[%s186 + $0x128] sm:$0xff] %v261
                %v263 = vld [vmem:[%s185 + $0xc70] sm:$0xff]
                %264 = vst [vmem:[%s186 + $0x130] sm:$0xff] %v263
                %v265 = vld [vmem:[%s185 + $0xc78] sm:$0xff]
                %266 = vst [vmem:[%s186 + $0x138] sm:$0xff] %v265
                %v267 = vld [vmem:[%s185 + $0xdc0] sm:$0xff]
                %268 = vst [vmem:[%s186 + $0x140] sm:$0xff] %v267
                %v269 = vld [vmem:[%s185 + $0xdc8] sm:$0xff]
                %270 = vst [vmem:[%s186 + $0x148] sm:$0xff] %v269
                %v271 = vld [vmem:[%s185 + $0xdd0] sm:$0xff]
                %272 = vst [vmem:[%s186 + $0x150] sm:$0xff] %v271
                %v273 = vld [vmem:[%s185 + $0xdd8] sm:$0xff]
                %274 = vst [vmem:[%s186 + $0x158] sm:$0xff] %v273
                %v275 = vld [vmem:[%s185 + $0xf20] sm:$0xff]
                %276 = vst [vmem:[%s186 + $0x160] sm:$0xff] %v275
                %v277 = vld [vmem:[%s185 + $0xf28] sm:$0xff]
                %278 = vst [vmem:[%s186 + $0x168] sm:$0xff] %v277
                %v279 = vld [vmem:[%s185 + $0xf30] sm:$0xff]
                %280 = vst [vmem:[%s186 + $0x170] sm:$0xff] %v279
                %v281 = vld [vmem:[%s185 + $0xf38] sm:$0xff]
                %282 = vst [vmem:[%s186 + $0x178] sm:$0xff] %v281
                %v283 = vld [vmem:[%s185 + $0x1080] sm:$0xff]
                %284 = vst [vmem:[%s186 + $0x180] sm:$0xff] %v283
                %v285 = vld [vmem:[%s185 + $0x1088] sm:$0xff]
                %286 = vst [vmem:[%s186 + $0x188] sm:$0xff] %v285
                %v287 = vld [vmem:[%s185 + $0x1090] sm:$0xff]
                %288 = vst [vmem:[%s186 + $0x190] sm:$0xff] %v287
                %v289 = vld [vmem:[%s185 + $0x1098] sm:$0xff]
                %290 = vst [vmem:[%s186 + $0x198] sm:$0xff] %v289
                %v291 = vld [vmem:[%s185 + $0x11e0] sm:$0xff]
                %292 = vst [vmem:[%s186 + $0x1a0] sm:$0xff] %v291
                %v293 = vld [vmem:[%s185 + $0x11e8] sm:$0xff]
                %294 = vst [vmem:[%s186 + $0x1a8] sm:$0xff] %v293
                %v295 = vld [vmem:[%s185 + $0x11f0] sm:$0xff]
                %296 = vst [vmem:[%s186 + $0x1b0] sm:$0xff] %v295
                %v297 = vld [vmem:[%s185 + $0x11f8] sm:$0xff]
                %298 = vst [vmem:[%s186 + $0x1b8] sm:$0xff] %v297
                %v299 = vld [vmem:[%s185 + $0x1340] sm:$0xff]
                %300 = vst [vmem:[%s186 + $0x1c0] sm:$0xff] %v299
                %v301 = vld [vmem:[%s185 + $0x1348] sm:$0xff]
                %302 = vst [vmem:[%s186 + $0x1c8] sm:$0xff] %v301
                %v303 = vld [vmem:[%s185 + $0x1350] sm:$0xff]
                %304 = vst [vmem:[%s186 + $0x1d0] sm:$0xff] %v303
                %v305 = vld [vmem:[%s185 + $0x1358] sm:$0xff]
                %306 = vst [vmem:[%s186 + $0x1d8] sm:$0xff] %v305
                %v307 = vld [vmem:[%s185 + $0x14a0] sm:$0xff]
                %308 = vst [vmem:[%s186 + $0x1e0] sm:$0xff] %v307
                %v309 = vld [vmem:[%s185 + $0x14a8] sm:$0xff]
                %310 = vst [vmem:[%s186 + $0x1e8] sm:$0xff] %v309
                %v311 = vld [vmem:[%s185 + $0x14b0] sm:$0xff]
                %312 = vst [vmem:[%s186 + $0x1f0] sm:$0xff] %v311
                %v313 = vld [vmem:[%s185 + $0x14b8] sm:$0xff]
                %314 = vst [vmem:[%s186 + $0x1f8] sm:$0xff] %v313
                %v315 = vld [vmem:[%s185 + $0x1600] sm:$0xff]
                %316 = vst [vmem:[%s186 + $0x200] sm:$0xff] %v315
                %v317 = vld [vmem:[%s185 + $0x1608] sm:$0xff]
                %318 = vst [vmem:[%s186 + $0x208] sm:$0xff] %v317
                %v319 = vld [vmem:[%s185 + $0x1610] sm:$0xff]
                %320 = vst [vmem:[%s186 + $0x210] sm:$0xff] %v319
                %v321 = vld [vmem:[%s185 + $0x1618] sm:$0xff]
                %322 = vst [vmem:[%s186 + $0x218] sm:$0xff] %v321
                %v323 = vld [vmem:[%s185 + $0x1760] sm:$0xff]
                %324 = vst [vmem:[%s186 + $0x220] sm:$0xff] %v323
                %v325 = vld [vmem:[%s185 + $0x1768] sm:$0xff]
                %326 = vst [vmem:[%s186 + $0x228] sm:$0xff] %v325
                %v327 = vld [vmem:[%s185 + $0x1770] sm:$0xff]
                %328 = vst [vmem:[%s186 + $0x230] sm:$0xff] %v327
                %v329 = vld [vmem:[%s185 + $0x1778] sm:$0xff]
                %330 = vst [vmem:[%s186 + $0x238] sm:$0xff] %v329
                %v331 = vld [vmem:[%s185 + $0x18c0] sm:$0xff]
                %332 = vst [vmem:[%s186 + $0x240] sm:$0xff] %v331
                %v333 = vld [vmem:[%s185 + $0x18c8] sm:$0xff]
                %334 = vst [vmem:[%s186 + $0x248] sm:$0xff] %v333
                %v335 = vld [vmem:[%s185 + $0x18d0] sm:$0xff]
                %336 = vst [vmem:[%s186 + $0x250] sm:$0xff] %v335
                %v337 = vld [vmem:[%s185 + $0x18d8] sm:$0xff]
                %338 = vst [vmem:[%s186 + $0x258] sm:$0xff] %v337
                %v339 = vld [vmem:[%s185 + $0x1a20] sm:$0xff]
                %340 = vst [vmem:[%s186 + $0x260] sm:$0xff] %v339
                %v341 = vld [vmem:[%s185 + $0x1a28] sm:$0xff]
                %342 = vst [vmem:[%s186 + $0x268] sm:$0xff] %v341
                %v343 = vld [vmem:[%s185 + $0x1a30] sm:$0xff]
                %344 = vst [vmem:[%s186 + $0x270] sm:$0xff] %v343
                %v345 = vld [vmem:[%s185 + $0x1a38] sm:$0xff]
                %346 = vst [vmem:[%s186 + $0x278] sm:$0xff] %v345
                %v347 = vld [vmem:[%s185 + $0x1b80] sm:$0xff]
                %348 = vst [vmem:[%s186 + $0x280] sm:$0xff] %v347
                %v349 = vld [vmem:[%s185 + $0x1b88] sm:$0xff]
                %350 = vst [vmem:[%s186 + $0x288] sm:$0xff] %v349
                %v351 = vld [vmem:[%s185 + $0x1b90] sm:$0xff]
                %352 = vst [vmem:[%s186 + $0x290] sm:$0xff] %v351
                %v353 = vld [vmem:[%s185 + $0x1b98] sm:$0xff]
                %354 = vst [vmem:[%s186 + $0x298] sm:$0xff] %v353
                %v355 = vld [vmem:[%s185 + $0x1ce0] sm:$0xff]
                %356 = vst [vmem:[%s186 + $0x2a0] sm:$0xff] %v355
                %v357 = vld [vmem:[%s185 + $0x1ce8] sm:$0xff]
                %358 = vst [vmem:[%s186 + $0x2a8] sm:$0xff] %v357
                %v359 = vld [vmem:[%s185 + $0x1cf0] sm:$0xff]
                %360 = vst [vmem:[%s186 + $0x2b0] sm:$0xff] %v359
                %v361 = vld [vmem:[%s185 + $0x1cf8] sm:$0xff]
                %362 = vst [vmem:[%s186 + $0x2b8] sm:$0xff] %v361
                %v363 = vld [vmem:[%s185 + $0x1e40] sm:$0xff]
                %364 = vst [vmem:[%s186 + $0x2c0] sm:$0xff] %v363
                %v365 = vld [vmem:[%s185 + $0x1e48] sm:$0xff]
                %366 = vst [vmem:[%s186 + $0x2c8] sm:$0xff] %v365
                %v367 = vld [vmem:[%s185 + $0x1e50] sm:$0xff]
                %368 = vst [vmem:[%s186 + $0x2d0] sm:$0xff] %v367
                %v369 = vld [vmem:[%s185 + $0x1e58] sm:$0xff]
                %370 = vst [vmem:[%s186 + $0x2d8] sm:$0xff] %v369
                %v371 = vld [vmem:[%s185 + $0x1fa0] sm:$0xff]
                %372 = vst [vmem:[%s186 + $0x2e0] sm:$0xff] %v371
                %v373 = vld [vmem:[%s185 + $0x1fa8] sm:$0xff]
                %374 = vst [vmem:[%s186 + $0x2e8] sm:$0xff] %v373
                %v375 = vld [vmem:[%s185 + $0x1fb0] sm:$0xff]
                %376 = vst [vmem:[%s186 + $0x2f0] sm:$0xff] %v375
                %v377 = vld [vmem:[%s185 + $0x1fb8] sm:$0xff]
                %378 = vst [vmem:[%s186 + $0x2f8] sm:$0xff] %v377
                %v379 = vld [vmem:[%s185 + $0x2100] sm:$0xff]
                %380 = vst [vmem:[%s186 + $0x300] sm:$0xff] %v379
                %v381 = vld [vmem:[%s185 + $0x2108] sm:$0xff]
                %382 = vst [vmem:[%s186 + $0x308] sm:$0xff] %v381
                %v383 = vld [vmem:[%s185 + $0x2110] sm:$0xff]
                %384 = vst [vmem:[%s186 + $0x310] sm:$0xff] %v383
                %v385 = vld [vmem:[%s185 + $0x2118] sm:$0xff]
                %386 = vst [vmem:[%s186 + $0x318] sm:$0xff] %v385
                %v387 = vld [vmem:[%s185 + $0x2260] sm:$0xff]
                %388 = vst [vmem:[%s186 + $0x320] sm:$0xff] %v387
                %v389 = vld [vmem:[%s185 + $0x2268] sm:$0xff]
                %390 = vst [vmem:[%s186 + $0x328] sm:$0xff] %v389
                %v391 = vld [vmem:[%s185 + $0x2270] sm:$0xff]
                %392 = vst [vmem:[%s186 + $0x330] sm:$0xff] %v391
                %v393 = vld [vmem:[%s185 + $0x2278] sm:$0xff]
                %394 = vst [vmem:[%s186 + $0x338] sm:$0xff] %v393
                %v395 = vld [vmem:[%s185 + $0x23c0] sm:$0xff]
                %396 = vst [vmem:[%s186 + $0x340] sm:$0xff] %v395
                %v397 = vld [vmem:[%s185 + $0x23c8] sm:$0xff]
                %398 = vst [vmem:[%s186 + $0x348] sm:$0xff] %v397
                %v399 = vld [vmem:[%s185 + $0x23d0] sm:$0xff]
                %400 = vst [vmem:[%s186 + $0x350] sm:$0xff] %v399
                %v401 = vld [vmem:[%s185 + $0x23d8] sm:$0xff]
                %402 = vst [vmem:[%s186 + $0x358] sm:$0xff] %v401
                %v403 = vld [vmem:[%s185 + $0x2520] sm:$0xff]
                %404 = vst [vmem:[%s186 + $0x360] sm:$0xff] %v403
                %v405 = vld [vmem:[%s185 + $0x2528] sm:$0xff]
                %406 = vst [vmem:[%s186 + $0x368] sm:$0xff] %v405
                %v407 = vld [vmem:[%s185 + $0x2530] sm:$0xff]
                %408 = vst [vmem:[%s186 + $0x370] sm:$0xff] %v407
                %v409 = vld [vmem:[%s185 + $0x2538] sm:$0xff]
                %410 = vst [vmem:[%s186 + $0x378] sm:$0xff] %v409
                %v411 = vld [vmem:[%s185 + $0x2680] sm:$0xff]
                %412 = vst [vmem:[%s186 + $0x380] sm:$0xff] %v411
                %v413 = vld [vmem:[%s185 + $0x2688] sm:$0xff]
                %414 = vst [vmem:[%s186 + $0x388] sm:$0xff] %v413
                %v415 = vld [vmem:[%s185 + $0x2690] sm:$0xff]
                %416 = vst [vmem:[%s186 + $0x390] sm:$0xff] %v415
                %v417 = vld [vmem:[%s185 + $0x2698] sm:$0xff]
                %418 = vst [vmem:[%s186 + $0x398] sm:$0xff] %v417
                %v419 = vld [vmem:[%s185 + $0x27e0] sm:$0xff]
                %420 = vst [vmem:[%s186 + $0x3a0] sm:$0xff] %v419
                %v421 = vld [vmem:[%s185 + $0x27e8] sm:$0xff]
                %422 = vst [vmem:[%s186 + $0x3a8] sm:$0xff] %v421
                %v423 = vld [vmem:[%s185 + $0x27f0] sm:$0xff]
                %424 = vst [vmem:[%s186 + $0x3b0] sm:$0xff] %v423
                %v425 = vld [vmem:[%s185 + $0x27f8] sm:$0xff]
                %426 = vst [vmem:[%s186 + $0x3b8] sm:$0xff] %v425
                %v427 = vld [vmem:[%s185 + $0x2940] sm:$0xff]
                %428 = vst [vmem:[%s186 + $0x3c0] sm:$0xff] %v427
                %v429 = vld [vmem:[%s185 + $0x2948] sm:$0xff]
                %430 = vst [vmem:[%s186 + $0x3c8] sm:$0xff] %v429
                %v431 = vld [vmem:[%s185 + $0x2950] sm:$0xff]
                %432 = vst [vmem:[%s186 + $0x3d0] sm:$0xff] %v431
                %v433 = vld [vmem:[%s185 + $0x2958] sm:$0xff]
                %434 = vst [vmem:[%s186 + $0x3d8] sm:$0xff] %v433
                %v435 = vld [vmem:[%s185 + $0x2aa0] sm:$0xff]
                %436 = vst [vmem:[%s186 + $0x3e0] sm:$0xff] %v435
                %v437 = vld [vmem:[%s185 + $0x2aa8] sm:$0xff]
                %438 = vst [vmem:[%s186 + $0x3e8] sm:$0xff] %v437
                %v439 = vld [vmem:[%s185 + $0x2ab0] sm:$0xff]
                %440 = vst [vmem:[%s186 + $0x3f0] sm:$0xff] %v439
                %v441 = vld [vmem:[%s185 + $0x2ab8] sm:$0xff]
                %442 = vst [vmem:[%s186 + $0x3f8] sm:$0xff] %v441
              $region41: #{dqn_forward.4} parent=35 // loop_footer
                %s184 = sadd.s32 1, %s180
              $region42: #{dqn_forward.4} parent=35 // loop_footer_branch
                %179 = sbr.rel target = $region38
              $region43: #{dqn_forward.4} parent=35 // loop_exit
                _
            $region36: #{dqn_forward.4} parent=31 // pred_fallthru
              _
            // Predicated region
            $region44: #{dqn_forward.4} parent=31 // pred_check
              _
            $region45: #{dqn_forward.4} parent=31 // pred_check_branch
              %444 = sbr.rel target = $region47
            $region46: #{dqn_forward.4} parent=31 // pred_region
              _
            $region47: #{dqn_forward.4} parent=31 // pred_fallthru
              _
          $region32: #{dqn_forward.4} parent=27 // pred_fallthru
            _
          %445 = vnop
        $region28: #{dqn_forward.4} parent=23 // pred_fallthru
          _
      $region24: #{dqn_forward.4} parent=5 // pred_fallthru
        _
      %p446 = scmp.le.s32.totalorder 1, %s9
      %p447 = scmp.lt.s32.totalorder %s9, 12
      %p448 = pnand %p446, %p447
      %p449 = pneg %p448
      // Predicated region
      $region48: #{dqn_forward.4} parent=5 // pred_check
        _
      $region49: #{dqn_forward.4} parent=5 // pred_check_branch
        %451 = sbr.rel (%p448) target = $region51
      $region50: #{dqn_forward.4} parent=5 // pred_region
        %s452 = ssub.s32 %s9, 1
        %s453 = sand.u32 %s60, 1
        %s454 = sand.u32 %s60, 1
        %s455 = smul.addr %s454, 1024
        %s456 = scalar_lea.vmem [#allocation2], %s455
        // Predicated region
        $region52: #{dqn_forward.4} parent=50 // pred_check
          %p457 = pneg %p73
        $region53: #{dqn_forward.4} parent=50 // pred_check_branch
          %459 = sbr.rel (%p457) target = $region55
        $region54: #{dqn_forward.4} parent=50 // pred_region
          _
        $region55: #{dqn_forward.4} parent=50 // pred_fallthru
          _
        %s460 = smul.u32 4, %s18
        %p461 = scmp.lt.s32.totalorder %s460, 3
        %s462 = scalar_select %p461, %s460, 3
        %s463 = smul.addr %s462, 2
        %s464 = smul.addr %s463, 4
        %s465 = scalar_lea.vmem %s0, %s464
        %p466 = pneg %p47
        %p467 = pneg %p44
        %s468 = sand.u32 %s60, 1
        %s469 = sand.u32 %s60, 1
        %s470 = smul.addr %s469, 1024
        %s471 = scalar_lea.vmem [#allocation2], %s470
        %p472 = pneg %p73
        %p473 = pneg %p70
        %s474 = smul.u32 4, %s18
        %p475 = scmp.lt.s32.totalorder %s474, 3
        %s476 = scalar_select %p475, %s474, 3
        %s477 = smul.addr %s476, 8
        %s478 = scalar_lea.vmem %s2, %s477
        %p479 = pneg %p99
        %p480 = pneg %p96
        %p481 = pneg %p127
        %p482 = pneg %p124
        %s483 = sand.u32 %s114, 1
        %s484 = sand.u32 %s114, 1
        %s485 = smul.addr %s484, 128
        %s486 = scalar_lea.vmem [#allocation3], %s485
        %s487 = smul.u32 4, %s18
        %p488 = scmp.lt.s32.totalorder %s487, 3
        %s489 = scalar_select %p488, %s487, 3
        %s490 = smul.addr %s489, 2
        %s491 = smul.addr %s490, 4
        %s492 = scalar_lea.vmem %s0, %s491
        %s493 = smul.u32 4, %s18
        %s494 = smul.u32 8, %s19
        %s495 = smul.u32 4, %s18
        %p496 = scmp.lt.s32.totalorder %s495, 3
        %s497 = scalar_select %p496, %s495, 3
        %s498 = smul.addr %s497, 8
        %s499 = scalar_lea.vmem %s2, %s498
        %s500 = smul.u32 4, %s18
        %s501 = smul.u32 4, %s18
        %s502 = smul.u32 8, %s19
        %v503 = vld [vmem:[%s492] sm:$0xff]
        %v504 = vld [vmem:[%s492 + $0x8] sm:$0xff]
        %v505 = vld [vmem:[%s492 + $0x10] sm:$0xff]
        %v506 = vld [vmem:[%s492 + $0x18] sm:$0xff]
        %v507 = vld [vmem:[%s456] sm:$0xff]
        %v508 = vld [vmem:[%s456 + $0x8] sm:$0xff]
        %v509 = vld [vmem:[%s456 + $0x10] sm:$0xff]
        %v510 = vld [vmem:[%s456 + $0x18] sm:$0xff]
        %v511 = vld [vmem:[%s456 + $0x20] sm:$0xff]
        %v512 = vld [vmem:[%s456 + $0x28] sm:$0xff]
        %v513 = vld [vmem:[%s456 + $0x30] sm:$0xff]
        %v514 = vld [vmem:[%s456 + $0x38] sm:$0xff]
        %v515 = vld [vmem:[%s456 + $0x40] sm:$0xff]
        %v516 = vld [vmem:[%s456 + $0x48] sm:$0xff]
        %v517 = vld [vmem:[%s456 + $0x50] sm:$0xff]
        %v518 = vld [vmem:[%s456 + $0x58] sm:$0xff]
        %v519 = vld [vmem:[%s456 + $0x60] sm:$0xff]
        %v520 = vld [vmem:[%s456 + $0x68] sm:$0xff]
        %v521 = vld [vmem:[%s456 + $0x70] sm:$0xff]
        %v522 = vld [vmem:[%s456 + $0x78] sm:$0xff]
        %v523 = vld [vmem:[%s456 + $0x80] sm:$0xff]
        %v524 = vld [vmem:[%s456 + $0x88] sm:$0xff]
        %v525 = vld [vmem:[%s456 + $0x90] sm:$0xff]
        %v526 = vld [vmem:[%s456 + $0x98] sm:$0xff]
        %v527 = vld [vmem:[%s456 + $0xa0] sm:$0xff]
        %v528 = vld [vmem:[%s456 + $0xa8] sm:$0xff]
        %v529 = vld [vmem:[%s456 + $0xb0] sm:$0xff]
        %v530 = vld [vmem:[%s456 + $0xb8] sm:$0xff]
        %v531 = vld [vmem:[%s456 + $0xc0] sm:$0xff]
        %v532 = vld [vmem:[%s456 + $0xc8] sm:$0xff]
        %v533 = vld [vmem:[%s456 + $0xd0] sm:$0xff]
        %v534 = vld [vmem:[%s456 + $0xd8] sm:$0xff]
        %v535 = vld [vmem:[%s456 + $0xe0] sm:$0xff]
        %v536 = vld [vmem:[%s456 + $0xe8] sm:$0xff]
        %v537 = vld [vmem:[%s456 + $0xf0] sm:$0xff]
        %v538 = vld [vmem:[%s456 + $0xf8] sm:$0xff]
        %v539 = vld [vmem:[%s456 + $0x100] sm:$0xff]
        %v540 = vld [vmem:[%s456 + $0x108] sm:$0xff]
        %v541 = vld [vmem:[%s456 + $0x110] sm:$0xff]
        %v542 = vld [vmem:[%s456 + $0x118] sm:$0xff]
        %v543 = vld [vmem:[%s456 + $0x120] sm:$0xff]
        %v544 = vld [vmem:[%s456 + $0x128] sm:$0xff]
        %v545 = vld [vmem:[%s456 + $0x130] sm:$0xff]
        %v546 = vld [vmem:[%s456 + $0x138] sm:$0xff]
        %v547 = vld [vmem:[%s456 + $0x140] sm:$0xff]
        %v548 = vld [vmem:[%s456 + $0x148] sm:$0xff]
        %v549 = vld [vmem:[%s456 + $0x150] sm:$0xff]
        %v550 = vld [vmem:[%s456 + $0x158] sm:$0xff]
        %v551 = vld [vmem:[%s456 + $0x160] sm:$0xff]
        %v552 = vld [vmem:[%s456 + $0x168] sm:$0xff]
        %v553 = vld [vmem:[%s456 + $0x170] sm:$0xff]
        %v554 = vld [vmem:[%s456 + $0x178] sm:$0xff]
        %v555 = vld [vmem:[%s456 + $0x180] sm:$0xff]
        %v556 = vld [vmem:[%s456 + $0x188] sm:$0xff]
        %v557 = vld [vmem:[%s456 + $0x190] sm:$0xff]
        %v558 = vld [vmem:[%s456 + $0x198] sm:$0xff]
        %v559 = vld [vmem:[%s456 + $0x1a0] sm:$0xff]
        %v560 = vld [vmem:[%s456 + $0x1a8] sm:$0xff]
        %v561 = vld [vmem:[%s456 + $0x1b0] sm:$0xff]
        %v562 = vld [vmem:[%s456 + $0x1b8] sm:$0xff]
        %v563 = vld [vmem:[%s456 + $0x1c0] sm:$0xff]
        %v564 = vld [vmem:[%s456 + $0x1c8] sm:$0xff]
        %v565 = vld [vmem:[%s456 + $0x1d0] sm:$0xff]
        %v566 = vld [vmem:[%s456 + $0x1d8] sm:$0xff]
        %v567 = vld [vmem:[%s456 + $0x1e0] sm:$0xff]
        %v568 = vld [vmem:[%s456 + $0x1e8] sm:$0xff]
        %v569 = vld [vmem:[%s456 + $0x1f0] sm:$0xff]
        %v570 = vld [vmem:[%s456 + $0x1f8] sm:$0xff]
        %v571 = vld [vmem:[%s456 + $0x200] sm:$0xff]
        %v572 = vld [vmem:[%s456 + $0x208] sm:$0xff]
        %v573 = vld [vmem:[%s456 + $0x210] sm:$0xff]
        %v574 = vld [vmem:[%s456 + $0x218] sm:$0xff]
        %v575 = vld [vmem:[%s456 + $0x220] sm:$0xff]
        %v576 = vld [vmem:[%s456 + $0x228] sm:$0xff]
        %v577 = vld [vmem:[%s456 + $0x230] sm:$0xff]
        %v578 = vld [vmem:[%s456 + $0x238] sm:$0xff]
        %v579 = vld [vmem:[%s456 + $0x240] sm:$0xff]
        %v580 = vld [vmem:[%s456 + $0x248] sm:$0xff]
        %v581 = vld [vmem:[%s456 + $0x250] sm:$0xff]
        %v582 = vld [vmem:[%s456 + $0x258] sm:$0xff]
        %v583 = vld [vmem:[%s456 + $0x260] sm:$0xff]
        %v584 = vld [vmem:[%s456 + $0x268] sm:$0xff]
        %v585 = vld [vmem:[%s456 + $0x270] sm:$0xff]
        %v586 = vld [vmem:[%s456 + $0x278] sm:$0xff]
        %v587 = vld [vmem:[%s456 + $0x280] sm:$0xff]
        %v588 = vld [vmem:[%s456 + $0x288] sm:$0xff]
        %v589 = vld [vmem:[%s456 + $0x290] sm:$0xff]
        %v590 = vld [vmem:[%s456 + $0x298] sm:$0xff]
        %v591 = vld [vmem:[%s456 + $0x2a0] sm:$0xff]
        %v592 = vld [vmem:[%s456 + $0x2a8] sm:$0xff]
        %v593 = vld [vmem:[%s456 + $0x2b0] sm:$0xff]
        %v594 = vld [vmem:[%s456 + $0x2b8] sm:$0xff]
        %v595 = vld [vmem:[%s456 + $0x2c0] sm:$0xff]
        %v596 = vld [vmem:[%s456 + $0x2c8] sm:$0xff]
        %v597 = vld [vmem:[%s456 + $0x2d0] sm:$0xff]
        %v598 = vld [vmem:[%s456 + $0x2d8] sm:$0xff]
        %v599 = vld [vmem:[%s456 + $0x2e0] sm:$0xff]
        %v600 = vld [vmem:[%s456 + $0x2e8] sm:$0xff]
        %v601 = vld [vmem:[%s456 + $0x2f0] sm:$0xff]
        %v602 = vld [vmem:[%s456 + $0x2f8] sm:$0xff]
        %v603 = vld [vmem:[%s456 + $0x300] sm:$0xff]
        %v604 = vld [vmem:[%s456 + $0x308] sm:$0xff]
        %v605 = vld [vmem:[%s456 + $0x310] sm:$0xff]
        %v606 = vld [vmem:[%s456 + $0x318] sm:$0xff]
        %v607 = vld [vmem:[%s456 + $0x320] sm:$0xff]
        %v608 = vld [vmem:[%s456 + $0x328] sm:$0xff]
        %v609 = vld [vmem:[%s456 + $0x330] sm:$0xff]
        %v610 = vld [vmem:[%s456 + $0x338] sm:$0xff]
        %v611 = vld [vmem:[%s456 + $0x340] sm:$0xff]
        %v612 = vld [vmem:[%s456 + $0x348] sm:$0xff]
        %v613 = vld [vmem:[%s456 + $0x350] sm:$0xff]
        %v614 = vld [vmem:[%s456 + $0x358] sm:$0xff]
        %v615 = vld [vmem:[%s456 + $0x360] sm:$0xff]
        %v616 = vld [vmem:[%s456 + $0x368] sm:$0xff]
        %v617 = vld [vmem:[%s456 + $0x370] sm:$0xff]
        %v618 = vld [vmem:[%s456 + $0x378] sm:$0xff]
        %v619 = vld [vmem:[%s456 + $0x380] sm:$0xff]
        %v620 = vld [vmem:[%s456 + $0x388] sm:$0xff]
        %v621 = vld [vmem:[%s456 + $0x390] sm:$0xff]
        %v622 = vld [vmem:[%s456 + $0x398] sm:$0xff]
        %v623 = vld [vmem:[%s456 + $0x3a0] sm:$0xff]
        %v624 = vld [vmem:[%s456 + $0x3a8] sm:$0xff]
        %v625 = vld [vmem:[%s456 + $0x3b0] sm:$0xff]
        %v626 = vld [vmem:[%s456 + $0x3b8] sm:$0xff]
        %v627 = vld [vmem:[%s456 + $0x3c0] sm:$0xff]
        %v628 = vld [vmem:[%s456 + $0x3c8] sm:$0xff]
        %v629 = vld [vmem:[%s456 + $0x3d0] sm:$0xff]
        %v630 = vld [vmem:[%s456 + $0x3d8] sm:$0xff]
        %v631 = vld [vmem:[%s456 + $0x3e0] sm:$0xff]
        %v632 = vld [vmem:[%s456 + $0x3e8] sm:$0xff]
        %v633 = vld [vmem:[%s456 + $0x3f0] sm:$0xff]
        %v634 = vld [vmem:[%s456 + $0x3f8] sm:$0xff]
        %v635 = vld [vmem:[%s499] sm:$0xff]
        %v636 = vld [vmem:[%s499 + $0x8] sm:$0xff]
        %v637 = vld [vmem:[%s499 + $0x10] sm:$0xff]
        %v638 = vld [vmem:[%s499 + $0x18] sm:$0xff]
        %640 = vset.pattern.permute.xlu0 0
        %641 = vperm.xlu0 %640, %v635
        %v642 = vpop.permute.xlu0 %641
        %645 = vset.pattern.permute.xlu0 0
        %646 = vperm.xlu0 %645, %v636
        %v647 = vpop.permute.xlu0 %646
        %650 = vset.pattern.permute.xlu0 0
        %651 = vperm.xlu0 %650, %v637
        %v652 = vpop.permute.xlu0 %651
        %655 = vset.pattern.permute.xlu0 0
        %656 = vperm.xlu0 %655, %v638
        %v657 = vpop.permute.xlu0 %656
        %v663 = vunpack.c.l.b16 %v503
        %v664 = vunpack.c.h.b16 %v503
        %v665 = vunpack.c.l.b16 %v504
        %v666 = vunpack.c.h.b16 %v504
        %v667 = vunpack.c.l.b16 %v505
        %v668 = vunpack.c.h.b16 %v505
        %v669 = vunpack.c.l.b16 %v506
        %v670 = vunpack.c.h.b16 %v506
        %v671 = vpack.c.b16 %v665, %v663
        %v672 = vpack.c.b16 %v666, %v664
        %v673 = vpack.c.b16 %v669, %v667
        %v674 = vpack.c.b16 %v670, %v668
        %v807 = vunpack.c.l.b16 %v507
        %v808 = vunpack.c.h.b16 %v507
        %v809 = vunpack.c.l.b16 %v508
        %v810 = vunpack.c.h.b16 %v508
        %v811 = vunpack.c.l.b16 %v509
        %v812 = vunpack.c.h.b16 %v509
        %v813 = vunpack.c.l.b16 %v510
        %v814 = vunpack.c.h.b16 %v510
        %v815 = vunpack.c.l.b16 %v511
        %v816 = vunpack.c.h.b16 %v511
        %v817 = vunpack.c.l.b16 %v512
        %v818 = vunpack.c.h.b16 %v512
        %v819 = vunpack.c.l.b16 %v513
        %v820 = vunpack.c.h.b16 %v513
        %v821 = vunpack.c.l.b16 %v514
        %v822 = vunpack.c.h.b16 %v514
        %v823 = vunpack.c.l.b16 %v515
        %v824 = vunpack.c.h.b16 %v515
        %v825 = vunpack.c.l.b16 %v516
        %v826 = vunpack.c.h.b16 %v516
        %v827 = vunpack.c.l.b16 %v517
        %v828 = vunpack.c.h.b16 %v517
        %v829 = vunpack.c.l.b16 %v518
        %v830 = vunpack.c.h.b16 %v518
        %v831 = vunpack.c.l.b16 %v519
        %v832 = vunpack.c.h.b16 %v519
        %v833 = vunpack.c.l.b16 %v520
        %v834 = vunpack.c.h.b16 %v520
        %v835 = vunpack.c.l.b16 %v521
        %v836 = vunpack.c.h.b16 %v521
        %v837 = vunpack.c.l.b16 %v522
        %v838 = vunpack.c.h.b16 %v522
        %v839 = vunpack.c.l.b16 %v523
        %v840 = vunpack.c.h.b16 %v523
        %v841 = vunpack.c.l.b16 %v524
        %v842 = vunpack.c.h.b16 %v524
        %v843 = vunpack.c.l.b16 %v525
        %v844 = vunpack.c.h.b16 %v525
        %v845 = vunpack.c.l.b16 %v526
        %v846 = vunpack.c.h.b16 %v526
        %v847 = vunpack.c.l.b16 %v527
        %v848 = vunpack.c.h.b16 %v527
        %v849 = vunpack.c.l.b16 %v528
        %v850 = vunpack.c.h.b16 %v528
        %v851 = vunpack.c.l.b16 %v529
        %v852 = vunpack.c.h.b16 %v529
        %v853 = vunpack.c.l.b16 %v530
        %v854 = vunpack.c.h.b16 %v530
        %v855 = vunpack.c.l.b16 %v531
        %v856 = vunpack.c.h.b16 %v531
        %v857 = vunpack.c.l.b16 %v532
        %v858 = vunpack.c.h.b16 %v532
        %v859 = vunpack.c.l.b16 %v533
        %v860 = vunpack.c.h.b16 %v533
        %v861 = vunpack.c.l.b16 %v534
        %v862 = vunpack.c.h.b16 %v534
        %v863 = vunpack.c.l.b16 %v535
        %v864 = vunpack.c.h.b16 %v535
        %v865 = vunpack.c.l.b16 %v536
        %v866 = vunpack.c.h.b16 %v536
        %v867 = vunpack.c.l.b16 %v537
        %v868 = vunpack.c.h.b16 %v537
        %v869 = vunpack.c.l.b16 %v538
        %v870 = vunpack.c.h.b16 %v538
        %v871 = vunpack.c.l.b16 %v539
        %v872 = vunpack.c.h.b16 %v539
        %v873 = vunpack.c.l.b16 %v540
        %v874 = vunpack.c.h.b16 %v540
        %v875 = vunpack.c.l.b16 %v541
        %v876 = vunpack.c.h.b16 %v541
        %v877 = vunpack.c.l.b16 %v542
        %v878 = vunpack.c.h.b16 %v542
        %v879 = vunpack.c.l.b16 %v543
        %v880 = vunpack.c.h.b16 %v543
        %v881 = vunpack.c.l.b16 %v544
        %v882 = vunpack.c.h.b16 %v544
        %v883 = vunpack.c.l.b16 %v545
        %v884 = vunpack.c.h.b16 %v545
        %v885 = vunpack.c.l.b16 %v546
        %v886 = vunpack.c.h.b16 %v546
        %v887 = vunpack.c.l.b16 %v547
        %v888 = vunpack.c.h.b16 %v547
        %v889 = vunpack.c.l.b16 %v548
        %v890 = vunpack.c.h.b16 %v548
        %v891 = vunpack.c.l.b16 %v549
        %v892 = vunpack.c.h.b16 %v549
        %v893 = vunpack.c.l.b16 %v550
        %v894 = vunpack.c.h.b16 %v550
        %v895 = vunpack.c.l.b16 %v551
        %v896 = vunpack.c.h.b16 %v551
        %v897 = vunpack.c.l.b16 %v552
        %v898 = vunpack.c.h.b16 %v552
        %v899 = vunpack.c.l.b16 %v553
        %v900 = vunpack.c.h.b16 %v553
        %v901 = vunpack.c.l.b16 %v554
        %v902 = vunpack.c.h.b16 %v554
        %v903 = vunpack.c.l.b16 %v555
        %v904 = vunpack.c.h.b16 %v555
        %v905 = vunpack.c.l.b16 %v556
        %v906 = vunpack.c.h.b16 %v556
        %v907 = vunpack.c.l.b16 %v557
        %v908 = vunpack.c.h.b16 %v557
        %v909 = vunpack.c.l.b16 %v558
        %v910 = vunpack.c.h.b16 %v558
        %v911 = vunpack.c.l.b16 %v559
        %v912 = vunpack.c.h.b16 %v559
        %v913 = vunpack.c.l.b16 %v560
        %v914 = vunpack.c.h.b16 %v560
        %v915 = vunpack.c.l.b16 %v561
        %v916 = vunpack.c.h.b16 %v561
        %v917 = vunpack.c.l.b16 %v562
        %v918 = vunpack.c.h.b16 %v562
        %v919 = vunpack.c.l.b16 %v563
        %v920 = vunpack.c.h.b16 %v563
        %v921 = vunpack.c.l.b16 %v564
        %v922 = vunpack.c.h.b16 %v564
        %v923 = vunpack.c.l.b16 %v565
        %v924 = vunpack.c.h.b16 %v565
        %v925 = vunpack.c.l.b16 %v566
        %v926 = vunpack.c.h.b16 %v566
        %v927 = vunpack.c.l.b16 %v567
        %v928 = vunpack.c.h.b16 %v567
        %v929 = vunpack.c.l.b16 %v568
        %v930 = vunpack.c.h.b16 %v568
        %v931 = vunpack.c.l.b16 %v569
        %v932 = vunpack.c.h.b16 %v569
        %v933 = vunpack.c.l.b16 %v570
        %v934 = vunpack.c.h.b16 %v570
        %v935 = vunpack.c.l.b16 %v571
        %v936 = vunpack.c.h.b16 %v571
        %v937 = vunpack.c.l.b16 %v572
        %v938 = vunpack.c.h.b16 %v572
        %v939 = vunpack.c.l.b16 %v573
        %v940 = vunpack.c.h.b16 %v573
        %v941 = vunpack.c.l.b16 %v574
        %v942 = vunpack.c.h.b16 %v574
        %v943 = vunpack.c.l.b16 %v575
        %v944 = vunpack.c.h.b16 %v575
        %v945 = vunpack.c.l.b16 %v576
        %v946 = vunpack.c.h.b16 %v576
        %v947 = vunpack.c.l.b16 %v577
        %v948 = vunpack.c.h.b16 %v577
        %v949 = vunpack.c.l.b16 %v578
        %v950 = vunpack.c.h.b16 %v578
        %v951 = vunpack.c.l.b16 %v579
        %v952 = vunpack.c.h.b16 %v579
        %v953 = vunpack.c.l.b16 %v580
        %v954 = vunpack.c.h.b16 %v580
        %v955 = vunpack.c.l.b16 %v581
        %v956 = vunpack.c.h.b16 %v581
        %v957 = vunpack.c.l.b16 %v582
        %v958 = vunpack.c.h.b16 %v582
        %v959 = vunpack.c.l.b16 %v583
        %v960 = vunpack.c.h.b16 %v583
        %v961 = vunpack.c.l.b16 %v584
        %v962 = vunpack.c.h.b16 %v584
        %v963 = vunpack.c.l.b16 %v585
        %v964 = vunpack.c.h.b16 %v585
        %v965 = vunpack.c.l.b16 %v586
        %v966 = vunpack.c.h.b16 %v586
        %v967 = vunpack.c.l.b16 %v587
        %v968 = vunpack.c.h.b16 %v587
        %v969 = vunpack.c.l.b16 %v588
        %v970 = vunpack.c.h.b16 %v588
        %v971 = vunpack.c.l.b16 %v589
        %v972 = vunpack.c.h.b16 %v589
        %v973 = vunpack.c.l.b16 %v590
        %v974 = vunpack.c.h.b16 %v590
        %v975 = vunpack.c.l.b16 %v591
        %v976 = vunpack.c.h.b16 %v591
        %v977 = vunpack.c.l.b16 %v592
        %v978 = vunpack.c.h.b16 %v592
        %v979 = vunpack.c.l.b16 %v593
        %v980 = vunpack.c.h.b16 %v593
        %v981 = vunpack.c.l.b16 %v594
        %v982 = vunpack.c.h.b16 %v594
        %v983 = vunpack.c.l.b16 %v595
        %v984 = vunpack.c.h.b16 %v595
        %v985 = vunpack.c.l.b16 %v596
        %v986 = vunpack.c.h.b16 %v596
        %v987 = vunpack.c.l.b16 %v597
        %v988 = vunpack.c.h.b16 %v597
        %v989 = vunpack.c.l.b16 %v598
        %v990 = vunpack.c.h.b16 %v598
        %v991 = vunpack.c.l.b16 %v599
        %v992 = vunpack.c.h.b16 %v599
        %v993 = vunpack.c.l.b16 %v600
        %v994 = vunpack.c.h.b16 %v600
        %v995 = vunpack.c.l.b16 %v601
        %v996 = vunpack.c.h.b16 %v601
        %v997 = vunpack.c.l.b16 %v602
        %v998 = vunpack.c.h.b16 %v602
        %v999 = vunpack.c.l.b16 %v603
        %v1000 = vunpack.c.h.b16 %v603
        %v1001 = vunpack.c.l.b16 %v604
        %v1002 = vunpack.c.h.b16 %v604
        %v1003 = vunpack.c.l.b16 %v605
        %v1004 = vunpack.c.h.b16 %v605
        %v1005 = vunpack.c.l.b16 %v606
        %v1006 = vunpack.c.h.b16 %v606
        %v1007 = vunpack.c.l.b16 %v607
        %v1008 = vunpack.c.h.b16 %v607
        %v1009 = vunpack.c.l.b16 %v608
        %v1010 = vunpack.c.h.b16 %v608
        %v1011 = vunpack.c.l.b16 %v609
        %v1012 = vunpack.c.h.b16 %v609
        %v1013 = vunpack.c.l.b16 %v610
        %v1014 = vunpack.c.h.b16 %v610
        %v1015 = vunpack.c.l.b16 %v611
        %v1016 = vunpack.c.h.b16 %v611
        %v1017 = vunpack.c.l.b16 %v612
        %v1018 = vunpack.c.h.b16 %v612
        %v1019 = vunpack.c.l.b16 %v613
        %v1020 = vunpack.c.h.b16 %v613
        %v1021 = vunpack.c.l.b16 %v614
        %v1022 = vunpack.c.h.b16 %v614
        %v1023 = vunpack.c.l.b16 %v615
        %v1024 = vunpack.c.h.b16 %v615
        %v1025 = vunpack.c.l.b16 %v616
        %v1026 = vunpack.c.h.b16 %v616
        %v1027 = vunpack.c.l.b16 %v617
        %v1028 = vunpack.c.h.b16 %v617
        %v1029 = vunpack.c.l.b16 %v618
        %v1030 = vunpack.c.h.b16 %v618
        %v1031 = vunpack.c.l.b16 %v619
        %v1032 = vunpack.c.h.b16 %v619
        %v1033 = vunpack.c.l.b16 %v620
        %v1034 = vunpack.c.h.b16 %v620
        %v1035 = vunpack.c.l.b16 %v621
        %v1036 = vunpack.c.h.b16 %v621
        %v1037 = vunpack.c.l.b16 %v622
        %v1038 = vunpack.c.h.b16 %v622
        %v1039 = vunpack.c.l.b16 %v623
        %v1040 = vunpack.c.h.b16 %v623
        %v1041 = vunpack.c.l.b16 %v624
        %v1042 = vunpack.c.h.b16 %v624
        %v1043 = vunpack.c.l.b16 %v625
        %v1044 = vunpack.c.h.b16 %v625
        %v1045 = vunpack.c.l.b16 %v626
        %v1046 = vunpack.c.h.b16 %v626
        %v1047 = vunpack.c.l.b16 %v627
        %v1048 = vunpack.c.h.b16 %v627
        %v1049 = vunpack.c.l.b16 %v628
        %v1050 = vunpack.c.h.b16 %v628
        %v1051 = vunpack.c.l.b16 %v629
        %v1052 = vunpack.c.h.b16 %v629
        %v1053 = vunpack.c.l.b16 %v630
        %v1054 = vunpack.c.h.b16 %v630
        %v1055 = vunpack.c.l.b16 %v631
        %v1056 = vunpack.c.h.b16 %v631
        %v1057 = vunpack.c.l.b16 %v632
        %v1058 = vunpack.c.h.b16 %v632
        %v1059 = vunpack.c.l.b16 %v633
        %v1060 = vunpack.c.h.b16 %v633
        %v1061 = vunpack.c.l.b16 %v634
        %v1062 = vunpack.c.h.b16 %v634
        %v1063 = vpack.c.b16 %v815, %v807
        %v1064 = vpack.c.b16 %v816, %v808
        %v1065 = vpack.c.b16 %v817, %v809
        %v1066 = vpack.c.b16 %v818, %v810
        %v1067 = vpack.c.b16 %v819, %v811
        %v1068 = vpack.c.b16 %v820, %v812
        %v1069 = vpack.c.b16 %v821, %v813
        %v1070 = vpack.c.b16 %v822, %v814
        %v1071 = vpack.c.b16 %v831, %v823
        %v1072 = vpack.c.b16 %v832, %v824
        %v1073 = vpack.c.b16 %v833, %v825
        %v1074 = vpack.c.b16 %v834, %v826
        %v1075 = vpack.c.b16 %v835, %v827
        %v1076 = vpack.c.b16 %v836, %v828
        %v1077 = vpack.c.b16 %v837, %v829
        %v1078 = vpack.c.b16 %v838, %v830
        %v1079 = vpack.c.b16 %v847, %v839
        %v1080 = vpack.c.b16 %v848, %v840
        %v1081 = vpack.c.b16 %v849, %v841
        %v1082 = vpack.c.b16 %v850, %v842
        %v1083 = vpack.c.b16 %v851, %v843
        %v1084 = vpack.c.b16 %v852, %v844
        %v1085 = vpack.c.b16 %v853, %v845
        %v1086 = vpack.c.b16 %v854, %v846
        %v1087 = vpack.c.b16 %v863, %v855
        %v1088 = vpack.c.b16 %v864, %v856
        %v1089 = vpack.c.b16 %v865, %v857
        %v1090 = vpack.c.b16 %v866, %v858
        %v1091 = vpack.c.b16 %v867, %v859
        %v1092 = vpack.c.b16 %v868, %v860
        %v1093 = vpack.c.b16 %v869, %v861
        %v1094 = vpack.c.b16 %v870, %v862
        %v1095 = vpack.c.b16 %v879, %v871
        %v1096 = vpack.c.b16 %v880, %v872
        %v1097 = vpack.c.b16 %v881, %v873
        %v1098 = vpack.c.b16 %v882, %v874
        %v1099 = vpack.c.b16 %v883, %v875
        %v1100 = vpack.c.b16 %v884, %v876
        %v1101 = vpack.c.b16 %v885, %v877
        %v1102 = vpack.c.b16 %v886, %v878
        %v1103 = vpack.c.b16 %v895, %v887
        %v1104 = vpack.c.b16 %v896, %v888
        %v1105 = vpack.c.b16 %v897, %v889
        %v1106 = vpack.c.b16 %v898, %v890
        %v1107 = vpack.c.b16 %v899, %v891
        %v1108 = vpack.c.b16 %v900, %v892
        %v1109 = vpack.c.b16 %v901, %v893
        %v1110 = vpack.c.b16 %v902, %v894
        %v1111 = vpack.c.b16 %v911, %v903
        %v1112 = vpack.c.b16 %v912, %v904
        %v1113 = vpack.c.b16 %v913, %v905
        %v1114 = vpack.c.b16 %v914, %v906
        %v1115 = vpack.c.b16 %v915, %v907
        %v1116 = vpack.c.b16 %v916, %v908
        %v1117 = vpack.c.b16 %v917, %v909
        %v1118 = vpack.c.b16 %v918, %v910
        %v1119 = vpack.c.b16 %v927, %v919
        %v1120 = vpack.c.b16 %v928, %v920
        %v1121 = vpack.c.b16 %v929, %v921
        %v1122 = vpack.c.b16 %v930, %v922
        %v1123 = vpack.c.b16 %v931, %v923
        %v1124 = vpack.c.b16 %v932, %v924
        %v1125 = vpack.c.b16 %v933, %v925
        %v1126 = vpack.c.b16 %v934, %v926
        %v1127 = vpack.c.b16 %v943, %v935
        %v1128 = vpack.c.b16 %v944, %v936
        %v1129 = vpack.c.b16 %v945, %v937
        %v1130 = vpack.c.b16 %v946, %v938
        %v1131 = vpack.c.b16 %v947, %v939
        %v1132 = vpack.c.b16 %v948, %v940
        %v1133 = vpack.c.b16 %v949, %v941
        %v1134 = vpack.c.b16 %v950, %v942
        %v1135 = vpack.c.b16 %v959, %v951
        %v1136 = vpack.c.b16 %v960, %v952
        %v1137 = vpack.c.b16 %v961, %v953
        %v1138 = vpack.c.b16 %v962, %v954
        %v1139 = vpack.c.b16 %v963, %v955
        %v1140 = vpack.c.b16 %v964, %v956
        %v1141 = vpack.c.b16 %v965, %v957
        %v1142 = vpack.c.b16 %v966, %v958
        %v1143 = vpack.c.b16 %v975, %v967
        %v1144 = vpack.c.b16 %v976, %v968
        %v1145 = vpack.c.b16 %v977, %v969
        %v1146 = vpack.c.b16 %v978, %v970
        %v1147 = vpack.c.b16 %v979, %v971
        %v1148 = vpack.c.b16 %v980, %v972
        %v1149 = vpack.c.b16 %v981, %v973
        %v1150 = vpack.c.b16 %v982, %v974
        %v1151 = vpack.c.b16 %v991, %v983
        %v1152 = vpack.c.b16 %v992, %v984
        %v1153 = vpack.c.b16 %v993, %v985
        %v1154 = vpack.c.b16 %v994, %v986
        %v1155 = vpack.c.b16 %v995, %v987
        %v1156 = vpack.c.b16 %v996, %v988
        %v1157 = vpack.c.b16 %v997, %v989
        %v1158 = vpack.c.b16 %v998, %v990
        %v1159 = vpack.c.b16 %v1007, %v999
        %v1160 = vpack.c.b16 %v1008, %v1000
        %v1161 = vpack.c.b16 %v1009, %v1001
        %v1162 = vpack.c.b16 %v1010, %v1002
        %v1163 = vpack.c.b16 %v1011, %v1003
        %v1164 = vpack.c.b16 %v1012, %v1004
        %v1165 = vpack.c.b16 %v1013, %v1005
        %v1166 = vpack.c.b16 %v1014, %v1006
        %v1167 = vpack.c.b16 %v1023, %v1015
        %v1168 = vpack.c.b16 %v1024, %v1016
        %v1169 = vpack.c.b16 %v1025, %v1017
        %v1170 = vpack.c.b16 %v1026, %v1018
        %v1171 = vpack.c.b16 %v1027, %v1019
        %v1172 = vpack.c.b16 %v1028, %v1020
        %v1173 = vpack.c.b16 %v1029, %v1021
        %v1174 = vpack.c.b16 %v1030, %v1022
        %v1175 = vpack.c.b16 %v1039, %v1031
        %v1176 = vpack.c.b16 %v1040, %v1032
        %v1177 = vpack.c.b16 %v1041, %v1033
        %v1178 = vpack.c.b16 %v1042, %v1034
        %v1179 = vpack.c.b16 %v1043, %v1035
        %v1180 = vpack.c.b16 %v1044, %v1036
        %v1181 = vpack.c.b16 %v1045, %v1037
        %v1182 = vpack.c.b16 %v1046, %v1038
        %v1183 = vpack.c.b16 %v1055, %v1047
        %v1184 = vpack.c.b16 %v1056, %v1048
        %v1185 = vpack.c.b16 %v1057, %v1049
        %v1186 = vpack.c.b16 %v1058, %v1050
        %v1187 = vpack.c.b16 %v1059, %v1051
        %v1188 = vpack.c.b16 %v1060, %v1052
        %v1189 = vpack.c.b16 %v1061, %v1053
        %v1190 = vpack.c.b16 %v1062, %v1054
        %1319 = vmatprep.subr.bf16.mxu0 %v1064
        %1320 = vmatpush1.bf16.msra.mxu0 %v1063
        %1321 = vmatprep.subr.bf16.mxu0 %v1072
        %1322 = vmatpush1.bf16.msra.mxu0 %v1071
        %1323 = vmatprep.subr.bf16.mxu0 %v1080
        %1324 = vmatpush1.bf16.msra.mxu0 %v1079
        %1325 = vmatprep.subr.bf16.mxu0 %v1088
        %1326 = vmatpush1.bf16.msra.mxu0 %v1087
        %1327 = vmatprep.subr.bf16.mxu0 %v1096
        %1328 = vmatpush1.bf16.msra.mxu0 %v1095
        %1329 = vmatprep.subr.bf16.mxu0 %v1104
        %1330 = vmatpush1.bf16.msra.mxu0 %v1103
        %1331 = vmatprep.subr.bf16.mxu0 %v1112
        %1332 = vmatpush1.bf16.msra.mxu0 %v1111
        %1333 = vmatprep.subr.bf16.mxu0 %v1120
        %1334 = vmatpush1.bf16.msra.mxu0 %v1119
        %1335 = vmatprep.subr.bf16.mxu0 %v1128
        %1336 = vmatpush1.bf16.msra.mxu0 %v1127
        %1337 = vmatprep.subr.bf16.mxu0 %v1136
        %1338 = vmatpush1.bf16.msra.mxu0 %v1135
        %1339 = vmatprep.subr.bf16.mxu0 %v1144
        %1340 = vmatpush1.bf16.msra.mxu0 %v1143
        %1341 = vmatprep.subr.bf16.mxu0 %v1152
        %1342 = vmatpush1.bf16.msra.mxu0 %v1151
        %1343 = vmatprep.subr.bf16.mxu0 %v1160
        %1344 = vmatpush1.bf16.msra.mxu0 %v1159
        %1345 = vmatprep.subr.bf16.mxu0 %v1168
        %1346 = vmatpush1.bf16.msra.mxu0 %v1167
        %1347 = vmatprep.subr.bf16.mxu0 %v1176
        %1348 = vmatpush1.bf16.msra.mxu0 %v1175
        %1349 = vmatprep.subr.bf16.mxu0 %v1184
        %1350 = vmatpush1.bf16.msra.mxu0 %v1183
        %1351 = vmatprep.mubr.bf16.mxu0 %v672
        %1352 = vmatmul.mubr.bf16.gmra.mrb[0].mxu0 %v671
        %v1353 = vpop.f32.mrb[0].mxu0
        %v1354 = vadd.f32 %v642, %v1353
        %v1355 = vpop.f32.mrb[0].mxu0
        %v1356 = vadd.f32 %v642, %v1355
        %v1357 = vpop.f32.mrb[0].mxu0
        %v1358 = vadd.f32 %v647, %v1357
        %v1359 = vpop.f32.mrb[0].mxu0
        %v1360 = vadd.f32 %v647, %v1359
        %1361 = vmatprep.mubr.bf16.mxu0 %v674
        %1362 = vmatmul.mubr.bf16.gmra.mrb[0].mxu0 %v673
        %v1363 = vpop.f32.mrb[0].mxu0
        %v1364 = vadd.f32 %v652, %v1363
        %v1365 = vpop.f32.mrb[0].mxu0
        %v1366 = vadd.f32 %v652, %v1365
        %v1367 = vpop.f32.mrb[0].mxu0
        %v1368 = vadd.f32 %v657, %v1367
        %v1369 = vpop.f32.mrb[0].mxu0
        %v1370 = vadd.f32 %v657, %v1369
        %1371 = vdwg.mxu0
        %1372 = vmatprep.subr.bf16.mxu0 %v1066
        %1373 = vmatpush1.bf16.msra.mxu0 %v1065
        %1374 = vmatprep.subr.bf16.mxu0 %v1074
        %1375 = vmatpush1.bf16.msra.mxu0 %v1073
        %1376 = vmatprep.subr.bf16.mxu0 %v1082
        %1377 = vmatpush1.bf16.msra.mxu0 %v1081
        %1378 = vmatprep.subr.bf16.mxu0 %v1090
        %1379 = vmatpush1.bf16.msra.mxu0 %v1089
        %1380 = vmatprep.subr.bf16.mxu0 %v1098
        %1381 = vmatpush1.bf16.msra.mxu0 %v1097
        %1382 = vmatprep.subr.bf16.mxu0 %v1106
        %1383 = vmatpush1.bf16.msra.mxu0 %v1105
        %1384 = vmatprep.subr.bf16.mxu0 %v1114
        %1385 = vmatpush1.bf16.msra.mxu0 %v1113
        %1386 = vmatprep.subr.bf16.mxu0 %v1122
        %1387 = vmatpush1.bf16.msra.mxu0 %v1121
        %1388 = vmatprep.subr.bf16.mxu0 %v1130
        %1389 = vmatpush1.bf16.msra.mxu0 %v1129
        %1390 = vmatprep.subr.bf16.mxu0 %v1138
        %1391 = vmatpush1.bf16.msra.mxu0 %v1137
        %1392 = vmatprep.subr.bf16.mxu0 %v1146
        %1393 = vmatpush1.bf16.msra.mxu0 %v1145
        %1394 = vmatprep.subr.bf16.mxu0 %v1154
        %1395 = vmatpush1.bf16.msra.mxu0 %v1153
        %1396 = vmatprep.subr.bf16.mxu0 %v1162
        %1397 = vmatpush1.bf16.msra.mxu0 %v1161
        %1398 = vmatprep.subr.bf16.mxu0 %v1170
        %1399 = vmatpush1.bf16.msra.mxu0 %v1169
        %1400 = vmatprep.subr.bf16.mxu0 %v1178
        %1401 = vmatpush1.bf16.msra.mxu0 %v1177
        %1402 = vmatprep.subr.bf16.mxu0 %v1186
        %1403 = vmatpush1.bf16.msra.mxu0 %v1185
        %1404 = vmatprep.mubr.bf16.mxu0 %v672
        %1405 = vmatmul.mubr.bf16.gmra.mrb[0].mxu0 %v671
        %v1406 = vpop.f32.mrb[0].mxu0
        %v1407 = vadd.f32 %v642, %v1406
        %v1408 = vpop.f32.mrb[0].mxu0
        %v1409 = vadd.f32 %v642, %v1408
        %v1410 = vpop.f32.mrb[0].mxu0
        %v1411 = vadd.f32 %v647, %v1410
        %v1412 = vpop.f32.mrb[0].mxu0
        %v1413 = vadd.f32 %v647, %v1412
        %1414 = vmatprep.mubr.bf16.mxu0 %v674
        %1415 = vmatmul.mubr.bf16.gmra.mrb[0].mxu0 %v673
        %v1416 = vpop.f32.mrb[0].mxu0
        %v1417 = vadd.f32 %v652, %v1416
        %v1418 = vpop.f32.mrb[0].mxu0
        %v1419 = vadd.f32 %v652, %v1418
        %v1420 = vpop.f32.mrb[0].mxu0
        %v1421 = vadd.f32 %v657, %v1420
        %v1422 = vpop.f32.mrb[0].mxu0
        %v1423 = vadd.f32 %v657, %v1422
        %1424 = vdwg.mxu0
        %1425 = vmatprep.subr.bf16.mxu0 %v1068
        %1426 = vmatpush1.bf16.msra.mxu0 %v1067
        %1427 = vmatprep.subr.bf16.mxu0 %v1076
        %1428 = vmatpush1.bf16.msra.mxu0 %v1075
        %1429 = vmatprep.subr.bf16.mxu0 %v1084
        %1430 = vmatpush1.bf16.msra.mxu0 %v1083
        %1431 = vmatprep.subr.bf16.mxu0 %v1092
        %1432 = vmatpush1.bf16.msra.mxu0 %v1091
        %1433 = vmatprep.subr.bf16.mxu0 %v1100
        %1434 = vmatpush1.bf16.msra.mxu0 %v1099
        %1435 = vmatprep.subr.bf16.mxu0 %v1108
        %1436 = vmatpush1.bf16.msra.mxu0 %v1107
        %1437 = vmatprep.subr.bf16.mxu0 %v1116
        %1438 = vmatpush1.bf16.msra.mxu0 %v1115
        %1439 = vmatprep.subr.bf16.mxu0 %v1124
        %1440 = vmatpush1.bf16.msra.mxu0 %v1123
        %1441 = vmatprep.subr.bf16.mxu0 %v1132
        %1442 = vmatpush1.bf16.msra.mxu0 %v1131
        %1443 = vmatprep.subr.bf16.mxu0 %v1140
        %1444 = vmatpush1.bf16.msra.mxu0 %v1139
        %1445 = vmatprep.subr.bf16.mxu0 %v1148
        %1446 = vmatpush1.bf16.msra.mxu0 %v1147
        %1447 = vmatprep.subr.bf16.mxu0 %v1156
        %1448 = vmatpush1.bf16.msra.mxu0 %v1155
        %1449 = vmatprep.subr.bf16.mxu0 %v1164
        %1450 = vmatpush1.bf16.msra.mxu0 %v1163
        %1451 = vmatprep.subr.bf16.mxu0 %v1172
        %1452 = vmatpush1.bf16.msra.mxu0 %v1171
        %1453 = vmatprep.subr.bf16.mxu0 %v1180
        %1454 = vmatpush1.bf16.msra.mxu0 %v1179
        %1455 = vmatprep.subr.bf16.mxu0 %v1188
        %1456 = vmatpush1.bf16.msra.mxu0 %v1187
        %1457 = vmatprep.mubr.bf16.mxu0 %v672
        %1458 = vmatmul.mubr.bf16.gmra.mrb[0].mxu0 %v671
        %v1459 = vpop.f32.mrb[0].mxu0
        %v1460 = vadd.f32 %v642, %v1459
        %v1461 = vpop.f32.mrb[0].mxu0
        %v1462 = vadd.f32 %v642, %v1461
        %v1463 = vpop.f32.mrb[0].mxu0
        %v1464 = vadd.f32 %v647, %v1463
        %v1465 = vpop.f32.mrb[0].mxu0
        %v1466 = vadd.f32 %v647, %v1465
        %1467 = vmatprep.mubr.bf16.mxu0 %v674
        %1468 = vmatmul.mubr.bf16.gmra.mrb[0].mxu0 %v673
        %v1469 = vpop.f32.mrb[0].mxu0
        %v1470 = vadd.f32 %v652, %v1469
        %v1471 = vpop.f32.mrb[0].mxu0
        %v1472 = vadd.f32 %v652, %v1471
        %v1473 = vpop.f32.mrb[0].mxu0
        %v1474 = vadd.f32 %v657, %v1473
        %v1475 = vpop.f32.mrb[0].mxu0
        %v1476 = vadd.f32 %v657, %v1475
        %1477 = vdwg.mxu0
        %1478 = vmatprep.subr.bf16.mxu0 %v1070
        %1479 = vmatpush1.bf16.msra.mxu0 %v1069
        %1480 = vmatprep.subr.bf16.mxu0 %v1078
        %1481 = vmatpush1.bf16.msra.mxu0 %v1077
        %1482 = vmatprep.subr.bf16.mxu0 %v1086
        %1483 = vmatpush1.bf16.msra.mxu0 %v1085
        %1484 = vmatprep.subr.bf16.mxu0 %v1094
        %1485 = vmatpush1.bf16.msra.mxu0 %v1093
        %1486 = vmatprep.subr.bf16.mxu0 %v1102
        %1487 = vmatpush1.bf16.msra.mxu0 %v1101
        %1488 = vmatprep.subr.bf16.mxu0 %v1110
        %1489 = vmatpush1.bf16.msra.mxu0 %v1109
        %1490 = vmatprep.subr.bf16.mxu0 %v1118
        %1491 = vmatpush1.bf16.msra.mxu0 %v1117
        %1492 = vmatprep.subr.bf16.mxu0 %v1126
        %1493 = vmatpush1.bf16.msra.mxu0 %v1125
        %1494 = vmatprep.subr.bf16.mxu0 %v1134
        %1495 = vmatpush1.bf16.msra.mxu0 %v1133
        %1496 = vmatprep.subr.bf16.mxu0 %v1142
        %1497 = vmatpush1.bf16.msra.mxu0 %v1141
        %1498 = vmatprep.subr.bf16.mxu0 %v1150
        %1499 = vmatpush1.bf16.msra.mxu0 %v1149
        %1500 = vmatprep.subr.bf16.mxu0 %v1158
        %1501 = vmatpush1.bf16.msra.mxu0 %v1157
        %1502 = vmatprep.subr.bf16.mxu0 %v1166
        %1503 = vmatpush1.bf16.msra.mxu0 %v1165
        %1504 = vmatprep.subr.bf16.mxu0 %v1174
        %1505 = vmatpush1.bf16.msra.mxu0 %v1173
        %1506 = vmatprep.subr.bf16.mxu0 %v1182
        %1507 = vmatpush1.bf16.msra.mxu0 %v1181
        %1508 = vmatprep.subr.bf16.mxu0 %v1190
        %1509 = vmatpush1.bf16.msra.mxu0 %v1189
        %1510 = vmatprep.mubr.bf16.mxu0 %v672
        %1511 = vmatmul.mubr.bf16.gmra.mrb[0].mxu0 %v671
        %v1512 = vpop.f32.mrb[0].mxu0
        %v1513 = vadd.f32 %v642, %v1512
        %v1514 = vpop.f32.mrb[0].mxu0
        %v1515 = vadd.f32 %v642, %v1514
        %v1516 = vpop.f32.mrb[0].mxu0
        %v1517 = vadd.f32 %v647, %v1516
        %v1518 = vpop.f32.mrb[0].mxu0
        %v1519 = vadd.f32 %v647, %v1518
        %1520 = vmatprep.mubr.bf16.mxu0 %v674
        %1521 = vmatmul.mubr.bf16.gmra.mrb[0].mxu0 %v673
        %v1522 = vpop.f32.mrb[0].mxu0
        %v1523 = vadd.f32 %v652, %v1522
        %v1524 = vpop.f32.mrb[0].mxu0
        %v1525 = vadd.f32 %v652, %v1524
        %v1526 = vpop.f32.mrb[0].mxu0
        %v1527 = vadd.f32 %v657, %v1526
        %v1528 = vpop.f32.mrb[0].mxu0
        %v1529 = vadd.f32 %v657, %v1528
        %1530 = vdwg.mxu0
        %v1531 = vmax.f32 %v1354, 0.0
        %v1532 = vmax.f32 %v1356, 0.0
        %v1533 = vmax.f32 %v1407, 0.0
        %v1534 = vmax.f32 %v1409, 0.0
        %v1535 = vmax.f32 %v1460, 0.0
        %v1536 = vmax.f32 %v1462, 0.0
        %v1537 = vmax.f32 %v1513, 0.0
        %v1538 = vmax.f32 %v1515, 0.0
        %v1539 = vmax.f32 %v1358, 0.0
        %v1540 = vmax.f32 %v1360, 0.0
        %v1541 = vmax.f32 %v1411, 0.0
        %v1542 = vmax.f32 %v1413, 0.0
        %v1543 = vmax.f32 %v1464, 0.0
        %v1544 = vmax.f32 %v1466, 0.0
        %v1545 = vmax.f32 %v1517, 0.0
        %v1546 = vmax.f32 %v1519, 0.0
        %v1547 = vmax.f32 %v1364, 0.0
        %v1548 = vmax.f32 %v1366, 0.0
        %v1549 = vmax.f32 %v1417, 0.0
        %v1550 = vmax.f32 %v1419, 0.0
        %v1551 = vmax.f32 %v1470, 0.0
        %v1552 = vmax.f32 %v1472, 0.0
        %v1553 = vmax.f32 %v1523, 0.0
        %v1554 = vmax.f32 %v1525, 0.0
        %v1555 = vmax.f32 %v1368, 0.0
        %v1556 = vmax.f32 %v1370, 0.0
        %v1557 = vmax.f32 %v1421, 0.0
        %v1558 = vmax.f32 %v1423, 0.0
        %v1559 = vmax.f32 %v1474, 0.0
        %v1560 = vmax.f32 %v1476, 0.0
        %v1561 = vmax.f32 %v1527, 0.0
        %v1562 = vmax.f32 %v1529, 0.0
        %v1563 = vpack.c.bf16 %v1539, %v1531
        %v1564 = vpack.c.bf16 %v1540, %v1532
        %v1565 = vpack.c.bf16 %v1541, %v1533
        %v1566 = vpack.c.bf16 %v1542, %v1534
        %v1567 = vpack.c.bf16 %v1543, %v1535
        %v1568 = vpack.c.bf16 %v1544, %v1536
        %v1569 = vpack.c.bf16 %v1545, %v1537
        %v1570 = vpack.c.bf16 %v1546, %v1538
        %v1571 = vpack.c.bf16 %v1555, %v1547
        %v1572 = vpack.c.bf16 %v1556, %v1548
        %v1573 = vpack.c.bf16 %v1557, %v1549
        %v1574 = vpack.c.bf16 %v1558, %v1550
        %v1575 = vpack.c.bf16 %v1559, %v1551
        %v1576 = vpack.c.bf16 %v1560, %v1552
        %v1577 = vpack.c.bf16 %v1561, %v1553
        %v1578 = vpack.c.bf16 %v1562, %v1554
        %v1595 = vunpack.c.l.b16 %v1563
        %v1596 = vunpack.c.l.b16 %v1564
        %v1597 = vunpack.c.l.b16 %v1565
        %v1598 = vunpack.c.l.b16 %v1566
        %v1599 = vunpack.c.l.b16 %v1567
        %v1600 = vunpack.c.l.b16 %v1568
        %v1601 = vunpack.c.l.b16 %v1569
        %v1602 = vunpack.c.l.b16 %v1570
        %v1603 = vunpack.c.h.b16 %v1563
        %v1604 = vunpack.c.h.b16 %v1564
        %v1605 = vunpack.c.h.b16 %v1565
        %v1606 = vunpack.c.h.b16 %v1566
        %v1607 = vunpack.c.h.b16 %v1567
        %v1608 = vunpack.c.h.b16 %v1568
        %v1609 = vunpack.c.h.b16 %v1569
        %v1610 = vunpack.c.h.b16 %v1570
        %v1611 = vunpack.c.l.b16 %v1571
        %v1612 = vunpack.c.l.b16 %v1572
        %v1613 = vunpack.c.l.b16 %v1573
        %v1614 = vunpack.c.l.b16 %v1574
        %v1615 = vunpack.c.l.b16 %v1575
        %v1616 = vunpack.c.l.b16 %v1576
        %v1617 = vunpack.c.l.b16 %v1577
        %v1618 = vunpack.c.l.b16 %v1578
        %v1619 = vunpack.c.h.b16 %v1571
        %v1620 = vunpack.c.h.b16 %v1572
        %v1621 = vunpack.c.h.b16 %v1573
        %v1622 = vunpack.c.h.b16 %v1574
        %v1623 = vunpack.c.h.b16 %v1575
        %v1624 = vunpack.c.h.b16 %v1576
        %v1625 = vunpack.c.h.b16 %v1577
        %v1626 = vunpack.c.h.b16 %v1578
        %v1627 = vpack.c.b16 %v1596, %v1595
        %v1628 = vpack.c.b16 %v1598, %v1597
        %v1629 = vpack.c.b16 %v1600, %v1599
        %v1630 = vpack.c.b16 %v1602, %v1601
        %v1631 = vpack.c.b16 %v1604, %v1603
        %v1632 = vpack.c.b16 %v1606, %v1605
        %v1633 = vpack.c.b16 %v1608, %v1607
        %v1634 = vpack.c.b16 %v1610, %v1609
        %v1635 = vpack.c.b16 %v1612, %v1611
        %v1636 = vpack.c.b16 %v1614, %v1613
        %v1637 = vpack.c.b16 %v1616, %v1615
        %v1638 = vpack.c.b16 %v1618, %v1617
        %v1639 = vpack.c.b16 %v1620, %v1619
        %v1640 = vpack.c.b16 %v1622, %v1621
        %v1641 = vpack.c.b16 %v1624, %v1623
        %v1642 = vpack.c.b16 %v1626, %v1625
        %1659 = vst [vmem:[%s486] sm:$0xff] %v1627
        %1660 = vst [vmem:[%s486 + $0x8] sm:$0xff] %v1628
        %1661 = vst [vmem:[%s486 + $0x10] sm:$0xff] %v1629
        %1662 = vst [vmem:[%s486 + $0x18] sm:$0xff] %v1630
        %1663 = vst [vmem:[%s486 + $0x20] sm:$0xff] %v1631
        %1664 = vst [vmem:[%s486 + $0x28] sm:$0xff] %v1632
        %1665 = vst [vmem:[%s486 + $0x30] sm:$0xff] %v1633
        %1666 = vst [vmem:[%s486 + $0x38] sm:$0xff] %v1634
        %1667 = vst [vmem:[%s486 + $0x40] sm:$0xff] %v1635
        %1668 = vst [vmem:[%s486 + $0x48] sm:$0xff] %v1636
        %1669 = vst [vmem:[%s486 + $0x50] sm:$0xff] %v1637
        %1670 = vst [vmem:[%s486 + $0x58] sm:$0xff] %v1638
        %1671 = vst [vmem:[%s486 + $0x60] sm:$0xff] %v1639
        %1672 = vst [vmem:[%s486 + $0x68] sm:$0xff] %v1640
        %1673 = vst [vmem:[%s486 + $0x70] sm:$0xff] %v1641
        %1674 = vst [vmem:[%s486 + $0x78] sm:$0xff] %v1642
        %s1675 = sand.u32 %s114, 1
        %s1676 = sand.u32 %s114, 1
        %s1677 = smul.addr %s1676, 128
        %s1678 = scalar_lea.vmem [#allocation3], %s1677
        // Predicated region
        $region56: #{dqn_forward.4} parent=50 // pred_check
          %p1679 = pneg %p124
        $region57: #{dqn_forward.4} parent=50 // pred_check_branch
          %1681 = sbr.rel (%p1679) target = $region59
        $region58: #{dqn_forward.4} parent=50 // pred_region
          %s1682 = smul.u32 4, %s18
          %s1683 = smul.u32 8, %s19
          %s1684 = smul.addr %s1682, 88
          %s1685 = sadd.s32 %s1683, %s1684
          %s1686 = smul.addr %s1685, 4
          %s1687 = scalar_lea.vmem %s3, %s1686
          // Predicated region
          $region60: #{dqn_forward.4} parent=58 // pred_check
            _
          $region61: #{dqn_forward.4} parent=58 // pred_check_branch
            %1689 = sbr.rel (0) target = $region63
          $region62: #{dqn_forward.4} parent=58 // pred_region
            // Predicated region
            $region64: #{dqn_forward.4} parent=62 // pred_check
              _
            $region65: #{dqn_forward.4} parent=62 // pred_check_branch
              %1691 = sbr.rel (0) target = $region67
            $region66: #{dqn_forward.4} parent=62 // pred_region
              loop: start=0, step=1, limit=1
              $region68: #{dqn_forward.4} parent=66 // loop_pre_header
                _
              $region69: #{dqn_forward.4} parent=66 // loop_header
                %s1693 = sphi 0, %s1697
                %p1694 = scmp.ge.s32.totalorder %s1693, 1
                %s1698 = sphi %s1678, %s1678
                %s1699 = sphi %s1687, %s1687
              $region70: #{dqn_forward.4} parent=66 // loop_header_branch
                %1696 = sbr.rel (%p1694) target = $region74
              $region71: #{dqn_forward.4} parent=66 // loop_body
                %v1700 = vld [vmem:[%s1698] sm:$0xff]
                %1701 = vst [vmem:[%s1699] sm:$0xff] %v1700
                %v1702 = vld [vmem:[%s1698 + $0x8] sm:$0xff]
                %1703 = vst [vmem:[%s1699 + $0x8] sm:$0xff] %v1702
                %v1704 = vld [vmem:[%s1698 + $0x10] sm:$0xff]
                %1705 = vst [vmem:[%s1699 + $0x10] sm:$0xff] %v1704
                %v1706 = vld [vmem:[%s1698 + $0x18] sm:$0xff]
                %1707 = vst [vmem:[%s1699 + $0x18] sm:$0xff] %v1706
                %v1708 = vld [vmem:[%s1698 + $0x20] sm:$0xff]
                %1709 = vst [vmem:[%s1699 + $0x160] sm:$0xff] %v1708
                %v1710 = vld [vmem:[%s1698 + $0x28] sm:$0xff]
                %1711 = vst [vmem:[%s1699 + $0x168] sm:$0xff] %v1710
                %v1712 = vld [vmem:[%s1698 + $0x30] sm:$0xff]
                %1713 = vst [vmem:[%s1699 + $0x170] sm:$0xff] %v1712
                %v1714 = vld [vmem:[%s1698 + $0x38] sm:$0xff]
                %1715 = vst [vmem:[%s1699 + $0x178] sm:$0xff] %v1714
                %v1716 = vld [vmem:[%s1698 + $0x40] sm:$0xff]
                %1717 = vst [vmem:[%s1699 + $0x2c0] sm:$0xff] %v1716
                %v1718 = vld [vmem:[%s1698 + $0x48] sm:$0xff]
                %1719 = vst [vmem:[%s1699 + $0x2c8] sm:$0xff] %v1718
                %v1720 = vld [vmem:[%s1698 + $0x50] sm:$0xff]
                %1721 = vst [vmem:[%s1699 + $0x2d0] sm:$0xff] %v1720
                %v1722 = vld [vmem:[%s1698 + $0x58] sm:$0xff]
                %1723 = vst [vmem:[%s1699 + $0x2d8] sm:$0xff] %v1722
                %v1724 = vld [vmem:[%s1698 + $0x60] sm:$0xff]
                %1725 = vst [vmem:[%s1699 + $0x420] sm:$0xff] %v1724
                %v1726 = vld [vmem:[%s1698 + $0x68] sm:$0xff]
                %1727 = vst [vmem:[%s1699 + $0x428] sm:$0xff] %v1726
                %v1728 = vld [vmem:[%s1698 + $0x70] sm:$0xff]
                %1729 = vst [vmem:[%s1699 + $0x430] sm:$0xff] %v1728
                %v1730 = vld [vmem:[%s1698 + $0x78] sm:$0xff]
                %1731 = vst [vmem:[%s1699 + $0x438] sm:$0xff] %v1730
              $region72: #{dqn_forward.4} parent=66 // loop_footer
                %s1697 = sadd.s32 1, %s1693
              $region73: #{dqn_forward.4} parent=66 // loop_footer_branch
                %1692 = sbr.rel target = $region69
              $region74: #{dqn_forward.4} parent=66 // loop_exit
                _
            $region67: #{dqn_forward.4} parent=62 // pred_fallthru
              _
            // Predicated region
            $region75: #{dqn_forward.4} parent=62 // pred_check
              _
            $region76: #{dqn_forward.4} parent=62 // pred_check_branch
              %1733 = sbr.rel target = $region78
            $region77: #{dqn_forward.4} parent=62 // pred_region
              _
            $region78: #{dqn_forward.4} parent=62 // pred_fallthru
              _
          $region63: #{dqn_forward.4} parent=58 // pred_fallthru
            _
          %1734 = vnop
        $region59: #{dqn_forward.4} parent=50 // pred_fallthru
          _
      $region51: #{dqn_forward.4} parent=5 // pred_fallthru
        _
      %p1735 = scmp.le.s32.totalorder 2, %s9
      // Predicated region
      $region79: #{dqn_forward.4} parent=5 // pred_check
        %p1736 = pneg %p1735
      $region80: #{dqn_forward.4} parent=5 // pred_check_branch
        %1738 = sbr.rel (%p1736) target = $region82
      $region81: #{dqn_forward.4} parent=5 // pred_region
        %s1739 = ssub.s32 %s9, 2
        // Predicated region
        $region83: #{dqn_forward.4} parent=81 // pred_check
          %p1740 = pneg %p130
        $region84: #{dqn_forward.4} parent=81 // pred_check_branch
          %1742 = sbr.rel (%p1740) target = $region86
        $region85: #{dqn_forward.4} parent=81 // pred_region
          %s1743 = sand.u32 %s115, 1
          %s1744 = sand.u32 %s115, 1
          %s1745 = smul.addr %s1744, 128
          %s1746 = scalar_lea.vmem [#allocation3], %s1745
        $region86: #{dqn_forward.4} parent=81 // pred_fallthru
          _
      $region82: #{dqn_forward.4} parent=5 // pred_fallthru
        _
    $region6: #{dqn_forward.4} parent=1 // loop_footer
      %s13 = sadd.s32 1, %s9
    $region7: #{dqn_forward.4} parent=1 // loop_footer_branch
      %8 = sbr.rel target = $region3
    $region8: #{dqn_forward.4} parent=1 // loop_exit
      _

// kernel: dqn_forward.5
$region0: #{dqn_forward.5}
  #allocation0 [shape = 'u32[]', space=smem, size = 0x4, offset = 0x4, fixed_abs, tag = 'smem constant byte address 0x4 - core index']
  #allocation1 [shape = 'u32[144,128]{1,0:T(1,128)}', space=vmem, size = 0x12000, scoped, tag = 'internal scratch']
  %s0 = inlined_call_operand.vmem [shape: bf16[64,512], index: 0, kind: input, shape index: {}]
  %s1 = inlined_call_operand.vmem [shape: bf16[512,3072], index: 1, kind: input, shape index: {}]
  %s2 = inlined_call_operand.vmem [shape: f32[64,1], index: 2, kind: input, shape index: {}]
  %s3 = inlined_call_operand.vmem [shape: bf16[64,3072], index: 3, kind: output, shape index: {}]
  %s4 = sld [smem:[#allocation0]]
  $region87: #{dqn_forward.5} parent=0
    _
  %s6 = ssub.s32 1, %s4
  %s7 = scalar_select 0, %s6, %s4
  $region1: #{dqn_forward.5} parent=0
    #allocation2 [shape = 'u8[1048576]{0}', space=vmem, size = 0x100000, scoped, tag = 'input window, operand 1']
    #allocation3 [shape = 'u8[131072]{0}', space=vmem, size = 0x20000, scoped, tag = 'output window, operand 0']
    loop: start=0, step=1, limit=8
    $region2: #{dqn_forward.5} parent=1 // loop_pre_header
      _
    $region3: #{dqn_forward.5} parent=1 // loop_header
      %s9 = sphi 0, %s13
      %p10 = scmp.ge.s32.totalorder %s9, 8
      %s16 = sphi 0, %s28
      %s17 = sphi 0, %s24
      %s18 = sphi 0, %s16
      %s19 = sphi 0, %s17
      %s20 = sphi 0, %s18
      %s21 = sphi 0, %s19
      %s31 = sphi 0, %s33
      %s34 = sphi 0, %s31
      %s35 = sphi 0, %s34
      %s51 = sphi 0, %s35
      %s57 = sphi 0, %s59
      %s60 = sphi 0, %s57
      %s61 = sphi 0, %s60
      %s77 = sphi 0, %s61
      %s83 = sphi 0, %s85
      %s86 = sphi 0, %s83
      %s87 = sphi 0, %s86
      %s103 = sphi 0, %s87
      %s111 = sphi 0, %s113
      %s114 = sphi 0, %s111
      %s115 = sphi 0, %s114
      %s131 = sphi 0, %s115
    $region4: #{dqn_forward.5} parent=1 // loop_header_branch
      %12 = sbr.rel (%p10) target = $region8
    $region5: #{dqn_forward.5} parent=1 // loop_body
      %s14 = ssub.s32 %s9, 1
      %s15 = ssub.s32 %s9, 2
      %s22 = sadd.s32 1, %s17
      %p23 = scmp.ge.s32.totalorder %s22, 6
      %s24 = scalar_select %p23, 0, %s22
      %s25 = sadd.s32 1, %s16
      %s26 = scalar_select %p23, %s25, %s16
      %p27 = scmp.ge.s32.totalorder %s26, 1
      %s28 = scalar_select %p27, 0, %s26
      %s29 = ssub.s32 %s16, %s28
      %p30 = scmp.eq.s32.totalorder %s29, 0
      %s32 = sadd.s32 %s31, 1
      %s33 = scalar_select %p30, %s31, %s32
      %p36 = pneg %p30
      %p37 = scmp.eq.s32.totalorder %s9, 5
      %p38 = por %p36, %p37
      %p39 = scmp.ne.s32.totalorder %s31, %s34
      %p40 = scmp.eq.s32.totalorder %s9, 0
      %p41 = por %p39, %p40
      %p42 = scmp.ne.s32.totalorder %s31, %s34
      %p43 = scmp.eq.s32.totalorder %s14, 5
      %p44 = por %p42, %p43
      %p45 = scmp.ne.s32.totalorder %s34, %s35
      %p46 = scmp.eq.s32.totalorder %s14, 0
      %p47 = por %p45, %p46
      %p48 = scmp.ne.s32.totalorder %s34, %s35
      %p49 = scmp.eq.s32.totalorder %s15, 5
      %p50 = por %p48, %p49
      %p52 = scmp.ne.s32.totalorder %s35, %s51
      %p53 = scmp.eq.s32.totalorder %s15, 0
      %p54 = por %p52, %p53
      %s55 = ssub.s32 %s17, %s24
      %p56 = scmp.eq.s32.totalorder %s55, 0
      %s58 = sadd.s32 %s57, 1
      %s59 = scalar_select %p56, %s57, %s58
      %p62 = pneg %p56
      %p63 = scmp.eq.s32.totalorder %s9, 5
      %p64 = por %p62, %p63
      %p65 = scmp.ne.s32.totalorder %s57, %s60
      %p66 = scmp.eq.s32.totalorder %s9, 0
      %p67 = por %p65, %p66
      %p68 = scmp.ne.s32.totalorder %s57, %s60
      %p69 = scmp.eq.s32.totalorder %s14, 5
      %p70 = por %p68, %p69
      %p71 = scmp.ne.s32.totalorder %s60, %s61
      %p72 = scmp.eq.s32.totalorder %s14, 0
      %p73 = por %p71, %p72
      %p74 = scmp.ne.s32.totalorder %s60, %s61
      %p75 = scmp.eq.s32.totalorder %s15, 5
      %p76 = por %p74, %p75
      %p78 = scmp.ne.s32.totalorder %s61, %s77
      %p79 = scmp.eq.s32.totalorder %s15, 0
      %p80 = por %p78, %p79
      %s81 = ssub.s32 %s16, %s28
      %p82 = scmp.eq.s32.totalorder %s81, 0
      %s84 = sadd.s32 %s83, 1
      %s85 = scalar_select %p82, %s83, %s84
      %p88 = pneg %p82
      %p89 = scmp.eq.s32.totalorder %s9, 5
      %p90 = por %p88, %p89
      %p91 = scmp.ne.s32.totalorder %s83, %s86
      %p92 = scmp.eq.s32.totalorder %s9, 0
      %p93 = por %p91, %p92
      %p94 = scmp.ne.s32.totalorder %s83, %s86
      %p95 = scmp.eq.s32.totalorder %s14, 5
      %p96 = por %p94, %p95
      %p97 = scmp.ne.s32.totalorder %s86, %s87
      %p98 = scmp.eq.s32.totalorder %s14, 0
      %p99 = por %p97, %p98
      %p100 = scmp.ne.s32.totalorder %s86, %s87
      %p101 = scmp.eq.s32.totalorder %s15, 5
      %p102 = por %p100, %p101
      %p104 = scmp.ne.s32.totalorder %s87, %s103
      %p105 = scmp.eq.s32.totalorder %s15, 0
      %p106 = por %p104, %p105
      %s107 = ssub.s32 %s16, %s28
      %s108 = ssub.s32 %s17, %s24
      %s109 = sor.u32 %s107, %s108
      %p110 = scmp.eq.s32.totalorder %s109, 0
      %s112 = sadd.s32 %s111, 1
      %s113 = scalar_select %p110, %s111, %s112
      %p116 = pneg %p110
      %p117 = scmp.eq.s32.totalorder %s9, 5
      %p118 = por %p116, %p117
      %p119 = scmp.ne.s32.totalorder %s111, %s114
      %p120 = scmp.eq.s32.totalorder %s9, 0
      %p121 = por %p119, %p120
      %p122 = scmp.ne.s32.totalorder %s111, %s114
      %p123 = scmp.eq.s32.totalorder %s14, 5
      %p124 = por %p122, %p123
      %p125 = scmp.ne.s32.totalorder %s114, %s115
      %p126 = scmp.eq.s32.totalorder %s14, 0
      %p127 = por %p125, %p126
      %p128 = scmp.ne.s32.totalorder %s114, %s115
      %p129 = scmp.eq.s32.totalorder %s15, 5
      %p130 = por %p128, %p129
      %p132 = scmp.ne.s32.totalorder %s115, %s131
      %p133 = scmp.eq.s32.totalorder %s15, 0
      %p134 = por %p132, %p133
      %p135 = scmp.le.s32.totalorder 1, %s9
      %p136 = scmp.lt.s32.totalorder %s9, 7
      %p137 = pnand %p135, %p136
      %p138 = pneg %p137
      // Predicated region
      $region9: #{dqn_forward.5} parent=5 // pred_check
        _
      $region10: #{dqn_forward.5} parent=5 // pred_check_branch
        %140 = sbr.rel (%p137) target = $region12
      $region11: #{dqn_forward.5} parent=5 // pred_region
        %s141 = ssub.s32 %s9, 1
        // Predicated region
        $region13: #{dqn_forward.5} parent=11 // pred_check
          %p142 = pneg %p47
        $region14: #{dqn_forward.5} parent=11 // pred_check_branch
          %144 = sbr.rel (%p142) target = $region16
        $region15: #{dqn_forward.5} parent=11 // pred_region
          %s145 = smul.u32 8, %s18
          %p146 = scmp.lt.s32.totalorder %s145, 7
          %s147 = scalar_select %p146, %s145, 7
          %s148 = smul.addr %s147, 4
          %s149 = smul.addr %s148, 4
          %s150 = scalar_lea.vmem %s0, %s149
          %s151 = smul.u32 8, %s18
        $region16: #{dqn_forward.5} parent=11 // pred_fallthru
          _
        // Predicated region
        $region17: #{dqn_forward.5} parent=11 // pred_check
          %p152 = pneg %p99
        $region18: #{dqn_forward.5} parent=11 // pred_check_branch
          %154 = sbr.rel (%p152) target = $region20
        $region19: #{dqn_forward.5} parent=11 // pred_region
          %s155 = smul.u32 8, %s18
          %p156 = scmp.lt.s32.totalorder %s155, 7
          %s157 = scalar_select %p156, %s155, 7
          %s158 = smul.addr %s157, 8
          %s159 = scalar_lea.vmem %s2, %s158
          %s160 = smul.u32 8, %s18
        $region20: #{dqn_forward.5} parent=11 // pred_fallthru
          _
      $region12: #{dqn_forward.5} parent=5 // pred_fallthru
        _
      %p161 = scmp.lt.s32.totalorder %s9, 6
      // Predicated region
      $region21: #{dqn_forward.5} parent=5 // pred_check
        %p162 = pneg %p161
      $region22: #{dqn_forward.5} parent=5 // pred_check_branch
        %164 = sbr.rel (%p162) target = $region24
      $region23: #{dqn_forward.5} parent=5 // pred_region
        // Predicated region
        $region25: #{dqn_forward.5} parent=23 // pred_check
          %p165 = pneg %p67
        $region26: #{dqn_forward.5} parent=23 // pred_check_branch
          %167 = sbr.rel (%p165) target = $region28
        $region27: #{dqn_forward.5} parent=23 // pred_region
          %s168 = sand.u32 %s57, 1
          %s169 = sand.u32 %s57, 1
          %s170 = smul.addr %s169, 1024
          %s171 = scalar_lea.vmem [#allocation2], %s170
          %s172 = smul.u32 4, %s17
          %s173 = smul.addr %s172, 4
          %s174 = scalar_lea.vmem %s1, %s173
          // Predicated region
          $region29: #{dqn_forward.5} parent=27 // pred_check
            _
          $region30: #{dqn_forward.5} parent=27 // pred_check_branch
            %176 = sbr.rel (0) target = $region32
          $region31: #{dqn_forward.5} parent=27 // pred_region
            // Predicated region
            $region33: #{dqn_forward.5} parent=31 // pred_check
              _
            $region34: #{dqn_forward.5} parent=31 // pred_check_branch
              %178 = sbr.rel (0) target = $region36
            $region35: #{dqn_forward.5} parent=31 // pred_region
              loop: start=0, step=1, limit=1
              $region37: #{dqn_forward.5} parent=35 // loop_pre_header
                _
              $region38: #{dqn_forward.5} parent=35 // loop_header
                %s180 = sphi 0, %s184
                %p181 = scmp.ge.s32.totalorder %s180, 1
                %s185 = sphi %s174, %s174
                %s186 = sphi %s171, %s171
              $region39: #{dqn_forward.5} parent=35 // loop_header_branch
                %183 = sbr.rel (%p181) target = $region43
              $region40: #{dqn_forward.5} parent=35 // loop_body
                %v187 = vld [vmem:[%s185] sm:$0xff]
                %188 = vst [vmem:[%s186] sm:$0xff] %v187
                %v189 = vld [vmem:[%s185 + $0x8] sm:$0xff]
                %190 = vst [vmem:[%s186 + $0x8] sm:$0xff] %v189
                %v191 = vld [vmem:[%s185 + $0x60] sm:$0xff]
                %192 = vst [vmem:[%s186 + $0x10] sm:$0xff] %v191
                %v193 = vld [vmem:[%s185 + $0x68] sm:$0xff]
                %194 = vst [vmem:[%s186 + $0x18] sm:$0xff] %v193
                %v195 = vld [vmem:[%s185 + $0xc0] sm:$0xff]
                %196 = vst [vmem:[%s186 + $0x20] sm:$0xff] %v195
                %v197 = vld [vmem:[%s185 + $0xc8] sm:$0xff]
                %198 = vst [vmem:[%s186 + $0x28] sm:$0xff] %v197
                %v199 = vld [vmem:[%s185 + $0x120] sm:$0xff]
                %200 = vst [vmem:[%s186 + $0x30] sm:$0xff] %v199
                %v201 = vld [vmem:[%s185 + $0x128] sm:$0xff]
                %202 = vst [vmem:[%s186 + $0x38] sm:$0xff] %v201
                %v203 = vld [vmem:[%s185 + $0x180] sm:$0xff]
                %204 = vst [vmem:[%s186 + $0x40] sm:$0xff] %v203
                %v205 = vld [vmem:[%s185 + $0x188] sm:$0xff]
                %206 = vst [vmem:[%s186 + $0x48] sm:$0xff] %v205
                %v207 = vld [vmem:[%s185 + $0x1e0] sm:$0xff]
                %208 = vst [vmem:[%s186 + $0x50] sm:$0xff] %v207
                %v209 = vld [vmem:[%s185 + $0x1e8] sm:$0xff]
                %210 = vst [vmem:[%s186 + $0x58] sm:$0xff] %v209
                %v211 = vld [vmem:[%s185 + $0x240] sm:$0xff]
                %212 = vst [vmem:[%s186 + $0x60] sm:$0xff] %v211
                %v213 = vld [vmem:[%s185 + $0x248] sm:$0xff]
                %214 = vst [vmem:[%s186 + $0x68] sm:$0xff] %v213
                %v215 = vld [vmem:[%s185 + $0x2a0] sm:$0xff]
                %216 = vst [vmem:[%s186 + $0x70] sm:$0xff] %v215
                %v217 = vld [vmem:[%s185 + $0x2a8] sm:$0xff]
                %218 = vst [vmem:[%s186 + $0x78] sm:$0xff] %v217
                %v219 = vld [vmem:[%s185 + $0x300] sm:$0xff]
                %220 = vst [vmem:[%s186 + $0x80] sm:$0xff] %v219
                %v221 = vld [vmem:[%s185 + $0x308] sm:$0xff]
                %222 = vst [vmem:[%s186 + $0x88] sm:$0xff] %v221
                %v223 = vld [vmem:[%s185 + $0x360] sm:$0xff]
                %224 = vst [vmem:[%s186 + $0x90] sm:$0xff] %v223
                %v225 = vld [vmem:[%s185 + $0x368] sm:$0xff]
                %226 = vst [vmem:[%s186 + $0x98] sm:$0xff] %v225
                %v227 = vld [vmem:[%s185 + $0x3c0] sm:$0xff]
                %228 = vst [vmem:[%s186 + $0xa0] sm:$0xff] %v227
                %v229 = vld [vmem:[%s185 + $0x3c8] sm:$0xff]
                %230 = vst [vmem:[%s186 + $0xa8] sm:$0xff] %v229
                %v231 = vld [vmem:[%s185 + $0x420] sm:$0xff]
                %232 = vst [vmem:[%s186 + $0xb0] sm:$0xff] %v231
                %v233 = vld [vmem:[%s185 + $0x428] sm:$0xff]
                %234 = vst [vmem:[%s186 + $0xb8] sm:$0xff] %v233
                %v235 = vld [vmem:[%s185 + $0x480] sm:$0xff]
                %236 = vst [vmem:[%s186 + $0xc0] sm:$0xff] %v235
                %v237 = vld [vmem:[%s185 + $0x488] sm:$0xff]
                %238 = vst [vmem:[%s186 + $0xc8] sm:$0xff] %v237
                %v239 = vld [vmem:[%s185 + $0x4e0] sm:$0xff]
                %240 = vst [vmem:[%s186 + $0xd0] sm:$0xff] %v239
                %v241 = vld [vmem:[%s185 + $0x4e8] sm:$0xff]
                %242 = vst [vmem:[%s186 + $0xd8] sm:$0xff] %v241
                %v243 = vld [vmem:[%s185 + $0x540] sm:$0xff]
                %244 = vst [vmem:[%s186 + $0xe0] sm:$0xff] %v243
                %v245 = vld [vmem:[%s185 + $0x548] sm:$0xff]
                %246 = vst [vmem:[%s186 + $0xe8] sm:$0xff] %v245
                %v247 = vld [vmem:[%s185 + $0x5a0] sm:$0xff]
                %248 = vst [vmem:[%s186 + $0xf0] sm:$0xff] %v247
                %v249 = vld [vmem:[%s185 + $0x5a8] sm:$0xff]
                %250 = vst [vmem:[%s186 + $0xf8] sm:$0xff] %v249
                %v251 = vld [vmem:[%s185 + $0x600] sm:$0xff]
                %252 = vst [vmem:[%s186 + $0x100] sm:$0xff] %v251
                %v253 = vld [vmem:[%s185 + $0x608] sm:$0xff]
                %254 = vst [vmem:[%s186 + $0x108] sm:$0xff] %v253
                %v255 = vld [vmem:[%s185 + $0x660] sm:$0xff]
                %256 = vst [vmem:[%s186 + $0x110] sm:$0xff] %v255
                %v257 = vld [vmem:[%s185 + $0x668] sm:$0xff]
                %258 = vst [vmem:[%s186 + $0x118] sm:$0xff] %v257
                %v259 = vld [vmem:[%s185 + $0x6c0] sm:$0xff]
                %260 = vst [vmem:[%s186 + $0x120] sm:$0xff] %v259
                %v261 = vld [vmem:[%s185 + $0x6c8] sm:$0xff]
                %262 = vst [vmem:[%s186 + $0x128] sm:$0xff] %v261
                %v263 = vld [vmem:[%s185 + $0x720] sm:$0xff]
                %264 = vst [vmem:[%s186 + $0x130] sm:$0xff] %v263
                %v265 = vld [vmem:[%s185 + $0x728] sm:$0xff]
                %266 = vst [vmem:[%s186 + $0x138] sm:$0xff] %v265
                %v267 = vld [vmem:[%s185 + $0x780] sm:$0xff]
                %268 = vst [vmem:[%s186 + $0x140] sm:$0xff] %v267
                %v269 = vld [vmem:[%s185 + $0x788] sm:$0xff]
                %270 = vst [vmem:[%s186 + $0x148] sm:$0xff] %v269
                %v271 = vld [vmem:[%s185 + $0x7e0] sm:$0xff]
                %272 = vst [vmem:[%s186 + $0x150] sm:$0xff] %v271
                %v273 = vld [vmem:[%s185 + $0x7e8] sm:$0xff]
                %274 = vst [vmem:[%s186 + $0x158] sm:$0xff] %v273
                %v275 = vld [vmem:[%s185 + $0x840] sm:$0xff]
                %276 = vst [vmem:[%s186 + $0x160] sm:$0xff] %v275
                %v277 = vld [vmem:[%s185 + $0x848] sm:$0xff]
                %278 = vst [vmem:[%s186 + $0x168] sm:$0xff] %v277
                %v279 = vld [vmem:[%s185 + $0x8a0] sm:$0xff]
                %280 = vst [vmem:[%s186 + $0x170] sm:$0xff] %v279
                %v281 = vld [vmem:[%s185 + $0x8a8] sm:$0xff]
                %282 = vst [vmem:[%s186 + $0x178] sm:$0xff] %v281
                %v283 = vld [vmem:[%s185 + $0x900] sm:$0xff]
                %284 = vst [vmem:[%s186 + $0x180] sm:$0xff] %v283
                %v285 = vld [vmem:[%s185 + $0x908] sm:$0xff]
                %286 = vst [vmem:[%s186 + $0x188] sm:$0xff] %v285
                %v287 = vld [vmem:[%s185 + $0x960] sm:$0xff]
                %288 = vst [vmem:[%s186 + $0x190] sm:$0xff] %v287
                %v289 = vld [vmem:[%s185 + $0x968] sm:$0xff]
                %290 = vst [vmem:[%s186 + $0x198] sm:$0xff] %v289
                %v291 = vld [vmem:[%s185 + $0x9c0] sm:$0xff]
                %292 = vst [vmem:[%s186 + $0x1a0] sm:$0xff] %v291
                %v293 = vld [vmem:[%s185 + $0x9c8] sm:$0xff]
                %294 = vst [vmem:[%s186 + $0x1a8] sm:$0xff] %v293
                %v295 = vld [vmem:[%s185 + $0xa20] sm:$0xff]
                %296 = vst [vmem:[%s186 + $0x1b0] sm:$0xff] %v295
                %v297 = vld [vmem:[%s185 + $0xa28] sm:$0xff]
                %298 = vst [vmem:[%s186 + $0x1b8] sm:$0xff] %v297
                %v299 = vld [vmem:[%s185 + $0xa80] sm:$0xff]
                %300 = vst [vmem:[%s186 + $0x1c0] sm:$0xff] %v299
                %v301 = vld [vmem:[%s185 + $0xa88] sm:$0xff]
                %302 = vst [vmem:[%s186 + $0x1c8] sm:$0xff] %v301
                %v303 = vld [vmem:[%s185 + $0xae0] sm:$0xff]
                %304 = vst [vmem:[%s186 + $0x1d0] sm:$0xff] %v303
                %v305 = vld [vmem:[%s185 + $0xae8] sm:$0xff]
                %306 = vst [vmem:[%s186 + $0x1d8] sm:$0xff] %v305
                %v307 = vld [vmem:[%s185 + $0xb40] sm:$0xff]
                %308 = vst [vmem:[%s186 + $0x1e0] sm:$0xff] %v307
                %v309 = vld [vmem:[%s185 + $0xb48] sm:$0xff]
                %310 = vst [vmem:[%s186 + $0x1e8] sm:$0xff] %v309
                %v311 = vld [vmem:[%s185 + $0xba0] sm:$0xff]
                %312 = vst [vmem:[%s186 + $0x1f0] sm:$0xff] %v311
                %v313 = vld [vmem:[%s185 + $0xba8] sm:$0xff]
                %314 = vst [vmem:[%s186 + $0x1f8] sm:$0xff] %v313
                %v315 = vld [vmem:[%s185 + $0xc00] sm:$0xff]
                %316 = vst [vmem:[%s186 + $0x200] sm:$0xff] %v315
                %v317 = vld [vmem:[%s185 + $0xc08] sm:$0xff]
                %318 = vst [vmem:[%s186 + $0x208] sm:$0xff] %v317
                %v319 = vld [vmem:[%s185 + $0xc60] sm:$0xff]
                %320 = vst [vmem:[%s186 + $0x210] sm:$0xff] %v319
                %v321 = vld [vmem:[%s185 + $0xc68] sm:$0xff]
                %322 = vst [vmem:[%s186 + $0x218] sm:$0xff] %v321
                %v323 = vld [vmem:[%s185 + $0xcc0] sm:$0xff]
                %324 = vst [vmem:[%s186 + $0x220] sm:$0xff] %v323
                %v325 = vld [vmem:[%s185 + $0xcc8] sm:$0xff]
                %326 = vst [vmem:[%s186 + $0x228] sm:$0xff] %v325
                %v327 = vld [vmem:[%s185 + $0xd20] sm:$0xff]
                %328 = vst [vmem:[%s186 + $0x230] sm:$0xff] %v327
                %v329 = vld [vmem:[%s185 + $0xd28] sm:$0xff]
                %330 = vst [vmem:[%s186 + $0x238] sm:$0xff] %v329
                %v331 = vld [vmem:[%s185 + $0xd80] sm:$0xff]
                %332 = vst [vmem:[%s186 + $0x240] sm:$0xff] %v331
                %v333 = vld [vmem:[%s185 + $0xd88] sm:$0xff]
                %334 = vst [vmem:[%s186 + $0x248] sm:$0xff] %v333
                %v335 = vld [vmem:[%s185 + $0xde0] sm:$0xff]
                %336 = vst [vmem:[%s186 + $0x250] sm:$0xff] %v335
                %v337 = vld [vmem:[%s185 + $0xde8] sm:$0xff]
                %338 = vst [vmem:[%s186 + $0x258] sm:$0xff] %v337
                %v339 = vld [vmem:[%s185 + $0xe40] sm:$0xff]
                %340 = vst [vmem:[%s186 + $0x260] sm:$0xff] %v339
                %v341 = vld [vmem:[%s185 + $0xe48] sm:$0xff]
                %342 = vst [vmem:[%s186 + $0x268] sm:$0xff] %v341
                %v343 = vld [vmem:[%s185 + $0xea0] sm:$0xff]
                %344 = vst [vmem:[%s186 + $0x270] sm:$0xff] %v343
                %v345 = vld [vmem:[%s185 + $0xea8] sm:$0xff]
                %346 = vst [vmem:[%s186 + $0x278] sm:$0xff] %v345
                %v347 = vld [vmem:[%s185 + $0xf00] sm:$0xff]
                %348 = vst [vmem:[%s186 + $0x280] sm:$0xff] %v347
                %v349 = vld [vmem:[%s185 + $0xf08] sm:$0xff]
                %350 = vst [vmem:[%s186 + $0x288] sm:$0xff] %v349
                %v351 = vld [vmem:[%s185 + $0xf60] sm:$0xff]
                %352 = vst [vmem:[%s186 + $0x290] sm:$0xff] %v351
                %v353 = vld [vmem:[%s185 + $0xf68] sm:$0xff]
                %354 = vst [vmem:[%s186 + $0x298] sm:$0xff] %v353
                %v355 = vld [vmem:[%s185 + $0xfc0] sm:$0xff]
                %356 = vst [vmem:[%s186 + $0x2a0] sm:$0xff] %v355
                %v357 = vld [vmem:[%s185 + $0xfc8] sm:$0xff]
                %358 = vst [vmem:[%s186 + $0x2a8] sm:$0xff] %v357
                %v359 = vld [vmem:[%s185 + $0x1020] sm:$0xff]
                %360 = vst [vmem:[%s186 + $0x2b0] sm:$0xff] %v359
                %v361 = vld [vmem:[%s185 + $0x1028] sm:$0xff]
                %362 = vst [vmem:[%s186 + $0x2b8] sm:$0xff] %v361
                %v363 = vld [vmem:[%s185 + $0x1080] sm:$0xff]
                %364 = vst [vmem:[%s186 + $0x2c0] sm:$0xff] %v363
                %v365 = vld [vmem:[%s185 + $0x1088] sm:$0xff]
                %366 = vst [vmem:[%s186 + $0x2c8] sm:$0xff] %v365
                %v367 = vld [vmem:[%s185 + $0x10e0] sm:$0xff]
                %368 = vst [vmem:[%s186 + $0x2d0] sm:$0xff] %v367
                %v369 = vld [vmem:[%s185 + $0x10e8] sm:$0xff]
                %370 = vst [vmem:[%s186 + $0x2d8] sm:$0xff] %v369
                %v371 = vld [vmem:[%s185 + $0x1140] sm:$0xff]
                %372 = vst [vmem:[%s186 + $0x2e0] sm:$0xff] %v371
                %v373 = vld [vmem:[%s185 + $0x1148] sm:$0xff]
                %374 = vst [vmem:[%s186 + $0x2e8] sm:$0xff] %v373
                %v375 = vld [vmem:[%s185 + $0x11a0] sm:$0xff]
                %376 = vst [vmem:[%s186 + $0x2f0] sm:$0xff] %v375
                %v377 = vld [vmem:[%s185 + $0x11a8] sm:$0xff]
                %378 = vst [vmem:[%s186 + $0x2f8] sm:$0xff] %v377
                %v379 = vld [vmem:[%s185 + $0x1200] sm:$0xff]
                %380 = vst [vmem:[%s186 + $0x300] sm:$0xff] %v379
                %v381 = vld [vmem:[%s185 + $0x1208] sm:$0xff]
                %382 = vst [vmem:[%s186 + $0x308] sm:$0xff] %v381
                %v383 = vld [vmem:[%s185 + $0x1260] sm:$0xff]
                %384 = vst [vmem:[%s186 + $0x310] sm:$0xff] %v383
                %v385 = vld [vmem:[%s185 + $0x1268] sm:$0xff]
                %386 = vst [vmem:[%s186 + $0x318] sm:$0xff] %v385
                %v387 = vld [vmem:[%s185 + $0x12c0] sm:$0xff]
                %388 = vst [vmem:[%s186 + $0x320] sm:$0xff] %v387
                %v389 = vld [vmem:[%s185 + $0x12c8] sm:$0xff]
                %390 = vst [vmem:[%s186 + $0x328] sm:$0xff] %v389
                %v391 = vld [vmem:[%s185 + $0x1320] sm:$0xff]
                %392 = vst [vmem:[%s186 + $0x330] sm:$0xff] %v391
                %v393 = vld [vmem:[%s185 + $0x1328] sm:$0xff]
                %394 = vst [vmem:[%s186 + $0x338] sm:$0xff] %v393
                %v395 = vld [vmem:[%s185 + $0x1380] sm:$0xff]
                %396 = vst [vmem:[%s186 + $0x340] sm:$0xff] %v395
                %v397 = vld [vmem:[%s185 + $0x1388] sm:$0xff]
                %398 = vst [vmem:[%s186 + $0x348] sm:$0xff] %v397
                %v399 = vld [vmem:[%s185 + $0x13e0] sm:$0xff]
                %400 = vst [vmem:[%s186 + $0x350] sm:$0xff] %v399
                %v401 = vld [vmem:[%s185 + $0x13e8] sm:$0xff]
                %402 = vst [vmem:[%s186 + $0x358] sm:$0xff] %v401
                %v403 = vld [vmem:[%s185 + $0x1440] sm:$0xff]
                %404 = vst [vmem:[%s186 + $0x360] sm:$0xff] %v403
                %v405 = vld [vmem:[%s185 + $0x1448] sm:$0xff]
                %406 = vst [vmem:[%s186 + $0x368] sm:$0xff] %v405
                %v407 = vld [vmem:[%s185 + $0x14a0] sm:$0xff]
                %408 = vst [vmem:[%s186 + $0x370] sm:$0xff] %v407
                %v409 = vld [vmem:[%s185 + $0x14a8] sm:$0xff]
                %410 = vst [vmem:[%s186 + $0x378] sm:$0xff] %v409
                %v411 = vld [vmem:[%s185 + $0x1500] sm:$0xff]
                %412 = vst [vmem:[%s186 + $0x380] sm:$0xff] %v411
                %v413 = vld [vmem:[%s185 + $0x1508] sm:$0xff]
                %414 = vst [vmem:[%s186 + $0x388] sm:$0xff] %v413
                %v415 = vld [vmem:[%s185 + $0x1560] sm:$0xff]
                %416 = vst [vmem:[%s186 + $0x390] sm:$0xff] %v415
                %v417 = vld [vmem:[%s185 + $0x1568] sm:$0xff]
                %418 = vst [vmem:[%s186 + $0x398] sm:$0xff] %v417
                %v419 = vld [vmem:[%s185 + $0x15c0] sm:$0xff]
                %420 = vst [vmem:[%s186 + $0x3a0] sm:$0xff] %v419
                %v421 = vld [vmem:[%s185 + $0x15c8] sm:$0xff]
                %422 = vst [vmem:[%s186 + $0x3a8] sm:$0xff] %v421
                %v423 = vld [vmem:[%s185 + $0x1620] sm:$0xff]
                %424 = vst [vmem:[%s186 + $0x3b0] sm:$0xff] %v423
                %v425 = vld [vmem:[%s185 + $0x1628] sm:$0xff]
                %426 = vst [vmem:[%s186 + $0x3b8] sm:$0xff] %v425
                %v427 = vld [vmem:[%s185 + $0x1680] sm:$0xff]
                %428 = vst [vmem:[%s186 + $0x3c0] sm:$0xff] %v427
                %v429 = vld [vmem:[%s185 + $0x1688] sm:$0xff]
                %430 = vst [vmem:[%s186 + $0x3c8] sm:$0xff] %v429
                %v431 = vld [vmem:[%s185 + $0x16e0] sm:$0xff]
                %432 = vst [vmem:[%s186 + $0x3d0] sm:$0xff] %v431
                %v433 = vld [vmem:[%s185 + $0x16e8] sm:$0xff]
                %434 = vst [vmem:[%s186 + $0x3d8] sm:$0xff] %v433
                %v435 = vld [vmem:[%s185 + $0x1740] sm:$0xff]
                %436 = vst [vmem:[%s186 + $0x3e0] sm:$0xff] %v435
                %v437 = vld [vmem:[%s185 + $0x1748] sm:$0xff]
                %438 = vst [vmem:[%s186 + $0x3e8] sm:$0xff] %v437
                %v439 = vld [vmem:[%s185 + $0x17a0] sm:$0xff]
                %440 = vst [vmem:[%s186 + $0x3f0] sm:$0xff] %v439
                %v441 = vld [vmem:[%s185 + $0x17a8] sm:$0xff]
                %442 = vst [vmem:[%s186 + $0x3f8] sm:$0xff] %v441
              $region41: #{dqn_forward.5} parent=35 // loop_footer
                %s184 = sadd.s32 1, %s180
              $region42: #{dqn_forward.5} parent=35 // loop_footer_branch
                %179 = sbr.rel target = $region38
              $region43: #{dqn_forward.5} parent=35 // loop_exit
                _
            $region36: #{dqn_forward.5} parent=31 // pred_fallthru
              _
            // Predicated region
            $region44: #{dqn_forward.5} parent=31 // pred_check
              _
            $region45: #{dqn_forward.5} parent=31 // pred_check_branch
              %444 = sbr.rel target = $region47
            $region46: #{dqn_forward.5} parent=31 // pred_region
              _
            $region47: #{dqn_forward.5} parent=31 // pred_fallthru
              _
          $region32: #{dqn_forward.5} parent=27 // pred_fallthru
            _
          %445 = vnop
        $region28: #{dqn_forward.5} parent=23 // pred_fallthru
          _
      $region24: #{dqn_forward.5} parent=5 // pred_fallthru
        _
      %p446 = scmp.le.s32.totalorder 1, %s9
      %p447 = scmp.lt.s32.totalorder %s9, 7
      %p448 = pnand %p446, %p447
      %p449 = pneg %p448
      // Predicated region
      $region48: #{dqn_forward.5} parent=5 // pred_check
        _
      $region49: #{dqn_forward.5} parent=5 // pred_check_branch
        %451 = sbr.rel (%p448) target = $region51
      $region50: #{dqn_forward.5} parent=5 // pred_region
        %s452 = ssub.s32 %s9, 1
        %s453 = sand.u32 %s60, 1
        %s454 = sand.u32 %s60, 1
        %s455 = smul.addr %s454, 1024
        %s456 = scalar_lea.vmem [#allocation2], %s455
        // Predicated region
        $region52: #{dqn_forward.5} parent=50 // pred_check
          %p457 = pneg %p73
        $region53: #{dqn_forward.5} parent=50 // pred_check_branch
          %459 = sbr.rel (%p457) target = $region55
        $region54: #{dqn_forward.5} parent=50 // pred_region
          _
        $region55: #{dqn_forward.5} parent=50 // pred_fallthru
          _
        %s460 = smul.u32 8, %s18
        %p461 = scmp.lt.s32.totalorder %s460, 7
        %s462 = scalar_select %p461, %s460, 7
        %s463 = smul.addr %s462, 4
        %s464 = smul.addr %s463, 4
        %s465 = scalar_lea.vmem %s0, %s464
        %p466 = pneg %p47
        %p467 = pneg %p44
        %s468 = sand.u32 %s60, 1
        %s469 = sand.u32 %s60, 1
        %s470 = smul.addr %s469, 1024
        %s471 = scalar_lea.vmem [#allocation2], %s470
        %p472 = pneg %p73
        %p473 = pneg %p70
        %s474 = smul.u32 8, %s18
        %p475 = scmp.lt.s32.totalorder %s474, 7
        %s476 = scalar_select %p475, %s474, 7
        %s477 = smul.addr %s476, 8
        %s478 = scalar_lea.vmem %s2, %s477
        %p479 = pneg %p99
        %p480 = pneg %p96
        %p481 = pneg %p127
        %p482 = pneg %p124
        %s483 = sand.u32 %s114, 1
        %s484 = sand.u32 %s114, 1
        %s485 = smul.addr %s484, 128
        %s486 = scalar_lea.vmem [#allocation3], %s485
        %s487 = smul.u32 8, %s18
        %p488 = scmp.lt.s32.totalorder %s487, 7
        %s489 = scalar_select %p488, %s487, 7
        %s490 = smul.addr %s489, 4
        %s491 = smul.addr %s490, 4
        %s492 = scalar_lea.vmem %s0, %s491
        %s493 = smul.u32 8, %s18
        %s494 = smul.u32 4, %s19
        %s495 = smul.u32 8, %s18
        %p496 = scmp.lt.s32.totalorder %s495, 7
        %s497 = scalar_select %p496, %s495, 7
        %s498 = smul.addr %s497, 8
        %s499 = scalar_lea.vmem %s2, %s498
        %s500 = smul.u32 8, %s18
        %s501 = smul.u32 8, %s18
        %s502 = smul.u32 4, %s19
        %v503 = vld [vmem:[%s492] sm:$0xff]
        %v504 = vld [vmem:[%s492 + $0x8] sm:$0xff]
        %v505 = vld [vmem:[%s492 + $0x10] sm:$0xff]
        %v506 = vld [vmem:[%s492 + $0x18] sm:$0xff]
        %v507 = vld [vmem:[%s492 + $0x20] sm:$0xff]
        %v508 = vld [vmem:[%s492 + $0x28] sm:$0xff]
        %v509 = vld [vmem:[%s492 + $0x30] sm:$0xff]
        %v510 = vld [vmem:[%s492 + $0x38] sm:$0xff]
        %v511 = vld [vmem:[%s492 + $0x40] sm:$0xff]
        %v512 = vld [vmem:[%s492 + $0x48] sm:$0xff]
        %v513 = vld [vmem:[%s492 + $0x50] sm:$0xff]
        %v514 = vld [vmem:[%s492 + $0x58] sm:$0xff]
        %v515 = vld [vmem:[%s492 + $0x60] sm:$0xff]
        %v516 = vld [vmem:[%s492 + $0x68] sm:$0xff]
        %v517 = vld [vmem:[%s492 + $0x70] sm:$0xff]
        %v518 = vld [vmem:[%s492 + $0x78] sm:$0xff]
        %v519 = vld [vmem:[%s456] sm:$0xff]
        %v520 = vld [vmem:[%s456 + $0x8] sm:$0xff]
        %v521 = vld [vmem:[%s456 + $0x10] sm:$0xff]
        %v522 = vld [vmem:[%s456 + $0x18] sm:$0xff]
        %v523 = vld [vmem:[%s456 + $0x20] sm:$0xff]
        %v524 = vld [vmem:[%s456 + $0x28] sm:$0xff]
        %v525 = vld [vmem:[%s456 + $0x30] sm:$0xff]
        %v526 = vld [vmem:[%s456 + $0x38] sm:$0xff]
        %v527 = vld [vmem:[%s456 + $0x40] sm:$0xff]
        %v528 = vld [vmem:[%s456 + $0x48] sm:$0xff]
        %v529 = vld [vmem:[%s456 + $0x50] sm:$0xff]
        %v530 = vld [vmem:[%s456 + $0x58] sm:$0xff]
        %v531 = vld [vmem:[%s456 + $0x60] sm:$0xff]
        %v532 = vld [vmem:[%s456 + $0x68] sm:$0xff]
        %v533 = vld [vmem:[%s456 + $0x70] sm:$0xff]
        %v534 = vld [vmem:[%s456 + $0x78] sm:$0xff]
        %v535 = vld [vmem:[%s456 + $0x80] sm:$0xff]
        %v536 = vld [vmem:[%s456 + $0x88] sm:$0xff]
        %v537 = vld [vmem:[%s456 + $0x90] sm:$0xff]
        %v538 = vld [vmem:[%s456 + $0x98] sm:$0xff]
        %v539 = vld [vmem:[%s456 + $0xa0] sm:$0xff]
        %v540 = vld [vmem:[%s456 + $0xa8] sm:$0xff]
        %v541 = vld [vmem:[%s456 + $0xb0] sm:$0xff]
        %v542 = vld [vmem:[%s456 + $0xb8] sm:$0xff]
        %v543 = vld [vmem:[%s456 + $0xc0] sm:$0xff]
        %v544 = vld [vmem:[%s456 + $0xc8] sm:$0xff]
        %v545 = vld [vmem:[%s456 + $0xd0] sm:$0xff]
        %v546 = vld [vmem:[%s456 + $0xd8] sm:$0xff]
        %v547 = vld [vmem:[%s456 + $0xe0] sm:$0xff]
        %v548 = vld [vmem:[%s456 + $0xe8] sm:$0xff]
        %v549 = vld [vmem:[%s456 + $0xf0] sm:$0xff]
        %v550 = vld [vmem:[%s456 + $0xf8] sm:$0xff]
        %v551 = vld [vmem:[%s456 + $0x100] sm:$0xff]
        %v552 = vld [vmem:[%s456 + $0x108] sm:$0xff]
        %v553 = vld [vmem:[%s456 + $0x110] sm:$0xff]
        %v554 = vld [vmem:[%s456 + $0x118] sm:$0xff]
        %v555 = vld [vmem:[%s456 + $0x120] sm:$0xff]
        %v556 = vld [vmem:[%s456 + $0x128] sm:$0xff]
        %v557 = vld [vmem:[%s456 + $0x130] sm:$0xff]
        %v558 = vld [vmem:[%s456 + $0x138] sm:$0xff]
        %v559 = vld [vmem:[%s456 + $0x140] sm:$0xff]
        %v560 = vld [vmem:[%s456 + $0x148] sm:$0xff]
        %v561 = vld [vmem:[%s456 + $0x150] sm:$0xff]
        %v562 = vld [vmem:[%s456 + $0x158] sm:$0xff]
        %v563 = vld [vmem:[%s456 + $0x160] sm:$0xff]
        %v564 = vld [vmem:[%s456 + $0x168] sm:$0xff]
        %v565 = vld [vmem:[%s456 + $0x170] sm:$0xff]
        %v566 = vld [vmem:[%s456 + $0x178] sm:$0xff]
        %v567 = vld [vmem:[%s456 + $0x180] sm:$0xff]
        %v568 = vld [vmem:[%s456 + $0x188] sm:$0xff]
        %v569 = vld [vmem:[%s456 + $0x190] sm:$0xff]
        %v570 = vld [vmem:[%s456 + $0x198] sm:$0xff]
        %v571 = vld [vmem:[%s456 + $0x1a0] sm:$0xff]
        %v572 = vld [vmem:[%s456 + $0x1a8] sm:$0xff]
        %v573 = vld [vmem:[%s456 + $0x1b0] sm:$0xff]
        %v574 = vld [vmem:[%s456 + $0x1b8] sm:$0xff]
        %v575 = vld [vmem:[%s456 + $0x1c0] sm:$0xff]
        %v576 = vld [vmem:[%s456 + $0x1c8] sm:$0xff]
        %v577 = vld [vmem:[%s456 + $0x1d0] sm:$0xff]
        %v578 = vld [vmem:[%s456 + $0x1d8] sm:$0xff]
        %v579 = vld [vmem:[%s456 + $0x1e0] sm:$0xff]
        %v580 = vld [vmem:[%s456 + $0x1e8] sm:$0xff]
        %v581 = vld [vmem:[%s456 + $0x1f0] sm:$0xff]
        %v582 = vld [vmem:[%s456 + $0x1f8] sm:$0xff]
        %v583 = vld [vmem:[%s456 + $0x200] sm:$0xff]
        %v584 = vld [vmem:[%s456 + $0x208] sm:$0xff]
        %v585 = vld [vmem:[%s456 + $0x210] sm:$0xff]
        %v586 = vld [vmem:[%s456 + $0x218] sm:$0xff]
        %v587 = vld [vmem:[%s456 + $0x220] sm:$0xff]
        %v588 = vld [vmem:[%s456 + $0x228] sm:$0xff]
        %v589 = vld [vmem:[%s456 + $0x230] sm:$0xff]
        %v590 = vld [vmem:[%s456 + $0x238] sm:$0xff]
        %v591 = vld [vmem:[%s456 + $0x240] sm:$0xff]
        %v592 = vld [vmem:[%s456 + $0x248] sm:$0xff]
        %v593 = vld [vmem:[%s456 + $0x250] sm:$0xff]
        %v594 = vld [vmem:[%s456 + $0x258] sm:$0xff]
        %v595 = vld [vmem:[%s456 + $0x260] sm:$0xff]
        %v596 = vld [vmem:[%s456 + $0x268] sm:$0xff]
        %v597 = vld [vmem:[%s456 + $0x270] sm:$0xff]
        %v598 = vld [vmem:[%s456 + $0x278] sm:$0xff]
        %v599 = vld [vmem:[%s456 + $0x280] sm:$0xff]
        %v600 = vld [vmem:[%s456 + $0x288] sm:$0xff]
        %v601 = vld [vmem:[%s456 + $0x290] sm:$0xff]
        %v602 = vld [vmem:[%s456 + $0x298] sm:$0xff]
        %v603 = vld [vmem:[%s456 + $0x2a0] sm:$0xff]
        %v604 = vld [vmem:[%s456 + $0x2a8] sm:$0xff]
        %v605 = vld [vmem:[%s456 + $0x2b0] sm:$0xff]
        %v606 = vld [vmem:[%s456 + $0x2b8] sm:$0xff]
        %v607 = vld [vmem:[%s456 + $0x2c0] sm:$0xff]
        %v608 = vld [vmem:[%s456 + $0x2c8] sm:$0xff]
        %v609 = vld [vmem:[%s456 + $0x2d0] sm:$0xff]
        %v610 = vld [vmem:[%s456 + $0x2d8] sm:$0xff]
        %v611 = vld [vmem:[%s456 + $0x2e0] sm:$0xff]
        %v612 = vld [vmem:[%s456 + $0x2e8] sm:$0xff]
        %v613 = vld [vmem:[%s456 + $0x2f0] sm:$0xff]
        %v614 = vld [vmem:[%s456 + $0x2f8] sm:$0xff]
        %v615 = vld [vmem:[%s456 + $0x300] sm:$0xff]
        %v616 = vld [vmem:[%s456 + $0x308] sm:$0xff]
        %v617 = vld [vmem:[%s456 + $0x310] sm:$0xff]
        %v618 = vld [vmem:[%s456 + $0x318] sm:$0xff]
        %v619 = vld [vmem:[%s456 + $0x320] sm:$0xff]
        %v620 = vld [vmem:[%s456 + $0x328] sm:$0xff]
        %v621 = vld [vmem:[%s456 + $0x330] sm:$0xff]
        %v622 = vld [vmem:[%s456 + $0x338] sm:$0xff]
        %v623 = vld [vmem:[%s456 + $0x340] sm:$0xff]
        %v624 = vld [vmem:[%s456 + $0x348] sm:$0xff]
        %v625 = vld [vmem:[%s456 + $0x350] sm:$0xff]
        %v626 = vld [vmem:[%s456 + $0x358] sm:$0xff]
        %v627 = vld [vmem:[%s456 + $0x360] sm:$0xff]
        %v628 = vld [vmem:[%s456 + $0x368] sm:$0xff]
        %v629 = vld [vmem:[%s456 + $0x370] sm:$0xff]
        %v630 = vld [vmem:[%s456 + $0x378] sm:$0xff]
        %v631 = vld [vmem:[%s456 + $0x380] sm:$0xff]
        %v632 = vld [vmem:[%s456 + $0x388] sm:$0xff]
        %v633 = vld [vmem:[%s456 + $0x390] sm:$0xff]
        %v634 = vld [vmem:[%s456 + $0x398] sm:$0xff]
        %v635 = vld [vmem:[%s456 + $0x3a0] sm:$0xff]
        %v636 = vld [vmem:[%s456 + $0x3a8] sm:$0xff]
        %v637 = vld [vmem:[%s456 + $0x3b0] sm:$0xff]
        %v638 = vld [vmem:[%s456 + $0x3b8] sm:$0xff]
        %v639 = vld [vmem:[%s456 + $0x3c0] sm:$0xff]
        %v640 = vld [vmem:[%s456 + $0x3c8] sm:$0xff]
        %v641 = vld [vmem:[%s456 + $0x3d0] sm:$0xff]
        %v642 = vld [vmem:[%s456 + $0x3d8] sm:$0xff]
        %v643 = vld [vmem:[%s456 + $0x3e0] sm:$0xff]
        %v644 = vld [vmem:[%s456 + $0x3e8] sm:$0xff]
        %v645 = vld [vmem:[%s456 + $0x3f0] sm:$0xff]
        %v646 = vld [vmem:[%s456 + $0x3f8] sm:$0xff]
        %v647 = vld [vmem:[%s499] sm:$0xff]
        %v648 = vld [vmem:[%s499 + $0x8] sm:$0xff]
        %v649 = vld [vmem:[%s499 + $0x10] sm:$0xff]
        %v650 = vld [vmem:[%s499 + $0x18] sm:$0xff]
        %v651 = vld [vmem:[%s499 + $0x20] sm:$0xff]
        %v652 = vld [vmem:[%s499 + $0x28] sm:$0xff]
        %v653 = vld [vmem:[%s499 + $0x30] sm:$0xff]
        %v654 = vld [vmem:[%s499 + $0x38] sm:$0xff]
        %656 = vset.pattern.permute.xlu0 0
        %657 = vperm.xlu0 %656, %v647
        %v658 = vpop.permute.xlu0 %657
        %661 = vset.pattern.permute.xlu0 0
        %662 = vperm.xlu0 %661, %v648
        %v663 = vpop.permute.xlu0 %662
        %666 = vset.pattern.permute.xlu0 0
        %667 = vperm.xlu0 %666, %v649
        %v668 = vpop.permute.xlu0 %667
        %671 = vset.pattern.permute.xlu0 0
        %672 = vperm.xlu0 %671, %v650
        %v673 = vpop.permute.xlu0 %672
        %676 = vset.pattern.permute.xlu0 0
        %677 = vperm.xlu0 %676, %v651
        %v678 = vpop.permute.xlu0 %677
        %681 = vset.pattern.permute.xlu0 0
        %682 = vperm.xlu0 %681, %v652
        %v683 = vpop.permute.xlu0 %682
        %686 = vset.pattern.permute.xlu0 0
        %687 = vperm.xlu0 %686, %v653
        %v688 = vpop.permute.xlu0 %687
        %691 = vset.pattern.permute.xlu0 0
        %692 = vperm.xlu0 %691, %v654
        %v693 = vpop.permute.xlu0 %692
        %v711 = vunpack.c.l.b16 %v503
        %v712 = vunpack.c.h.b16 %v503
        %v713 = vunpack.c.l.b16 %v504
        %v714 = vunpack.c.h.b16 %v504
        %v715 = vunpack.c.l.b16 %v505
        %v716 = vunpack.c.h.b16 %v505
        %v717 = vunpack.c.l.b16 %v506
        %v718 = vunpack.c.h.b16 %v506
        %v719 = vunpack.c.l.b16 %v507
        %v720 = vunpack.c.h.b16 %v507
        %v721 = vunpack.c.l.b16 %v508
        %v722 = vunpack.c.h.b16 %v508
        %v723 = vunpack.c.l.b16 %v509
        %v724 = vunpack.c.h.b16 %v509
        %v725 = vunpack.c.l.b16 %v510
        %v726 = vunpack.c.h.b16 %v510
        %v727 = vunpack.c.l.b16 %v511
        %v728 = vunpack.c.h.b16 %v511
        %v729 = vunpack.c.l.b16 %v512
        %v730 = vunpack.c.h.b16 %v512
        %v731 = vunpack.c.l.b16 %v513
        %v732 = vunpack.c.h.b16 %v513
        %v733 = vunpack.c.l.b16 %v514
        %v734 = vunpack.c.h.b16 %v514
        %v735 = vunpack.c.l.b16 %v515
        %v736 = vunpack.c.h.b16 %v515
        %v737 = vunpack.c.l.b16 %v516
        %v738 = vunpack.c.h.b16 %v516
        %v739 = vunpack.c.l.b16 %v517
        %v740 = vunpack.c.h.b16 %v517
        %v741 = vunpack.c.l.b16 %v518
        %v742 = vunpack.c.h.b16 %v518
        %v743 = vpack.c.b16 %v715, %v711
        %v744 = vpack.c.b16 %v716, %v712
        %v745 = vpack.c.b16 %v717, %v713
        %v746 = vpack.c.b16 %v718, %v714
        %v747 = vpack.c.b16 %v723, %v719
        %v748 = vpack.c.b16 %v724, %v720
        %v749 = vpack.c.b16 %v725, %v721
        %v750 = vpack.c.b16 %v726, %v722
        %v751 = vpack.c.b16 %v731, %v727
        %v752 = vpack.c.b16 %v732, %v728
        %v753 = vpack.c.b16 %v733, %v729
        %v754 = vpack.c.b16 %v734, %v730
        %v755 = vpack.c.b16 %v739, %v735
        %v756 = vpack.c.b16 %v740, %v736
        %v757 = vpack.c.b16 %v741, %v737
        %v758 = vpack.c.b16 %v742, %v738
        %v903 = vunpack.c.l.b16 %v519
        %v904 = vunpack.c.h.b16 %v519
        %v905 = vunpack.c.l.b16 %v520
        %v906 = vunpack.c.h.b16 %v520
        %v907 = vunpack.c.l.b16 %v521
        %v908 = vunpack.c.h.b16 %v521
        %v909 = vunpack.c.l.b16 %v522
        %v910 = vunpack.c.h.b16 %v522
        %v911 = vunpack.c.l.b16 %v523
        %v912 = vunpack.c.h.b16 %v523
        %v913 = vunpack.c.l.b16 %v524
        %v914 = vunpack.c.h.b16 %v524
        %v915 = vunpack.c.l.b16 %v525
        %v916 = vunpack.c.h.b16 %v525
        %v917 = vunpack.c.l.b16 %v526
        %v918 = vunpack.c.h.b16 %v526
        %v919 = vunpack.c.l.b16 %v527
        %v920 = vunpack.c.h.b16 %v527
        %v921 = vunpack.c.l.b16 %v528
        %v922 = vunpack.c.h.b16 %v528
        %v923 = vunpack.c.l.b16 %v529
        %v924 = vunpack.c.h.b16 %v529
        %v925 = vunpack.c.l.b16 %v530
        %v926 = vunpack.c.h.b16 %v530
        %v927 = vunpack.c.l.b16 %v531
        %v928 = vunpack.c.h.b16 %v531
        %v929 = vunpack.c.l.b16 %v532
        %v930 = vunpack.c.h.b16 %v532
        %v931 = vunpack.c.l.b16 %v533
        %v932 = vunpack.c.h.b16 %v533
        %v933 = vunpack.c.l.b16 %v534
        %v934 = vunpack.c.h.b16 %v534
        %v935 = vunpack.c.l.b16 %v535
        %v936 = vunpack.c.h.b16 %v535
        %v937 = vunpack.c.l.b16 %v536
        %v938 = vunpack.c.h.b16 %v536
        %v939 = vunpack.c.l.b16 %v537
        %v940 = vunpack.c.h.b16 %v537
        %v941 = vunpack.c.l.b16 %v538
        %v942 = vunpack.c.h.b16 %v538
        %v943 = vunpack.c.l.b16 %v539
        %v944 = vunpack.c.h.b16 %v539
        %v945 = vunpack.c.l.b16 %v540
        %v946 = vunpack.c.h.b16 %v540
        %v947 = vunpack.c.l.b16 %v541
        %v948 = vunpack.c.h.b16 %v541
        %v949 = vunpack.c.l.b16 %v542
        %v950 = vunpack.c.h.b16 %v542
        %v951 = vunpack.c.l.b16 %v543
        %v952 = vunpack.c.h.b16 %v543
        %v953 = vunpack.c.l.b16 %v544
        %v954 = vunpack.c.h.b16 %v544
        %v955 = vunpack.c.l.b16 %v545
        %v956 = vunpack.c.h.b16 %v545
        %v957 = vunpack.c.l.b16 %v546
        %v958 = vunpack.c.h.b16 %v546
        %v959 = vunpack.c.l.b16 %v547
        %v960 = vunpack.c.h.b16 %v547
        %v961 = vunpack.c.l.b16 %v548
        %v962 = vunpack.c.h.b16 %v548
        %v963 = vunpack.c.l.b16 %v549
        %v964 = vunpack.c.h.b16 %v549
        %v965 = vunpack.c.l.b16 %v550
        %v966 = vunpack.c.h.b16 %v550
        %v967 = vunpack.c.l.b16 %v551
        %v968 = vunpack.c.h.b16 %v551
        %v969 = vunpack.c.l.b16 %v552
        %v970 = vunpack.c.h.b16 %v552
        %v971 = vunpack.c.l.b16 %v553
        %v972 = vunpack.c.h.b16 %v553
        %v973 = vunpack.c.l.b16 %v554
        %v974 = vunpack.c.h.b16 %v554
        %v975 = vunpack.c.l.b16 %v555
        %v976 = vunpack.c.h.b16 %v555
        %v977 = vunpack.c.l.b16 %v556
        %v978 = vunpack.c.h.b16 %v556
        %v979 = vunpack.c.l.b16 %v557
        %v980 = vunpack.c.h.b16 %v557
        %v981 = vunpack.c.l.b16 %v558
        %v982 = vunpack.c.h.b16 %v558
        %v983 = vunpack.c.l.b16 %v559
        %v984 = vunpack.c.h.b16 %v559
        %v985 = vunpack.c.l.b16 %v560
        %v986 = vunpack.c.h.b16 %v560
        %v987 = vunpack.c.l.b16 %v561
        %v988 = vunpack.c.h.b16 %v561
        %v989 = vunpack.c.l.b16 %v562
        %v990 = vunpack.c.h.b16 %v562
        %v991 = vunpack.c.l.b16 %v563
        %v992 = vunpack.c.h.b16 %v563
        %v993 = vunpack.c.l.b16 %v564
        %v994 = vunpack.c.h.b16 %v564
        %v995 = vunpack.c.l.b16 %v565
        %v996 = vunpack.c.h.b16 %v565
        %v997 = vunpack.c.l.b16 %v566
        %v998 = vunpack.c.h.b16 %v566
        %v999 = vunpack.c.l.b16 %v567
        %v1000 = vunpack.c.h.b16 %v567
        %v1001 = vunpack.c.l.b16 %v568
        %v1002 = vunpack.c.h.b16 %v568
        %v1003 = vunpack.c.l.b16 %v569
        %v1004 = vunpack.c.h.b16 %v569
        %v1005 = vunpack.c.l.b16 %v570
        %v1006 = vunpack.c.h.b16 %v570
        %v1007 = vunpack.c.l.b16 %v571
        %v1008 = vunpack.c.h.b16 %v571
        %v1009 = vunpack.c.l.b16 %v572
        %v1010 = vunpack.c.h.b16 %v572
        %v1011 = vunpack.c.l.b16 %v573
        %v1012 = vunpack.c.h.b16 %v573
        %v1013 = vunpack.c.l.b16 %v574
        %v1014 = vunpack.c.h.b16 %v574
        %v1015 = vunpack.c.l.b16 %v575
        %v1016 = vunpack.c.h.b16 %v575
        %v1017 = vunpack.c.l.b16 %v576
        %v1018 = vunpack.c.h.b16 %v576
        %v1019 = vunpack.c.l.b16 %v577
        %v1020 = vunpack.c.h.b16 %v577
        %v1021 = vunpack.c.l.b16 %v578
        %v1022 = vunpack.c.h.b16 %v578
        %v1023 = vunpack.c.l.b16 %v579
        %v1024 = vunpack.c.h.b16 %v579
        %v1025 = vunpack.c.l.b16 %v580
        %v1026 = vunpack.c.h.b16 %v580
        %v1027 = vunpack.c.l.b16 %v581
        %v1028 = vunpack.c.h.b16 %v581
        %v1029 = vunpack.c.l.b16 %v582
        %v1030 = vunpack.c.h.b16 %v582
        %v1031 = vunpack.c.l.b16 %v583
        %v1032 = vunpack.c.h.b16 %v583
        %v1033 = vunpack.c.l.b16 %v584
        %v1034 = vunpack.c.h.b16 %v584
        %v1035 = vunpack.c.l.b16 %v585
        %v1036 = vunpack.c.h.b16 %v585
        %v1037 = vunpack.c.l.b16 %v586
        %v1038 = vunpack.c.h.b16 %v586
        %v1039 = vunpack.c.l.b16 %v587
        %v1040 = vunpack.c.h.b16 %v587
        %v1041 = vunpack.c.l.b16 %v588
        %v1042 = vunpack.c.h.b16 %v588
        %v1043 = vunpack.c.l.b16 %v589
        %v1044 = vunpack.c.h.b16 %v589
        %v1045 = vunpack.c.l.b16 %v590
        %v1046 = vunpack.c.h.b16 %v590
        %v1047 = vunpack.c.l.b16 %v591
        %v1048 = vunpack.c.h.b16 %v591
        %v1049 = vunpack.c.l.b16 %v592
        %v1050 = vunpack.c.h.b16 %v592
        %v1051 = vunpack.c.l.b16 %v593
        %v1052 = vunpack.c.h.b16 %v593
        %v1053 = vunpack.c.l.b16 %v594
        %v1054 = vunpack.c.h.b16 %v594
        %v1055 = vunpack.c.l.b16 %v595
        %v1056 = vunpack.c.h.b16 %v595
        %v1057 = vunpack.c.l.b16 %v596
        %v1058 = vunpack.c.h.b16 %v596
        %v1059 = vunpack.c.l.b16 %v597
        %v1060 = vunpack.c.h.b16 %v597
        %v1061 = vunpack.c.l.b16 %v598
        %v1062 = vunpack.c.h.b16 %v598
        %v1063 = vunpack.c.l.b16 %v599
        %v1064 = vunpack.c.h.b16 %v599
        %v1065 = vunpack.c.l.b16 %v600
        %v1066 = vunpack.c.h.b16 %v600
        %v1067 = vunpack.c.l.b16 %v601
        %v1068 = vunpack.c.h.b16 %v601
        %v1069 = vunpack.c.l.b16 %v602
        %v1070 = vunpack.c.h.b16 %v602
        %v1071 = vunpack.c.l.b16 %v603
        %v1072 = vunpack.c.h.b16 %v603
        %v1073 = vunpack.c.l.b16 %v604
        %v1074 = vunpack.c.h.b16 %v604
        %v1075 = vunpack.c.l.b16 %v605
        %v1076 = vunpack.c.h.b16 %v605
        %v1077 = vunpack.c.l.b16 %v606
        %v1078 = vunpack.c.h.b16 %v606
        %v1079 = vunpack.c.l.b16 %v607
        %v1080 = vunpack.c.h.b16 %v607
        %v1081 = vunpack.c.l.b16 %v608
        %v1082 = vunpack.c.h.b16 %v608
        %v1083 = vunpack.c.l.b16 %v609
        %v1084 = vunpack.c.h.b16 %v609
        %v1085 = vunpack.c.l.b16 %v610
        %v1086 = vunpack.c.h.b16 %v610
        %v1087 = vunpack.c.l.b16 %v611
        %v1088 = vunpack.c.h.b16 %v611
        %v1089 = vunpack.c.l.b16 %v612
        %v1090 = vunpack.c.h.b16 %v612
        %v1091 = vunpack.c.l.b16 %v613
        %v1092 = vunpack.c.h.b16 %v613
        %v1093 = vunpack.c.l.b16 %v614
        %v1094 = vunpack.c.h.b16 %v614
        %v1095 = vunpack.c.l.b16 %v615
        %v1096 = vunpack.c.h.b16 %v615
        %v1097 = vunpack.c.l.b16 %v616
        %v1098 = vunpack.c.h.b16 %v616
        %v1099 = vunpack.c.l.b16 %v617
        %v1100 = vunpack.c.h.b16 %v617
        %v1101 = vunpack.c.l.b16 %v618
        %v1102 = vunpack.c.h.b16 %v618
        %v1103 = vunpack.c.l.b16 %v619
        %v1104 = vunpack.c.h.b16 %v619
        %v1105 = vunpack.c.l.b16 %v620
        %v1106 = vunpack.c.h.b16 %v620
        %v1107 = vunpack.c.l.b16 %v621
        %v1108 = vunpack.c.h.b16 %v621
        %v1109 = vunpack.c.l.b16 %v622
        %v1110 = vunpack.c.h.b16 %v622
        %v1111 = vunpack.c.l.b16 %v623
        %v1112 = vunpack.c.h.b16 %v623
        %v1113 = vunpack.c.l.b16 %v624
        %v1114 = vunpack.c.h.b16 %v624
        %v1115 = vunpack.c.l.b16 %v625
        %v1116 = vunpack.c.h.b16 %v625
        %v1117 = vunpack.c.l.b16 %v626
        %v1118 = vunpack.c.h.b16 %v626
        %v1119 = vunpack.c.l.b16 %v627
        %v1120 = vunpack.c.h.b16 %v627
        %v1121 = vunpack.c.l.b16 %v628
        %v1122 = vunpack.c.h.b16 %v628
        %v1123 = vunpack.c.l.b16 %v629
        %v1124 = vunpack.c.h.b16 %v629
        %v1125 = vunpack.c.l.b16 %v630
        %v1126 = vunpack.c.h.b16 %v630
        %v1127 = vunpack.c.l.b16 %v631
        %v1128 = vunpack.c.h.b16 %v631
        %v1129 = vunpack.c.l.b16 %v632
        %v1130 = vunpack.c.h.b16 %v632
        %v1131 = vunpack.c.l.b16 %v633
        %v1132 = vunpack.c.h.b16 %v633
        %v1133 = vunpack.c.l.b16 %v634
        %v1134 = vunpack.c.h.b16 %v634
        %v1135 = vunpack.c.l.b16 %v635
        %v1136 = vunpack.c.h.b16 %v635
        %v1137 = vunpack.c.l.b16 %v636
        %v1138 = vunpack.c.h.b16 %v636
        %v1139 = vunpack.c.l.b16 %v637
        %v1140 = vunpack.c.h.b16 %v637
        %v1141 = vunpack.c.l.b16 %v638
        %v1142 = vunpack.c.h.b16 %v638
        %v1143 = vunpack.c.l.b16 %v639
        %v1144 = vunpack.c.h.b16 %v639
        %v1145 = vunpack.c.l.b16 %v640
        %v1146 = vunpack.c.h.b16 %v640
        %v1147 = vunpack.c.l.b16 %v641
        %v1148 = vunpack.c.h.b16 %v641
        %v1149 = vunpack.c.l.b16 %v642
        %v1150 = vunpack.c.h.b16 %v642
        %v1151 = vunpack.c.l.b16 %v643
        %v1152 = vunpack.c.h.b16 %v643
        %v1153 = vunpack.c.l.b16 %v644
        %v1154 = vunpack.c.h.b16 %v644
        %v1155 = vunpack.c.l.b16 %v645
        %v1156 = vunpack.c.h.b16 %v645
        %v1157 = vunpack.c.l.b16 %v646
        %v1158 = vunpack.c.h.b16 %v646
        %v1159 = vpack.c.b16 %v907, %v903
        %v1160 = vpack.c.b16 %v908, %v904
        %v1161 = vpack.c.b16 %v909, %v905
        %v1162 = vpack.c.b16 %v910, %v906
        %v1163 = vpack.c.b16 %v915, %v911
        %v1164 = vpack.c.b16 %v916, %v912
        %v1165 = vpack.c.b16 %v917, %v913
        %v1166 = vpack.c.b16 %v918, %v914
        %v1167 = vpack.c.b16 %v923, %v919
        %v1168 = vpack.c.b16 %v924, %v920
        %v1169 = vpack.c.b16 %v925, %v921
        %v1170 = vpack.c.b16 %v926, %v922
        %v1171 = vpack.c.b16 %v931, %v927
        %v1172 = vpack.c.b16 %v932, %v928
        %v1173 = vpack.c.b16 %v933, %v929
        %v1174 = vpack.c.b16 %v934, %v930
        %v1175 = vpack.c.b16 %v939, %v935
        %v1176 = vpack.c.b16 %v940, %v936
        %v1177 = vpack.c.b16 %v941, %v937
        %v1178 = vpack.c.b16 %v942, %v938
        %v1179 = vpack.c.b16 %v947, %v943
        %v1180 = vpack.c.b16 %v948, %v944
        %v1181 = vpack.c.b16 %v949, %v945
        %v1182 = vpack.c.b16 %v950, %v946
        %v1183 = vpack.c.b16 %v955, %v951
        %v1184 = vpack.c.b16 %v956, %v952
        %v1185 = vpack.c.b16 %v957, %v953
        %v1186 = vpack.c.b16 %v958, %v954
        %v1187 = vpack.c.b16 %v963, %v959
        %v1188 = vpack.c.b16 %v964, %v960
        %v1189 = vpack.c.b16 %v965, %v961
        %v1190 = vpack.c.b16 %v966, %v962
        %v1191 = vpack.c.b16 %v971, %v967
        %v1192 = vpack.c.b16 %v972, %v968
        %v1193 = vpack.c.b16 %v973, %v969
        %v1194 = vpack.c.b16 %v974, %v970
        %v1195 = vpack.c.b16 %v979, %v975
        %v1196 = vpack.c.b16 %v980, %v976
        %v1197 = vpack.c.b16 %v981, %v977
        %v1198 = vpack.c.b16 %v982, %v978
        %v1199 = vpack.c.b16 %v987, %v983
        %v1200 = vpack.c.b16 %v988, %v984
        %v1201 = vpack.c.b16 %v989, %v985
        %v1202 = vpack.c.b16 %v990, %v986
        %v1203 = vpack.c.b16 %v995, %v991
        %v1204 = vpack.c.b16 %v996, %v992
        %v1205 = vpack.c.b16 %v997, %v993
        %v1206 = vpack.c.b16 %v998, %v994
        %v1207 = vpack.c.b16 %v1003, %v999
        %v1208 = vpack.c.b16 %v1004, %v1000
        %v1209 = vpack.c.b16 %v1005, %v1001
        %v1210 = vpack.c.b16 %v1006, %v1002
        %v1211 = vpack.c.b16 %v1011, %v1007
        %v1212 = vpack.c.b16 %v1012, %v1008
        %v1213 = vpack.c.b16 %v1013, %v1009
        %v1214 = vpack.c.b16 %v1014, %v1010
        %v1215 = vpack.c.b16 %v1019, %v1015
        %v1216 = vpack.c.b16 %v1020, %v1016
        %v1217 = vpack.c.b16 %v1021, %v1017
        %v1218 = vpack.c.b16 %v1022, %v1018
        %v1219 = vpack.c.b16 %v1027, %v1023
        %v1220 = vpack.c.b16 %v1028, %v1024
        %v1221 = vpack.c.b16 %v1029, %v1025
        %v1222 = vpack.c.b16 %v1030, %v1026
        %v1223 = vpack.c.b16 %v1035, %v1031
        %v1224 = vpack.c.b16 %v1036, %v1032
        %v1225 = vpack.c.b16 %v1037, %v1033
        %v1226 = vpack.c.b16 %v1038, %v1034
        %v1227 = vpack.c.b16 %v1043, %v1039
        %v1228 = vpack.c.b16 %v1044, %v1040
        %v1229 = vpack.c.b16 %v1045, %v1041
        %v1230 = vpack.c.b16 %v1046, %v1042
        %v1231 = vpack.c.b16 %v1051, %v1047
        %v1232 = vpack.c.b16 %v1052, %v1048
        %v1233 = vpack.c.b16 %v1053, %v1049
        %v1234 = vpack.c.b16 %v1054, %v1050
        %v1235 = vpack.c.b16 %v1059, %v1055
        %v1236 = vpack.c.b16 %v1060, %v1056
        %v1237 = vpack.c.b16 %v1061, %v1057
        %v1238 = vpack.c.b16 %v1062, %v1058
        %v1239 = vpack.c.b16 %v1067, %v1063
        %v1240 = vpack.c.b16 %v1068, %v1064
        %v1241 = vpack.c.b16 %v1069, %v1065
        %v1242 = vpack.c.b16 %v1070, %v1066
        %v1243 = vpack.c.b16 %v1075, %v1071
        %v1244 = vpack.c.b16 %v1076, %v1072
        %v1245 = vpack.c.b16 %v1077, %v1073
        %v1246 = vpack.c.b16 %v1078, %v1074
        %v1247 = vpack.c.b16 %v1083, %v1079
        %v1248 = vpack.c.b16 %v1084, %v1080
        %v1249 = vpack.c.b16 %v1085, %v1081
        %v1250 = vpack.c.b16 %v1086, %v1082
        %v1251 = vpack.c.b16 %v1091, %v1087
        %v1252 = vpack.c.b16 %v1092, %v1088
        %v1253 = vpack.c.b16 %v1093, %v1089
        %v1254 = vpack.c.b16 %v1094, %v1090
        %v1255 = vpack.c.b16 %v1099, %v1095
        %v1256 = vpack.c.b16 %v1100, %v1096
        %v1257 = vpack.c.b16 %v1101, %v1097
        %v1258 = vpack.c.b16 %v1102, %v1098
        %v1259 = vpack.c.b16 %v1107, %v1103
        %v1260 = vpack.c.b16 %v1108, %v1104
        %v1261 = vpack.c.b16 %v1109, %v1105
        %v1262 = vpack.c.b16 %v1110, %v1106
        %v1263 = vpack.c.b16 %v1115, %v1111
        %v1264 = vpack.c.b16 %v1116, %v1112
        %v1265 = vpack.c.b16 %v1117, %v1113
        %v1266 = vpack.c.b16 %v1118, %v1114
        %v1267 = vpack.c.b16 %v1123, %v1119
        %v1268 = vpack.c.b16 %v1124, %v1120
        %v1269 = vpack.c.b16 %v1125, %v1121
        %v1270 = vpack.c.b16 %v1126, %v1122
        %v1271 = vpack.c.b16 %v1131, %v1127
        %v1272 = vpack.c.b16 %v1132, %v1128
        %v1273 = vpack.c.b16 %v1133, %v1129
        %v1274 = vpack.c.b16 %v1134, %v1130
        %v1275 = vpack.c.b16 %v1139, %v1135
        %v1276 = vpack.c.b16 %v1140, %v1136
        %v1277 = vpack.c.b16 %v1141, %v1137
        %v1278 = vpack.c.b16 %v1142, %v1138
        %v1279 = vpack.c.b16 %v1147, %v1143
        %v1280 = vpack.c.b16 %v1148, %v1144
        %v1281 = vpack.c.b16 %v1149, %v1145
        %v1282 = vpack.c.b16 %v1150, %v1146
        %v1283 = vpack.c.b16 %v1155, %v1151
        %v1284 = vpack.c.b16 %v1156, %v1152
        %v1285 = vpack.c.b16 %v1157, %v1153
        %v1286 = vpack.c.b16 %v1158, %v1154
        %1415 = vmatprep.subr.bf16.mxu0 %v1160
        %1416 = vmatpush1.bf16.msra.mxu0 %v1159
        %1417 = vmatprep.subr.bf16.mxu0 %v1164
        %1418 = vmatpush1.bf16.msra.mxu0 %v1163
        %1419 = vmatprep.subr.bf16.mxu0 %v1168
        %1420 = vmatpush1.bf16.msra.mxu0 %v1167
        %1421 = vmatprep.subr.bf16.mxu0 %v1172
        %1422 = vmatpush1.bf16.msra.mxu0 %v1171
        %1423 = vmatprep.subr.bf16.mxu0 %v1176
        %1424 = vmatpush1.bf16.msra.mxu0 %v1175
        %1425 = vmatprep.subr.bf16.mxu0 %v1180
        %1426 = vmatpush1.bf16.msra.mxu0 %v1179
        %1427 = vmatprep.subr.bf16.mxu0 %v1184
        %1428 = vmatpush1.bf16.msra.mxu0 %v1183
        %1429 = vmatprep.subr.bf16.mxu0 %v1188
        %1430 = vmatpush1.bf16.msra.mxu0 %v1187
        %1431 = vmatprep.subr.bf16.mxu0 %v1192
        %1432 = vmatpush1.bf16.msra.mxu0 %v1191
        %1433 = vmatprep.subr.bf16.mxu0 %v1196
        %1434 = vmatpush1.bf16.msra.mxu0 %v1195
        %1435 = vmatprep.subr.bf16.mxu0 %v1200
        %1436 = vmatpush1.bf16.msra.mxu0 %v1199
        %1437 = vmatprep.subr.bf16.mxu0 %v1204
        %1438 = vmatpush1.bf16.msra.mxu0 %v1203
        %1439 = vmatprep.subr.bf16.mxu0 %v1208
        %1440 = vmatpush1.bf16.msra.mxu0 %v1207
        %1441 = vmatprep.subr.bf16.mxu0 %v1212
        %1442 = vmatpush1.bf16.msra.mxu0 %v1211
        %1443 = vmatprep.subr.bf16.mxu0 %v1216
        %1444 = vmatpush1.bf16.msra.mxu0 %v1215
        %1445 = vmatprep.subr.bf16.mxu0 %v1220
        %1446 = vmatpush1.bf16.msra.mxu0 %v1219
        %1447 = vmatprep.mubr.bf16.mxu0 %v744
        %1448 = vmatmul.mubr.bf16.gmra.mrb[0].mxu0 %v743
        %v1449 = vpop.f32.mrb[0].mxu0
        %v1450 = vadd.f32 %v658, %v1449
        %v1451 = vpop.f32.mrb[0].mxu0
        %v1452 = vadd.f32 %v658, %v1451
        %v1453 = vpop.f32.mrb[0].mxu0
        %v1454 = vadd.f32 %v663, %v1453
        %v1455 = vpop.f32.mrb[0].mxu0
        %v1456 = vadd.f32 %v663, %v1455
        %1457 = vmatprep.mubr.bf16.mxu0 %v748
        %1458 = vmatmul.mubr.bf16.gmra.mrb[0].mxu0 %v747
        %v1459 = vpop.f32.mrb[0].mxu0
        %v1460 = vadd.f32 %v668, %v1459
        %v1461 = vpop.f32.mrb[0].mxu0
        %v1462 = vadd.f32 %v668, %v1461
        %v1463 = vpop.f32.mrb[0].mxu0
        %v1464 = vadd.f32 %v673, %v1463
        %v1465 = vpop.f32.mrb[0].mxu0
        %v1466 = vadd.f32 %v673, %v1465
        %1467 = vmatprep.mubr.bf16.mxu0 %v752
        %1468 = vmatmul.mubr.bf16.gmra.mrb[0].mxu0 %v751
        %v1469 = vpop.f32.mrb[0].mxu0
        %v1470 = vadd.f32 %v678, %v1469
        %v1471 = vpop.f32.mrb[0].mxu0
        %v1472 = vadd.f32 %v678, %v1471
        %v1473 = vpop.f32.mrb[0].mxu0
        %v1474 = vadd.f32 %v683, %v1473
        %v1475 = vpop.f32.mrb[0].mxu0
        %v1476 = vadd.f32 %v683, %v1475
        %1477 = vmatprep.mubr.bf16.mxu0 %v756
        %1478 = vmatmul.mubr.bf16.gmra.mrb[0].mxu0 %v755
        %v1479 = vpop.f32.mrb[0].mxu0
        %v1480 = vadd.f32 %v688, %v1479
        %v1481 = vpop.f32.mrb[0].mxu0
        %v1482 = vadd.f32 %v688, %v1481
        %v1483 = vpop.f32.mrb[0].mxu0
        %v1484 = vadd.f32 %v693, %v1483
        %v1485 = vpop.f32.mrb[0].mxu0
        %v1486 = vadd.f32 %v693, %v1485
        %1487 = vdwg.mxu0
        %1488 = vmatprep.subr.bf16.mxu0 %v1224
        %1489 = vmatpush1.bf16.msra.mxu0 %v1223
        %1490 = vmatprep.subr.bf16.mxu0 %v1228
        %1491 = vmatpush1.bf16.msra.mxu0 %v1227
        %1492 = vmatprep.subr.bf16.mxu0 %v1232
        %1493 = vmatpush1.bf16.msra.mxu0 %v1231
        %1494 = vmatprep.subr.bf16.mxu0 %v1236
        %1495 = vmatpush1.bf16.msra.mxu0 %v1235
        %1496 = vmatprep.subr.bf16.mxu0 %v1240
        %1497 = vmatpush1.bf16.msra.mxu0 %v1239
        %1498 = vmatprep.subr.bf16.mxu0 %v1244
        %1499 = vmatpush1.bf16.msra.mxu0 %v1243
        %1500 = vmatprep.subr.bf16.mxu0 %v1248
        %1501 = vmatpush1.bf16.msra.mxu0 %v1247
        %1502 = vmatprep.subr.bf16.mxu0 %v1252
        %1503 = vmatpush1.bf16.msra.mxu0 %v1251
        %1504 = vmatprep.subr.bf16.mxu0 %v1256
        %1505 = vmatpush1.bf16.msra.mxu0 %v1255
        %1506 = vmatprep.subr.bf16.mxu0 %v1260
        %1507 = vmatpush1.bf16.msra.mxu0 %v1259
        %1508 = vmatprep.subr.bf16.mxu0 %v1264
        %1509 = vmatpush1.bf16.msra.mxu0 %v1263
        %1510 = vmatprep.subr.bf16.mxu0 %v1268
        %1511 = vmatpush1.bf16.msra.mxu0 %v1267
        %1512 = vmatprep.subr.bf16.mxu0 %v1272
        %1513 = vmatpush1.bf16.msra.mxu0 %v1271
        %1514 = vmatprep.subr.bf16.mxu0 %v1276
        %1515 = vmatpush1.bf16.msra.mxu0 %v1275
        %1516 = vmatprep.subr.bf16.mxu0 %v1280
        %1517 = vmatpush1.bf16.msra.mxu0 %v1279
        %1518 = vmatprep.subr.bf16.mxu0 %v1284
        %1519 = vmatpush1.bf16.msra.mxu0 %v1283
        %1520 = vmatprep.mubr.bf16.mxu0 %v746
        %1521 = vmatmul.mubr.bf16.gmra.mrb[0].mxu0 %v745
        %v1522 = vpop.f32.mrb[0].mxu0
        %v1523 = vadd.f32 %v1450, %v1522
        %v1524 = vpop.f32.mrb[0].mxu0
        %v1525 = vadd.f32 %v1452, %v1524
        %v1526 = vpop.f32.mrb[0].mxu0
        %v1527 = vadd.f32 %v1454, %v1526
        %v1528 = vpop.f32.mrb[0].mxu0
        %v1529 = vadd.f32 %v1456, %v1528
        %1530 = vmatprep.mubr.bf16.mxu0 %v750
        %1531 = vmatmul.mubr.bf16.gmra.mrb[0].mxu0 %v749
        %v1532 = vpop.f32.mrb[0].mxu0
        %v1533 = vadd.f32 %v1460, %v1532
        %v1534 = vpop.f32.mrb[0].mxu0
        %v1535 = vadd.f32 %v1462, %v1534
        %v1536 = vpop.f32.mrb[0].mxu0
        %v1537 = vadd.f32 %v1464, %v1536
        %v1538 = vpop.f32.mrb[0].mxu0
        %v1539 = vadd.f32 %v1466, %v1538
        %1540 = vmatprep.mubr.bf16.mxu0 %v754
        %1541 = vmatmul.mubr.bf16.gmra.mrb[0].mxu0 %v753
        %v1542 = vpop.f32.mrb[0].mxu0
        %v1543 = vadd.f32 %v1470, %v1542
        %v1544 = vpop.f32.mrb[0].mxu0
        %v1545 = vadd.f32 %v1472, %v1544
        %v1546 = vpop.f32.mrb[0].mxu0
        %v1547 = vadd.f32 %v1474, %v1546
        %v1548 = vpop.f32.mrb[0].mxu0
        %v1549 = vadd.f32 %v1476, %v1548
        %1550 = vmatprep.mubr.bf16.mxu0 %v758
        %1551 = vmatmul.mubr.bf16.gmra.mrb[0].mxu0 %v757
        %v1552 = vpop.f32.mrb[0].mxu0
        %v1553 = vadd.f32 %v1480, %v1552
        %v1554 = vpop.f32.mrb[0].mxu0
        %v1555 = vadd.f32 %v1482, %v1554
        %v1556 = vpop.f32.mrb[0].mxu0
        %v1557 = vadd.f32 %v1484, %v1556
        %v1558 = vpop.f32.mrb[0].mxu0
        %v1559 = vadd.f32 %v1486, %v1558
        %1560 = vdwg.mxu0
        %1561 = vmatprep.subr.bf16.mxu0 %v1162
        %1562 = vmatpush1.bf16.msra.mxu0 %v1161
        %1563 = vmatprep.subr.bf16.mxu0 %v1166
        %1564 = vmatpush1.bf16.msra.mxu0 %v1165
        %1565 = vmatprep.subr.bf16.mxu0 %v1170
        %1566 = vmatpush1.bf16.msra.mxu0 %v1169
        %1567 = vmatprep.subr.bf16.mxu0 %v1174
        %1568 = vmatpush1.bf16.msra.mxu0 %v1173
        %1569 = vmatprep.subr.bf16.mxu0 %v1178
        %1570 = vmatpush1.bf16.msra.mxu0 %v1177
        %1571 = vmatprep.subr.bf16.mxu0 %v1182
        %1572 = vmatpush1.bf16.msra.mxu0 %v1181
        %1573 = vmatprep.subr.bf16.mxu0 %v1186
        %1574 = vmatpush1.bf16.msra.mxu0 %v1185
        %1575 = vmatprep.subr.bf16.mxu0 %v1190
        %1576 = vmatpush1.bf16.msra.mxu0 %v1189
        %1577 = vmatprep.subr.bf16.mxu0 %v1194
        %1578 = vmatpush1.bf16.msra.mxu0 %v1193
        %1579 = vmatprep.subr.bf16.mxu0 %v1198
        %1580 = vmatpush1.bf16.msra.mxu0 %v1197
        %1581 = vmatprep.subr.bf16.mxu0 %v1202
        %1582 = vmatpush1.bf16.msra.mxu0 %v1201
        %1583 = vmatprep.subr.bf16.mxu0 %v1206
        %1584 = vmatpush1.bf16.msra.mxu0 %v1205
        %1585 = vmatprep.subr.bf16.mxu0 %v1210
        %1586 = vmatpush1.bf16.msra.mxu0 %v1209
        %1587 = vmatprep.subr.bf16.mxu0 %v1214
        %1588 = vmatpush1.bf16.msra.mxu0 %v1213
        %1589 = vmatprep.subr.bf16.mxu0 %v1218
        %1590 = vmatpush1.bf16.msra.mxu0 %v1217
        %1591 = vmatprep.subr.bf16.mxu0 %v1222
        %1592 = vmatpush1.bf16.msra.mxu0 %v1221
        %1593 = vmatprep.mubr.bf16.mxu0 %v744
        %1594 = vmatmul.mubr.bf16.gmra.mrb[0].mxu0 %v743
        %v1595 = vpop.f32.mrb[0].mxu0
        %v1596 = vadd.f32 %v658, %v1595
        %v1597 = vpop.f32.mrb[0].mxu0
        %v1598 = vadd.f32 %v658, %v1597
        %v1599 = vpop.f32.mrb[0].mxu0
        %v1600 = vadd.f32 %v663, %v1599
        %v1601 = vpop.f32.mrb[0].mxu0
        %v1602 = vadd.f32 %v663, %v1601
        %1603 = vmatprep.mubr.bf16.mxu0 %v748
        %1604 = vmatmul.mubr.bf16.gmra.mrb[0].mxu0 %v747
        %v1605 = vpop.f32.mrb[0].mxu0
        %v1606 = vadd.f32 %v668, %v1605
        %v1607 = vpop.f32.mrb[0].mxu0
        %v1608 = vadd.f32 %v668, %v1607
        %v1609 = vpop.f32.mrb[0].mxu0
        %v1610 = vadd.f32 %v673, %v1609
        %v1611 = vpop.f32.mrb[0].mxu0
        %v1612 = vadd.f32 %v673, %v1611
        %1613 = vmatprep.mubr.bf16.mxu0 %v752
        %1614 = vmatmul.mubr.bf16.gmra.mrb[0].mxu0 %v751
        %v1615 = vpop.f32.mrb[0].mxu0
        %v1616 = vadd.f32 %v678, %v1615
        %v1617 = vpop.f32.mrb[0].mxu0
        %v1618 = vadd.f32 %v678, %v1617
        %v1619 = vpop.f32.mrb[0].mxu0
        %v1620 = vadd.f32 %v683, %v1619
        %v1621 = vpop.f32.mrb[0].mxu0
        %v1622 = vadd.f32 %v683, %v1621
        %1623 = vmatprep.mubr.bf16.mxu0 %v756
        %1624 = vmatmul.mubr.bf16.gmra.mrb[0].mxu0 %v755
        %v1625 = vpop.f32.mrb[0].mxu0
        %v1626 = vadd.f32 %v688, %v1625
        %v1627 = vpop.f32.mrb[0].mxu0
        %v1628 = vadd.f32 %v688, %v1627
        %v1629 = vpop.f32.mrb[0].mxu0
        %v1630 = vadd.f32 %v693, %v1629
        %v1631 = vpop.f32.mrb[0].mxu0
        %v1632 = vadd.f32 %v693, %v1631
        %1633 = vdwg.mxu0
        %1634 = vmatprep.subr.bf16.mxu0 %v1226
        %1635 = vmatpush1.bf16.msra.mxu0 %v1225
        %1636 = vmatprep.subr.bf16.mxu0 %v1230
        %1637 = vmatpush1.bf16.msra.mxu0 %v1229
        %1638 = vmatprep.subr.bf16.mxu0 %v1234
        %1639 = vmatpush1.bf16.msra.mxu0 %v1233
        %1640 = vmatprep.subr.bf16.mxu0 %v1238
        %1641 = vmatpush1.bf16.msra.mxu0 %v1237
        %1642 = vmatprep.subr.bf16.mxu0 %v1242
        %1643 = vmatpush1.bf16.msra.mxu0 %v1241
        %1644 = vmatprep.subr.bf16.mxu0 %v1246
        %1645 = vmatpush1.bf16.msra.mxu0 %v1245
        %1646 = vmatprep.subr.bf16.mxu0 %v1250
        %1647 = vmatpush1.bf16.msra.mxu0 %v1249
        %1648 = vmatprep.subr.bf16.mxu0 %v1254
        %1649 = vmatpush1.bf16.msra.mxu0 %v1253
        %1650 = vmatprep.subr.bf16.mxu0 %v1258
        %1651 = vmatpush1.bf16.msra.mxu0 %v1257
        %1652 = vmatprep.subr.bf16.mxu0 %v1262
        %1653 = vmatpush1.bf16.msra.mxu0 %v1261
        %1654 = vmatprep.subr.bf16.mxu0 %v1266
        %1655 = vmatpush1.bf16.msra.mxu0 %v1265
        %1656 = vmatprep.subr.bf16.mxu0 %v1270
        %1657 = vmatpush1.bf16.msra.mxu0 %v1269
        %1658 = vmatprep.subr.bf16.mxu0 %v1274
        %1659 = vmatpush1.bf16.msra.mxu0 %v1273
        %1660 = vmatprep.subr.bf16.mxu0 %v1278
        %1661 = vmatpush1.bf16.msra.mxu0 %v1277
        %1662 = vmatprep.subr.bf16.mxu0 %v1282
        %1663 = vmatpush1.bf16.msra.mxu0 %v1281
        %1664 = vmatprep.subr.bf16.mxu0 %v1286
        %1665 = vmatpush1.bf16.msra.mxu0 %v1285
        %1666 = vmatprep.mubr.bf16.mxu0 %v746
        %1667 = vmatmul.mubr.bf16.gmra.mrb[0].mxu0 %v745
        %v1668 = vpop.f32.mrb[0].mxu0
        %v1669 = vadd.f32 %v1596, %v1668
        %v1670 = vpop.f32.mrb[0].mxu0
        %v1671 = vadd.f32 %v1598, %v1670
        %v1672 = vpop.f32.mrb[0].mxu0
        %v1673 = vadd.f32 %v1600, %v1672
        %v1674 = vpop.f32.mrb[0].mxu0
        %v1675 = vadd.f32 %v1602, %v1674
        %1676 = vmatprep.mubr.bf16.mxu0 %v750
        %1677 = vmatmul.mubr.bf16.gmra.mrb[0].mxu0 %v749
        %v1678 = vpop.f32.mrb[0].mxu0
        %v1679 = vadd.f32 %v1606, %v1678
        %v1680 = vpop.f32.mrb[0].mxu0
        %v1681 = vadd.f32 %v1608, %v1680
        %v1682 = vpop.f32.mrb[0].mxu0
        %v1683 = vadd.f32 %v1610, %v1682
        %v1684 = vpop.f32.mrb[0].mxu0
        %v1685 = vadd.f32 %v1612, %v1684
        %1686 = vmatprep.mubr.bf16.mxu0 %v754
        %1687 = vmatmul.mubr.bf16.gmra.mrb[0].mxu0 %v753
        %v1688 = vpop.f32.mrb[0].mxu0
        %v1689 = vadd.f32 %v1616, %v1688
        %v1690 = vpop.f32.mrb[0].mxu0
        %v1691 = vadd.f32 %v1618, %v1690
        %v1692 = vpop.f32.mrb[0].mxu0
        %v1693 = vadd.f32 %v1620, %v1692
        %v1694 = vpop.f32.mrb[0].mxu0
        %v1695 = vadd.f32 %v1622, %v1694
        %1696 = vmatprep.mubr.bf16.mxu0 %v758
        %1697 = vmatmul.mubr.bf16.gmra.mrb[0].mxu0 %v757
        %v1698 = vpop.f32.mrb[0].mxu0
        %v1699 = vadd.f32 %v1626, %v1698
        %v1700 = vpop.f32.mrb[0].mxu0
        %v1701 = vadd.f32 %v1628, %v1700
        %v1702 = vpop.f32.mrb[0].mxu0
        %v1703 = vadd.f32 %v1630, %v1702
        %v1704 = vpop.f32.mrb[0].mxu0
        %v1705 = vadd.f32 %v1632, %v1704
        %1706 = vdwg.mxu0
        %v1707 = vmax.f32 %v1523, 0.0
        %v1708 = vmax.f32 %v1525, 0.0
        %v1709 = vmax.f32 %v1669, 0.0
        %v1710 = vmax.f32 %v1671, 0.0
        %v1711 = vmax.f32 %v1527, 0.0
        %v1712 = vmax.f32 %v1529, 0.0
        %v1713 = vmax.f32 %v1673, 0.0
        %v1714 = vmax.f32 %v1675, 0.0
        %v1715 = vmax.f32 %v1533, 0.0
        %v1716 = vmax.f32 %v1535, 0.0
        %v1717 = vmax.f32 %v1679, 0.0
        %v1718 = vmax.f32 %v1681, 0.0
        %v1719 = vmax.f32 %v1537, 0.0
        %v1720 = vmax.f32 %v1539, 0.0
        %v1721 = vmax.f32 %v1683, 0.0
        %v1722 = vmax.f32 %v1685, 0.0
        %v1723 = vmax.f32 %v1543, 0.0
        %v1724 = vmax.f32 %v1545, 0.0
        %v1725 = vmax.f32 %v1689, 0.0
        %v1726 = vmax.f32 %v1691, 0.0
        %v1727 = vmax.f32 %v1547, 0.0
        %v1728 = vmax.f32 %v1549, 0.0
        %v1729 = vmax.f32 %v1693, 0.0
        %v1730 = vmax.f32 %v1695, 0.0
        %v1731 = vmax.f32 %v1553, 0.0
        %v1732 = vmax.f32 %v1555, 0.0
        %v1733 = vmax.f32 %v1699, 0.0
        %v1734 = vmax.f32 %v1701, 0.0
        %v1735 = vmax.f32 %v1557, 0.0
        %v1736 = vmax.f32 %v1559, 0.0
        %v1737 = vmax.f32 %v1703, 0.0
        %v1738 = vmax.f32 %v1705, 0.0
        %v1739 = vpack.c.bf16 %v1711, %v1707
        %v1740 = vpack.c.bf16 %v1712, %v1708
        %v1741 = vpack.c.bf16 %v1713, %v1709
        %v1742 = vpack.c.bf16 %v1714, %v1710
        %v1743 = vpack.c.bf16 %v1719, %v1715
        %v1744 = vpack.c.bf16 %v1720, %v1716
        %v1745 = vpack.c.bf16 %v1721, %v1717
        %v1746 = vpack.c.bf16 %v1722, %v1718
        %v1747 = vpack.c.bf16 %v1727, %v1723
        %v1748 = vpack.c.bf16 %v1728, %v1724
        %v1749 = vpack.c.bf16 %v1729, %v1725
        %v1750 = vpack.c.bf16 %v1730, %v1726
        %v1751 = vpack.c.bf16 %v1735, %v1731
        %v1752 = vpack.c.bf16 %v1736, %v1732
        %v1753 = vpack.c.bf16 %v1737, %v1733
        %v1754 = vpack.c.bf16 %v1738, %v1734
        %v1771 = vunpack.c.l.b16 %v1739
        %v1772 = vunpack.c.l.b16 %v1740
        %v1773 = vunpack.c.l.b16 %v1741
        %v1774 = vunpack.c.l.b16 %v1742
        %v1775 = vunpack.c.h.b16 %v1739
        %v1776 = vunpack.c.h.b16 %v1740
        %v1777 = vunpack.c.h.b16 %v1741
        %v1778 = vunpack.c.h.b16 %v1742
        %v1779 = vunpack.c.l.b16 %v1743
        %v1780 = vunpack.c.l.b16 %v1744
        %v1781 = vunpack.c.l.b16 %v1745
        %v1782 = vunpack.c.l.b16 %v1746
        %v1783 = vunpack.c.h.b16 %v1743
        %v1784 = vunpack.c.h.b16 %v1744
        %v1785 = vunpack.c.h.b16 %v1745
        %v1786 = vunpack.c.h.b16 %v1746
        %v1787 = vunpack.c.l.b16 %v1747
        %v1788 = vunpack.c.l.b16 %v1748
        %v1789 = vunpack.c.l.b16 %v1749
        %v1790 = vunpack.c.l.b16 %v1750
        %v1791 = vunpack.c.h.b16 %v1747
        %v1792 = vunpack.c.h.b16 %v1748
        %v1793 = vunpack.c.h.b16 %v1749
        %v1794 = vunpack.c.h.b16 %v1750
        %v1795 = vunpack.c.l.b16 %v1751
        %v1796 = vunpack.c.l.b16 %v1752
        %v1797 = vunpack.c.l.b16 %v1753
        %v1798 = vunpack.c.l.b16 %v1754
        %v1799 = vunpack.c.h.b16 %v1751
        %v1800 = vunpack.c.h.b16 %v1752
        %v1801 = vunpack.c.h.b16 %v1753
        %v1802 = vunpack.c.h.b16 %v1754
        %v1803 = vpack.c.b16 %v1772, %v1771
        %v1804 = vpack.c.b16 %v1774, %v1773
        %v1805 = vpack.c.b16 %v1776, %v1775
        %v1806 = vpack.c.b16 %v1778, %v1777
        %v1807 = vpack.c.b16 %v1780, %v1779
        %v1808 = vpack.c.b16 %v1782, %v1781
        %v1809 = vpack.c.b16 %v1784, %v1783
        %v1810 = vpack.c.b16 %v1786, %v1785
        %v1811 = vpack.c.b16 %v1788, %v1787
        %v1812 = vpack.c.b16 %v1790, %v1789
        %v1813 = vpack.c.b16 %v1792, %v1791
        %v1814 = vpack.c.b16 %v1794, %v1793
        %v1815 = vpack.c.b16 %v1796, %v1795
        %v1816 = vpack.c.b16 %v1798, %v1797
        %v1817 = vpack.c.b16 %v1800, %v1799
        %v1818 = vpack.c.b16 %v1802, %v1801
        %1835 = vst [vmem:[%s486] sm:$0xff] %v1803
        %1836 = vst [vmem:[%s486 + $0x8] sm:$0xff] %v1804
        %1837 = vst [vmem:[%s486 + $0x10] sm:$0xff] %v1805
        %1838 = vst [vmem:[%s486 + $0x18] sm:$0xff] %v1806
        %1839 = vst [vmem:[%s486 + $0x20] sm:$0xff] %v1807
        %1840 = vst [vmem:[%s486 + $0x28] sm:$0xff] %v1808
        %1841 = vst [vmem:[%s486 + $0x30] sm:$0xff] %v1809
        %1842 = vst [vmem:[%s486 + $0x38] sm:$0xff] %v1810
        %1843 = vst [vmem:[%s486 + $0x40] sm:$0xff] %v1811
        %1844 = vst [vmem:[%s486 + $0x48] sm:$0xff] %v1812
        %1845 = vst [vmem:[%s486 + $0x50] sm:$0xff] %v1813
        %1846 = vst [vmem:[%s486 + $0x58] sm:$0xff] %v1814
        %1847 = vst [vmem:[%s486 + $0x60] sm:$0xff] %v1815
        %1848 = vst [vmem:[%s486 + $0x68] sm:$0xff] %v1816
        %1849 = vst [vmem:[%s486 + $0x70] sm:$0xff] %v1817
        %1850 = vst [vmem:[%s486 + $0x78] sm:$0xff] %v1818
        %s1851 = sand.u32 %s114, 1
        %s1852 = sand.u32 %s114, 1
        %s1853 = smul.addr %s1852, 128
        %s1854 = scalar_lea.vmem [#allocation3], %s1853
        // Predicated region
        $region56: #{dqn_forward.5} parent=50 // pred_check
          %p1855 = pneg %p124
        $region57: #{dqn_forward.5} parent=50 // pred_check_branch
          %1857 = sbr.rel (%p1855) target = $region59
        $region58: #{dqn_forward.5} parent=50 // pred_region
          %s1858 = smul.u32 8, %s18
          %s1859 = smul.u32 4, %s19
          %s1860 = smul.addr %s1858, 24
          %s1861 = sadd.s32 %s1859, %s1860
          %s1862 = smul.addr %s1861, 4
          %s1863 = scalar_lea.vmem %s3, %s1862
          // Predicated region
          $region60: #{dqn_forward.5} parent=58 // pred_check
            _
          $region61: #{dqn_forward.5} parent=58 // pred_check_branch
            %1865 = sbr.rel (0) target = $region63
          $region62: #{dqn_forward.5} parent=58 // pred_region
            // Predicated region
            $region64: #{dqn_forward.5} parent=62 // pred_check
              _
            $region65: #{dqn_forward.5} parent=62 // pred_check_branch
              %1867 = sbr.rel (0) target = $region67
            $region66: #{dqn_forward.5} parent=62 // pred_region
              loop: start=0, step=1, limit=1
              $region68: #{dqn_forward.5} parent=66 // loop_pre_header
                _
              $region69: #{dqn_forward.5} parent=66 // loop_header
                %s1869 = sphi 0, %s1873
                %p1870 = scmp.ge.s32.totalorder %s1869, 1
                %s1874 = sphi %s1854, %s1854
                %s1875 = sphi %s1863, %s1863
              $region70: #{dqn_forward.5} parent=66 // loop_header_branch
                %1872 = sbr.rel (%p1870) target = $region74
              $region71: #{dqn_forward.5} parent=66 // loop_body
                %v1876 = vld [vmem:[%s1874] sm:$0xff]
                %1877 = vst [vmem:[%s1875] sm:$0xff] %v1876
                %v1878 = vld [vmem:[%s1874 + $0x8] sm:$0xff]
                %1879 = vst [vmem:[%s1875 + $0x8] sm:$0xff] %v1878
                %v1880 = vld [vmem:[%s1874 + $0x10] sm:$0xff]
                %1881 = vst [vmem:[%s1875 + $0x60] sm:$0xff] %v1880
                %v1882 = vld [vmem:[%s1874 + $0x18] sm:$0xff]
                %1883 = vst [vmem:[%s1875 + $0x68] sm:$0xff] %v1882
                %v1884 = vld [vmem:[%s1874 + $0x20] sm:$0xff]
                %1885 = vst [vmem:[%s1875 + $0xc0] sm:$0xff] %v1884
                %v1886 = vld [vmem:[%s1874 + $0x28] sm:$0xff]
                %1887 = vst [vmem:[%s1875 + $0xc8] sm:$0xff] %v1886
                %v1888 = vld [vmem:[%s1874 + $0x30] sm:$0xff]
                %1889 = vst [vmem:[%s1875 + $0x120] sm:$0xff] %v1888
                %v1890 = vld [vmem:[%s1874 + $0x38] sm:$0xff]
                %1891 = vst [vmem:[%s1875 + $0x128] sm:$0xff] %v1890
                %v1892 = vld [vmem:[%s1874 + $0x40] sm:$0xff]
                %1893 = vst [vmem:[%s1875 + $0x180] sm:$0xff] %v1892
                %v1894 = vld [vmem:[%s1874 + $0x48] sm:$0xff]
                %1895 = vst [vmem:[%s1875 + $0x188] sm:$0xff] %v1894
                %v1896 = vld [vmem:[%s1874 + $0x50] sm:$0xff]
                %1897 = vst [vmem:[%s1875 + $0x1e0] sm:$0xff] %v1896
                %v1898 = vld [vmem:[%s1874 + $0x58] sm:$0xff]
                %1899 = vst [vmem:[%s1875 + $0x1e8] sm:$0xff] %v1898
                %v1900 = vld [vmem:[%s1874 + $0x60] sm:$0xff]
                %1901 = vst [vmem:[%s1875 + $0x240] sm:$0xff] %v1900
                %v1902 = vld [vmem:[%s1874 + $0x68] sm:$0xff]
                %1903 = vst [vmem:[%s1875 + $0x248] sm:$0xff] %v1902
                %v1904 = vld [vmem:[%s1874 + $0x70] sm:$0xff]
                %1905 = vst [vmem:[%s1875 + $0x2a0] sm:$0xff] %v1904
                %v1906 = vld [vmem:[%s1874 + $0x78] sm:$0xff]
                %1907 = vst [vmem:[%s1875 + $0x2a8] sm:$0xff] %v1906
              $region72: #{dqn_forward.5} parent=66 // loop_footer
                %s1873 = sadd.s32 1, %s1869
              $region73: #{dqn_forward.5} parent=66 // loop_footer_branch
                %1868 = sbr.rel target = $region69
              $region74: #{dqn_forward.5} parent=66 // loop_exit
                _
            $region67: #{dqn_forward.5} parent=62 // pred_fallthru
              _
            // Predicated region
            $region75: #{dqn_forward.5} parent=62 // pred_check
              _
            $region76: #{dqn_forward.5} parent=62 // pred_check_branch
              %1909 = sbr.rel target = $region78
            $region77: #{dqn_forward.5} parent=62 // pred_region
              _
            $region78: #{dqn_forward.5} parent=62 // pred_fallthru
              _
          $region63: #{dqn_forward.5} parent=58 // pred_fallthru
            _
          %1910 = vnop
        $region59: #{dqn_forward.5} parent=50 // pred_fallthru
          _
      $region51: #{dqn_forward.5} parent=5 // pred_fallthru
        _
      %p1911 = scmp.le.s32.totalorder 2, %s9
      // Predicated region
      $region79: #{dqn_forward.5} parent=5 // pred_check
        %p1912 = pneg %p1911
      $region80: #{dqn_forward.5} parent=5 // pred_check_branch
        %1914 = sbr.rel (%p1912) target = $region82
      $region81: #{dqn_forward.5} parent=5 // pred_region
        %s1915 = ssub.s32 %s9, 2
        // Predicated region
        $region83: #{dqn_forward.5} parent=81 // pred_check
          %p1916 = pneg %p130
        $region84: #{dqn_forward.5} parent=81 // pred_check_branch
          %1918 = sbr.rel (%p1916) target = $region86
        $region85: #{dqn_forward.5} parent=81 // pred_region
          %s1919 = sand.u32 %s115, 1
          %s1920 = sand.u32 %s115, 1
          %s1921 = smul.addr %s1920, 128
          %s1922 = scalar_lea.vmem [#allocation3], %s1921
        $region86: #{dqn_forward.5} parent=81 // pred_fallthru
          _
      $region82: #{dqn_forward.5} parent=5 // pred_fallthru
        _
    $region6: #{dqn_forward.5} parent=1 // loop_footer
      %s13 = sadd.s32 1, %s9
    $region7: #{dqn_forward.5} parent=1 // loop_footer_branch
      %8 = sbr.rel target = $region3
    $region8: #{dqn_forward.5} parent=1 // loop_exit
      _

// kernel: dqn_forward.6
$region0: #{dqn_forward.6}
  #allocation0 [shape = 'u32[]', space=smem, size = 0x4, offset = 0x4, fixed_abs, tag = 'smem constant byte address 0x4 - core index']
  #allocation1 [shape = 'u32[144,128]{1,0:T(1,128)}', space=vmem, size = 0x12000, scoped, tag = 'internal scratch']
  %s0 = inlined_call_operand.vmem [shape: bf16[64,576], index: 0, kind: input, shape index: {}]
  %s1 = inlined_call_operand.vmem [shape: bf16[576,2560], index: 1, kind: input, shape index: {}]
  %s2 = inlined_call_operand.vmem [shape: f32[64,1], index: 2, kind: input, shape index: {}]
  %s3 = inlined_call_operand.vmem [shape: bf16[64,2560], index: 3, kind: output, shape index: {}]
  %s4 = sld [smem:[#allocation0]]
  $region93: #{dqn_forward.6} parent=0
    _
  %s6 = ssub.s32 1, %s4
  %s7 = scalar_select 0, %s6, %s4
  $region1: #{dqn_forward.6} parent=0
    #allocation2 [shape = 'u8[1474560]{0}', space=vmem, size = 0x168000, scoped, tag = 'input window, operand 1']
    #allocation3 [shape = 'u8[163840]{0}', space=vmem, size = 0x28000, scoped, tag = 'output window, operand 0']
    loop: start=0, step=1, limit=6
    $region2: #{dqn_forward.6} parent=1 // loop_pre_header
      _
    $region3: #{dqn_forward.6} parent=1 // loop_header
      %s9 = sphi 0, %s13
      %p10 = scmp.ge.s32.totalorder %s9, 6
      %s16 = sphi 0, %s28
      %s17 = sphi 0, %s24
      %s18 = sphi 0, %s16
      %s19 = sphi 0, %s17
      %s20 = sphi 0, %s18
      %s21 = sphi 0, %s19
      %s31 = sphi 0, %s33
      %s34 = sphi 0, %s31
      %s35 = sphi 0, %s34
      %s51 = sphi 0, %s35
      %s57 = sphi 0, %s59
      %s60 = sphi 0, %s57
      %s61 = sphi 0, %s60
      %s77 = sphi 0, %s61
      %s83 = sphi 0, %s85
      %s86 = sphi 0, %s83
      %s87 = sphi 0, %s86
      %s103 = sphi 0, %s87
      %s111 = sphi 0, %s113
      %s114 = sphi 0, %s111
      %s115 = sphi 0, %s114
      %s131 = sphi 0, %s115
    $region4: #{dqn_forward.6} parent=1 // loop_header_branch
      %12 = sbr.rel (%p10) target = $region8
    $region5: #{dqn_forward.6} parent=1 // loop_body
      %s14 = ssub.s32 %s9, 1
      %s15 = ssub.s32 %s9, 2
      %s22 = sadd.s32 1, %s17
      %p23 = scmp.ge.s32.totalorder %s22, 4
      %s24 = scalar_select %p23, 0, %s22
      %s25 = sadd.s32 1, %s16
      %s26 = scalar_select %p23, %s25, %s16
      %p27 = scmp.ge.s32.totalorder %s26, 1
      %s28 = scalar_select %p27, 0, %s26
      %s29 = ssub.s32 %s16, %s28
      %p30 = scmp.eq.s32.totalorder %s29, 0
      %s32 = sadd.s32 %s31, 1
      %s33 = scalar_select %p30, %s31, %s32
      %p36 = pneg %p30
      %p37 = scmp.eq.s32.totalorder %s9, 3
      %p38 = por %p36, %p37
      %p39 = scmp.ne.s32.totalorder %s31, %s34
      %p40 = scmp.eq.s32.totalorder %s9, 0
      %p41 = por %p39, %p40
      %p42 = scmp.ne.s32.totalorder %s31, %s34
      %p43 = scmp.eq.s32.totalorder %s14, 3
      %p44 = por %p42, %p43
      %p45 = scmp.ne.s32.totalorder %s34, %s35
      %p46 = scmp.eq.s32.totalorder %s14, 0
      %p47 = por %p45, %p46
      %p48 = scmp.ne.s32.totalorder %s34, %s35
      %p49 = scmp.eq.s32.totalorder %s15, 3
      %p50 = por %p48, %p49
      %p52 = scmp.ne.s32.totalorder %s35, %s51
      %p53 = scmp.eq.s32.totalorder %s15, 0
      %p54 = por %p52, %p53
      %s55 = ssub.s32 %s17, %s24
      %p56 = scmp.eq.s32.totalorder %s55, 0
      %s58 = sadd.s32 %s57, 1
      %s59 = scalar_select %p56, %s57, %s58
      %p62 = pneg %p56
      %p63 = scmp.eq.s32.totalorder %s9, 3
      %p64 = por %p62, %p63
      %p65 = scmp.ne.s32.totalorder %s57, %s60
      %p66 = scmp.eq.s32.totalorder %s9, 0
      %p67 = por %p65, %p66
      %p68 = scmp.ne.s32.totalorder %s57, %s60
      %p69 = scmp.eq.s32.totalorder %s14, 3
      %p70 = por %p68, %p69
      %p71 = scmp.ne.s32.totalorder %s60, %s61
      %p72 = scmp.eq.s32.totalorder %s14, 0
      %p73 = por %p71, %p72
      %p74 = scmp.ne.s32.totalorder %s60, %s61
      %p75 = scmp.eq.s32.totalorder %s15, 3
      %p76 = por %p74, %p75
      %p78 = scmp.ne.s32.totalorder %s61, %s77
      %p79 = scmp.eq.s32.totalorder %s15, 0
      %p80 = por %p78, %p79
      %s81 = ssub.s32 %s16, %s28
      %p82 = scmp.eq.s32.totalorder %s81, 0
      %s84 = sadd.s32 %s83, 1
      %s85 = scalar_select %p82, %s83, %s84
      %p88 = pneg %p82
      %p89 = scmp.eq.s32.totalorder %s9, 3
      %p90 = por %p88, %p89
      %p91 = scmp.ne.s32.totalorder %s83, %s86
      %p92 = scmp.eq.s32.totalorder %s9, 0
      %p93 = por %p91, %p92
      %p94 = scmp.ne.s32.totalorder %s83, %s86
      %p95 = scmp.eq.s32.totalorder %s14, 3
      %p96 = por %p94, %p95
      %p97 = scmp.ne.s32.totalorder %s86, %s87
      %p98 = scmp.eq.s32.totalorder %s14, 0
      %p99 = por %p97, %p98
      %p100 = scmp.ne.s32.totalorder %s86, %s87
      %p101 = scmp.eq.s32.totalorder %s15, 3
      %p102 = por %p100, %p101
      %p104 = scmp.ne.s32.totalorder %s87, %s103
      %p105 = scmp.eq.s32.totalorder %s15, 0
      %p106 = por %p104, %p105
      %s107 = ssub.s32 %s16, %s28
      %s108 = ssub.s32 %s17, %s24
      %s109 = sor.u32 %s107, %s108
      %p110 = scmp.eq.s32.totalorder %s109, 0
      %s112 = sadd.s32 %s111, 1
      %s113 = scalar_select %p110, %s111, %s112
      %p116 = pneg %p110
      %p117 = scmp.eq.s32.totalorder %s9, 3
      %p118 = por %p116, %p117
      %p119 = scmp.ne.s32.totalorder %s111, %s114
      %p120 = scmp.eq.s32.totalorder %s9, 0
      %p121 = por %p119, %p120
      %p122 = scmp.ne.s32.totalorder %s111, %s114
      %p123 = scmp.eq.s32.totalorder %s14, 3
      %p124 = por %p122, %p123
      %p125 = scmp.ne.s32.totalorder %s114, %s115
      %p126 = scmp.eq.s32.totalorder %s14, 0
      %p127 = por %p125, %p126
      %p128 = scmp.ne.s32.totalorder %s114, %s115
      %p129 = scmp.eq.s32.totalorder %s15, 3
      %p130 = por %p128, %p129
      %p132 = scmp.ne.s32.totalorder %s115, %s131
      %p133 = scmp.eq.s32.totalorder %s15, 0
      %p134 = por %p132, %p133
      %p135 = scmp.le.s32.totalorder 1, %s9
      %p136 = scmp.lt.s32.totalorder %s9, 5
      %p137 = pnand %p135, %p136
      %p138 = pneg %p137
      // Predicated region
      $region9: #{dqn_forward.6} parent=5 // pred_check
        _
      $region10: #{dqn_forward.6} parent=5 // pred_check_branch
        %140 = sbr.rel (%p137) target = $region12
      $region11: #{dqn_forward.6} parent=5 // pred_region
        %s141 = ssub.s32 %s9, 1
        // Predicated region
        $region13: #{dqn_forward.6} parent=11 // pred_check
          %p142 = pneg %p47
        $region14: #{dqn_forward.6} parent=11 // pred_check_branch
          %144 = sbr.rel (%p142) target = $region16
        $region15: #{dqn_forward.6} parent=11 // pred_region
          %s145 = smul.u32 8, %s18
          %p146 = scmp.lt.s32.totalorder %s145, 7
          %s147 = scalar_select %p146, %s145, 7
          %s148 = smul.addr %s147, 5
          %s149 = smul.addr %s148, 4
          %s150 = scalar_lea.vmem %s0, %s149
          %s151 = smul.u32 8, %s18
        $region16: #{dqn_forward.6} parent=11 // pred_fallthru
          _
        // Predicated region
        $region17: #{dqn_forward.6} parent=11 // pred_check
          %p152 = pneg %p99
        $region18: #{dqn_forward.6} parent=11 // pred_check_branch
          %154 = sbr.rel (%p152) target = $region20
        $region19: #{dqn_forward.6} parent=11 // pred_region
          %s155 = smul.u32 8, %s18
          %p156 = scmp.lt.s32.totalorder %s155, 7
          %s157 = scalar_select %p156, %s155, 7
          %s158 = smul.addr %s157, 8
          %s159 = scalar_lea.vmem %s2, %s158
          %s160 = smul.u32 8, %s18
        $region20: #{dqn_forward.6} parent=11 // pred_fallthru
          _
      $region12: #{dqn_forward.6} parent=5 // pred_fallthru
        _
      %p161 = scmp.lt.s32.totalorder %s9, 4
      // Predicated region
      $region21: #{dqn_forward.6} parent=5 // pred_check
        %p162 = pneg %p161
      $region22: #{dqn_forward.6} parent=5 // pred_check_branch
        %164 = sbr.rel (%p162) target = $region24
      $region23: #{dqn_forward.6} parent=5 // pred_region
        // Predicated region
        $region25: #{dqn_forward.6} parent=23 // pred_check
          %p165 = pneg %p67
        $region26: #{dqn_forward.6} parent=23 // pred_check_branch
          %167 = sbr.rel (%p165) target = $region28
        $region27: #{dqn_forward.6} parent=23 // pred_region
          %s168 = sand.u32 %s57, 1
          %s169 = sand.u32 %s57, 1
          %s170 = smul.addr %s169, 1440
          %s171 = scalar_lea.vmem [#allocation2], %s170
          %s172 = smul.u32 5, %s17
          %s173 = smul.addr %s172, 4
          %s174 = scalar_lea.vmem %s1, %s173
          // Predicated region
          $region29: #{dqn_forward.6} parent=27 // pred_check
            _
          $region30: #{dqn_forward.6} parent=27 // pred_check_branch
            %176 = sbr.rel (0) target = $region32
          $region31: #{dqn_forward.6} parent=27 // pred_region
            // Predicated region
            $region33: #{dqn_forward.6} parent=31 // pred_check
              _
            $region34: #{dqn_forward.6} parent=31 // pred_check_branch
              %178 = sbr.rel (0) target = $region36
            $region35: #{dqn_forward.6} parent=31 // pred_region
              %s179 = scalar_lea.vmem %s174, 16
              %s180 = scalar_lea.vmem %s171, 16 [#allocation2]
              loop: start=0, step=1, limit=1
              $region37: #{dqn_forward.6} parent=35 // loop_pre_header
                _
              $region38: #{dqn_forward.6} parent=35 // loop_header
                %s182 = sphi 0, %s186
                %p183 = scmp.ge.s32.totalorder %s182, 1
                %s187 = sphi %s174, %s174
                %s188 = sphi %s171, %s171
              $region39: #{dqn_forward.6} parent=35 // loop_header_branch
                %185 = sbr.rel (%p183) target = $region43
              $region40: #{dqn_forward.6} parent=35 // loop_body
                %v189 = vld [vmem:[%s187] sm:$0xff]
                %190 = vst [vmem:[%s188] sm:$0xff] %v189
                %v191 = vld [vmem:[%s187 + $0x8] sm:$0xff]
                %192 = vst [vmem:[%s188 + $0x8] sm:$0xff] %v191
                %v193 = vld [vmem:[%s187 + $0x50] sm:$0xff]
                %194 = vst [vmem:[%s188 + $0x14] sm:$0xff] %v193
                %v195 = vld [vmem:[%s187 + $0x58] sm:$0xff]
                %196 = vst [vmem:[%s188 + $0x1c] sm:$0xff] %v195
                %v197 = vld [vmem:[%s187 + $0xa0] sm:$0xff]
                %198 = vst [vmem:[%s188 + $0x28] sm:$0xff] %v197
                %v199 = vld [vmem:[%s187 + $0xa8] sm:$0xff]
                %200 = vst [vmem:[%s188 + $0x30] sm:$0xff] %v199
                %v201 = vld [vmem:[%s187 + $0xf0] sm:$0xff]
                %202 = vst [vmem:[%s188 + $0x3c] sm:$0xff] %v201
                %v203 = vld [vmem:[%s187 + $0xf8] sm:$0xff]
                %204 = vst [vmem:[%s188 + $0x44] sm:$0xff] %v203
                %v205 = vld [vmem:[%s187 + $0x140] sm:$0xff]
                %206 = vst [vmem:[%s188 + $0x50] sm:$0xff] %v205
                %v207 = vld [vmem:[%s187 + $0x148] sm:$0xff]
                %208 = vst [vmem:[%s188 + $0x58] sm:$0xff] %v207
                %v209 = vld [vmem:[%s187 + $0x190] sm:$0xff]
                %210 = vst [vmem:[%s188 + $0x64] sm:$0xff] %v209
                %v211 = vld [vmem:[%s187 + $0x198] sm:$0xff]
                %212 = vst [vmem:[%s188 + $0x6c] sm:$0xff] %v211
                %v213 = vld [vmem:[%s187 + $0x1e0] sm:$0xff]
                %214 = vst [vmem:[%s188 + $0x78] sm:$0xff] %v213
                %v215 = vld [vmem:[%s187 + $0x1e8] sm:$0xff]
                %216 = vst [vmem:[%s188 + $0x80] sm:$0xff] %v215
                %v217 = vld [vmem:[%s187 + $0x230] sm:$0xff]
                %218 = vst [vmem:[%s188 + $0x8c] sm:$0xff] %v217
                %v219 = vld [vmem:[%s187 + $0x238] sm:$0xff]
                %220 = vst [vmem:[%s188 + $0x94] sm:$0xff] %v219
                %v221 = vld [vmem:[%s187 + $0x280] sm:$0xff]
                %222 = vst [vmem:[%s188 + $0xa0] sm:$0xff] %v221
                %v223 = vld [vmem:[%s187 + $0x288] sm:$0xff]
                %224 = vst [vmem:[%s188 + $0xa8] sm:$0xff] %v223
                %v225 = vld [vmem:[%s187 + $0x2d0] sm:$0xff]
                %226 = vst [vmem:[%s188 + $0xb4] sm:$0xff] %v225
                %v227 = vld [vmem:[%s187 + $0x2d8] sm:$0xff]
                %228 = vst [vmem:[%s188 + $0xbc] sm:$0xff] %v227
                %v229 = vld [vmem:[%s187 + $0x320] sm:$0xff]
                %230 = vst [vmem:[%s188 + $0xc8] sm:$0xff] %v229
                %v231 = vld [vmem:[%s187 + $0x328] sm:$0xff]
                %232 = vst [vmem:[%s188 + $0xd0] sm:$0xff] %v231
                %v233 = vld [vmem:[%s187 + $0x370] sm:$0xff]
                %234 = vst [vmem:[%s188 + $0xdc] sm:$0xff] %v233
                %v235 = vld [vmem:[%s187 + $0x378] sm:$0xff]
                %236 = vst [vmem:[%s188 + $0xe4] sm:$0xff] %v235
                %v237 = vld [vmem:[%s187 + $0x3c0] sm:$0xff]
                %238 = vst [vmem:[%s188 + $0xf0] sm:$0xff] %v237
                %v239 = vld [vmem:[%s187 + $0x3c8] sm:$0xff]
                %240 = vst [vmem:[%s188 + $0xf8] sm:$0xff] %v239
                %v241 = vld [vmem:[%s187 + $0x410] sm:$0xff]
                %242 = vst [vmem:[%s188 + $0x104] sm:$0xff] %v241
                %v243 = vld [vmem:[%s187 + $0x418] sm:$0xff]
                %244 = vst [vmem:[%s188 + $0x10c] sm:$0xff] %v243
                %v245 = vld [vmem:[%s187 + $0x460] sm:$0xff]
                %246 = vst [vmem:[%s188 + $0x118] sm:$0xff] %v245
                %v247 = vld [vmem:[%s187 + $0x468] sm:$0xff]
                %248 = vst [vmem:[%s188 + $0x120] sm:$0xff] %v247
                %v249 = vld [vmem:[%s187 + $0x4b0] sm:$0xff]
                %250 = vst [vmem:[%s188 + $0x12c] sm:$0xff] %v249
                %v251 = vld [vmem:[%s187 + $0x4b8] sm:$0xff]
                %252 = vst [vmem:[%s188 + $0x134] sm:$0xff] %v251
                %v253 = vld [vmem:[%s187 + $0x500] sm:$0xff]
                %254 = vst [vmem:[%s188 + $0x140] sm:$0xff] %v253
                %v255 = vld [vmem:[%s187 + $0x508] sm:$0xff]
                %256 = vst [vmem:[%s188 + $0x148] sm:$0xff] %v255
                %v257 = vld [vmem:[%s187 + $0x550] sm:$0xff]
                %258 = vst [vmem:[%s188 + $0x154] sm:$0xff] %v257
                %v259 = vld [vmem:[%s187 + $0x558] sm:$0xff]
                %260 = vst [vmem:[%s188 + $0x15c] sm:$0xff] %v259
                %v261 = vld [vmem:[%s187 + $0x5a0] sm:$0xff]
                %262 = vst [vmem:[%s188 + $0x168] sm:$0xff] %v261
                %v263 = vld [vmem:[%s187 + $0x5a8] sm:$0xff]
                %264 = vst [vmem:[%s188 + $0x170] sm:$0xff] %v263
                %v265 = vld [vmem:[%s187 + $0x5f0] sm:$0xff]
                %266 = vst [vmem:[%s188 + $0x17c] sm:$0xff] %v265
                %v267 = vld [vmem:[%s187 + $0x5f8] sm:$0xff]
                %268 = vst [vmem:[%s188 + $0x184] sm:$0xff] %v267
                %v269 = vld [vmem:[%s187 + $0x640] sm:$0xff]
                %270 = vst [vmem:[%s188 + $0x190] sm:$0xff] %v269
                %v271 = vld [vmem:[%s187 + $0x648] sm:$0xff]
                %272 = vst [vmem:[%s188 + $0x198] sm:$0xff] %v271
                %v273 = vld [vmem:[%s187 + $0x690] sm:$0xff]
                %274 = vst [vmem:[%s188 + $0x1a4] sm:$0xff] %v273
                %v275 = vld [vmem:[%s187 + $0x698] sm:$0xff]
                %276 = vst [vmem:[%s188 + $0x1ac] sm:$0xff] %v275
                %v277 = vld [vmem:[%s187 + $0x6e0] sm:$0xff]
                %278 = vst [vmem:[%s188 + $0x1b8] sm:$0xff] %v277
                %v279 = vld [vmem:[%s187 + $0x6e8] sm:$0xff]
                %280 = vst [vmem:[%s188 + $0x1c0] sm:$0xff] %v279
                %v281 = vld [vmem:[%s187 + $0x730] sm:$0xff]
                %282 = vst [vmem:[%s188 + $0x1cc] sm:$0xff] %v281
                %v283 = vld [vmem:[%s187 + $0x738] sm:$0xff]
                %284 = vst [vmem:[%s188 + $0x1d4] sm:$0xff] %v283
                %v285 = vld [vmem:[%s187 + $0x780] sm:$0xff]
                %286 = vst [vmem:[%s188 + $0x1e0] sm:$0xff] %v285
                %v287 = vld [vmem:[%s187 + $0x788] sm:$0xff]
                %288 = vst [vmem:[%s188 + $0x1e8] sm:$0xff] %v287
                %v289 = vld [vmem:[%s187 + $0x7d0] sm:$0xff]
                %290 = vst [vmem:[%s188 + $0x1f4] sm:$0xff] %v289
                %v291 = vld [vmem:[%s187 + $0x7d8] sm:$0xff]
                %292 = vst [vmem:[%s188 + $0x1fc] sm:$0xff] %v291
                %v293 = vld [vmem:[%s187 + $0x820] sm:$0xff]
                %294 = vst [vmem:[%s188 + $0x208] sm:$0xff] %v293
                %v295 = vld [vmem:[%s187 + $0x828] sm:$0xff]
                %296 = vst [vmem:[%s188 + $0x210] sm:$0xff] %v295
                %v297 = vld [vmem:[%s187 + $0x870] sm:$0xff]
                %298 = vst [vmem:[%s188 + $0x21c] sm:$0xff] %v297
                %v299 = vld [vmem:[%s187 + $0x878] sm:$0xff]
                %300 = vst [vmem:[%s188 + $0x224] sm:$0xff] %v299
                %v301 = vld [vmem:[%s187 + $0x8c0] sm:$0xff]
                %302 = vst [vmem:[%s188 + $0x230] sm:$0xff] %v301
                %v303 = vld [vmem:[%s187 + $0x8c8] sm:$0xff]
                %304 = vst [vmem:[%s188 + $0x238] sm:$0xff] %v303
                %v305 = vld [vmem:[%s187 + $0x910] sm:$0xff]
                %306 = vst [vmem:[%s188 + $0x244] sm:$0xff] %v305
                %v307 = vld [vmem:[%s187 + $0x918] sm:$0xff]
                %308 = vst [vmem:[%s188 + $0x24c] sm:$0xff] %v307
                %v309 = vld [vmem:[%s187 + $0x960] sm:$0xff]
                %310 = vst [vmem:[%s188 + $0x258] sm:$0xff] %v309
                %v311 = vld [vmem:[%s187 + $0x968] sm:$0xff]
                %312 = vst [vmem:[%s188 + $0x260] sm:$0xff] %v311
                %v313 = vld [vmem:[%s187 + $0x9b0] sm:$0xff]
                %314 = vst [vmem:[%s188 + $0x26c] sm:$0xff] %v313
                %v315 = vld [vmem:[%s187 + $0x9b8] sm:$0xff]
                %316 = vst [vmem:[%s188 + $0x274] sm:$0xff] %v315
                %v317 = vld [vmem:[%s187 + $0xa00] sm:$0xff]
                %318 = vst [vmem:[%s188 + $0x280] sm:$0xff] %v317
                %v319 = vld [vmem:[%s187 + $0xa08] sm:$0xff]
                %320 = vst [vmem:[%s188 + $0x288] sm:$0xff] %v319
                %v321 = vld [vmem:[%s187 + $0xa50] sm:$0xff]
                %322 = vst [vmem:[%s188 + $0x294] sm:$0xff] %v321
                %v323 = vld [vmem:[%s187 + $0xa58] sm:$0xff]
                %324 = vst [vmem:[%s188 + $0x29c] sm:$0xff] %v323
                %v325 = vld [vmem:[%s187 + $0xaa0] sm:$0xff]
                %326 = vst [vmem:[%s188 + $0x2a8] sm:$0xff] %v325
                %v327 = vld [vmem:[%s187 + $0xaa8] sm:$0xff]
                %328 = vst [vmem:[%s188 + $0x2b0] sm:$0xff] %v327
                %v329 = vld [vmem:[%s187 + $0xaf0] sm:$0xff]
                %330 = vst [vmem:[%s188 + $0x2bc] sm:$0xff] %v329
                %v331 = vld [vmem:[%s187 + $0xaf8] sm:$0xff]
                %332 = vst [vmem:[%s188 + $0x2c4] sm:$0xff] %v331
                %v333 = vld [vmem:[%s187 + $0xb40] sm:$0xff]
                %334 = vst [vmem:[%s188 + $0x2d0] sm:$0xff] %v333
                %v335 = vld [vmem:[%s187 + $0xb48] sm:$0xff]
                %336 = vst [vmem:[%s188 + $0x2d8] sm:$0xff] %v335
                %v337 = vld [vmem:[%s187 + $0xb90] sm:$0xff]
                %338 = vst [vmem:[%s188 + $0x2e4] sm:$0xff] %v337
                %v339 = vld [vmem:[%s187 + $0xb98] sm:$0xff]
                %340 = vst [vmem:[%s188 + $0x2ec] sm:$0xff] %v339
                %v341 = vld [vmem:[%s187 + $0xbe0] sm:$0xff]
                %342 = vst [vmem:[%s188 + $0x2f8] sm:$0xff] %v341
                %v343 = vld [vmem:[%s187 + $0xbe8] sm:$0xff]
                %344 = vst [vmem:[%s188 + $0x300] sm:$0xff] %v343
                %v345 = vld [vmem:[%s187 + $0xc30] sm:$0xff]
                %346 = vst [vmem:[%s188 + $0x30c] sm:$0xff] %v345
                %v347 = vld [vmem:[%s187 + $0xc38] sm:$0xff]
                %348 = vst [vmem:[%s188 + $0x314] sm:$0xff] %v347
                %v349 = vld [vmem:[%s187 + $0xc80] sm:$0xff]
                %350 = vst [vmem:[%s188 + $0x320] sm:$0xff] %v349
                %v351 = vld [vmem:[%s187 + $0xc88] sm:$0xff]
                %352 = vst [vmem:[%s188 + $0x328] sm:$0xff] %v351
                %v353 = vld [vmem:[%s187 + $0xcd0] sm:$0xff]
                %354 = vst [vmem:[%s188 + $0x334] sm:$0xff] %v353
                %v355 = vld [vmem:[%s187 + $0xcd8] sm:$0xff]
                %356 = vst [vmem:[%s188 + $0x33c] sm:$0xff] %v355
                %v357 = vld [vmem:[%s187 + $0xd20] sm:$0xff]
                %358 = vst [vmem:[%s188 + $0x348] sm:$0xff] %v357
                %v359 = vld [vmem:[%s187 + $0xd28] sm:$0xff]
                %360 = vst [vmem:[%s188 + $0x350] sm:$0xff] %v359
                %v361 = vld [vmem:[%s187 + $0xd70] sm:$0xff]
                %362 = vst [vmem:[%s188 + $0x35c] sm:$0xff] %v361
                %v363 = vld [vmem:[%s187 + $0xd78] sm:$0xff]
                %364 = vst [vmem:[%s188 + $0x364] sm:$0xff] %v363
                %v365 = vld [vmem:[%s187 + $0xdc0] sm:$0xff]
                %366 = vst [vmem:[%s188 + $0x370] sm:$0xff] %v365
                %v367 = vld [vmem:[%s187 + $0xdc8] sm:$0xff]
                %368 = vst [vmem:[%s188 + $0x378] sm:$0xff] %v367
                %v369 = vld [vmem:[%s187 + $0xe10] sm:$0xff]
                %370 = vst [vmem:[%s188 + $0x384] sm:$0xff] %v369
                %v371 = vld [vmem:[%s187 + $0xe18] sm:$0xff]
                %372 = vst [vmem:[%s188 + $0x38c] sm:$0xff] %v371
                %v373 = vld [vmem:[%s187 + $0xe60] sm:$0xff]
                %374 = vst [vmem:[%s188 + $0x398] sm:$0xff] %v373
                %v375 = vld [vmem:[%s187 + $0xe68] sm:$0xff]
                %376 = vst [vmem:[%s188 + $0x3a0] sm:$0xff] %v375
                %v377 = vld [vmem:[%s187 + $0xeb0] sm:$0xff]
                %378 = vst [vmem:[%s188 + $0x3ac] sm:$0xff] %v377
                %v379 = vld [vmem:[%s187 + $0xeb8] sm:$0xff]
                %380 = vst [vmem:[%s188 + $0x3b4] sm:$0xff] %v379
                %v381 = vld [vmem:[%s187 + $0xf00] sm:$0xff]
                %382 = vst [vmem:[%s188 + $0x3c0] sm:$0xff] %v381
                %v383 = vld [vmem:[%s187 + $0xf08] sm:$0xff]
                %384 = vst [vmem:[%s188 + $0x3c8] sm:$0xff] %v383
                %v385 = vld [vmem:[%s187 + $0xf50] sm:$0xff]
                %386 = vst [vmem:[%s188 + $0x3d4] sm:$0xff] %v385
                %v387 = vld [vmem:[%s187 + $0xf58] sm:$0xff]
                %388 = vst [vmem:[%s188 + $0x3dc] sm:$0xff] %v387
                %v389 = vld [vmem:[%s187 + $0xfa0] sm:$0xff]
                %390 = vst [vmem:[%s188 + $0x3e8] sm:$0xff] %v389
                %v391 = vld [vmem:[%s187 + $0xfa8] sm:$0xff]
                %392 = vst [vmem:[%s188 + $0x3f0] sm:$0xff] %v391
                %v393 = vld [vmem:[%s187 + $0xff0] sm:$0xff]
                %394 = vst [vmem:[%s188 + $0x3fc] sm:$0xff] %v393
                %v395 = vld [vmem:[%s187 + $0xff8] sm:$0xff]
                %396 = vst [vmem:[%s188 + $0x404] sm:$0xff] %v395
                %v397 = vld [vmem:[%s187 + $0x1040] sm:$0xff]
                %398 = vst [vmem:[%s188 + $0x410] sm:$0xff] %v397
                %v399 = vld [vmem:[%s187 + $0x1048] sm:$0xff]
                %400 = vst [vmem:[%s188 + $0x418] sm:$0xff] %v399
                %v401 = vld [vmem:[%s187 + $0x1090] sm:$0xff]
                %402 = vst [vmem:[%s188 + $0x424] sm:$0xff] %v401
                %v403 = vld [vmem:[%s187 + $0x1098] sm:$0xff]
                %404 = vst [vmem:[%s188 + $0x42c] sm:$0xff] %v403
                %v405 = vld [vmem:[%s187 + $0x10e0] sm:$0xff]
                %406 = vst [vmem:[%s188 + $0x438] sm:$0xff] %v405
                %v407 = vld [vmem:[%s187 + $0x10e8] sm:$0xff]
                %408 = vst [vmem:[%s188 + $0x440] sm:$0xff] %v407
                %v409 = vld [vmem:[%s187 + $0x1130] sm:$0xff]
                %410 = vst [vmem:[%s188 + $0x44c] sm:$0xff] %v409
                %v411 = vld [vmem:[%s187 + $0x1138] sm:$0xff]
                %412 = vst [vmem:[%s188 + $0x454] sm:$0xff] %v411
                %v413 = vld [vmem:[%s187 + $0x1180] sm:$0xff]
                %414 = vst [vmem:[%s188 + $0x460] sm:$0xff] %v413
                %v415 = vld [vmem:[%s187 + $0x1188] sm:$0xff]
                %416 = vst [vmem:[%s188 + $0x468] sm:$0xff] %v415
                %v417 = vld [vmem:[%s187 + $0x11d0] sm:$0xff]
                %418 = vst [vmem:[%s188 + $0x474] sm:$0xff] %v417
                %v419 = vld [vmem:[%s187 + $0x11d8] sm:$0xff]
                %420 = vst [vmem:[%s188 + $0x47c] sm:$0xff] %v419
                %v421 = vld [vmem:[%s187 + $0x1220] sm:$0xff]
                %422 = vst [vmem:[%s188 + $0x488] sm:$0xff] %v421
                %v423 = vld [vmem:[%s187 + $0x1228] sm:$0xff]
                %424 = vst [vmem:[%s188 + $0x490] sm:$0xff] %v423
                %v425 = vld [vmem:[%s187 + $0x1270] sm:$0xff]
                %426 = vst [vmem:[%s188 + $0x49c] sm:$0xff] %v425
                %v427 = vld [vmem:[%s187 + $0x1278] sm:$0xff]
                %428 = vst [vmem:[%s188 + $0x4a4] sm:$0xff] %v427
                %v429 = vld [vmem:[%s187 + $0x12c0] sm:$0xff]
                %430 = vst [vmem:[%s188 + $0x4b0] sm:$0xff] %v429
                %v431 = vld [vmem:[%s187 + $0x12c8] sm:$0xff]
                %432 = vst [vmem:[%s188 + $0x4b8] sm:$0xff] %v431
                %v433 = vld [vmem:[%s187 + $0x1310] sm:$0xff]
                %434 = vst [vmem:[%s188 + $0x4c4] sm:$0xff] %v433
                %v435 = vld [vmem:[%s187 + $0x1318] sm:$0xff]
                %436 = vst [vmem:[%s188 + $0x4cc] sm:$0xff] %v435
                %v437 = vld [vmem:[%s187 + $0x1360] sm:$0xff]
                %438 = vst [vmem:[%s188 + $0x4d8] sm:$0xff] %v437
                %v439 = vld [vmem:[%s187 + $0x1368] sm:$0xff]
                %440 = vst [vmem:[%s188 + $0x4e0] sm:$0xff] %v439
                %v441 = vld [vmem:[%s187 + $0x13b0] sm:$0xff]
                %442 = vst [vmem:[%s188 + $0x4ec] sm:$0xff] %v441
                %v443 = vld [vmem:[%s187 + $0x13b8] sm:$0xff]
                %444 = vst [vmem:[%s188 + $0x4f4] sm:$0xff] %v443
                %v445 = vld [vmem:[%s187 + $0x1400] sm:$0xff]
                %446 = vst [vmem:[%s188 + $0x500] sm:$0xff] %v445
                %v447 = vld [vmem:[%s187 + $0x1408] sm:$0xff]
                %448 = vst [vmem:[%s188 + $0x508] sm:$0xff] %v447
                %v449 = vld [vmem:[%s187 + $0x1450] sm:$0xff]
                %450 = vst [vmem:[%s188 + $0x514] sm:$0xff] %v449
                %v451 = vld [vmem:[%s187 + $0x1458] sm:$0xff]
                %452 = vst [vmem:[%s188 + $0x51c] sm:$0xff] %v451
                %v453 = vld [vmem:[%s187 + $0x14a0] sm:$0xff]
                %454 = vst [vmem:[%s188 + $0x528] sm:$0xff] %v453
                %v455 = vld [vmem:[%s187 + $0x14a8] sm:$0xff]
                %456 = vst [vmem:[%s188 + $0x530] sm:$0xff] %v455
                %v457 = vld [vmem:[%s187 + $0x14f0] sm:$0xff]
                %458 = vst [vmem:[%s188 + $0x53c] sm:$0xff] %v457
                %v459 = vld [vmem:[%s187 + $0x14f8] sm:$0xff]
                %460 = vst [vmem:[%s188 + $0x544] sm:$0xff] %v459
                %v461 = vld [vmem:[%s187 + $0x1540] sm:$0xff]
                %462 = vst [vmem:[%s188 + $0x550] sm:$0xff] %v461
                %v463 = vld [vmem:[%s187 + $0x1548] sm:$0xff]
                %464 = vst [vmem:[%s188 + $0x558] sm:$0xff] %v463
                %v465 = vld [vmem:[%s187 + $0x1590] sm:$0xff]
                %466 = vst [vmem:[%s188 + $0x564] sm:$0xff] %v465
                %v467 = vld [vmem:[%s187 + $0x1598] sm:$0xff]
                %468 = vst [vmem:[%s188 + $0x56c] sm:$0xff] %v467
                %v469 = vld [vmem:[%s187 + $0x15e0] sm:$0xff]
                %470 = vst [vmem:[%s188 + $0x578] sm:$0xff] %v469
                %v471 = vld [vmem:[%s187 + $0x15e8] sm:$0xff]
                %472 = vst [vmem:[%s188 + $0x580] sm:$0xff] %v471
                %v473 = vld [vmem:[%s187 + $0x1630] sm:$0xff]
                %474 = vst [vmem:[%s188 + $0x58c] sm:$0xff] %v473
                %v475 = vld [vmem:[%s187 + $0x1638] sm:$0xff]
                %476 = vst [vmem:[%s188 + $0x594] sm:$0xff] %v475
              $region41: #{dqn_forward.6} parent=35 // loop_footer
                %s186 = sadd.s32 1, %s182
              $region42: #{dqn_forward.6} parent=35 // loop_footer_branch
                %181 = sbr.rel target = $region38
              $region43: #{dqn_forward.6} parent=35 // loop_exit
                _
              loop: start=0, step=1, limit=1
              $region44: #{dqn_forward.6} parent=35 // loop_pre_header
                _
              $region45: #{dqn_forward.6} parent=35 // loop_header
                %s479 = sphi 0, %s483
                %p480 = scmp.ge.s32.totalorder %s479, 1
                %s484 = sphi %s179, %s179
                %s485 = sphi %s180, %s180
              $region46: #{dqn_forward.6} parent=35 // loop_header_branch
                %482 = sbr.rel (%p480) target = $region50
              $region47: #{dqn_forward.6} parent=35 // loop_body
                %v486 = vld [vmem:[%s484] sm:$0xf]
                %487 = vst [vmem:[%s485] sm:$0xf] %v486
                %v488 = vld [vmem:[%s484 + $0x50] sm:$0xf]
                %489 = vst [vmem:[%s485 + $0x14] sm:$0xf] %v488
                %v490 = vld [vmem:[%s484 + $0xa0] sm:$0xf]
                %491 = vst [vmem:[%s485 + $0x28] sm:$0xf] %v490
                %v492 = vld [vmem:[%s484 + $0xf0] sm:$0xf]
                %493 = vst [vmem:[%s485 + $0x3c] sm:$0xf] %v492
                %v494 = vld [vmem:[%s484 + $0x140] sm:$0xf]
                %495 = vst [vmem:[%s485 + $0x50] sm:$0xf] %v494
                %v496 = vld [vmem:[%s484 + $0x190] sm:$0xf]
                %497 = vst [vmem:[%s485 + $0x64] sm:$0xf] %v496
                %v498 = vld [vmem:[%s484 + $0x1e0] sm:$0xf]
                %499 = vst [vmem:[%s485 + $0x78] sm:$0xf] %v498
                %v500 = vld [vmem:[%s484 + $0x230] sm:$0xf]
                %501 = vst [vmem:[%s485 + $0x8c] sm:$0xf] %v500
                %v502 = vld [vmem:[%s484 + $0x280] sm:$0xf]
                %503 = vst [vmem:[%s485 + $0xa0] sm:$0xf] %v502
                %v504 = vld [vmem:[%s484 + $0x2d0] sm:$0xf]
                %505 = vst [vmem:[%s485 + $0xb4] sm:$0xf] %v504
                %v506 = vld [vmem:[%s484 + $0x320] sm:$0xf]
                %507 = vst [vmem:[%s485 + $0xc8] sm:$0xf] %v506
                %v508 = vld [vmem:[%s484 + $0x370] sm:$0xf]
                %509 = vst [vmem:[%s485 + $0xdc] sm:$0xf] %v508
                %v510 = vld [vmem:[%s484 + $0x3c0] sm:$0xf]
                %511 = vst [vmem:[%s485 + $0xf0] sm:$0xf] %v510
                %v512 = vld [vmem:[%s484 + $0x410] sm:$0xf]
                %513 = vst [vmem:[%s485 + $0x104] sm:$0xf] %v512
                %v514 = vld [vmem:[%s484 + $0x460] sm:$0xf]
                %515 = vst [vmem:[%s485 + $0x118] sm:$0xf] %v514
                %v516 = vld [vmem:[%s484 + $0x4b0] sm:$0xf]
                %517 = vst [vmem:[%s485 + $0x12c] sm:$0xf] %v516
                %v518 = vld [vmem:[%s484 + $0x500] sm:$0xf]
                %519 = vst [vmem:[%s485 + $0x140] sm:$0xf] %v518
                %v520 = vld [vmem:[%s484 + $0x550] sm:$0xf]
                %521 = vst [vmem:[%s485 + $0x154] sm:$0xf] %v520
                %v522 = vld [vmem:[%s484 + $0x5a0] sm:$0xf]
                %523 = vst [vmem:[%s485 + $0x168] sm:$0xf] %v522
                %v524 = vld [vmem:[%s484 + $0x5f0] sm:$0xf]
                %525 = vst [vmem:[%s485 + $0x17c] sm:$0xf] %v524
                %v526 = vld [vmem:[%s484 + $0x640] sm:$0xf]
                %527 = vst [vmem:[%s485 + $0x190] sm:$0xf] %v526
                %v528 = vld [vmem:[%s484 + $0x690] sm:$0xf]
                %529 = vst [vmem:[%s485 + $0x1a4] sm:$0xf] %v528
                %v530 = vld [vmem:[%s484 + $0x6e0] sm:$0xf]
                %531 = vst [vmem:[%s485 + $0x1b8] sm:$0xf] %v530
                %v532 = vld [vmem:[%s484 + $0x730] sm:$0xf]
                %533 = vst [vmem:[%s485 + $0x1cc] sm:$0xf] %v532
                %v534 = vld [vmem:[%s484 + $0x780] sm:$0xf]
                %535 = vst [vmem:[%s485 + $0x1e0] sm:$0xf] %v534
                %v536 = vld [vmem:[%s484 + $0x7d0] sm:$0xf]
                %537 = vst [vmem:[%s485 + $0x1f4] sm:$0xf] %v536
                %v538 = vld [vmem:[%s484 + $0x820] sm:$0xf]
                %539 = vst [vmem:[%s485 + $0x208] sm:$0xf] %v538
                %v540 = vld [vmem:[%s484 + $0x870] sm:$0xf]
                %541 = vst [vmem:[%s485 + $0x21c] sm:$0xf] %v540
                %v542 = vld [vmem:[%s484 + $0x8c0] sm:$0xf]
                %543 = vst [vmem:[%s485 + $0x230] sm:$0xf] %v542
                %v544 = vld [vmem:[%s484 + $0x910] sm:$0xf]
                %545 = vst [vmem:[%s485 + $0x244] sm:$0xf] %v544
                %v546 = vld [vmem:[%s484 + $0x960] sm:$0xf]
                %547 = vst [vmem:[%s485 + $0x258] sm:$0xf] %v546
                %v548 = vld [vmem:[%s484 + $0x9b0] sm:$0xf]
                %549 = vst [vmem:[%s485 + $0x26c] sm:$0xf] %v548
                %v550 = vld [vmem:[%s484 + $0xa00] sm:$0xf]
                %551 = vst [vmem:[%s485 + $0x280] sm:$0xf] %v550
                %v552 = vld [vmem:[%s484 + $0xa50] sm:$0xf]
                %553 = vst [vmem:[%s485 + $0x294] sm:$0xf] %v552
                %v554 = vld [vmem:[%s484 + $0xaa0] sm:$0xf]
                %555 = vst [vmem:[%s485 + $0x2a8] sm:$0xf] %v554
                %v556 = vld [vmem:[%s484 + $0xaf0] sm:$0xf]
                %557 = vst [vmem:[%s485 + $0x2bc] sm:$0xf] %v556
                %v558 = vld [vmem:[%s484 + $0xb40] sm:$0xf]
                %559 = vst [vmem:[%s485 + $0x2d0] sm:$0xf] %v558
                %v560 = vld [vmem:[%s484 + $0xb90] sm:$0xf]
                %561 = vst [vmem:[%s485 + $0x2e4] sm:$0xf] %v560
                %v562 = vld [vmem:[%s484 + $0xbe0] sm:$0xf]
                %563 = vst [vmem:[%s485 + $0x2f8] sm:$0xf] %v562
                %v564 = vld [vmem:[%s484 + $0xc30] sm:$0xf]
                %565 = vst [vmem:[%s485 + $0x30c] sm:$0xf] %v564
                %v566 = vld [vmem:[%s484 + $0xc80] sm:$0xf]
                %567 = vst [vmem:[%s485 + $0x320] sm:$0xf] %v566
                %v568 = vld [vmem:[%s484 + $0xcd0] sm:$0xf]
                %569 = vst [vmem:[%s485 + $0x334] sm:$0xf] %v568
                %v570 = vld [vmem:[%s484 + $0xd20] sm:$0xf]
                %571 = vst [vmem:[%s485 + $0x348] sm:$0xf] %v570
                %v572 = vld [vmem:[%s484 + $0xd70] sm:$0xf]
                %573 = vst [vmem:[%s485 + $0x35c] sm:$0xf] %v572
                %v574 = vld [vmem:[%s484 + $0xdc0] sm:$0xf]
                %575 = vst [vmem:[%s485 + $0x370] sm:$0xf] %v574
                %v576 = vld [vmem:[%s484 + $0xe10] sm:$0xf]
                %577 = vst [vmem:[%s485 + $0x384] sm:$0xf] %v576
                %v578 = vld [vmem:[%s484 + $0xe60] sm:$0xf]
                %579 = vst [vmem:[%s485 + $0x398] sm:$0xf] %v578
                %v580 = vld [vmem:[%s484 + $0xeb0] sm:$0xf]
                %581 = vst [vmem:[%s485 + $0x3ac] sm:$0xf] %v580
                %v582 = vld [vmem:[%s484 + $0xf00] sm:$0xf]
                %583 = vst [vmem:[%s485 + $0x3c0] sm:$0xf] %v582
                %v584 = vld [vmem:[%s484 + $0xf50] sm:$0xf]
                %585 = vst [vmem:[%s485 + $0x3d4] sm:$0xf] %v584
                %v586 = vld [vmem:[%s484 + $0xfa0] sm:$0xf]
                %587 = vst [vmem:[%s485 + $0x3e8] sm:$0xf] %v586
                %v588 = vld [vmem:[%s484 + $0xff0] sm:$0xf]
                %589 = vst [vmem:[%s485 + $0x3fc] sm:$0xf] %v588
                %v590 = vld [vmem:[%s484 + $0x1040] sm:$0xf]
                %591 = vst [vmem:[%s485 + $0x410] sm:$0xf] %v590
                %v592 = vld [vmem:[%s484 + $0x1090] sm:$0xf]
                %593 = vst [vmem:[%s485 + $0x424] sm:$0xf] %v592
                %v594 = vld [vmem:[%s484 + $0x10e0] sm:$0xf]
                %595 = vst [vmem:[%s485 + $0x438] sm:$0xf] %v594
                %v596 = vld [vmem:[%s484 + $0x1130] sm:$0xf]
                %597 = vst [vmem:[%s485 + $0x44c] sm:$0xf] %v596
                %v598 = vld [vmem:[%s484 + $0x1180] sm:$0xf]
                %599 = vst [vmem:[%s485 + $0x460] sm:$0xf] %v598
                %v600 = vld [vmem:[%s484 + $0x11d0] sm:$0xf]
                %601 = vst [vmem:[%s485 + $0x474] sm:$0xf] %v600
                %v602 = vld [vmem:[%s484 + $0x1220] sm:$0xf]
                %603 = vst [vmem:[%s485 + $0x488] sm:$0xf] %v602
                %v604 = vld [vmem:[%s484 + $0x1270] sm:$0xf]
                %605 = vst [vmem:[%s485 + $0x49c] sm:$0xf] %v604
                %v606 = vld [vmem:[%s484 + $0x12c0] sm:$0xf]
                %607 = vst [vmem:[%s485 + $0x4b0] sm:$0xf] %v606
                %v608 = vld [vmem:[%s484 + $0x1310] sm:$0xf]
                %609 = vst [vmem:[%s485 + $0x4c4] sm:$0xf] %v608
                %v610 = vld [vmem:[%s484 + $0x1360] sm:$0xf]
                %611 = vst [vmem:[%s485 + $0x4d8] sm:$0xf] %v610
                %v612 = vld [vmem:[%s484 + $0x13b0] sm:$0xf]
                %613 = vst [vmem:[%s485 + $0x4ec] sm:$0xf] %v612
                %v614 = vld [vmem:[%s484 + $0x1400] sm:$0xf]
                %615 = vst [vmem:[%s485 + $0x500] sm:$0xf] %v614
                %v616 = vld [vmem:[%s484 + $0x1450] sm:$0xf]
                %617 = vst [vmem:[%s485 + $0x514] sm:$0xf] %v616
                %v618 = vld [vmem:[%s484 + $0x14a0] sm:$0xf]
                %619 = vst [vmem:[%s485 + $0x528] sm:$0xf] %v618
                %v620 = vld [vmem:[%s484 + $0x14f0] sm:$0xf]
                %621 = vst [vmem:[%s485 + $0x53c] sm:$0xf] %v620
                %v622 = vld [vmem:[%s484 + $0x1540] sm:$0xf]
                %623 = vst [vmem:[%s485 + $0x550] sm:$0xf] %v622
                %v624 = vld [vmem:[%s484 + $0x1590] sm:$0xf]
                %625 = vst [vmem:[%s485 + $0x564] sm:$0xf] %v624
                %v626 = vld [vmem:[%s484 + $0x15e0] sm:$0xf]
                %627 = vst [vmem:[%s485 + $0x578] sm:$0xf] %v626
                %v628 = vld [vmem:[%s484 + $0x1630] sm:$0xf]
                %629 = vst [vmem:[%s485 + $0x58c] sm:$0xf] %v628
              $region48: #{dqn_forward.6} parent=35 // loop_footer
                %s483 = sadd.s32 1, %s479
              $region49: #{dqn_forward.6} parent=35 // loop_footer_branch
                %478 = sbr.rel target = $region45
              $region50: #{dqn_forward.6} parent=35 // loop_exit
                _
            $region36: #{dqn_forward.6} parent=31 // pred_fallthru
              _
          $region32: #{dqn_forward.6} parent=27 // pred_fallthru
            _
          %630 = vnop
        $region28: #{dqn_forward.6} parent=23 // pred_fallthru
          _
      $region24: #{dqn_forward.6} parent=5 // pred_fallthru
        _
      %p631 = scmp.le.s32.totalorder 1, %s9
      %p632 = scmp.lt.s32.totalorder %s9, 5
      %p633 = pnand %p631, %p632
      %p634 = pneg %p633
      // Predicated region
      $region51: #{dqn_forward.6} parent=5 // pred_check
        _
      $region52: #{dqn_forward.6} parent=5 // pred_check_branch
        %636 = sbr.rel (%p633) target = $region54
      $region53: #{dqn_forward.6} parent=5 // pred_region
        %s637 = ssub.s32 %s9, 1
        %s638 = sand.u32 %s60, 1
        %s639 = sand.u32 %s60, 1
        %s640 = smul.addr %s639, 1440
        %s641 = scalar_lea.vmem [#allocation2], %s640
        // Predicated region
        $region55: #{dqn_forward.6} parent=53 // pred_check
          %p642 = pneg %p73
        $region56: #{dqn_forward.6} parent=53 // pred_check_branch
          %644 = sbr.rel (%p642) target = $region58
        $region57: #{dqn_forward.6} parent=53 // pred_region
          _
        $region58: #{dqn_forward.6} parent=53 // pred_fallthru
          _
        %s645 = smul.u32 8, %s18
        %p646 = scmp.lt.s32.totalorder %s645, 7
        %s647 = scalar_select %p646, %s645, 7
        %s648 = smul.addr %s647, 5
        %s649 = smul.addr %s648, 4
        %s650 = scalar_lea.vmem %s0, %s649
        %p651 = pneg %p47
        %p652 = pneg %p44
        %s653 = sand.u32 %s60, 1
        %s654 = sand.u32 %s60, 1
        %s655 = smul.addr %s654, 1440
        %s656 = scalar_lea.vmem [#allocation2], %s655
        %p657 = pneg %p73
        %p658 = pneg %p70
        %s659 = smul.u32 8, %s18
        %p660 = scmp.lt.s32.totalorder %s659, 7
        %s661 = scalar_select %p660, %s659, 7
        %s662 = smul.addr %s661, 8
        %s663 = scalar_lea.vmem %s2, %s662
        %p664 = pneg %p99
        %p665 = pneg %p96
        %p666 = pneg %p127
        %p667 = pneg %p124
        %s668 = sand.u32 %s114, 1
        %s669 = sand.u32 %s114, 1
        %s670 = smul.addr %s669, 160
        %s671 = scalar_lea.vmem [#allocation3], %s670
        %s672 = smul.u32 8, %s18
        %p673 = scmp.lt.s32.totalorder %s672, 7
        %s674 = scalar_select %p673, %s672, 7
        %s675 = smul.addr %s674, 5
        %s676 = smul.addr %s675, 4
        %s677 = scalar_lea.vmem %s0, %s676
        %s678 = smul.u32 8, %s18
        %s679 = smul.u32 5, %s19
        %s680 = smul.u32 8, %s18
        %p681 = scmp.lt.s32.totalorder %s680, 7
        %s682 = scalar_select %p681, %s680, 7
        %s683 = smul.addr %s682, 8
        %s684 = scalar_lea.vmem %s2, %s683
        %s685 = smul.u32 8, %s18
        %s686 = smul.u32 8, %s18
        %s687 = smul.u32 5, %s19
        %v689 = vld [vmem:[%s677] sm:$0xff]
        %v690 = vld [vmem:[%s677 + $0x8] sm:$0xff]
        %v691 = vld [vmem:[%s677 + $0x10] sm:$0xf]
        %v692 = vld [vmem:[%s677 + $0x14] sm:$0xff]
        %v693 = vld [vmem:[%s677 + $0x1c] sm:$0xff]
        %v694 = vld [vmem:[%s677 + $0x24] sm:$0xf]
        %v695 = vld [vmem:[%s677 + $0x28] sm:$0xff]
        %v696 = vld [vmem:[%s677 + $0x30] sm:$0xff]
        %v697 = vld [vmem:[%s677 + $0x38] sm:$0xf]
        %v698 = vld [vmem:[%s677 + $0x3c] sm:$0xff]
        %v699 = vld [vmem:[%s677 + $0x44] sm:$0xff]
        %v700 = vld [vmem:[%s677 + $0x4c] sm:$0xf]
        %v701 = vld [vmem:[%s677 + $0x50] sm:$0xff]
        %v702 = vld [vmem:[%s677 + $0x58] sm:$0xff]
        %v703 = vld [vmem:[%s677 + $0x60] sm:$0xf]
        %v704 = vld [vmem:[%s677 + $0x64] sm:$0xff]
        %v705 = vld [vmem:[%s677 + $0x6c] sm:$0xff]
        %v706 = vld [vmem:[%s677 + $0x74] sm:$0xf]
        %v707 = vld [vmem:[%s677 + $0x78] sm:$0xff]
        %v708 = vld [vmem:[%s677 + $0x80] sm:$0xff]
        %v709 = vld [vmem:[%s677 + $0x88] sm:$0xf]
        %v710 = vld [vmem:[%s677 + $0x8c] sm:$0xff]
        %v711 = vld [vmem:[%s677 + $0x94] sm:$0xff]
        %v712 = vld [vmem:[%s677 + $0x9c] sm:$0xf]
        %v713 = vld [vmem:[%s641] sm:$0xff]
        %v714 = vld [vmem:[%s641 + $0x8] sm:$0xff]
        %v715 = vld [vmem:[%s641 + $0x10] sm:$0xf]
        %v716 = vld [vmem:[%s641 + $0x14] sm:$0xff]
        %v717 = vld [vmem:[%s641 + $0x1c] sm:$0xff]
        %v718 = vld [vmem:[%s641 + $0x24] sm:$0xf]
        %v719 = vld [vmem:[%s641 + $0x28] sm:$0xff]
        %v720 = vld [vmem:[%s641 + $0x30] sm:$0xff]
        %v721 = vld [vmem:[%s641 + $0x38] sm:$0xf]
        %v722 = vld [vmem:[%s641 + $0x3c] sm:$0xff]
        %v723 = vld [vmem:[%s641 + $0x44] sm:$0xff]
        %v724 = vld [vmem:[%s641 + $0x4c] sm:$0xf]
        %v725 = vld [vmem:[%s641 + $0x50] sm:$0xff]
        %v726 = vld [vmem:[%s641 + $0x58] sm:$0xff]
        %v727 = vld [vmem:[%s641 + $0x60] sm:$0xf]
        %v728 = vld [vmem:[%s641 + $0x64] sm:$0xff]
        %v729 = vld [vmem:[%s641 + $0x6c] sm:$0xff]
        %v730 = vld [vmem:[%s641 + $0x74] sm:$0xf]
        %v731 = vld [vmem:[%s641 + $0x78] sm:$0xff]
        %v732 = vld [vmem:[%s641 + $0x80] sm:$0xff]
        %v733 = vld [vmem:[%s641 + $0x88] sm:$0xf]
        %v734 = vld [vmem:[%s641 + $0x8c] sm:$0xff]
        %v735 = vld [vmem:[%s641 + $0x94] sm:$0xff]
        %v736 = vld [vmem:[%s641 + $0x9c] sm:$0xf]
        %v737 = vld [vmem:[%s641 + $0xa0] sm:$0xff]
        %v738 = vld [vmem:[%s641 + $0xa8] sm:$0xff]
        %v739 = vld [vmem:[%s641 + $0xb0] sm:$0xf]
        %v740 = vld [vmem:[%s641 + $0xb4] sm:$0xff]
        %v741 = vld [vmem:[%s641 + $0xbc] sm:$0xff]
        %v742 = vld [vmem:[%s641 + $0xc4] sm:$0xf]
        %v743 = vld [vmem:[%s641 + $0xc8] sm:$0xff]
        %v744 = vld [vmem:[%s641 + $0xd0] sm:$0xff]
        %v745 = vld [vmem:[%s641 + $0xd8] sm:$0xf]
        %v746 = vld [vmem:[%s641 + $0xdc] sm:$0xff]
        %v747 = vld [vmem:[%s641 + $0xe4] sm:$0xff]
        %v748 = vld [vmem:[%s641 + $0xec] sm:$0xf]
        %v749 = vld [vmem:[%s641 + $0xf0] sm:$0xff]
        %v750 = vld [vmem:[%s641 + $0xf8] sm:$0xff]
        %v751 = vld [vmem:[%s641 + $0x100] sm:$0xf]
        %v752 = vld [vmem:[%s641 + $0x104] sm:$0xff]
        %v753 = vld [vmem:[%s641 + $0x10c] sm:$0xff]
        %v754 = vld [vmem:[%s641 + $0x114] sm:$0xf]
        %v755 = vld [vmem:[%s641 + $0x118] sm:$0xff]
        %v756 = vld [vmem:[%s641 + $0x120] sm:$0xff]
        %v757 = vld [vmem:[%s641 + $0x128] sm:$0xf]
        %v758 = vld [vmem:[%s641 + $0x12c] sm:$0xff]
        %v759 = vld [vmem:[%s641 + $0x134] sm:$0xff]
        %v760 = vld [vmem:[%s641 + $0x13c] sm:$0xf]
        %v761 = vld [vmem:[%s641 + $0x140] sm:$0xff]
        %v762 = vld [vmem:[%s641 + $0x148] sm:$0xff]
        %v763 = vld [vmem:[%s641 + $0x150] sm:$0xf]
        %v764 = vld [vmem:[%s641 + $0x154] sm:$0xff]
        %v765 = vld [vmem:[%s641 + $0x15c] sm:$0xff]
        %v766 = vld [vmem:[%s641 + $0x164] sm:$0xf]
        %v767 = vld [vmem:[%s641 + $0x168] sm:$0xff]
        %v768 = vld [vmem:[%s641 + $0x170] sm:$0xff]
        %v769 = vld [vmem:[%s641 + $0x178] sm:$0xf]
        %v770 = vld [vmem:[%s641 + $0x17c] sm:$0xff]
        %v771 = vld [vmem:[%s641 + $0x184] sm:$0xff]
        %v772 = vld [vmem:[%s641 + $0x18c] sm:$0xf]
        %v773 = vld [vmem:[%s641 + $0x190] sm:$0xff]
        %v774 = vld [vmem:[%s641 + $0x198] sm:$0xff]
        %v775 = vld [vmem:[%s641 + $0x1a0] sm:$0xf]
        %v776 = vld [vmem:[%s641 + $0x1a4] sm:$0xff]
        %v777 = vld [vmem:[%s641 + $0x1ac] sm:$0xff]
        %v778 = vld [vmem:[%s641 + $0x1b4] sm:$0xf]
        %v779 = vld [vmem:[%s641 + $0x1b8] sm:$0xff]
        %v780 = vld [vmem:[%s641 + $0x1c0] sm:$0xff]
        %v781 = vld [vmem:[%s641 + $0x1c8] sm:$0xf]
        %v782 = vld [vmem:[%s641 + $0x1cc] sm:$0xff]
        %v783 = vld [vmem:[%s641 + $0x1d4] sm:$0xff]
        %v784 = vld [vmem:[%s641 + $0x1dc] sm:$0xf]
        %v785 = vld [vmem:[%s641 + $0x1e0] sm:$0xff]
        %v786 = vld [vmem:[%s641 + $0x1e8] sm:$0xff]
        %v787 = vld [vmem:[%s641 + $0x1f0] sm:$0xf]
        %v788 = vld [vmem:[%s641 + $0x1f4] sm:$0xff]
        %v789 = vld [vmem:[%s641 + $0x1fc] sm:$0xff]
        %v790 = vld [vmem:[%s641 + $0x204] sm:$0xf]
        %v791 = vld [vmem:[%s641 + $0x208] sm:$0xff]
        %v792 = vld [vmem:[%s641 + $0x210] sm:$0xff]
        %v793 = vld [vmem:[%s641 + $0x218] sm:$0xf]
        %v794 = vld [vmem:[%s641 + $0x21c] sm:$0xff]
        %v795 = vld [vmem:[%s641 + $0x224] sm:$0xff]
        %v796 = vld [vmem:[%s641 + $0x22c] sm:$0xf]
        %v797 = vld [vmem:[%s641 + $0x230] sm:$0xff]
        %v798 = vld [vmem:[%s641 + $0x238] sm:$0xff]
        %v799 = vld [vmem:[%s641 + $0x240] sm:$0xf]
        %v800 = vld [vmem:[%s641 + $0x244] sm:$0xff]
        %v801 = vld [vmem:[%s641 + $0x24c] sm:$0xff]
        %v802 = vld [vmem:[%s641 + $0x254] sm:$0xf]
        %v803 = vld [vmem:[%s641 + $0x258] sm:$0xff]
        %v804 = vld [vmem:[%s641 + $0x260] sm:$0xff]
        %v805 = vld [vmem:[%s641 + $0x268] sm:$0xf]
        %v806 = vld [vmem:[%s641 + $0x26c] sm:$0xff]
        %v807 = vld [vmem:[%s641 + $0x274] sm:$0xff]
        %v808 = vld [vmem:[%s641 + $0x27c] sm:$0xf]
        %v809 = vld [vmem:[%s641 + $0x280] sm:$0xff]
        %v810 = vld [vmem:[%s641 + $0x288] sm:$0xff]
        %v811 = vld [vmem:[%s641 + $0x290] sm:$0xf]
        %v812 = vld [vmem:[%s641 + $0x294] sm:$0xff]
        %v813 = vld [vmem:[%s641 + $0x29c] sm:$0xff]
        %v814 = vld [vmem:[%s641 + $0x2a4] sm:$0xf]
        %v815 = vld [vmem:[%s641 + $0x2a8] sm:$0xff]
        %v816 = vld [vmem:[%s641 + $0x2b0] sm:$0xff]
        %v817 = vld [vmem:[%s641 + $0x2b8] sm:$0xf]
        %v818 = vld [vmem:[%s641 + $0x2bc] sm:$0xff]
        %v819 = vld [vmem:[%s641 + $0x2c4] sm:$0xff]
        %v820 = vld [vmem:[%s641 + $0x2cc] sm:$0xf]
        %v821 = vld [vmem:[%s641 + $0x2d0] sm:$0xff]
        %v822 = vld [vmem:[%s641 + $0x2d8] sm:$0xff]
        %v823 = vld [vmem:[%s641 + $0x2e0] sm:$0xf]
        %v824 = vld [vmem:[%s641 + $0x2e4] sm:$0xff]
        %v825 = vld [vmem:[%s641 + $0x2ec] sm:$0xff]
        %v826 = vld [vmem:[%s641 + $0x2f4] sm:$0xf]
        %v827 = vld [vmem:[%s641 + $0x2f8] sm:$0xff]
        %v828 = vld [vmem:[%s641 + $0x300] sm:$0xff]
        %v829 = vld [vmem:[%s641 + $0x308] sm:$0xf]
        %v830 = vld [vmem:[%s641 + $0x30c] sm:$0xff]
        %v831 = vld [vmem:[%s641 + $0x314] sm:$0xff]
        %v832 = vld [vmem:[%s641 + $0x31c] sm:$0xf]
        %v833 = vld [vmem:[%s641 + $0x320] sm:$0xff]
        %v834 = vld [vmem:[%s641 + $0x328] sm:$0xff]
        %v835 = vld [vmem:[%s641 + $0x330] sm:$0xf]
        %v836 = vld [vmem:[%s641 + $0x334] sm:$0xff]
        %v837 = vld [vmem:[%s641 + $0x33c] sm:$0xff]
        %v838 = vld [vmem:[%s641 + $0x344] sm:$0xf]
        %v839 = vld [vmem:[%s641 + $0x348] sm:$0xff]
        %v840 = vld [vmem:[%s641 + $0x350] sm:$0xff]
        %v841 = vld [vmem:[%s641 + $0x358] sm:$0xf]
        %v842 = vld [vmem:[%s641 + $0x35c] sm:$0xff]
        %v843 = vld [vmem:[%s641 + $0x364] sm:$0xff]
        %v844 = vld [vmem:[%s641 + $0x36c] sm:$0xf]
        %v845 = vld [vmem:[%s641 + $0x370] sm:$0xff]
        %v846 = vld [vmem:[%s641 + $0x378] sm:$0xff]
        %v847 = vld [vmem:[%s641 + $0x380] sm:$0xf]
        %v848 = vld [vmem:[%s641 + $0x384] sm:$0xff]
        %v849 = vld [vmem:[%s641 + $0x38c] sm:$0xff]
        %v850 = vld [vmem:[%s641 + $0x394] sm:$0xf]
        %v851 = vld [vmem:[%s641 + $0x398] sm:$0xff]
        %v852 = vld [vmem:[%s641 + $0x3a0] sm:$0xff]
        %v853 = vld [vmem:[%s641 + $0x3a8] sm:$0xf]
        %v854 = vld [vmem:[%s641 + $0x3ac] sm:$0xff]
        %v855 = vld [vmem:[%s641 + $0x3b4] sm:$0xff]
        %v856 = vld [vmem:[%s641 + $0x3bc] sm:$0xf]
        %v857 = vld [vmem:[%s641 + $0x3c0] sm:$0xff]
        %v858 = vld [vmem:[%s641 + $0x3c8] sm:$0xff]
        %v859 = vld [vmem:[%s641 + $0x3d0] sm:$0xf]
        %v860 = vld [vmem:[%s641 + $0x3d4] sm:$0xff]
        %v861 = vld [vmem:[%s641 + $0x3dc] sm:$0xff]
        %v862 = vld [vmem:[%s641 + $0x3e4] sm:$0xf]
        %v863 = vld [vmem:[%s641 + $0x3e8] sm:$0xff]
        %v864 = vld [vmem:[%s641 + $0x3f0] sm:$0xff]
        %v865 = vld [vmem:[%s641 + $0x3f8] sm:$0xf]
        %v866 = vld [vmem:[%s641 + $0x3fc] sm:$0xff]
        %v867 = vld [vmem:[%s641 + $0x404] sm:$0xff]
        %v868 = vld [vmem:[%s641 + $0x40c] sm:$0xf]
        %v869 = vld [vmem:[%s641 + $0x410] sm:$0xff]
        %v870 = vld [vmem:[%s641 + $0x418] sm:$0xff]
        %v871 = vld [vmem:[%s641 + $0x420] sm:$0xf]
        %v872 = vld [vmem:[%s641 + $0x424] sm:$0xff]
        %v873 = vld [vmem:[%s641 + $0x42c] sm:$0xff]
        %v874 = vld [vmem:[%s641 + $0x434] sm:$0xf]
        %v875 = vld [vmem:[%s641 + $0x438] sm:$0xff]
        %v876 = vld [vmem:[%s641 + $0x440] sm:$0xff]
        %v877 = vld [vmem:[%s641 + $0x448] sm:$0xf]
        %v878 = vld [vmem:[%s641 + $0x44c] sm:$0xff]
        %v879 = vld [vmem:[%s641 + $0x454] sm:$0xff]
        %v880 = vld [vmem:[%s641 + $0x45c] sm:$0xf]
        %v881 = vld [vmem:[%s641 + $0x460] sm:$0xff]
        %v882 = vld [vmem:[%s641 + $0x468] sm:$0xff]
        %v883 = vld [vmem:[%s641 + $0x470] sm:$0xf]
        %v884 = vld [vmem:[%s641 + $0x474] sm:$0xff]
        %v885 = vld [vmem:[%s641 + $0x47c] sm:$0xff]
        %v886 = vld [vmem:[%s641 + $0x484] sm:$0xf]
        %v887 = vld [vmem:[%s641 + $0x488] sm:$0xff]
        %v888 = vld [vmem:[%s641 + $0x490] sm:$0xff]
        %v889 = vld [vmem:[%s641 + $0x498] sm:$0xf]
        %v890 = vld [vmem:[%s641 + $0x49c] sm:$0xff]
        %v891 = vld [vmem:[%s641 + $0x4a4] sm:$0xff]
        %v892 = vld [vmem:[%s641 + $0x4ac] sm:$0xf]
        %v893 = vld [vmem:[%s641 + $0x4b0] sm:$0xff]
        %v894 = vld [vmem:[%s641 + $0x4b8] sm:$0xff]
        %v895 = vld [vmem:[%s641 + $0x4c0] sm:$0xf]
        %v896 = vld [vmem:[%s641 + $0x4c4] sm:$0xff]
        %v897 = vld [vmem:[%s641 + $0x4cc] sm:$0xff]
        %v898 = vld [vmem:[%s641 + $0x4d4] sm:$0xf]
        %v899 = vld [vmem:[%s641 + $0x4d8] sm:$0xff]
        %v900 = vld [vmem:[%s641 + $0x4e0] sm:$0xff]
        %v901 = vld [vmem:[%s641 + $0x4e8] sm:$0xf]
        %v902 = vld [vmem:[%s641 + $0x4ec] sm:$0xff]
        %v903 = vld [vmem:[%s641 + $0x4f4] sm:$0xff]
        %v904 = vld [vmem:[%s641 + $0x4fc] sm:$0xf]
        %v905 = vld [vmem:[%s641 + $0x500] sm:$0xff]
        %v906 = vld [vmem:[%s641 + $0x508] sm:$0xff]
        %v907 = vld [vmem:[%s641 + $0x510] sm:$0xf]
        %v908 = vld [vmem:[%s641 + $0x514] sm:$0xff]
        %v909 = vld [vmem:[%s641 + $0x51c] sm:$0xff]
        %v910 = vld [vmem:[%s641 + $0x524] sm:$0xf]
        %v911 = vld [vmem:[%s641 + $0x528] sm:$0xff]
        %v912 = vld [vmem:[%s641 + $0x530] sm:$0xff]
        %v913 = vld [vmem:[%s641 + $0x538] sm:$0xf]
        %v914 = vld [vmem:[%s641 + $0x53c] sm:$0xff]
        %v915 = vld [vmem:[%s641 + $0x544] sm:$0xff]
        %v916 = vld [vmem:[%s641 + $0x54c] sm:$0xf]
        %v917 = vld [vmem:[%s641 + $0x550] sm:$0xff]
        %v918 = vld [vmem:[%s641 + $0x558] sm:$0xff]
        %v919 = vld [vmem:[%s641 + $0x560] sm:$0xf]
        %v920 = vld [vmem:[%s641 + $0x564] sm:$0xff]
        %v921 = vld [vmem:[%s641 + $0x56c] sm:$0xff]
        %v922 = vld [vmem:[%s641 + $0x574] sm:$0xf]
        %v923 = vld [vmem:[%s641 + $0x578] sm:$0xff]
        %v924 = vld [vmem:[%s641 + $0x580] sm:$0xff]
        %v925 = vld [vmem:[%s641 + $0x588] sm:$0xf]
        %v926 = vld [vmem:[%s641 + $0x58c] sm:$0xff]
        %v927 = vld [vmem:[%s641 + $0x594] sm:$0xff]
        %v928 = vld [vmem:[%s641 + $0x59c] sm:$0xf]
        %v929 = vld [vmem:[%s684] sm:$0xff]
        %v930 = vld [vmem:[%s684 + $0x8] sm:$0xff]
        %v931 = vld [vmem:[%s684 + $0x10] sm:$0xff]
        %v932 = vld [vmem:[%s684 + $0x18] sm:$0xff]
        %v933 = vld [vmem:[%s684 + $0x20] sm:$0xff]
        %v934 = vld [vmem:[%s684 + $0x28] sm:$0xff]
        %v935 = vld [vmem:[%s684 + $0x30] sm:$0xff]
        %v936 = vld [vmem:[%s684 + $0x38] sm:$0xff]
        %938 = vset.pattern.permute.xlu0 0
        %939 = vperm.xlu0 %938, %v929
        %v940 = vpop.permute.xlu0 %939
        %943 = vset.pattern.permute.xlu0 0
        %944 = vperm.xlu0 %943, %v930
        %v945 = vpop.permute.xlu0 %944
        %948 = vset.pattern.permute.xlu0 0
        %949 = vperm.xlu0 %948, %v931
        %v950 = vpop.permute.xlu0 %949
        %953 = vset.pattern.permute.xlu0 0
        %954 = vperm.xlu0 %953, %v932
        %v955 = vpop.permute.xlu0 %954
        %958 = vset.pattern.permute.xlu0 0
        %959 = vperm.xlu0 %958, %v933
        %v960 = vpop.permute.xlu0 %959
        %963 = vset.pattern.permute.xlu0 0
        %964 = vperm.xlu0 %963, %v934
        %v965 = vpop.permute.xlu0 %964
        %968 = vset.pattern.permute.xlu0 0
        %969 = vperm.xlu0 %968, %v935
        %v970 = vpop.permute.xlu0 %969
        %973 = vset.pattern.permute.xlu0 0
        %974 = vperm.xlu0 %973, %v936
        %v975 = vpop.permute.xlu0 %974
        %v1001 = vunpack.c.l.b16 %v689
        %v1002 = vunpack.c.h.b16 %v689
        %v1003 = vunpack.c.l.b16 %v690
        %v1004 = vunpack.c.h.b16 %v690
        %v1005 = vunpack.c.l.b16 %v691
        %v1006 = vunpack.c.l.b16 %v692
        %v1007 = vunpack.c.h.b16 %v692
        %v1008 = vunpack.c.l.b16 %v693
        %v1009 = vunpack.c.h.b16 %v693
        %v1010 = vunpack.c.l.b16 %v694
        %v1011 = vunpack.c.l.b16 %v695
        %v1012 = vunpack.c.h.b16 %v695
        %v1013 = vunpack.c.l.b16 %v696
        %v1014 = vunpack.c.h.b16 %v696
        %v1015 = vunpack.c.l.b16 %v697
        %v1016 = vunpack.c.l.b16 %v698
        %v1017 = vunpack.c.h.b16 %v698
        %v1018 = vunpack.c.l.b16 %v699
        %v1019 = vunpack.c.h.b16 %v699
        %v1020 = vunpack.c.l.b16 %v700
        %v1021 = vunpack.c.l.b16 %v701
        %v1022 = vunpack.c.h.b16 %v701
        %v1023 = vunpack.c.l.b16 %v702
        %v1024 = vunpack.c.h.b16 %v702
        %v1025 = vunpack.c.l.b16 %v703
        %v1026 = vunpack.c.l.b16 %v704
        %v1027 = vunpack.c.h.b16 %v704
        %v1028 = vunpack.c.l.b16 %v705
        %v1029 = vunpack.c.h.b16 %v705
        %v1030 = vunpack.c.l.b16 %v706
        %v1031 = vunpack.c.l.b16 %v707
        %v1032 = vunpack.c.h.b16 %v707
        %v1033 = vunpack.c.l.b16 %v708
        %v1034 = vunpack.c.h.b16 %v708
        %v1035 = vunpack.c.l.b16 %v709
        %v1036 = vunpack.c.l.b16 %v710
        %v1037 = vunpack.c.h.b16 %v710
        %v1038 = vunpack.c.l.b16 %v711
        %v1039 = vunpack.c.h.b16 %v711
        %v1040 = vunpack.c.l.b16 %v712
        %v1041 = vpack.c.b16 %v1006, %v1001
        %v1042 = vpack.c.b16 %v1007, %v1002
        %v1043 = vpack.c.b16 %v1008, %v1003
        %v1044 = vpack.c.b16 %v1009, %v1004
        %v1045 = vpack.c.b16 %v1010, %v1005
        %v1046 = vpack.c.b16 %v1016, %v1011
        %v1047 = vpack.c.b16 %v1017, %v1012
        %v1048 = vpack.c.b16 %v1018, %v1013
        %v1049 = vpack.c.b16 %v1019, %v1014
        %v1050 = vpack.c.b16 %v1020, %v1015
        %v1051 = vpack.c.b16 %v1026, %v1021
        %v1052 = vpack.c.b16 %v1027, %v1022
        %v1053 = vpack.c.b16 %v1028, %v1023
        %v1054 = vpack.c.b16 %v1029, %v1024
        %v1055 = vpack.c.b16 %v1030, %v1025
        %v1056 = vpack.c.b16 %v1036, %v1031
        %v1057 = vpack.c.b16 %v1037, %v1032
        %v1058 = vpack.c.b16 %v1038, %v1033
        %v1059 = vpack.c.b16 %v1039, %v1034
        %v1060 = vpack.c.b16 %v1040, %v1035
        %v1293 = vunpack.c.l.b16 %v713
        %v1294 = vunpack.c.h.b16 %v713
        %v1295 = vunpack.c.l.b16 %v714
        %v1296 = vunpack.c.h.b16 %v714
        %v1297 = vunpack.c.l.b16 %v715
        %v1298 = vunpack.c.l.b16 %v716
        %v1299 = vunpack.c.h.b16 %v716
        %v1300 = vunpack.c.l.b16 %v717
        %v1301 = vunpack.c.h.b16 %v717
        %v1302 = vunpack.c.l.b16 %v718
        %v1303 = vunpack.c.l.b16 %v719
        %v1304 = vunpack.c.h.b16 %v719
        %v1305 = vunpack.c.l.b16 %v720
        %v1306 = vunpack.c.h.b16 %v720
        %v1307 = vunpack.c.l.b16 %v721
        %v1308 = vunpack.c.l.b16 %v722
        %v1309 = vunpack.c.h.b16 %v722
        %v1310 = vunpack.c.l.b16 %v723
        %v1311 = vunpack.c.h.b16 %v723
        %v1312 = vunpack.c.l.b16 %v724
        %v1313 = vunpack.c.l.b16 %v725
        %v1314 = vunpack.c.h.b16 %v725
        %v1315 = vunpack.c.l.b16 %v726
        %v1316 = vunpack.c.h.b16 %v726
        %v1317 = vunpack.c.l.b16 %v727
        %v1318 = vunpack.c.l.b16 %v728
        %v1319 = vunpack.c.h.b16 %v728
        %v1320 = vunpack.c.l.b16 %v729
        %v1321 = vunpack.c.h.b16 %v729
        %v1322 = vunpack.c.l.b16 %v730
        %v1323 = vunpack.c.l.b16 %v731
        %v1324 = vunpack.c.h.b16 %v731
        %v1325 = vunpack.c.l.b16 %v732
        %v1326 = vunpack.c.h.b16 %v732
        %v1327 = vunpack.c.l.b16 %v733
        %v1328 = vunpack.c.l.b16 %v734
        %v1329 = vunpack.c.h.b16 %v734
        %v1330 = vunpack.c.l.b16 %v735
        %v1331 = vunpack.c.h.b16 %v735
        %v1332 = vunpack.c.l.b16 %v736
        %v1333 = vunpack.c.l.b16 %v737
        %v1334 = vunpack.c.h.b16 %v737
        %v1335 = vunpack.c.l.b16 %v738
        %v1336 = vunpack.c.h.b16 %v738
        %v1337 = vunpack.c.l.b16 %v739
        %v1338 = vunpack.c.l.b16 %v740
        %v1339 = vunpack.c.h.b16 %v740
        %v1340 = vunpack.c.l.b16 %v741
        %v1341 = vunpack.c.h.b16 %v741
        %v1342 = vunpack.c.l.b16 %v742
        %v1343 = vunpack.c.l.b16 %v743
        %v1344 = vunpack.c.h.b16 %v743
        %v1345 = vunpack.c.l.b16 %v744
        %v1346 = vunpack.c.h.b16 %v744
        %v1347 = vunpack.c.l.b16 %v745
        %v1348 = vunpack.c.l.b16 %v746
        %v1349 = vunpack.c.h.b16 %v746
        %v1350 = vunpack.c.l.b16 %v747
        %v1351 = vunpack.c.h.b16 %v747
        %v1352 = vunpack.c.l.b16 %v748
        %v1353 = vunpack.c.l.b16 %v749
        %v1354 = vunpack.c.h.b16 %v749
        %v1355 = vunpack.c.l.b16 %v750
        %v1356 = vunpack.c.h.b16 %v750
        %v1357 = vunpack.c.l.b16 %v751
        %v1358 = vunpack.c.l.b16 %v752
        %v1359 = vunpack.c.h.b16 %v752
        %v1360 = vunpack.c.l.b16 %v753
        %v1361 = vunpack.c.h.b16 %v753
        %v1362 = vunpack.c.l.b16 %v754
        %v1363 = vunpack.c.l.b16 %v755
        %v1364 = vunpack.c.h.b16 %v755
        %v1365 = vunpack.c.l.b16 %v756
        %v1366 = vunpack.c.h.b16 %v756
        %v1367 = vunpack.c.l.b16 %v757
        %v1368 = vunpack.c.l.b16 %v758
        %v1369 = vunpack.c.h.b16 %v758
        %v1370 = vunpack.c.l.b16 %v759
        %v1371 = vunpack.c.h.b16 %v759
        %v1372 = vunpack.c.l.b16 %v760
        %v1373 = vunpack.c.l.b16 %v761
        %v1374 = vunpack.c.h.b16 %v761
        %v1375 = vunpack.c.l.b16 %v762
        %v1376 = vunpack.c.h.b16 %v762
        %v1377 = vunpack.c.l.b16 %v763
        %v1378 = vunpack.c.l.b16 %v764
        %v1379 = vunpack.c.h.b16 %v764
        %v1380 = vunpack.c.l.b16 %v765
        %v1381 = vunpack.c.h.b16 %v765
        %v1382 = vunpack.c.l.b16 %v766
        %v1383 = vunpack.c.l.b16 %v767
        %v1384 = vunpack.c.h.b16 %v767
        %v1385 = vunpack.c.l.b16 %v768
        %v1386 = vunpack.c.h.b16 %v768
        %v1387 = vunpack.c.l.b16 %v769
        %v1388 = vunpack.c.l.b16 %v770
        %v1389 = vunpack.c.h.b16 %v770
        %v1390 = vunpack.c.l.b16 %v771
        %v1391 = vunpack.c.h.b16 %v771
        %v1392 = vunpack.c.l.b16 %v772
        %v1393 = vunpack.c.l.b16 %v773
        %v1394 = vunpack.c.h.b16 %v773
        %v1395 = vunpack.c.l.b16 %v774
        %v1396 = vunpack.c.h.b16 %v774
        %v1397 = vunpack.c.l.b16 %v775
        %v1398 = vunpack.c.l.b16 %v776
        %v1399 = vunpack.c.h.b16 %v776
        %v1400 = vunpack.c.l.b16 %v777
        %v1401 = vunpack.c.h.b16 %v777
        %v1402 = vunpack.c.l.b16 %v778
        %v1403 = vunpack.c.l.b16 %v779
        %v1404 = vunpack.c.h.b16 %v779
        %v1405 = vunpack.c.l.b16 %v780
        %v1406 = vunpack.c.h.b16 %v780
        %v1407 = vunpack.c.l.b16 %v781
        %v1408 = vunpack.c.l.b16 %v782
        %v1409 = vunpack.c.h.b16 %v782
        %v1410 = vunpack.c.l.b16 %v783
        %v1411 = vunpack.c.h.b16 %v783
        %v1412 = vunpack.c.l.b16 %v784
        %v1413 = vunpack.c.l.b16 %v785
        %v1414 = vunpack.c.h.b16 %v785
        %v1415 = vunpack.c.l.b16 %v786
        %v1416 = vunpack.c.h.b16 %v786
        %v1417 = vunpack.c.l.b16 %v787
        %v1418 = vunpack.c.l.b16 %v788
        %v1419 = vunpack.c.h.b16 %v788
        %v1420 = vunpack.c.l.b16 %v789
        %v1421 = vunpack.c.h.b16 %v789
        %v1422 = vunpack.c.l.b16 %v790
        %v1423 = vunpack.c.l.b16 %v791
        %v1424 = vunpack.c.h.b16 %v791
        %v1425 = vunpack.c.l.b16 %v792
        %v1426 = vunpack.c.h.b16 %v792
        %v1427 = vunpack.c.l.b16 %v793
        %v1428 = vunpack.c.l.b16 %v794
        %v1429 = vunpack.c.h.b16 %v794
        %v1430 = vunpack.c.l.b16 %v795
        %v1431 = vunpack.c.h.b16 %v795
        %v1432 = vunpack.c.l.b16 %v796
        %v1433 = vunpack.c.l.b16 %v797
        %v1434 = vunpack.c.h.b16 %v797
        %v1435 = vunpack.c.l.b16 %v798
        %v1436 = vunpack.c.h.b16 %v798
        %v1437 = vunpack.c.l.b16 %v799
        %v1438 = vunpack.c.l.b16 %v800
        %v1439 = vunpack.c.h.b16 %v800
        %v1440 = vunpack.c.l.b16 %v801
        %v1441 = vunpack.c.h.b16 %v801
        %v1442 = vunpack.c.l.b16 %v802
        %v1443 = vunpack.c.l.b16 %v803
        %v1444 = vunpack.c.h.b16 %v803
        %v1445 = vunpack.c.l.b16 %v804
        %v1446 = vunpack.c.h.b16 %v804
        %v1447 = vunpack.c.l.b16 %v805
        %v1448 = vunpack.c.l.b16 %v806
        %v1449 = vunpack.c.h.b16 %v806
        %v1450 = vunpack.c.l.b16 %v807
        %v1451 = vunpack.c.h.b16 %v807
        %v1452 = vunpack.c.l.b16 %v808
        %v1453 = vunpack.c.l.b16 %v809
        %v1454 = vunpack.c.h.b16 %v809
        %v1455 = vunpack.c.l.b16 %v810
        %v1456 = vunpack.c.h.b16 %v810
        %v1457 = vunpack.c.l.b16 %v811
        %v1458 = vunpack.c.l.b16 %v812
        %v1459 = vunpack.c.h.b16 %v812
        %v1460 = vunpack.c.l.b16 %v813
        %v1461 = vunpack.c.h.b16 %v813
        %v1462 = vunpack.c.l.b16 %v814
        %v1463 = vunpack.c.l.b16 %v815
        %v1464 = vunpack.c.h.b16 %v815
        %v1465 = vunpack.c.l.b16 %v816
        %v1466 = vunpack.c.h.b16 %v816
        %v1467 = vunpack.c.l.b16 %v817
        %v1468 = vunpack.c.l.b16 %v818
        %v1469 = vunpack.c.h.b16 %v818
        %v1470 = vunpack.c.l.b16 %v819
        %v1471 = vunpack.c.h.b16 %v819
        %v1472 = vunpack.c.l.b16 %v820
        %v1473 = vunpack.c.l.b16 %v821
        %v1474 = vunpack.c.h.b16 %v821
        %v1475 = vunpack.c.l.b16 %v822
        %v1476 = vunpack.c.h.b16 %v822
        %v1477 = vunpack.c.l.b16 %v823
        %v1478 = vunpack.c.l.b16 %v824
        %v1479 = vunpack.c.h.b16 %v824
        %v1480 = vunpack.c.l.b16 %v825
        %v1481 = vunpack.c.h.b16 %v825
        %v1482 = vunpack.c.l.b16 %v826
        %v1483 = vunpack.c.l.b16 %v827
        %v1484 = vunpack.c.h.b16 %v827
        %v1485 = vunpack.c.l.b16 %v828
        %v1486 = vunpack.c.h.b16 %v828
        %v1487 = vunpack.c.l.b16 %v829
        %v1488 = vunpack.c.l.b16 %v830
        %v1489 = vunpack.c.h.b16 %v830
        %v1490 = vunpack.c.l.b16 %v831
        %v1491 = vunpack.c.h.b16 %v831
        %v1492 = vunpack.c.l.b16 %v832
        %v1493 = vunpack.c.l.b16 %v833
        %v1494 = vunpack.c.h.b16 %v833
        %v1495 = vunpack.c.l.b16 %v834
        %v1496 = vunpack.c.h.b16 %v834
        %v1497 = vunpack.c.l.b16 %v835
        %v1498 = vunpack.c.l.b16 %v836
        %v1499 = vunpack.c.h.b16 %v836
        %v1500 = vunpack.c.l.b16 %v837
        %v1501 = vunpack.c.h.b16 %v837
        %v1502 = vunpack.c.l.b16 %v838
        %v1503 = vunpack.c.l.b16 %v839
        %v1504 = vunpack.c.h.b16 %v839
        %v1505 = vunpack.c.l.b16 %v840
        %v1506 = vunpack.c.h.b16 %v840
        %v1507 = vunpack.c.l.b16 %v841
        %v1508 = vunpack.c.l.b16 %v842
        %v1509 = vunpack.c.h.b16 %v842
        %v1510 = vunpack.c.l.b16 %v843
        %v1511 = vunpack.c.h.b16 %v843
        %v1512 = vunpack.c.l.b16 %v844
        %v1513 = vunpack.c.l.b16 %v845
        %v1514 = vunpack.c.h.b16 %v845
        %v1515 = vunpack.c.l.b16 %v846
        %v1516 = vunpack.c.h.b16 %v846
        %v1517 = vunpack.c.l.b16 %v847
        %v1518 = vunpack.c.l.b16 %v848
        %v1519 = vunpack.c.h.b16 %v848
        %v1520 = vunpack.c.l.b16 %v849
        %v1521 = vunpack.c.h.b16 %v849
        %v1522 = vunpack.c.l.b16 %v850
        %v1523 = vunpack.c.l.b16 %v851
        %v1524 = vunpack.c.h.b16 %v851
        %v1525 = vunpack.c.l.b16 %v852
        %v1526 = vunpack.c.h.b16 %v852
        %v1527 = vunpack.c.l.b16 %v853
        %v1528 = vunpack.c.l.b16 %v854
        %v1529 = vunpack.c.h.b16 %v854
        %v1530 = vunpack.c.l.b16 %v855
        %v1531 = vunpack.c.h.b16 %v855
        %v1532 = vunpack.c.l.b16 %v856
        %v1533 = vunpack.c.l.b16 %v857
        %v1534 = vunpack.c.h.b16 %v857
        %v1535 = vunpack.c.l.b16 %v858
        %v1536 = vunpack.c.h.b16 %v858
        %v1537 = vunpack.c.l.b16 %v859
        %v1538 = vunpack.c.l.b16 %v860
        %v1539 = vunpack.c.h.b16 %v860
        %v1540 = vunpack.c.l.b16 %v861
        %v1541 = vunpack.c.h.b16 %v861
        %v1542 = vunpack.c.l.b16 %v862
        %v1543 = vunpack.c.l.b16 %v863
        %v1544 = vunpack.c.h.b16 %v863
        %v1545 = vunpack.c.l.b16 %v864
        %v1546 = vunpack.c.h.b16 %v864
        %v1547 = vunpack.c.l.b16 %v865
        %v1548 = vunpack.c.l.b16 %v866
        %v1549 = vunpack.c.h.b16 %v866
        %v1550 = vunpack.c.l.b16 %v867
        %v1551 = vunpack.c.h.b16 %v867
        %v1552 = vunpack.c.l.b16 %v868
        %v1553 = vunpack.c.l.b16 %v869
        %v1554 = vunpack.c.h.b16 %v869
        %v1555 = vunpack.c.l.b16 %v870
        %v1556 = vunpack.c.h.b16 %v870
        %v1557 = vunpack.c.l.b16 %v871
        %v1558 = vunpack.c.l.b16 %v872
        %v1559 = vunpack.c.h.b16 %v872
        %v1560 = vunpack.c.l.b16 %v873
        %v1561 = vunpack.c.h.b16 %v873
        %v1562 = vunpack.c.l.b16 %v874
        %v1563 = vunpack.c.l.b16 %v875
        %v1564 = vunpack.c.h.b16 %v875
        %v1565 = vunpack.c.l.b16 %v876
        %v1566 = vunpack.c.h.b16 %v876
        %v1567 = vunpack.c.l.b16 %v877
        %v1568 = vunpack.c.l.b16 %v878
        %v1569 = vunpack.c.h.b16 %v878
        %v1570 = vunpack.c.l.b16 %v879
        %v1571 = vunpack.c.h.b16 %v879
        %v1572 = vunpack.c.l.b16 %v880
        %v1573 = vunpack.c.l.b16 %v881
        %v1574 = vunpack.c.h.b16 %v881
        %v1575 = vunpack.c.l.b16 %v882
        %v1576 = vunpack.c.h.b16 %v882
        %v1577 = vunpack.c.l.b16 %v883
        %v1578 = vunpack.c.l.b16 %v884
        %v1579 = vunpack.c.h.b16 %v884
        %v1580 = vunpack.c.l.b16 %v885
        %v1581 = vunpack.c.h.b16 %v885
        %v1582 = vunpack.c.l.b16 %v886
        %v1583 = vunpack.c.l.b16 %v887
        %v1584 = vunpack.c.h.b16 %v887
        %v1585 = vunpack.c.l.b16 %v888
        %v1586 = vunpack.c.h.b16 %v888
        %v1587 = vunpack.c.l.b16 %v889
        %v1588 = vunpack.c.l.b16 %v890
        %v1589 = vunpack.c.h.b16 %v890
        %v1590 = vunpack.c.l.b16 %v891
        %v1591 = vunpack.c.h.b16 %v891
        %v1592 = vunpack.c.l.b16 %v892
        %v1593 = vunpack.c.l.b16 %v893
        %v1594 = vunpack.c.h.b16 %v893
        %v1595 = vunpack.c.l.b16 %v894
        %v1596 = vunpack.c.h.b16 %v894
        %v1597 = vunpack.c.l.b16 %v895
        %v1598 = vunpack.c.l.b16 %v896
        %v1599 = vunpack.c.h.b16 %v896
        %v1600 = vunpack.c.l.b16 %v897
        %v1601 = vunpack.c.h.b16 %v897
        %v1602 = vunpack.c.l.b16 %v898
        %v1603 = vunpack.c.l.b16 %v899
        %v1604 = vunpack.c.h.b16 %v899
        %v1605 = vunpack.c.l.b16 %v900
        %v1606 = vunpack.c.h.b16 %v900
        %v1607 = vunpack.c.l.b16 %v901
        %v1608 = vunpack.c.l.b16 %v902
        %v1609 = vunpack.c.h.b16 %v902
        %v1610 = vunpack.c.l.b16 %v903
        %v1611 = vunpack.c.h.b16 %v903
        %v1612 = vunpack.c.l.b16 %v904
        %v1613 = vunpack.c.l.b16 %v905
        %v1614 = vunpack.c.h.b16 %v905
        %v1615 = vunpack.c.l.b16 %v906
        %v1616 = vunpack.c.h.b16 %v906
        %v1617 = vunpack.c.l.b16 %v907
        %v1618 = vunpack.c.l.b16 %v908
        %v1619 = vunpack.c.h.b16 %v908
        %v1620 = vunpack.c.l.b16 %v909
        %v1621 = vunpack.c.h.b16 %v909
        %v1622 = vunpack.c.l.b16 %v910
        %v1623 = vunpack.c.l.b16 %v911
        %v1624 = vunpack.c.h.b16 %v911
        %v1625 = vunpack.c.l.b16 %v912
        %v1626 = vunpack.c.h.b16 %v912
        %v1627 = vunpack.c.l.b16 %v913
        %v1628 = vunpack.c.l.b16 %v914
        %v1629 = vunpack.c.h.b16 %v914
        %v1630 = vunpack.c.l.b16 %v915
        %v1631 = vunpack.c.h.b16 %v915
        %v1632 = vunpack.c.l.b16 %v916
        %v1633 = vunpack.c.l.b16 %v917
        %v1634 = vunpack.c.h.b16 %v917
        %v1635 = vunpack.c.l.b16 %v918
        %v1636 = vunpack.c.h.b16 %v918
        %v1637 = vunpack.c.l.b16 %v919
        %v1638 = vunpack.c.l.b16 %v920
        %v1639 = vunpack.c.h.b16 %v920
        %v1640 = vunpack.c.l.b16 %v921
        %v1641 = vunpack.c.h.b16 %v921
        %v1642 = vunpack.c.l.b16 %v922
        %v1643 = vunpack.c.l.b16 %v923
        %v1644 = vunpack.c.h.b16 %v923
        %v1645 = vunpack.c.l.b16 %v924
        %v1646 = vunpack.c.h.b16 %v924
        %v1647 = vunpack.c.l.b16 %v925
        %v1648 = vunpack.c.l.b16 %v926
        %v1649 = vunpack.c.h.b16 %v926
        %v1650 = vunpack.c.l.b16 %v927
        %v1651 = vunpack.c.h.b16 %v927
        %v1652 = vunpack.c.l.b16 %v928
        %v1653 = vpack.c.b16 %v1298, %v1293
        %v1654 = vpack.c.b16 %v1299, %v1294
        %v1655 = vpack.c.b16 %v1300, %v1295
        %v1656 = vpack.c.b16 %v1301, %v1296
        %v1657 = vpack.c.b16 %v1302, %v1297
        %v1658 = vpack.c.b16 %v1308, %v1303
        %v1659 = vpack.c.b16 %v1309, %v1304
        %v1660 = vpack.c.b16 %v1310, %v1305
        %v1661 = vpack.c.b16 %v1311, %v1306
        %v1662 = vpack.c.b16 %v1312, %v1307
        %v1663 = vpack.c.b16 %v1318, %v1313
        %v1664 = vpack.c.b16 %v1319, %v1314
        %v1665 = vpack.c.b16 %v1320, %v1315
        %v1666 = vpack.c.b16 %v1321, %v1316
        %v1667 = vpack.c.b16 %v1322, %v1317
        %v1668 = vpack.c.b16 %v1328, %v1323
        %v1669 = vpack.c.b16 %v1329, %v1324
        %v1670 = vpack.c.b16 %v1330, %v1325
        %v1671 = vpack.c.b16 %v1331, %v1326
        %v1672 = vpack.c.b16 %v1332, %v1327
        %v1673 = vpack.c.b16 %v1338, %v1333
        %v1674 = vpack.c.b16 %v1339, %v1334
        %v1675 = vpack.c.b16 %v1340, %v1335
        %v1676 = vpack.c.b16 %v1341, %v1336
        %v1677 = vpack.c.b16 %v1342, %v1337
        %v1678 = vpack.c.b16 %v1348, %v1343
        %v1679 = vpack.c.b16 %v1349, %v1344
        %v1680 = vpack.c.b16 %v1350, %v1345
        %v1681 = vpack.c.b16 %v1351, %v1346
        %v1682 = vpack.c.b16 %v1352, %v1347
        %v1683 = vpack.c.b16 %v1358, %v1353
        %v1684 = vpack.c.b16 %v1359, %v1354
        %v1685 = vpack.c.b16 %v1360, %v1355
        %v1686 = vpack.c.b16 %v1361, %v1356
        %v1687 = vpack.c.b16 %v1362, %v1357
        %v1688 = vpack.c.b16 %v1368, %v1363
        %v1689 = vpack.c.b16 %v1369, %v1364
        %v1690 = vpack.c.b16 %v1370, %v1365
        %v1691 = vpack.c.b16 %v1371, %v1366
        %v1692 = vpack.c.b16 %v1372, %v1367
        %v1693 = vpack.c.b16 %v1378, %v1373
        %v1694 = vpack.c.b16 %v1379, %v1374
        %v1695 = vpack.c.b16 %v1380, %v1375
        %v1696 = vpack.c.b16 %v1381, %v1376
        %v1697 = vpack.c.b16 %v1382, %v1377
        %v1698 = vpack.c.b16 %v1388, %v1383
        %v1699 = vpack.c.b16 %v1389, %v1384
        %v1700 = vpack.c.b16 %v1390, %v1385
        %v1701 = vpack.c.b16 %v1391, %v1386
        %v1702 = vpack.c.b16 %v1392, %v1387
        %v1703 = vpack.c.b16 %v1398, %v1393
        %v1704 = vpack.c.b16 %v1399, %v1394
        %v1705 = vpack.c.b16 %v1400, %v1395
        %v1706 = vpack.c.b16 %v1401, %v1396
        %v1707 = vpack.c.b16 %v1402, %v1397
        %v1708 = vpack.c.b16 %v1408, %v1403
        %v1709 = vpack.c.b16 %v1409, %v1404
        %v1710 = vpack.c.b16 %v1410, %v1405
        %v1711 = vpack.c.b16 %v1411, %v1406
        %v1712 = vpack.c.b16 %v1412, %v1407
        %v1713 = vpack.c.b16 %v1418, %v1413
        %v1714 = vpack.c.b16 %v1419, %v1414
        %v1715 = vpack.c.b16 %v1420, %v1415
        %v1716 = vpack.c.b16 %v1421, %v1416
        %v1717 = vpack.c.b16 %v1422, %v1417
        %v1718 = vpack.c.b16 %v1428, %v1423
        %v1719 = vpack.c.b16 %v1429, %v1424
        %v1720 = vpack.c.b16 %v1430, %v1425
        %v1721 = vpack.c.b16 %v1431, %v1426
        %v1722 = vpack.c.b16 %v1432, %v1427
        %v1723 = vpack.c.b16 %v1438, %v1433
        %v1724 = vpack.c.b16 %v1439, %v1434
        %v1725 = vpack.c.b16 %v1440, %v1435
        %v1726 = vpack.c.b16 %v1441, %v1436
        %v1727 = vpack.c.b16 %v1442, %v1437
        %v1728 = vpack.c.b16 %v1448, %v1443
        %v1729 = vpack.c.b16 %v1449, %v1444
        %v1730 = vpack.c.b16 %v1450, %v1445
        %v1731 = vpack.c.b16 %v1451, %v1446
        %v1732 = vpack.c.b16 %v1452, %v1447
        %v1733 = vpack.c.b16 %v1458, %v1453
        %v1734 = vpack.c.b16 %v1459, %v1454
        %v1735 = vpack.c.b16 %v1460, %v1455
        %v1736 = vpack.c.b16 %v1461, %v1456
        %v1737 = vpack.c.b16 %v1462, %v1457
        %v1738 = vpack.c.b16 %v1468, %v1463
        %v1739 = vpack.c.b16 %v1469, %v1464
        %v1740 = vpack.c.b16 %v1470, %v1465
        %v1741 = vpack.c.b16 %v1471, %v1466
        %v1742 = vpack.c.b16 %v1472, %v1467
        %v1743 = vpack.c.b16 %v1478, %v1473
        %v1744 = vpack.c.b16 %v1479, %v1474
        %v1745 = vpack.c.b16 %v1480, %v1475
        %v1746 = vpack.c.b16 %v1481, %v1476
        %v1747 = vpack.c.b16 %v1482, %v1477
        %v1748 = vpack.c.b16 %v1488, %v1483
        %v1749 = vpack.c.b16 %v1489, %v1484
        %v1750 = vpack.c.b16 %v1490, %v1485
        %v1751 = vpack.c.b16 %v1491, %v1486
        %v1752 = vpack.c.b16 %v1492, %v1487
        %v1753 = vpack.c.b16 %v1498, %v1493
        %v1754 = vpack.c.b16 %v1499, %v1494
        %v1755 = vpack.c.b16 %v1500, %v1495
        %v1756 = vpack.c.b16 %v1501, %v1496
        %v1757 = vpack.c.b16 %v1502, %v1497
        %v1758 = vpack.c.b16 %v1508, %v1503
        %v1759 = vpack.c.b16 %v1509, %v1504
        %v1760 = vpack.c.b16 %v1510, %v1505
        %v1761 = vpack.c.b16 %v1511, %v1506
        %v1762 = vpack.c.b16 %v1512, %v1507
        %v1763 = vpack.c.b16 %v1518, %v1513
        %v1764 = vpack.c.b16 %v1519, %v1514
        %v1765 = vpack.c.b16 %v1520, %v1515
        %v1766 = vpack.c.b16 %v1521, %v1516
        %v1767 = vpack.c.b16 %v1522, %v1517
        %v1768 = vpack.c.b16 %v1528, %v1523
        %v1769 = vpack.c.b16 %v1529, %v1524
        %v1770 = vpack.c.b16 %v1530, %v1525
        %v1771 = vpack.c.b16 %v1531, %v1526
        %v1772 = vpack.c.b16 %v1532, %v1527
        %v1773 = vpack.c.b16 %v1538, %v1533
        %v1774 = vpack.c.b16 %v1539, %v1534
        %v1775 = vpack.c.b16 %v1540, %v1535
        %v1776 = vpack.c.b16 %v1541, %v1536
        %v1777 = vpack.c.b16 %v1542, %v1537
        %v1778 = vpack.c.b16 %v1548, %v1543
        %v1779 = vpack.c.b16 %v1549, %v1544
        %v1780 = vpack.c.b16 %v1550, %v1545
        %v1781 = vpack.c.b16 %v1551, %v1546
        %v1782 = vpack.c.b16 %v1552, %v1547
        %v1783 = vpack.c.b16 %v1558, %v1553
        %v1784 = vpack.c.b16 %v1559, %v1554
        %v1785 = vpack.c.b16 %v1560, %v1555
        %v1786 = vpack.c.b16 %v1561, %v1556
        %v1787 = vpack.c.b16 %v1562, %v1557
        %v1788 = vpack.c.b16 %v1568, %v1563
        %v1789 = vpack.c.b16 %v1569, %v1564
        %v1790 = vpack.c.b16 %v1570, %v1565
        %v1791 = vpack.c.b16 %v1571, %v1566
        %v1792 = vpack.c.b16 %v1572, %v1567
        %v1793 = vpack.c.b16 %v1578, %v1573
        %v1794 = vpack.c.b16 %v1579, %v1574
        %v1795 = vpack.c.b16 %v1580, %v1575
        %v1796 = vpack.c.b16 %v1581, %v1576
        %v1797 = vpack.c.b16 %v1582, %v1577
        %v1798 = vpack.c.b16 %v1588, %v1583
        %v1799 = vpack.c.b16 %v1589, %v1584
        %v1800 = vpack.c.b16 %v1590, %v1585
        %v1801 = vpack.c.b16 %v1591, %v1586
        %v1802 = vpack.c.b16 %v1592, %v1587
        %v1803 = vpack.c.b16 %v1598, %v1593
        %v1804 = vpack.c.b16 %v1599, %v1594
        %v1805 = vpack.c.b16 %v1600, %v1595
        %v1806 = vpack.c.b16 %v1601, %v1596
        %v1807 = vpack.c.b16 %v1602, %v1597
        %v1808 = vpack.c.b16 %v1608, %v1603
        %v1809 = vpack.c.b16 %v1609, %v1604
        %v1810 = vpack.c.b16 %v1610, %v1605
        %v1811 = vpack.c.b16 %v1611, %v1606
        %v1812 = vpack.c.b16 %v1612, %v1607
        %v1813 = vpack.c.b16 %v1618, %v1613
        %v1814 = vpack.c.b16 %v1619, %v1614
        %v1815 = vpack.c.b16 %v1620, %v1615
        %v1816 = vpack.c.b16 %v1621, %v1616
        %v1817 = vpack.c.b16 %v1622, %v1617
        %v1818 = vpack.c.b16 %v1628, %v1623
        %v1819 = vpack.c.b16 %v1629, %v1624
        %v1820 = vpack.c.b16 %v1630, %v1625
        %v1821 = vpack.c.b16 %v1631, %v1626
        %v1822 = vpack.c.b16 %v1632, %v1627
        %v1823 = vpack.c.b16 %v1638, %v1633
        %v1824 = vpack.c.b16 %v1639, %v1634
        %v1825 = vpack.c.b16 %v1640, %v1635
        %v1826 = vpack.c.b16 %v1641, %v1636
        %v1827 = vpack.c.b16 %v1642, %v1637
        %v1828 = vpack.c.b16 %v1648, %v1643
        %v1829 = vpack.c.b16 %v1649, %v1644
        %v1830 = vpack.c.b16 %v1650, %v1645
        %v1831 = vpack.c.b16 %v1651, %v1646
        %v1832 = vpack.c.b16 %v1652, %v1647
        %vm2013 = vcmask 523264
        %v2015 = vsel %vm2013, %v1045, 0
        %v2018 = vsel %vm2013, %v1050, 0
        %v2021 = vsel %vm2013, %v1055, 0
        %v2024 = vsel %vm2013, %v1060, 0
        %2026 = vmatprep.subr.bf16.mxu0 %v1654
        %2027 = vmatpush1.bf16.msra.mxu0 %v1653
        %2028 = vmatprep.subr.bf16.mxu0 %v1659
        %2029 = vmatpush1.bf16.msra.mxu0 %v1658
        %2030 = vmatprep.subr.bf16.mxu0 %v1664
        %2031 = vmatpush1.bf16.msra.mxu0 %v1663
        %2032 = vmatprep.subr.bf16.mxu0 %v1669
        %2033 = vmatpush1.bf16.msra.mxu0 %v1668
        %2034 = vmatprep.subr.bf16.mxu0 %v1674
        %2035 = vmatpush1.bf16.msra.mxu0 %v1673
        %2036 = vmatprep.subr.bf16.mxu0 %v1679
        %2037 = vmatpush1.bf16.msra.mxu0 %v1678
        %2038 = vmatprep.subr.bf16.mxu0 %v1684
        %2039 = vmatpush1.bf16.msra.mxu0 %v1683
        %2040 = vmatprep.subr.bf16.mxu0 %v1689
        %2041 = vmatpush1.bf16.msra.mxu0 %v1688
        %2042 = vmatprep.subr.bf16.mxu0 %v1694
        %2043 = vmatpush1.bf16.msra.mxu0 %v1693
        %2044 = vmatprep.subr.bf16.mxu0 %v1699
        %2045 = vmatpush1.bf16.msra.mxu0 %v1698
        %2046 = vmatprep.subr.bf16.mxu0 %v1704
        %2047 = vmatpush1.bf16.msra.mxu0 %v1703
        %2048 = vmatprep.subr.bf16.mxu0 %v1709
        %2049 = vmatpush1.bf16.msra.mxu0 %v1708
        %2050 = vmatprep.subr.bf16.mxu0 %v1714
        %2051 = vmatpush1.bf16.msra.mxu0 %v1713
        %2052 = vmatprep.subr.bf16.mxu0 %v1719
        %2053 = vmatpush1.bf16.msra.mxu0 %v1718
        %2054 = vmatprep.subr.bf16.mxu0 %v1724
        %2055 = vmatpush1.bf16.msra.mxu0 %v1723
        %2056 = vmatprep.subr.bf16.mxu0 %v1729
        %2057 = vmatpush1.bf16.msra.mxu0 %v1728
        %2058 = vmatprep.mubr.bf16.mxu0 %v1042
        %2059 = vmatmul.mubr.bf16.gmra.mrb[0].mxu0 %v1041
        %v2060 = vpop.f32.mrb[0].mxu0
        %v2061 = vadd.f32 %v940, %v2060
        %v2062 = vpop.f32.mrb[0].mxu0
        %v2063 = vadd.f32 %v940, %v2062
        %v2064 = vpop.f32.mrb[0].mxu0
        %v2065 = vadd.f32 %v945, %v2064
        %v2066 = vpop.f32.mrb[0].mxu0
        %v2067 = vadd.f32 %v945, %v2066
        %2068 = vmatprep.mubr.bf16.mxu0 %v1047
        %2069 = vmatmul.mubr.bf16.gmra.mrb[0].mxu0 %v1046
        %v2070 = vpop.f32.mrb[0].mxu0
        %v2071 = vadd.f32 %v950, %v2070
        %v2072 = vpop.f32.mrb[0].mxu0
        %v2073 = vadd.f32 %v950, %v2072
        %v2074 = vpop.f32.mrb[0].mxu0
        %v2075 = vadd.f32 %v955, %v2074
        %v2076 = vpop.f32.mrb[0].mxu0
        %v2077 = vadd.f32 %v955, %v2076
        %2078 = vmatprep.mubr.bf16.mxu0 %v1052
        %2079 = vmatmul.mubr.bf16.gmra.mrb[0].mxu0 %v1051
        %v2080 = vpop.f32.mrb[0].mxu0
        %v2081 = vadd.f32 %v960, %v2080
        %v2082 = vpop.f32.mrb[0].mxu0
        %v2083 = vadd.f32 %v960, %v2082
        %v2084 = vpop.f32.mrb[0].mxu0
        %v2085 = vadd.f32 %v965, %v2084
        %v2086 = vpop.f32.mrb[0].mxu0
        %v2087 = vadd.f32 %v965, %v2086
        %2088 = vmatprep.mubr.bf16.mxu0 %v1057
        %2089 = vmatmul.mubr.bf16.gmra.mrb[0].mxu0 %v1056
        %v2090 = vpop.f32.mrb[0].mxu0
        %v2091 = vadd.f32 %v970, %v2090
        %v2092 = vpop.f32.mrb[0].mxu0
        %v2093 = vadd.f32 %v970, %v2092
        %v2094 = vpop.f32.mrb[0].mxu0
        %v2095 = vadd.f32 %v975, %v2094
        %v2096 = vpop.f32.mrb[0].mxu0
        %v2097 = vadd.f32 %v975, %v2096
        %2098 = vdwg.mxu0
        %2099 = vmatprep.subr.bf16.mxu0 %v1734
        %2100 = vmatpush1.bf16.msra.mxu0 %v1733
        %2101 = vmatprep.subr.bf16.mxu0 %v1739
        %2102 = vmatpush1.bf16.msra.mxu0 %v1738
        %2103 = vmatprep.subr.bf16.mxu0 %v1744
        %2104 = vmatpush1.bf16.msra.mxu0 %v1743
        %2105 = vmatprep.subr.bf16.mxu0 %v1749
        %2106 = vmatpush1.bf16.msra.mxu0 %v1748
        %2107 = vmatprep.subr.bf16.mxu0 %v1754
        %2108 = vmatpush1.bf16.msra.mxu0 %v1753
        %2109 = vmatprep.subr.bf16.mxu0 %v1759
        %2110 = vmatpush1.bf16.msra.mxu0 %v1758
        %2111 = vmatprep.subr.bf16.mxu0 %v1764
        %2112 = vmatpush1.bf16.msra.mxu0 %v1763
        %2113 = vmatprep.subr.bf16.mxu0 %v1769
        %2114 = vmatpush1.bf16.msra.mxu0 %v1768
        %2115 = vmatprep.subr.bf16.mxu0 %v1774
        %2116 = vmatpush1.bf16.msra.mxu0 %v1773
        %2117 = vmatprep.subr.bf16.mxu0 %v1779
        %2118 = vmatpush1.bf16.msra.mxu0 %v1778
        %2119 = vmatprep.subr.bf16.mxu0 %v1784
        %2120 = vmatpush1.bf16.msra.mxu0 %v1783
        %2121 = vmatprep.subr.bf16.mxu0 %v1789
        %2122 = vmatpush1.bf16.msra.mxu0 %v1788
        %2123 = vmatprep.subr.bf16.mxu0 %v1794
        %2124 = vmatpush1.bf16.msra.mxu0 %v1793
        %2125 = vmatprep.subr.bf16.mxu0 %v1799
        %2126 = vmatpush1.bf16.msra.mxu0 %v1798
        %2127 = vmatprep.subr.bf16.mxu0 %v1804
        %2128 = vmatpush1.bf16.msra.mxu0 %v1803
        %2129 = vmatprep.subr.bf16.mxu0 %v1809
        %2130 = vmatpush1.bf16.msra.mxu0 %v1808
        %2131 = vmatprep.mubr.bf16.mxu0 %v1044
        %2132 = vmatmul.mubr.bf16.gmra.mrb[0].mxu0 %v1043
        %v2133 = vpop.f32.mrb[0].mxu0
        %v2134 = vadd.f32 %v2061, %v2133
        %v2135 = vpop.f32.mrb[0].mxu0
        %v2136 = vadd.f32 %v2063, %v2135
        %v2137 = vpop.f32.mrb[0].mxu0
        %v2138 = vadd.f32 %v2065, %v2137
        %v2139 = vpop.f32.mrb[0].mxu0
        %v2140 = vadd.f32 %v2067, %v2139
        %2141 = vmatprep.mubr.bf16.mxu0 %v1049
        %2142 = vmatmul.mubr.bf16.gmra.mrb[0].mxu0 %v1048
        %v2143 = vpop.f32.mrb[0].mxu0
        %v2144 = vadd.f32 %v2071, %v2143
        %v2145 = vpop.f32.mrb[0].mxu0
        %v2146 = vadd.f32 %v2073, %v2145
        %v2147 = vpop.f32.mrb[0].mxu0
        %v2148 = vadd.f32 %v2075, %v2147
        %v2149 = vpop.f32.mrb[0].mxu0
        %v2150 = vadd.f32 %v2077, %v2149
        %2151 = vmatprep.mubr.bf16.mxu0 %v1054
        %2152 = vmatmul.mubr.bf16.gmra.mrb[0].mxu0 %v1053
        %v2153 = vpop.f32.mrb[0].mxu0
        %v2154 = vadd.f32 %v2081, %v2153
        %v2155 = vpop.f32.mrb[0].mxu0
        %v2156 = vadd.f32 %v2083, %v2155
        %v2157 = vpop.f32.mrb[0].mxu0
        %v2158 = vadd.f32 %v2085, %v2157
        %v2159 = vpop.f32.mrb[0].mxu0
        %v2160 = vadd.f32 %v2087, %v2159
        %2161 = vmatprep.mubr.bf16.mxu0 %v1059
        %2162 = vmatmul.mubr.bf16.gmra.mrb[0].mxu0 %v1058
        %v2163 = vpop.f32.mrb[0].mxu0
        %v2164 = vadd.f32 %v2091, %v2163
        %v2165 = vpop.f32.mrb[0].mxu0
        %v2166 = vadd.f32 %v2093, %v2165
        %v2167 = vpop.f32.mrb[0].mxu0
        %v2168 = vadd.f32 %v2095, %v2167
        %v2169 = vpop.f32.mrb[0].mxu0
        %v2170 = vadd.f32 %v2097, %v2169
        %2171 = vdwg.mxu0
        %2172 = vmatprep.subr.bf16.mxu0 %v1814
        %2173 = vmatpush1.bf16.msra.mxu0 %v1813
        %2174 = vmatprep.subr.bf16.mxu0 %v1819
        %2175 = vmatpush1.bf16.msra.mxu0 %v1818
        %2176 = vmatprep.subr.bf16.mxu0 %v1824
        %2177 = vmatpush1.bf16.msra.mxu0 %v1823
        %2178 = vmatprep.subr.bf16.mxu0 %v1829
        %2179 = vmatpush1.bf16.msra.mxu0 %v1828
        %2180 = vmatprep.subr.bf16.mxu0 0
        %2181 = vmatpush1.bf16.msra.mxu0 0
        %2182 = vmatprep.subr.bf16.mxu0 0
        %2183 = vmatpush1.bf16.msra.mxu0 0
        %2184 = vmatprep.subr.bf16.mxu0 0
        %2185 = vmatpush1.bf16.msra.mxu0 0
        %2186 = vmatprep.subr.bf16.mxu0 0
        %2187 = vmatpush1.bf16.msra.mxu0 0
        %2188 = vmatprep.subr.bf16.mxu0 0
        %2189 = vmatpush1.bf16.msra.mxu0 0
        %2190 = vmatprep.subr.bf16.mxu0 0
        %2191 = vmatpush1.bf16.msra.mxu0 0
        %2192 = vmatprep.subr.bf16.mxu0 0
        %2193 = vmatpush1.bf16.msra.mxu0 0
        %2194 = vmatprep.subr.bf16.mxu0 0
        %2195 = vmatpush1.bf16.msra.mxu0 0
        %2196 = vmatprep.subr.bf16.mxu0 0
        %2197 = vmatpush1.bf16.msra.mxu0 0
        %2198 = vmatprep.subr.bf16.mxu0 0
        %2199 = vmatpush1.bf16.msra.mxu0 0
        %2200 = vmatprep.subr.bf16.mxu0 0
        %2201 = vmatpush1.bf16.msra.mxu0 0
        %2202 = vmatprep.subr.bf16.mxu0 0
        %2203 = vmatpush1.bf16.msra.mxu0 0
        %2204 = vmatprep.mubr.bf16.mxu0 0
        %2205 = vmatmul.mubr.bf16.gmra.mrb[0].mxu0 %v2015
        %v2206 = vpop.f32.mrb[0].mxu0
        %v2207 = vadd.f32 %v2134, %v2206
        %v2208 = vpop.f32.mrb[0].mxu0
        %v2209 = vadd.f32 %v2136, %v2208
        %v2210 = vpop.f32.mrb[0].mxu0
        %v2211 = vadd.f32 %v2138, %v2210
        %v2212 = vpop.f32.mrb[0].mxu0
        %v2213 = vadd.f32 %v2140, %v2212
        %2214 = vmatprep.mubr.bf16.mxu0 0
        %2215 = vmatmul.mubr.bf16.gmra.mrb[0].mxu0 %v2018
        %v2216 = vpop.f32.mrb[0].mxu0
        %v2217 = vadd.f32 %v2144, %v2216
        %v2218 = vpop.f32.mrb[0].mxu0
        %v2219 = vadd.f32 %v2146, %v2218
        %v2220 = vpop.f32.mrb[0].mxu0
        %v2221 = vadd.f32 %v2148, %v2220
        %v2222 = vpop.f32.mrb[0].mxu0
        %v2223 = vadd.f32 %v2150, %v2222
        %2224 = vmatprep.mubr.bf16.mxu0 0
        %2225 = vmatmul.mubr.bf16.gmra.mrb[0].mxu0 %v2021
        %v2226 = vpop.f32.mrb[0].mxu0
        %v2227 = vadd.f32 %v2154, %v2226
        %v2228 = vpop.f32.mrb[0].mxu0
        %v2229 = vadd.f32 %v2156, %v2228
        %v2230 = vpop.f32.mrb[0].mxu0
        %v2231 = vadd.f32 %v2158, %v2230
        %v2232 = vpop.f32.mrb[0].mxu0
        %v2233 = vadd.f32 %v2160, %v2232
        %2234 = vmatprep.mubr.bf16.mxu0 0
        %2235 = vmatmul.mubr.bf16.gmra.mrb[0].mxu0 %v2024
        %v2236 = vpop.f32.mrb[0].mxu0
        %v2237 = vadd.f32 %v2164, %v2236
        %v2238 = vpop.f32.mrb[0].mxu0
        %v2239 = vadd.f32 %v2166, %v2238
        %v2240 = vpop.f32.mrb[0].mxu0
        %v2241 = vadd.f32 %v2168, %v2240
        %v2242 = vpop.f32.mrb[0].mxu0
        %v2243 = vadd.f32 %v2170, %v2242
        %2244 = vdwg.mxu0
        %2245 = vmatprep.subr.bf16.mxu0 %v1656
        %2246 = vmatpush1.bf16.msra.mxu0 %v1655
        %2247 = vmatprep.subr.bf16.mxu0 %v1661
        %2248 = vmatpush1.bf16.msra.mxu0 %v1660
        %2249 = vmatprep.subr.bf16.mxu0 %v1666
        %2250 = vmatpush1.bf16.msra.mxu0 %v1665
        %2251 = vmatprep.subr.bf16.mxu0 %v1671
        %2252 = vmatpush1.bf16.msra.mxu0 %v1670
        %2253 = vmatprep.subr.bf16.mxu0 %v1676
        %2254 = vmatpush1.bf16.msra.mxu0 %v1675
        %2255 = vmatprep.subr.bf16.mxu0 %v1681
        %2256 = vmatpush1.bf16.msra.mxu0 %v1680
        %2257 = vmatprep.subr.bf16.mxu0 %v1686
        %2258 = vmatpush1.bf16.msra.mxu0 %v1685
        %2259 = vmatprep.subr.bf16.mxu0 %v1691
        %2260 = vmatpush1.bf16.msra.mxu0 %v1690
        %2261 = vmatprep.subr.bf16.mxu0 %v1696
        %2262 = vmatpush1.bf16.msra.mxu0 %v1695
        %2263 = vmatprep.subr.bf16.mxu0 %v1701
        %2264 = vmatpush1.bf16.msra.mxu0 %v1700
        %2265 = vmatprep.subr.bf16.mxu0 %v1706
        %2266 = vmatpush1.bf16.msra.mxu0 %v1705
        %2267 = vmatprep.subr.bf16.mxu0 %v1711
        %2268 = vmatpush1.bf16.msra.mxu0 %v1710
        %2269 = vmatprep.subr.bf16.mxu0 %v1716
        %2270 = vmatpush1.bf16.msra.mxu0 %v1715
        %2271 = vmatprep.subr.bf16.mxu0 %v1721
        %2272 = vmatpush1.bf16.msra.mxu0 %v1720
        %2273 = vmatprep.subr.bf16.mxu0 %v1726
        %2274 = vmatpush1.bf16.msra.mxu0 %v1725
        %2275 = vmatprep.subr.bf16.mxu0 %v1731
        %2276 = vmatpush1.bf16.msra.mxu0 %v1730
        %2277 = vmatprep.mubr.bf16.mxu0 %v1042
        %2278 = vmatmul.mubr.bf16.gmra.mrb[0].mxu0 %v1041
        %v2279 = vpop.f32.mrb[0].mxu0
        %v2280 = vadd.f32 %v940, %v2279
        %v2281 = vpop.f32.mrb[0].mxu0
        %v2282 = vadd.f32 %v940, %v2281
        %v2283 = vpop.f32.mrb[0].mxu0
        %v2284 = vadd.f32 %v945, %v2283
        %v2285 = vpop.f32.mrb[0].mxu0
        %v2286 = vadd.f32 %v945, %v2285
        %2287 = vmatprep.mubr.bf16.mxu0 %v1047
        %2288 = vmatmul.mubr.bf16.gmra.mrb[0].mxu0 %v1046
        %v2289 = vpop.f32.mrb[0].mxu0
        %v2290 = vadd.f32 %v950, %v2289
        %v2291 = vpop.f32.mrb[0].mxu0
        %v2292 = vadd.f32 %v950, %v2291
        %v2293 = vpop.f32.mrb[0].mxu0
        %v2294 = vadd.f32 %v955, %v2293
        %v2295 = vpop.f32.mrb[0].mxu0
        %v2296 = vadd.f32 %v955, %v2295
        %2297 = vmatprep.mubr.bf16.mxu0 %v1052
        %2298 = vmatmul.mubr.bf16.gmra.mrb[0].mxu0 %v1051
        %v2299 = vpop.f32.mrb[0].mxu0
        %v2300 = vadd.f32 %v960, %v2299
        %v2301 = vpop.f32.mrb[0].mxu0
        %v2302 = vadd.f32 %v960, %v2301
        %v2303 = vpop.f32.mrb[0].mxu0
        %v2304 = vadd.f32 %v965, %v2303
        %v2305 = vpop.f32.mrb[0].mxu0
        %v2306 = vadd.f32 %v965, %v2305
        %2307 = vmatprep.mubr.bf16.mxu0 %v1057
        %2308 = vmatmul.mubr.bf16.gmra.mrb[0].mxu0 %v1056
        %v2309 = vpop.f32.mrb[0].mxu0
        %v2310 = vadd.f32 %v970, %v2309
        %v2311 = vpop.f32.mrb[0].mxu0
        %v2312 = vadd.f32 %v970, %v2311
        %v2313 = vpop.f32.mrb[0].mxu0
        %v2314 = vadd.f32 %v975, %v2313
        %v2315 = vpop.f32.mrb[0].mxu0
        %v2316 = vadd.f32 %v975, %v2315
        %2317 = vdwg.mxu0
        %2318 = vmatprep.subr.bf16.mxu0 %v1736
        %2319 = vmatpush1.bf16.msra.mxu0 %v1735
        %2320 = vmatprep.subr.bf16.mxu0 %v1741
        %2321 = vmatpush1.bf16.msra.mxu0 %v1740
        %2322 = vmatprep.subr.bf16.mxu0 %v1746
        %2323 = vmatpush1.bf16.msra.mxu0 %v1745
        %2324 = vmatprep.subr.bf16.mxu0 %v1751
        %2325 = vmatpush1.bf16.msra.mxu0 %v1750
        %2326 = vmatprep.subr.bf16.mxu0 %v1756
        %2327 = vmatpush1.bf16.msra.mxu0 %v1755
        %2328 = vmatprep.subr.bf16.mxu0 %v1761
        %2329 = vmatpush1.bf16.msra.mxu0 %v1760
        %2330 = vmatprep.subr.bf16.mxu0 %v1766
        %2331 = vmatpush1.bf16.msra.mxu0 %v1765
        %2332 = vmatprep.subr.bf16.mxu0 %v1771
        %2333 = vmatpush1.bf16.msra.mxu0 %v1770
        %2334 = vmatprep.subr.bf16.mxu0 %v1776
        %2335 = vmatpush1.bf16.msra.mxu0 %v1775
        %2336 = vmatprep.subr.bf16.mxu0 %v1781
        %2337 = vmatpush1.bf16.msra.mxu0 %v1780
        %2338 = vmatprep.subr.bf16.mxu0 %v1786
        %2339 = vmatpush1.bf16.msra.mxu0 %v1785
        %2340 = vmatprep.subr.bf16.mxu0 %v1791
        %2341 = vmatpush1.bf16.msra.mxu0 %v1790
        %2342 = vmatprep.subr.bf16.mxu0 %v1796
        %2343 = vmatpush1.bf16.msra.mxu0 %v1795
        %2344 = vmatprep.subr.bf16.mxu0 %v1801
        %2345 = vmatpush1.bf16.msra.mxu0 %v1800
        %2346 = vmatprep.subr.bf16.mxu0 %v1806
        %2347 = vmatpush1.bf16.msra.mxu0 %v1805
        %2348 = vmatprep.subr.bf16.mxu0 %v1811
        %2349 = vmatpush1.bf16.msra.mxu0 %v1810
        %2350 = vmatprep.mubr.bf16.mxu0 %v1044
        %2351 = vmatmul.mubr.bf16.gmra.mrb[0].mxu0 %v1043
        %v2352 = vpop.f32.mrb[0].mxu0
        %v2353 = vadd.f32 %v2280, %v2352
        %v2354 = vpop.f32.mrb[0].mxu0
        %v2355 = vadd.f32 %v2282, %v2354
        %v2356 = vpop.f32.mrb[0].mxu0
        %v2357 = vadd.f32 %v2284, %v2356
        %v2358 = vpop.f32.mrb[0].mxu0
        %v2359 = vadd.f32 %v2286, %v2358
        %2360 = vmatprep.mubr.bf16.mxu0 %v1049
        %2361 = vmatmul.mubr.bf16.gmra.mrb[0].mxu0 %v1048
        %v2362 = vpop.f32.mrb[0].mxu0
        %v2363 = vadd.f32 %v2290, %v2362
        %v2364 = vpop.f32.mrb[0].mxu0
        %v2365 = vadd.f32 %v2292, %v2364
        %v2366 = vpop.f32.mrb[0].mxu0
        %v2367 = vadd.f32 %v2294, %v2366
        %v2368 = vpop.f32.mrb[0].mxu0
        %v2369 = vadd.f32 %v2296, %v2368
        %2370 = vmatprep.mubr.bf16.mxu0 %v1054
        %2371 = vmatmul.mubr.bf16.gmra.mrb[0].mxu0 %v1053
        %v2372 = vpop.f32.mrb[0].mxu0
        %v2373 = vadd.f32 %v2300, %v2372
        %v2374 = vpop.f32.mrb[0].mxu0
        %v2375 = vadd.f32 %v2302, %v2374
        %v2376 = vpop.f32.mrb[0].mxu0
        %v2377 = vadd.f32 %v2304, %v2376
        %v2378 = vpop.f32.mrb[0].mxu0
        %v2379 = vadd.f32 %v2306, %v2378
        %2380 = vmatprep.mubr.bf16.mxu0 %v1059
        %2381 = vmatmul.mubr.bf16.gmra.mrb[0].mxu0 %v1058
        %v2382 = vpop.f32.mrb[0].mxu0
        %v2383 = vadd.f32 %v2310, %v2382
        %v2384 = vpop.f32.mrb[0].mxu0
        %v2385 = vadd.f32 %v2312, %v2384
        %v2386 = vpop.f32.mrb[0].mxu0
        %v2387 = vadd.f32 %v2314, %v2386
        %v2388 = vpop.f32.mrb[0].mxu0
        %v2389 = vadd.f32 %v2316, %v2388
        %2390 = vdwg.mxu0
        %2391 = vmatprep.subr.bf16.mxu0 %v1816
        %2392 = vmatpush1.bf16.msra.mxu0 %v1815
        %2393 = vmatprep.subr.bf16.mxu0 %v1821
        %2394 = vmatpush1.bf16.msra.mxu0 %v1820
        %2395 = vmatprep.subr.bf16.mxu0 %v1826
        %2396 = vmatpush1.bf16.msra.mxu0 %v1825
        %2397 = vmatprep.subr.bf16.mxu0 %v1831
        %2398 = vmatpush1.bf16.msra.mxu0 %v1830
        %2399 = vmatprep.subr.bf16.mxu0 0
        %2400 = vmatpush1.bf16.msra.mxu0 0
        %2401 = vmatprep.subr.bf16.mxu0 0
        %2402 = vmatpush1.bf16.msra.mxu0 0
        %2403 = vmatprep.subr.bf16.mxu0 0
        %2404 = vmatpush1.bf16.msra.mxu0 0
        %2405 = vmatprep.subr.bf16.mxu0 0
        %2406 = vmatpush1.bf16.msra.mxu0 0
        %2407 = vmatprep.subr.bf16.mxu0 0
        %2408 = vmatpush1.bf16.msra.mxu0 0
        %2409 = vmatprep.subr.bf16.mxu0 0
        %2410 = vmatpush1.bf16.msra.mxu0 0
        %2411 = vmatprep.subr.bf16.mxu0 0
        %2412 = vmatpush1.bf16.msra.mxu0 0
        %2413 = vmatprep.subr.bf16.mxu0 0
        %2414 = vmatpush1.bf16.msra.mxu0 0
        %2415 = vmatprep.subr.bf16.mxu0 0
        %2416 = vmatpush1.bf16.msra.mxu0 0
        %2417 = vmatprep.subr.bf16.mxu0 0
        %2418 = vmatpush1.bf16.msra.mxu0 0
        %2419 = vmatprep.subr.bf16.mxu0 0
        %2420 = vmatpush1.bf16.msra.mxu0 0
        %2421 = vmatprep.subr.bf16.mxu0 0
        %2422 = vmatpush1.bf16.msra.mxu0 0
        %2423 = vmatprep.mubr.bf16.mxu0 0
        %2424 = vmatmul.mubr.bf16.gmra.mrb[0].mxu0 %v2015
        %v2425 = vpop.f32.mrb[0].mxu0
        %v2426 = vadd.f32 %v2353, %v2425
        %v2427 = vpop.f32.mrb[0].mxu0
        %v2428 = vadd.f32 %v2355, %v2427
        %v2429 = vpop.f32.mrb[0].mxu0
        %v2430 = vadd.f32 %v2357, %v2429
        %v2431 = vpop.f32.mrb[0].mxu0
        %v2432 = vadd.f32 %v2359, %v2431
        %2433 = vmatprep.mubr.bf16.mxu0 0
        %2434 = vmatmul.mubr.bf16.gmra.mrb[0].mxu0 %v2018
        %v2435 = vpop.f32.mrb[0].mxu0
        %v2436 = vadd.f32 %v2363, %v2435
        %v2437 = vpop.f32.mrb[0].mxu0
        %v2438 = vadd.f32 %v2365, %v2437
        %v2439 = vpop.f32.mrb[0].mxu0
        %v2440 = vadd.f32 %v2367, %v2439
        %v2441 = vpop.f32.mrb[0].mxu0
        %v2442 = vadd.f32 %v2369, %v2441
        %2443 = vmatprep.mubr.bf16.mxu0 0
        %2444 = vmatmul.mubr.bf16.gmra.mrb[0].mxu0 %v2021
        %v2445 = vpop.f32.mrb[0].mxu0
        %v2446 = vadd.f32 %v2373, %v2445
        %v2447 = vpop.f32.mrb[0].mxu0
        %v2448 = vadd.f32 %v2375, %v2447
        %v2449 = vpop.f32.mrb[0].mxu0
        %v2450 = vadd.f32 %v2377, %v2449
        %v2451 = vpop.f32.mrb[0].mxu0
        %v2452 = vadd.f32 %v2379, %v2451
        %2453 = vmatprep.mubr.bf16.mxu0 0
        %2454 = vmatmul.mubr.bf16.gmra.mrb[0].mxu0 %v2024
        %v2455 = vpop.f32.mrb[0].mxu0
        %v2456 = vadd.f32 %v2383, %v2455
        %v2457 = vpop.f32.mrb[0].mxu0
        %v2458 = vadd.f32 %v2385, %v2457
        %v2459 = vpop.f32.mrb[0].mxu0
        %v2460 = vadd.f32 %v2387, %v2459
        %v2461 = vpop.f32.mrb[0].mxu0
        %v2462 = vadd.f32 %v2389, %v2461
        %2463 = vdwg.mxu0
        %2464 = vmatprep.subr.bf16.mxu0 0
        %2465 = vmatpush1.bf16.msra.mxu0 %v1657
        %2466 = vmatprep.subr.bf16.mxu0 0
        %2467 = vmatpush1.bf16.msra.mxu0 %v1662
        %2468 = vmatprep.subr.bf16.mxu0 0
        %2469 = vmatpush1.bf16.msra.mxu0 %v1667
        %2470 = vmatprep.subr.bf16.mxu0 0
        %2471 = vmatpush1.bf16.msra.mxu0 %v1672
        %2472 = vmatprep.subr.bf16.mxu0 0
        %2473 = vmatpush1.bf16.msra.mxu0 %v1677
        %2474 = vmatprep.subr.bf16.mxu0 0
        %2475 = vmatpush1.bf16.msra.mxu0 %v1682
        %2476 = vmatprep.subr.bf16.mxu0 0
        %2477 = vmatpush1.bf16.msra.mxu0 %v1687
        %2478 = vmatprep.subr.bf16.mxu0 0
        %2479 = vmatpush1.bf16.msra.mxu0 %v1692
        %2480 = vmatprep.subr.bf16.mxu0 0
        %2481 = vmatpush1.bf16.msra.mxu0 %v1697
        %2482 = vmatprep.subr.bf16.mxu0 0
        %2483 = vmatpush1.bf16.msra.mxu0 %v1702
        %2484 = vmatprep.subr.bf16.mxu0 0
        %2485 = vmatpush1.bf16.msra.mxu0 %v1707
        %2486 = vmatprep.subr.bf16.mxu0 0
        %2487 = vmatpush1.bf16.msra.mxu0 %v1712
        %2488 = vmatprep.subr.bf16.mxu0 0
        %2489 = vmatpush1.bf16.msra.mxu0 %v1717
        %2490 = vmatprep.subr.bf16.mxu0 0
        %2491 = vmatpush1.bf16.msra.mxu0 %v1722
        %2492 = vmatprep.subr.bf16.mxu0 0
        %2493 = vmatpush1.bf16.msra.mxu0 %v1727
        %2494 = vmatprep.subr.bf16.mxu0 0
        %2495 = vmatpush1.bf16.msra.mxu0 %v1732
        %2496 = vmatprep.mubr.bf16.mxu0 %v1042
        %2497 = vmatmul.mubr.bf16.gmra.mrb[0].mxu0 %v1041
        %v2498 = vpop.f32.mrb[0].mxu0
        %v2499 = vadd.f32 %v940, %v2498
        %v2500 = vpop.f32.mrb[0].mxu0
        %v2501 = vpop.f32.mrb[0].mxu0
        %v2502 = vadd.f32 %v945, %v2501
        %v2503 = vpop.f32.mrb[0].mxu0
        %2504 = vmatprep.mubr.bf16.mxu0 %v1047
        %2505 = vmatmul.mubr.bf16.gmra.mrb[0].mxu0 %v1046
        %v2506 = vpop.f32.mrb[0].mxu0
        %v2507 = vadd.f32 %v950, %v2506
        %v2508 = vpop.f32.mrb[0].mxu0
        %v2509 = vpop.f32.mrb[0].mxu0
        %v2510 = vadd.f32 %v955, %v2509
        %v2511 = vpop.f32.mrb[0].mxu0
        %2512 = vmatprep.mubr.bf16.mxu0 %v1052
        %2513 = vmatmul.mubr.bf16.gmra.mrb[0].mxu0 %v1051
        %v2514 = vpop.f32.mrb[0].mxu0
        %v2515 = vadd.f32 %v960, %v2514
        %v2516 = vpop.f32.mrb[0].mxu0
        %v2517 = vpop.f32.mrb[0].mxu0
        %v2518 = vadd.f32 %v965, %v2517
        %v2519 = vpop.f32.mrb[0].mxu0
        %2520 = vmatprep.mubr.bf16.mxu0 %v1057
        %2521 = vmatmul.mubr.bf16.gmra.mrb[0].mxu0 %v1056
        %v2522 = vpop.f32.mrb[0].mxu0
        %v2523 = vadd.f32 %v970, %v2522
        %v2524 = vpop.f32.mrb[0].mxu0
        %v2525 = vpop.f32.mrb[0].mxu0
        %v2526 = vadd.f32 %v975, %v2525
        %v2527 = vpop.f32.mrb[0].mxu0
        %2528 = vdwg.mxu0
        %2529 = vmatprep.subr.bf16.mxu0 0
        %2530 = vmatpush1.bf16.msra.mxu0 %v1737
        %2531 = vmatprep.subr.bf16.mxu0 0
        %2532 = vmatpush1.bf16.msra.mxu0 %v1742
        %2533 = vmatprep.subr.bf16.mxu0 0
        %2534 = vmatpush1.bf16.msra.mxu0 %v1747
        %2535 = vmatprep.subr.bf16.mxu0 0
        %2536 = vmatpush1.bf16.msra.mxu0 %v1752
        %2537 = vmatprep.subr.bf16.mxu0 0
        %2538 = vmatpush1.bf16.msra.mxu0 %v1757
        %2539 = vmatprep.subr.bf16.mxu0 0
        %2540 = vmatpush1.bf16.msra.mxu0 %v1762
        %2541 = vmatprep.subr.bf16.mxu0 0
        %2542 = vmatpush1.bf16.msra.mxu0 %v1767
        %2543 = vmatprep.subr.bf16.mxu0 0
        %2544 = vmatpush1.bf16.msra.mxu0 %v1772
        %2545 = vmatprep.subr.bf16.mxu0 0
        %2546 = vmatpush1.bf16.msra.mxu0 %v1777
        %2547 = vmatprep.subr.bf16.mxu0 0
        %2548 = vmatpush1.bf16.msra.mxu0 %v1782
        %2549 = vmatprep.subr.bf16.mxu0 0
        %2550 = vmatpush1.bf16.msra.mxu0 %v1787
        %2551 = vmatprep.subr.bf16.mxu0 0
        %2552 = vmatpush1.bf16.msra.mxu0 %v1792
        %2553 = vmatprep.subr.bf16.mxu0 0
        %2554 = vmatpush1.bf16.msra.mxu0 %v1797
        %2555 = vmatprep.subr.bf16.mxu0 0
        %2556 = vmatpush1.bf16.msra.mxu0 %v1802
        %2557 = vmatprep.subr.bf16.mxu0 0
        %2558 = vmatpush1.bf16.msra.mxu0 %v1807
        %2559 = vmatprep.subr.bf16.mxu0 0
        %2560 = vmatpush1.bf16.msra.mxu0 %v1812
        %2561 = vmatprep.mubr.bf16.mxu0 %v1044
        %2562 = vmatmul.mubr.bf16.gmra.mrb[0].mxu0 %v1043
        %v2563 = vpop.f32.mrb[0].mxu0
        %v2564 = vadd.f32 %v2499, %v2563
        %v2565 = vpop.f32.mrb[0].mxu0
        %v2566 = vpop.f32.mrb[0].mxu0
        %v2567 = vadd.f32 %v2502, %v2566
        %v2568 = vpop.f32.mrb[0].mxu0
        %2569 = vmatprep.mubr.bf16.mxu0 %v1049
        %2570 = vmatmul.mubr.bf16.gmra.mrb[0].mxu0 %v1048
        %v2571 = vpop.f32.mrb[0].mxu0
        %v2572 = vadd.f32 %v2507, %v2571
        %v2573 = vpop.f32.mrb[0].mxu0
        %v2574 = vpop.f32.mrb[0].mxu0
        %v2575 = vadd.f32 %v2510, %v2574
        %v2576 = vpop.f32.mrb[0].mxu0
        %2577 = vmatprep.mubr.bf16.mxu0 %v1054
        %2578 = vmatmul.mubr.bf16.gmra.mrb[0].mxu0 %v1053
        %v2579 = vpop.f32.mrb[0].mxu0
        %v2580 = vadd.f32 %v2515, %v2579
        %v2581 = vpop.f32.mrb[0].mxu0
        %v2582 = vpop.f32.mrb[0].mxu0
        %v2583 = vadd.f32 %v2518, %v2582
        %v2584 = vpop.f32.mrb[0].mxu0
        %2585 = vmatprep.mubr.bf16.mxu0 %v1059
        %2586 = vmatmul.mubr.bf16.gmra.mrb[0].mxu0 %v1058
        %v2587 = vpop.f32.mrb[0].mxu0
        %v2588 = vadd.f32 %v2523, %v2587
        %v2589 = vpop.f32.mrb[0].mxu0
        %v2590 = vpop.f32.mrb[0].mxu0
        %v2591 = vadd.f32 %v2526, %v2590
        %v2592 = vpop.f32.mrb[0].mxu0
        %2593 = vdwg.mxu0
        %2594 = vmatprep.subr.bf16.mxu0 0
        %2595 = vmatpush1.bf16.msra.mxu0 %v1817
        %2596 = vmatprep.subr.bf16.mxu0 0
        %2597 = vmatpush1.bf16.msra.mxu0 %v1822
        %2598 = vmatprep.subr.bf16.mxu0 0
        %2599 = vmatpush1.bf16.msra.mxu0 %v1827
        %2600 = vmatprep.subr.bf16.mxu0 0
        %2601 = vmatpush1.bf16.msra.mxu0 %v1832
        %2602 = vmatprep.subr.bf16.mxu0 0
        %2603 = vmatpush1.bf16.msra.mxu0 0
        %2604 = vmatprep.subr.bf16.mxu0 0
        %2605 = vmatpush1.bf16.msra.mxu0 0
        %2606 = vmatprep.subr.bf16.mxu0 0
        %2607 = vmatpush1.bf16.msra.mxu0 0
        %2608 = vmatprep.subr.bf16.mxu0 0
        %2609 = vmatpush1.bf16.msra.mxu0 0
        %2610 = vmatprep.subr.bf16.mxu0 0
        %2611 = vmatpush1.bf16.msra.mxu0 0
        %2612 = vmatprep.subr.bf16.mxu0 0
        %2613 = vmatpush1.bf16.msra.mxu0 0
        %2614 = vmatprep.subr.bf16.mxu0 0
        %2615 = vmatpush1.bf16.msra.mxu0 0
        %2616 = vmatprep.subr.bf16.mxu0 0
        %2617 = vmatpush1.bf16.msra.mxu0 0
        %2618 = vmatprep.subr.bf16.mxu0 0
        %2619 = vmatpush1.bf16.msra.mxu0 0
        %2620 = vmatprep.subr.bf16.mxu0 0
        %2621 = vmatpush1.bf16.msra.mxu0 0
        %2622 = vmatprep.subr.bf16.mxu0 0
        %2623 = vmatpush1.bf16.msra.mxu0 0
        %2624 = vmatprep.subr.bf16.mxu0 0
        %2625 = vmatpush1.bf16.msra.mxu0 0
        %2626 = vmatprep.mubr.bf16.mxu0 0
        %2627 = vmatmul.mubr.bf16.gmra.mrb[0].mxu0 %v2015
        %v2628 = vpop.f32.mrb[0].mxu0
        %v2629 = vadd.f32 %v2564, %v2628
        %v2630 = vpop.f32.mrb[0].mxu0
        %v2631 = vpop.f32.mrb[0].mxu0
        %v2632 = vadd.f32 %v2567, %v2631
        %v2633 = vpop.f32.mrb[0].mxu0
        %2634 = vmatprep.mubr.bf16.mxu0 0
        %2635 = vmatmul.mubr.bf16.gmra.mrb[0].mxu0 %v2018
        %v2636 = vpop.f32.mrb[0].mxu0
        %v2637 = vadd.f32 %v2572, %v2636
        %v2638 = vpop.f32.mrb[0].mxu0
        %v2639 = vpop.f32.mrb[0].mxu0
        %v2640 = vadd.f32 %v2575, %v2639
        %v2641 = vpop.f32.mrb[0].mxu0
        %2642 = vmatprep.mubr.bf16.mxu0 0
        %2643 = vmatmul.mubr.bf16.gmra.mrb[0].mxu0 %v2021
        %v2644 = vpop.f32.mrb[0].mxu0
        %v2645 = vadd.f32 %v2580, %v2644
        %v2646 = vpop.f32.mrb[0].mxu0
        %v2647 = vpop.f32.mrb[0].mxu0
        %v2648 = vadd.f32 %v2583, %v2647
        %v2649 = vpop.f32.mrb[0].mxu0
        %2650 = vmatprep.mubr.bf16.mxu0 0
        %2651 = vmatmul.mubr.bf16.gmra.mrb[0].mxu0 %v2024
        %v2652 = vpop.f32.mrb[0].mxu0
        %v2653 = vadd.f32 %v2588, %v2652
        %v2654 = vpop.f32.mrb[0].mxu0
        %v2655 = vpop.f32.mrb[0].mxu0
        %v2656 = vadd.f32 %v2591, %v2655
        %v2657 = vpop.f32.mrb[0].mxu0
        %2658 = vdwg.mxu0
        %v2659 = vmax.f32 %v2207, 0.0
        %v2660 = vmax.f32 %v2209, 0.0
        %v2661 = vmax.f32 %v2426, 0.0
        %v2662 = vmax.f32 %v2428, 0.0
        %v2663 = vmax.f32 %v2629, 0.0
        %v2664 = vmax.f32 %v2211, 0.0
        %v2665 = vmax.f32 %v2213, 0.0
        %v2666 = vmax.f32 %v2430, 0.0
        %v2667 = vmax.f32 %v2432, 0.0
        %v2668 = vmax.f32 %v2632, 0.0
        %v2669 = vmax.f32 %v2217, 0.0
        %v2670 = vmax.f32 %v2219, 0.0
        %v2671 = vmax.f32 %v2436, 0.0
        %v2672 = vmax.f32 %v2438, 0.0
        %v2673 = vmax.f32 %v2637, 0.0
        %v2674 = vmax.f32 %v2221, 0.0
        %v2675 = vmax.f32 %v2223, 0.0
        %v2676 = vmax.f32 %v2440, 0.0
        %v2677 = vmax.f32 %v2442, 0.0
        %v2678 = vmax.f32 %v2640, 0.0
        %v2679 = vmax.f32 %v2227, 0.0
        %v2680 = vmax.f32 %v2229, 0.0
        %v2681 = vmax.f32 %v2446, 0.0
        %v2682 = vmax.f32 %v2448, 0.0
        %v2683 = vmax.f32 %v2645, 0.0
        %v2684 = vmax.f32 %v2231, 0.0
        %v2685 = vmax.f32 %v2233, 0.0
        %v2686 = vmax.f32 %v2450, 0.0
        %v2687 = vmax.f32 %v2452, 0.0
        %v2688 = vmax.f32 %v2648, 0.0
        %v2689 = vmax.f32 %v2237, 0.0
        %v2690 = vmax.f32 %v2239, 0.0
        %v2691 = vmax.f32 %v2456, 0.0
        %v2692 = vmax.f32 %v2458, 0.0
        %v2693 = vmax.f32 %v2653, 0.0
        %v2694 = vmax.f32 %v2241, 0.0
        %v2695 = vmax.f32 %v2243, 0.0
        %v2696 = vmax.f32 %v2460, 0.0
        %v2697 = vmax.f32 %v2462, 0.0
        %v2698 = vmax.f32 %v2656, 0.0
        %v2699 = vpack.c.bf16 %v2664, %v2659
        %v2700 = vpack.c.bf16 %v2665, %v2660
        %v2701 = vpack.c.bf16 %v2666, %v2661
        %v2702 = vpack.c.bf16 %v2667, %v2662
        %v2703 = vpack.c.bf16 %v2668, %v2663
        %v2704 = vpack.c.bf16 %v2674, %v2669
        %v2705 = vpack.c.bf16 %v2675, %v2670
        %v2706 = vpack.c.bf16 %v2676, %v2671
        %v2707 = vpack.c.bf16 %v2677, %v2672
        %v2708 = vpack.c.bf16 %v2678, %v2673
        %v2709 = vpack.c.bf16 %v2684, %v2679
        %v2710 = vpack.c.bf16 %v2685, %v2680
        %v2711 = vpack.c.bf16 %v2686, %v2681
        %v2712 = vpack.c.bf16 %v2687, %v2682
        %v2713 = vpack.c.bf16 %v2688, %v2683
        %v2714 = vpack.c.bf16 %v2694, %v2689
        %v2715 = vpack.c.bf16 %v2695, %v2690
        %v2716 = vpack.c.bf16 %v2696, %v2691
        %v2717 = vpack.c.bf16 %v2697, %v2692
        %v2718 = vpack.c.bf16 %v2698, %v2693
        %v2739 = vunpack.c.l.b16 %v2699
        %v2740 = vunpack.c.l.b16 %v2700
        %v2741 = vunpack.c.l.b16 %v2701
        %v2742 = vunpack.c.l.b16 %v2702
        %v2743 = vunpack.c.l.b16 %v2703
        %v2744 = vunpack.c.h.b16 %v2699
        %v2745 = vunpack.c.h.b16 %v2700
        %v2746 = vunpack.c.h.b16 %v2701
        %v2747 = vunpack.c.h.b16 %v2702
        %v2748 = vunpack.c.h.b16 %v2703
        %v2749 = vunpack.c.l.b16 %v2704
        %v2750 = vunpack.c.l.b16 %v2705
        %v2751 = vunpack.c.l.b16 %v2706
        %v2752 = vunpack.c.l.b16 %v2707
        %v2753 = vunpack.c.l.b16 %v2708
        %v2754 = vunpack.c.h.b16 %v2704
        %v2755 = vunpack.c.h.b16 %v2705
        %v2756 = vunpack.c.h.b16 %v2706
        %v2757 = vunpack.c.h.b16 %v2707
        %v2758 = vunpack.c.h.b16 %v2708
        %v2759 = vunpack.c.l.b16 %v2709
        %v2760 = vunpack.c.l.b16 %v2710
        %v2761 = vunpack.c.l.b16 %v2711
        %v2762 = vunpack.c.l.b16 %v2712
        %v2763 = vunpack.c.l.b16 %v2713
        %v2764 = vunpack.c.h.b16 %v2709
        %v2765 = vunpack.c.h.b16 %v2710
        %v2766 = vunpack.c.h.b16 %v2711
        %v2767 = vunpack.c.h.b16 %v2712
        %v2768 = vunpack.c.h.b16 %v2713
        %v2769 = vunpack.c.l.b16 %v2714
        %v2770 = vunpack.c.l.b16 %v2715
        %v2771 = vunpack.c.l.b16 %v2716
        %v2772 = vunpack.c.l.b16 %v2717
        %v2773 = vunpack.c.l.b16 %v2718
        %v2774 = vunpack.c.h.b16 %v2714
        %v2775 = vunpack.c.h.b16 %v2715
        %v2776 = vunpack.c.h.b16 %v2716
        %v2777 = vunpack.c.h.b16 %v2717
        %v2778 = vunpack.c.h.b16 %v2718
        %v2779 = vpack.c.b16 %v2740, %v2739
        %v2780 = vpack.c.b16 %v2742, %v2741
        %v2781 = vpack.c.b16 %v2743, %v2743
        %v2782 = vpack.c.b16 %v2745, %v2744
        %v2783 = vpack.c.b16 %v2747, %v2746
        %v2784 = vpack.c.b16 %v2748, %v2748
        %v2785 = vpack.c.b16 %v2750, %v2749
        %v2786 = vpack.c.b16 %v2752, %v2751
        %v2787 = vpack.c.b16 %v2753, %v2753
        %v2788 = vpack.c.b16 %v2755, %v2754
        %v2789 = vpack.c.b16 %v2757, %v2756
        %v2790 = vpack.c.b16 %v2758, %v2758
        %v2791 = vpack.c.b16 %v2760, %v2759
        %v2792 = vpack.c.b16 %v2762, %v2761
        %v2793 = vpack.c.b16 %v2763, %v2763
        %v2794 = vpack.c.b16 %v2765, %v2764
        %v2795 = vpack.c.b16 %v2767, %v2766
        %v2796 = vpack.c.b16 %v2768, %v2768
        %v2797 = vpack.c.b16 %v2770, %v2769
        %v2798 = vpack.c.b16 %v2772, %v2771
        %v2799 = vpack.c.b16 %v2773, %v2773
        %v2800 = vpack.c.b16 %v2775, %v2774
        %v2801 = vpack.c.b16 %v2777, %v2776
        %v2802 = vpack.c.b16 %v2778, %v2778
        %2827 = vst [vmem:[%s671] sm:$0xff] %v2779
        %2828 = vst [vmem:[%s671 + $0x8] sm:$0xff] %v2780
        %2829 = vst [vmem:[%s671 + $0x10] sm:$0xf] %v2781
        %2830 = vst [vmem:[%s671 + $0x14] sm:$0xff] %v2782
        %2831 = vst [vmem:[%s671 + $0x1c] sm:$0xff] %v2783
        %2832 = vst [vmem:[%s671 + $0x24] sm:$0xf] %v2784
        %2833 = vst [vmem:[%s671 + $0x28] sm:$0xff] %v2785
        %2834 = vst [vmem:[%s671 + $0x30] sm:$0xff] %v2786
        %2835 = vst [vmem:[%s671 + $0x38] sm:$0xf] %v2787
        %2836 = vst [vmem:[%s671 + $0x3c] sm:$0xff] %v2788
        %2837 = vst [vmem:[%s671 + $0x44] sm:$0xff] %v2789
        %2838 = vst [vmem:[%s671 + $0x4c] sm:$0xf] %v2790
        %2839 = vst [vmem:[%s671 + $0x50] sm:$0xff] %v2791
        %2840 = vst [vmem:[%s671 + $0x58] sm:$0xff] %v2792
        %2841 = vst [vmem:[%s671 + $0x60] sm:$0xf] %v2793
        %2842 = vst [vmem:[%s671 + $0x64] sm:$0xff] %v2794
        %2843 = vst [vmem:[%s671 + $0x6c] sm:$0xff] %v2795
        %2844 = vst [vmem:[%s671 + $0x74] sm:$0xf] %v2796
        %2845 = vst [vmem:[%s671 + $0x78] sm:$0xff] %v2797
        %2846 = vst [vmem:[%s671 + $0x80] sm:$0xff] %v2798
        %2847 = vst [vmem:[%s671 + $0x88] sm:$0xf] %v2799
        %2848 = vst [vmem:[%s671 + $0x8c] sm:$0xff] %v2800
        %2849 = vst [vmem:[%s671 + $0x94] sm:$0xff] %v2801
        %2850 = vst [vmem:[%s671 + $0x9c] sm:$0xf] %v2802
        %s2851 = sand.u32 %s114, 1
        %s2852 = sand.u32 %s114, 1
        %s2853 = smul.addr %s2852, 160
        %s2854 = scalar_lea.vmem [#allocation3], %s2853
        // Predicated region
        $region59: #{dqn_forward.6} parent=53 // pred_check
          %p2855 = pneg %p124
        $region60: #{dqn_forward.6} parent=53 // pred_check_branch
          %2857 = sbr.rel (%p2855) target = $region62
        $region61: #{dqn_forward.6} parent=53 // pred_region
          %s2858 = smul.u32 8, %s18
          %s2859 = smul.u32 5, %s19
          %s2860 = smul.addr %s2858, 20
          %s2861 = sadd.s32 %s2859, %s2860
          %s2862 = smul.addr %s2861, 4
          %s2863 = scalar_lea.vmem %s3, %s2862
          // Predicated region
          $region63: #{dqn_forward.6} parent=61 // pred_check
            _
          $region64: #{dqn_forward.6} parent=61 // pred_check_branch
            %2865 = sbr.rel (0) target = $region66
          $region65: #{dqn_forward.6} parent=61 // pred_region
            // Predicated region
            $region67: #{dqn_forward.6} parent=65 // pred_check
              _
            $region68: #{dqn_forward.6} parent=65 // pred_check_branch
              %2867 = sbr.rel (0) target = $region70
            $region69: #{dqn_forward.6} parent=65 // pred_region
              %s2868 = scalar_lea.vmem %s2854, 16 [#allocation3]
              %s2869 = scalar_lea.vmem %s2863, 16
              loop: start=0, step=1, limit=1
              $region71: #{dqn_forward.6} parent=69 // loop_pre_header
                _
              $region72: #{dqn_forward.6} parent=69 // loop_header
                %s2871 = sphi 0, %s2875
                %p2872 = scmp.ge.s32.totalorder %s2871, 1
                %s2876 = sphi %s2854, %s2854
                %s2877 = sphi %s2863, %s2863
              $region73: #{dqn_forward.6} parent=69 // loop_header_branch
                %2874 = sbr.rel (%p2872) target = $region77
              $region74: #{dqn_forward.6} parent=69 // loop_body
                %v2878 = vld [vmem:[%s2876] sm:$0xff]
                %2879 = vst [vmem:[%s2877] sm:$0xff] %v2878
                %v2880 = vld [vmem:[%s2876 + $0x8] sm:$0xff]
                %2881 = vst [vmem:[%s2877 + $0x8] sm:$0xff] %v2880
                %v2882 = vld [vmem:[%s2876 + $0x14] sm:$0xff]
                %2883 = vst [vmem:[%s2877 + $0x50] sm:$0xff] %v2882
                %v2884 = vld [vmem:[%s2876 + $0x1c] sm:$0xff]
                %2885 = vst [vmem:[%s2877 + $0x58] sm:$0xff] %v2884
                %v2886 = vld [vmem:[%s2876 + $0x28] sm:$0xff]
                %2887 = vst [vmem:[%s2877 + $0xa0] sm:$0xff] %v2886
                %v2888 = vld [vmem:[%s2876 + $0x30] sm:$0xff]
                %2889 = vst [vmem:[%s2877 + $0xa8] sm:$0xff] %v2888
                %v2890 = vld [vmem:[%s2876 + $0x3c] sm:$0xff]
                %2891 = vst [vmem:[%s2877 + $0xf0] sm:$0xff] %v2890
                %v2892 = vld [vmem:[%s2876 + $0x44] sm:$0xff]
                %2893 = vst [vmem:[%s2877 + $0xf8] sm:$0xff] %v2892
                %v2894 = vld [vmem:[%s2876 + $0x50] sm:$0xff]
                %2895 = vst [vmem:[%s2877 + $0x140] sm:$0xff] %v2894
                %v2896 = vld [vmem:[%s2876 + $0x58] sm:$0xff]
                %2897 = vst [vmem:[%s2877 + $0x148] sm:$0xff] %v2896
                %v2898 = vld [vmem:[%s2876 + $0x64] sm:$0xff]
                %2899 = vst [vmem:[%s2877 + $0x190] sm:$0xff] %v2898
                %v2900 = vld [vmem:[%s2876 + $0x6c] sm:$0xff]
                %2901 = vst [vmem:[%s2877 + $0x198] sm:$0xff] %v2900
                %v2902 = vld [vmem:[%s2876 + $0x78] sm:$0xff]
                %2903 = vst [vmem:[%s2877 + $0x1e0] sm:$0xff] %v2902
                %v2904 = vld [vmem:[%s2876 + $0x80] sm:$0xff]
                %2905 = vst [vmem:[%s2877 + $0x1e8] sm:$0xff] %v2904
                %v2906 = vld [vmem:[%s2876 + $0x8c] sm:$0xff]
                %2907 = vst [vmem:[%s2877 + $0x230] sm:$0xff] %v2906
                %v2908 = vld [vmem:[%s2876 + $0x94] sm:$0xff]
                %2909 = vst [vmem:[%s2877 + $0x238] sm:$0xff] %v2908
              $region75: #{dqn_forward.6} parent=69 // loop_footer
                %s2875 = sadd.s32 1, %s2871
              $region76: #{dqn_forward.6} parent=69 // loop_footer_branch
                %2870 = sbr.rel target = $region72
              $region77: #{dqn_forward.6} parent=69 // loop_exit
                _
              loop: start=0, step=1, limit=1
              $region78: #{dqn_forward.6} parent=69 // loop_pre_header
                _
              $region79: #{dqn_forward.6} parent=69 // loop_header
                %s2912 = sphi 0, %s2916
                %p2913 = scmp.ge.s32.totalorder %s2912, 1
                %s2917 = sphi %s2868, %s2868
                %s2918 = sphi %s2869, %s2869
              $region80: #{dqn_forward.6} parent=69 // loop_header_branch
                %2915 = sbr.rel (%p2913) target = $region84
              $region81: #{dqn_forward.6} parent=69 // loop_body
                %v2919 = vld [vmem:[%s2917] sm:$0xf]
                %2920 = vst [vmem:[%s2918] sm:$0xf] %v2919
                %v2921 = vld [vmem:[%s2917 + $0x14] sm:$0xf]
                %2922 = vst [vmem:[%s2918 + $0x50] sm:$0xf] %v2921
                %v2923 = vld [vmem:[%s2917 + $0x28] sm:$0xf]
                %2924 = vst [vmem:[%s2918 + $0xa0] sm:$0xf] %v2923
                %v2925 = vld [vmem:[%s2917 + $0x3c] sm:$0xf]
                %2926 = vst [vmem:[%s2918 + $0xf0] sm:$0xf] %v2925
                %v2927 = vld [vmem:[%s2917 + $0x50] sm:$0xf]
                %2928 = vst [vmem:[%s2918 + $0x140] sm:$0xf] %v2927
                %v2929 = vld [vmem:[%s2917 + $0x64] sm:$0xf]
                %2930 = vst [vmem:[%s2918 + $0x190] sm:$0xf] %v2929
                %v2931 = vld [vmem:[%s2917 + $0x78] sm:$0xf]
                %2932 = vst [vmem:[%s2918 + $0x1e0] sm:$0xf] %v2931
                %v2933 = vld [vmem:[%s2917 + $0x8c] sm:$0xf]
                %2934 = vst [vmem:[%s2918 + $0x230] sm:$0xf] %v2933
              $region82: #{dqn_forward.6} parent=69 // loop_footer
                %s2916 = sadd.s32 1, %s2912
              $region83: #{dqn_forward.6} parent=69 // loop_footer_branch
                %2911 = sbr.rel target = $region79
              $region84: #{dqn_forward.6} parent=69 // loop_exit
                _
            $region70: #{dqn_forward.6} parent=65 // pred_fallthru
              _
          $region66: #{dqn_forward.6} parent=61 // pred_fallthru
            _
          %2935 = vnop
        $region62: #{dqn_forward.6} parent=53 // pred_fallthru
          _
      $region54: #{dqn_forward.6} parent=5 // pred_fallthru
        _
      %p2936 = scmp.le.s32.totalorder 2, %s9
      // Predicated region
      $region85: #{dqn_forward.6} parent=5 // pred_check
        %p2937 = pneg %p2936
      $region86: #{dqn_forward.6} parent=5 // pred_check_branch
        %2939 = sbr.rel (%p2937) target = $region88
      $region87: #{dqn_forward.6} parent=5 // pred_region
        %s2940 = ssub.s32 %s9, 2
        // Predicated region
        $region89: #{dqn_forward.6} parent=87 // pred_check
          %p2941 = pneg %p130
        $region90: #{dqn_forward.6} parent=87 // pred_check_branch
          %2943 = sbr.rel (%p2941) target = $region92
        $region91: #{dqn_forward.6} parent=87 // pred_region
          %s2944 = sand.u32 %s115, 1
          %s2945 = sand.u32 %s115, 1
          %s2946 = smul.addr %s2945, 160
          %s2947 = scalar_lea.vmem [#allocation3], %s2946
        $region92: #{dqn_forward.6} parent=87 // pred_fallthru
          _
      $region88: #{dqn_forward.6} parent=5 // pred_fallthru
        _
    $region6: #{dqn_forward.6} parent=1 // loop_footer
      %s13 = sadd.s32 1, %s9
    $region7: #{dqn_forward.6} parent=1 // loop_footer_branch
      %8 = sbr.rel target = $region3
    $region8: #{dqn_forward.6} parent=1 // loop_exit
      _

// kernel: dqn_forward.7
$region0: #{dqn_forward.7}
  #allocation0 [shape = 'u32[]', space=smem, size = 0x4, offset = 0x4, fixed_abs, tag = 'smem constant byte address 0x4 - core index']
  #allocation1 [shape = 'u32[144,128]{1,0:T(1,128)}', space=vmem, size = 0x12000, scoped, tag = 'internal scratch']
  #allocation2 [shape = 'f32[8,256]{1,0:T(8,128)}', space=vmem, size = 0x2000, scoped, tag = 'scratch operand']
  %s0 = inlined_call_operand.vmem [shape: bf16[8,73984], index: 0, kind: input, shape index: {}]
  %s1 = inlined_call_operand.hbm [shape: bf16[73984,512], index: 1, kind: input, shape index: {}]
  %s2 = inlined_call_operand.vmem [shape: f32[1,512], index: 2, kind: input, shape index: {}]
  %s3 = inlined_call_operand.vmem [shape: f32[8,512], index: 3, kind: output, shape index: {}]
  %s4 = sld [smem:[#allocation0]]
  $region57: #{dqn_forward.7} parent=0
    _
  %s6 = ssub.s32 1, %s4
  %s7 = scalar_select 0, %s6, %s4
  $region1: #{dqn_forward.7} parent=0
    #allocation3 [shape = 'u8[4456448]{0}', space=vmem, size = 0x440000, scoped, tag = 'input window, operand 1']
    #allocation4 [shape = 's32[2]{0}', space=sflag, size = 0x8, scoped, tag = 'scoped memory for dqn_forward.7']
    %8 = vsyncpa [#allocation4], 0
    %s9 = scalar_lea.sflag [#allocation4], 1
    %10 = vsyncpa %s9, 0
    loop: start=0, step=1, limit=36
    $region2: #{dqn_forward.7} parent=1 // loop_pre_header
      _
    $region3: #{dqn_forward.7} parent=1 // loop_header
      %s12 = sphi 0, %s16
      %p13 = scmp.ge.s32.totalorder %s12, 36
      %s19 = sphi 0, %s38
      %s20 = sphi 0, %s34
      %s21 = sphi 0, %s30
      %s22 = sphi 0, %s19
      %s23 = sphi 0, %s20
      %s24 = sphi 0, %s21
      %s25 = sphi 0, %s22
      %s26 = sphi 0, %s23
      %s27 = sphi 0, %s24
      %s43 = sphi 0, %s45
      %s46 = sphi 0, %s43
      %s47 = sphi 0, %s46
      %s63 = sphi 0, %s47
      %s71 = sphi 0, %s73
      %s74 = sphi 0, %s71
      %s75 = sphi 0, %s74
      %s91 = sphi 0, %s75
      %s97 = sphi 0, %s99
      %s100 = sphi 0, %s97
      %s101 = sphi 0, %s100
      %s117 = sphi 0, %s101
      %s125 = sphi 0, %s127
      %s128 = sphi 0, %s125
      %s129 = sphi 0, %s128
      %s145 = sphi 0, %s129
    $region4: #{dqn_forward.7} parent=1 // loop_header_branch
      %15 = sbr.rel (%p13) target = $region8
    $region5: #{dqn_forward.7} parent=1 // loop_body
      %s17 = ssub.s32 %s12, 1
      %s18 = ssub.s32 %s12, 2
      %s28 = sadd.s32 1, %s21
      %p29 = scmp.ge.s32.totalorder %s28, 17
      %s30 = scalar_select %p29, 0, %s28
      %s31 = sadd.s32 1, %s20
      %s32 = scalar_select %p29, %s31, %s20
      %p33 = scmp.ge.s32.totalorder %s32, 2
      %s34 = scalar_select %p33, 0, %s32
      %s35 = sadd.s32 1, %s19
      %s36 = scalar_select %p33, %s35, %s19
      %p37 = scmp.ge.s32.totalorder %s36, 1
      %s38 = scalar_select %p37, 0, %s36
      %s39 = ssub.s32 %s19, %s38
      %s40 = ssub.s32 %s21, %s30
      %s41 = sor.u32 %s39, %s40
      %p42 = scmp.eq.s32.totalorder %s41, 0
      %s44 = sadd.s32 %s43, 1
      %s45 = scalar_select %p42, %s43, %s44
      %p48 = pneg %p42
      %p49 = scmp.eq.s32.totalorder %s12, 33
      %p50 = por %p48, %p49
      %p51 = scmp.ne.s32.totalorder %s43, %s46
      %p52 = scmp.eq.s32.totalorder %s12, 0
      %p53 = por %p51, %p52
      %p54 = scmp.ne.s32.totalorder %s43, %s46
      %p55 = scmp.eq.s32.totalorder %s17, 33
      %p56 = por %p54, %p55
      %p57 = scmp.ne.s32.totalorder %s46, %s47
      %p58 = scmp.eq.s32.totalorder %s17, 0
      %p59 = por %p57, %p58
      %p60 = scmp.ne.s32.totalorder %s46, %s47
      %p61 = scmp.eq.s32.totalorder %s18, 33
      %p62 = por %p60, %p61
      %p64 = scmp.ne.s32.totalorder %s47, %s63
      %p65 = scmp.eq.s32.totalorder %s18, 0
      %p66 = por %p64, %p65
      %s67 = ssub.s32 %s21, %s30
      %s68 = ssub.s32 %s20, %s34
      %s69 = sor.u32 %s67, %s68
      %p70 = scmp.eq.s32.totalorder %s69, 0
      %s72 = sadd.s32 %s71, 1
      %s73 = scalar_select %p70, %s71, %s72
      %p76 = pneg %p70
      %p77 = scmp.eq.s32.totalorder %s12, 33
      %p78 = por %p76, %p77
      %p79 = scmp.ne.s32.totalorder %s71, %s74
      %p80 = scmp.eq.s32.totalorder %s12, 0
      %p81 = por %p79, %p80
      %p82 = scmp.ne.s32.totalorder %s71, %s74
      %p83 = scmp.eq.s32.totalorder %s17, 33
      %p84 = por %p82, %p83
      %p85 = scmp.ne.s32.totalorder %s74, %s75
      %p86 = scmp.eq.s32.totalorder %s17, 0
      %p87 = por %p85, %p86
      %p88 = scmp.ne.s32.totalorder %s74, %s75
      %p89 = scmp.eq.s32.totalorder %s18, 33
      %p90 = por %p88, %p89
      %p92 = scmp.ne.s32.totalorder %s75, %s91
      %p93 = scmp.eq.s32.totalorder %s18, 0
      %p94 = por %p92, %p93
      %s95 = ssub.s32 %s20, %s34
      %p96 = scmp.eq.s32.totalorder %s95, 0
      %s98 = sadd.s32 %s97, 1
      %s99 = scalar_select %p96, %s97, %s98
      %p102 = pneg %p96
      %p103 = scmp.eq.s32.totalorder %s12, 33
      %p104 = por %p102, %p103
      %p105 = scmp.ne.s32.totalorder %s97, %s100
      %p106 = scmp.eq.s32.totalorder %s12, 0
      %p107 = por %p105, %p106
      %p108 = scmp.ne.s32.totalorder %s97, %s100
      %p109 = scmp.eq.s32.totalorder %s17, 33
      %p110 = por %p108, %p109
      %p111 = scmp.ne.s32.totalorder %s100, %s101
      %p112 = scmp.eq.s32.totalorder %s17, 0
      %p113 = por %p111, %p112
      %p114 = scmp.ne.s32.totalorder %s100, %s101
      %p115 = scmp.eq.s32.totalorder %s18, 33
      %p116 = por %p114, %p115
      %p118 = scmp.ne.s32.totalorder %s101, %s117
      %p119 = scmp.eq.s32.totalorder %s18, 0
      %p120 = por %p118, %p119
      %s121 = ssub.s32 %s19, %s38
      %s122 = ssub.s32 %s20, %s34
      %s123 = sor.u32 %s121, %s122
      %p124 = scmp.eq.s32.totalorder %s123, 0
      %s126 = sadd.s32 %s125, 1
      %s127 = scalar_select %p124, %s125, %s126
      %p130 = pneg %p124
      %p131 = scmp.eq.s32.totalorder %s12, 33
      %p132 = por %p130, %p131
      %p133 = scmp.ne.s32.totalorder %s125, %s128
      %p134 = scmp.eq.s32.totalorder %s12, 0
      %p135 = por %p133, %p134
      %p136 = scmp.ne.s32.totalorder %s125, %s128
      %p137 = scmp.eq.s32.totalorder %s17, 33
      %p138 = por %p136, %p137
      %p139 = scmp.ne.s32.totalorder %s128, %s129
      %p140 = scmp.eq.s32.totalorder %s17, 0
      %p141 = por %p139, %p140
      %p142 = scmp.ne.s32.totalorder %s128, %s129
      %p143 = scmp.eq.s32.totalorder %s18, 33
      %p144 = por %p142, %p143
      %p146 = scmp.ne.s32.totalorder %s129, %s145
      %p147 = scmp.eq.s32.totalorder %s18, 0
      %p148 = por %p146, %p147
      %p149 = scmp.le.s32.totalorder 1, %s12
      %p150 = scmp.lt.s32.totalorder %s12, 35
      %p151 = pnand %p149, %p150
      %p152 = pneg %p151
      // Predicated region
      $region9: #{dqn_forward.7} parent=5 // pred_check
        _
      $region10: #{dqn_forward.7} parent=5 // pred_check_branch
        %154 = sbr.rel (%p151) target = $region12
      $region11: #{dqn_forward.7} parent=5 // pred_region
        %s155 = ssub.s32 %s12, 1
      $region12: #{dqn_forward.7} parent=5 // pred_fallthru
        _
      %p156 = scmp.lt.s32.totalorder %s12, 34
      // Predicated region
      $region13: #{dqn_forward.7} parent=5 // pred_check
        %p157 = pneg %p156
      $region14: #{dqn_forward.7} parent=5 // pred_check_branch
        %159 = sbr.rel (%p157) target = $region16
      $region15: #{dqn_forward.7} parent=5 // pred_region
        // Predicated region
        $region17: #{dqn_forward.7} parent=15 // pred_check
          %p160 = pneg %p53
        $region18: #{dqn_forward.7} parent=15 // pred_check_branch
          %162 = sbr.rel (%p160) target = $region20
        $region19: #{dqn_forward.7} parent=15 // pred_region
          %s163 = smul.u32 34, %s21
          %p164 = scmp.lt.s32.totalorder %s19, 0
          %s165 = scalar_select %p164, %s19, 0
          %p166 = scmp.lt.s32.totalorder %s163, 577
          %s167 = scalar_select %p166, %s163, 577
          %s168 = smul.addr %s165, 578
          %s169 = sadd.s32 %s167, %s168
          %s170 = smul.addr %s169, 4
          %s171 = scalar_lea.vmem %s0, %s170
          %s172 = smul.u32 34, %s21
        $region20: #{dqn_forward.7} parent=15 // pred_fallthru
          _
        // Predicated region
        $region21: #{dqn_forward.7} parent=15 // pred_check
          %p173 = pneg %p81
        $region22: #{dqn_forward.7} parent=15 // pred_check_branch
          %175 = sbr.rel (%p173) target = $region24
        $region23: #{dqn_forward.7} parent=15 // pred_region
          %s176 = sand.u32 %s71, 1
          %s177 = scalar_lea.sflag [#allocation4], %s176
          %s178 = sand.u32 %s71, 1
          %s179 = smul.addr %s178, 4352
          %s180 = scalar_lea.vmem [#allocation3], %s179
          %s181 = smul.u32 544, %s21
          %s182 = smul.u32 2, %s20
          %s184 = ssub.s32 69632, 69632
          %185 = vsyncadd %s177, %s184
          %s186 = smul.addr %s181, 4
          %s187 = sadd.s32 %s182, %s186
          %s188 = smul.addr %s187, 64
          %s189 = scalar_lea.hbm %s1, %s188
          %s190 = sshll.u32 %s180, 4
          %s191 = int_to_ptr.vmem [resolvable:$true] %s190
          %196 = dma.hbm_to_vmem [thread:$0]  %s189, 69632, %s191, %s177, 256, 128, 8
        $region24: #{dqn_forward.7} parent=15 // pred_fallthru
          _
        // Predicated region
        $region25: #{dqn_forward.7} parent=15 // pred_check
          %p197 = pneg %p107
        $region26: #{dqn_forward.7} parent=15 // pred_check_branch
          %199 = sbr.rel (%p197) target = $region28
        $region27: #{dqn_forward.7} parent=15 // pred_region
          %s200 = smul.u32 2, %s20
          %p201 = scmp.lt.s32.totalorder %s200, 3
          %s202 = scalar_select %p201, %s200, 3
          %s203 = scalar_lea.vmem %s2, %s202
          %s204 = smul.u32 2, %s20
        $region28: #{dqn_forward.7} parent=15 // pred_fallthru
          _
      $region16: #{dqn_forward.7} parent=5 // pred_fallthru
        _
      %p205 = scmp.le.s32.totalorder 1, %s12
      %p206 = scmp.lt.s32.totalorder %s12, 35
      %p207 = pnand %p205, %p206
      %p208 = pneg %p207
      // Predicated region
      $region29: #{dqn_forward.7} parent=5 // pred_check
        _
      $region30: #{dqn_forward.7} parent=5 // pred_check_branch
        %210 = sbr.rel (%p207) target = $region32
      $region31: #{dqn_forward.7} parent=5 // pred_region
        %s211 = ssub.s32 %s12, 1
        %s212 = sand.u32 %s74, 1
        %s213 = scalar_lea.sflag [#allocation4], %s212
        %s214 = sand.u32 %s74, 1
        %s215 = smul.addr %s214, 4352
        %s216 = scalar_lea.vmem [#allocation3], %s215
        // Predicated region
        $region33: #{dqn_forward.7} parent=31 // pred_check
          %p217 = pneg %p87
        $region34: #{dqn_forward.7} parent=31 // pred_check_branch
          %219 = sbr.rel (%p217) target = $region36
        $region35: #{dqn_forward.7} parent=31 // pred_region
          %220 = dma.done %s213, 69632
        $region36: #{dqn_forward.7} parent=31 // pred_fallthru
          _
        %s221 = smul.u32 34, %s24
        %p222 = scmp.lt.s32.totalorder %s22, 0
        %s223 = scalar_select %p222, %s22, 0
        %p224 = scmp.lt.s32.totalorder %s221, 577
        %s225 = scalar_select %p224, %s221, 577
        %s226 = smul.addr %s223, 578
        %s227 = sadd.s32 %s225, %s226
        %s228 = smul.addr %s227, 4
        %s229 = scalar_lea.vmem %s0, %s228
        %p230 = pneg %p59
        %p231 = pneg %p56
        %s232 = sand.u32 %s74, 1
        %s233 = scalar_lea.sflag [#allocation4], %s232
        %s234 = sand.u32 %s74, 1
        %s235 = smul.addr %s234, 4352
        %s236 = scalar_lea.vmem [#allocation3], %s235
        %p237 = pneg %p87
        %p238 = pneg %p84
        %s239 = smul.u32 2, %s23
        %p240 = scmp.lt.s32.totalorder %s239, 3
        %s241 = scalar_select %p240, %s239, 3
        %s242 = scalar_lea.vmem %s2, %s241
        %p243 = pneg %p113
        %p244 = pneg %p110
        %p245 = pneg %p141
        %p246 = pneg %p138
        %s247 = smul.u32 2, %s23
        %p248 = scmp.lt.s32.totalorder %s22, 0
        %s249 = scalar_select %p248, %s22, 0
        %p250 = scmp.lt.s32.totalorder %s247, 3
        %s251 = scalar_select %p250, %s247, 3
        %s252 = smul.addr %s249, 4
        %s253 = sadd.s32 %s251, %s252
        %s254 = smul.addr %s253, 8
        %s255 = scalar_lea.vmem %s3, %s254
        %s256 = smul.u32 34, %s24
        %p257 = scmp.lt.s32.totalorder %s22, 0
        %s258 = scalar_select %p257, %s22, 0
        %p259 = scmp.lt.s32.totalorder %s256, 577
        %s260 = scalar_select %p259, %s256, 577
        %s261 = smul.addr %s258, 578
        %s262 = sadd.s32 %s260, %s261
        %s263 = smul.addr %s262, 4
        %s264 = scalar_lea.vmem %s0, %s263
        %s265 = smul.u32 34, %s24
        %s266 = smul.u32 544, %s24
        %s267 = smul.u32 2, %s23
        %s268 = smul.u32 2, %s23
        %p269 = scmp.lt.s32.totalorder %s268, 3
        %s270 = scalar_select %p269, %s268, 3
        %s271 = scalar_lea.vmem %s2, %s270
        %s272 = smul.u32 2, %s23
        %s273 = smul.u32 2, %s23
        %p274 = scmp.lt.s32.totalorder %s22, 0
        %s275 = scalar_select %p274, %s22, 0
        %p276 = scmp.lt.s32.totalorder %s273, 3
        %s277 = scalar_select %p276, %s273, 3
        %s278 = smul.addr %s275, 4
        %s279 = sadd.s32 %s277, %s278
        %s280 = smul.addr %s279, 8
        %s281 = scalar_lea.vmem %s3, %s280
        %s282 = smul.u32 2, %s23
        %p283 = scmp.eq.s32.totalorder %s24, 0
        // Predicated region
        $region37: #{dqn_forward.7} parent=31 // pred_check
          %p284 = pneg %p283
        $region38: #{dqn_forward.7} parent=31 // pred_check_branch
          %286 = sbr.rel (%p284) target = $region40
        $region39: #{dqn_forward.7} parent=31 // pred_region
          %287 = vst [vmem:[#allocation2] sm:$0xff] 0.0
          %288 = vst [vmem:[#allocation2 + $0x8] sm:$0xff] 0.0
        $region40: #{dqn_forward.7} parent=31 // pred_fallthru
          _
        %v289 = vld [vmem:[#allocation2] sm:$0xff]
        %v290 = vld [vmem:[#allocation2 + $0x8] sm:$0xff]
        %v291 = vld [vmem:[%s264] sm:$0xff]
        %v292 = vld [vmem:[%s264 + $0x8] sm:$0xff]
        %v293 = vld [vmem:[%s264 + $0x10] sm:$0xff]
        %v294 = vld [vmem:[%s264 + $0x18] sm:$0xff]
        %v295 = vld [vmem:[%s264 + $0x20] sm:$0xff]
        %v296 = vld [vmem:[%s264 + $0x28] sm:$0xff]
        %v297 = vld [vmem:[%s264 + $0x30] sm:$0xff]
        %v298 = vld [vmem:[%s264 + $0x38] sm:$0xff]
        %v299 = vld [vmem:[%s264 + $0x40] sm:$0xff]
        %v300 = vld [vmem:[%s264 + $0x48] sm:$0xff]
        %v301 = vld [vmem:[%s264 + $0x50] sm:$0xff]
        %v302 = vld [vmem:[%s264 + $0x58] sm:$0xff]
        %v303 = vld [vmem:[%s264 + $0x60] sm:$0xff]
        %v304 = vld [vmem:[%s264 + $0x68] sm:$0xff]
        %v305 = vld [vmem:[%s264 + $0x70] sm:$0xff]
        %v306 = vld [vmem:[%s264 + $0x78] sm:$0xff]
        %v307 = vld [vmem:[%s264 + $0x80] sm:$0xff]
        %v308 = vld [vmem:[%s216] sm:$0xff]
        %v309 = vld [vmem:[%s216 + $0x8] sm:$0xff]
        %v310 = vld [vmem:[%s216 + $0x10] sm:$0xff]
        %v311 = vld [vmem:[%s216 + $0x18] sm:$0xff]
        %v312 = vld [vmem:[%s216 + $0x20] sm:$0xff]
        %v313 = vld [vmem:[%s216 + $0x28] sm:$0xff]
        %v314 = vld [vmem:[%s216 + $0x30] sm:$0xff]
        %v315 = vld [vmem:[%s216 + $0x38] sm:$0xff]
        %v316 = vld [vmem:[%s216 + $0x40] sm:$0xff]
        %v317 = vld [vmem:[%s216 + $0x48] sm:$0xff]
        %v318 = vld [vmem:[%s216 + $0x50] sm:$0xff]
        %v319 = vld [vmem:[%s216 + $0x58] sm:$0xff]
        %v320 = vld [vmem:[%s216 + $0x60] sm:$0xff]
        %v321 = vld [vmem:[%s216 + $0x68] sm:$0xff]
        %v322 = vld [vmem:[%s216 + $0x70] sm:$0xff]
        %v323 = vld [vmem:[%s216 + $0x78] sm:$0xff]
        %v324 = vld [vmem:[%s216 + $0x80] sm:$0xff]
        %v325 = vld [vmem:[%s216 + $0x88] sm:$0xff]
        %v326 = vld [vmem:[%s216 + $0x90] sm:$0xff]
        %v327 = vld [vmem:[%s216 + $0x98] sm:$0xff]
        %v328 = vld [vmem:[%s216 + $0xa0] sm:$0xff]
        %v329 = vld [vmem:[%s216 + $0xa8] sm:$0xff]
        %v330 = vld [vmem:[%s216 + $0xb0] sm:$0xff]
        %v331 = vld [vmem:[%s216 + $0xb8] sm:$0xff]
        %v332 = vld [vmem:[%s216 + $0xc0] sm:$0xff]
        %v333 = vld [vmem:[%s216 + $0xc8] sm:$0xff]
        %v334 = vld [vmem:[%s216 + $0xd0] sm:$0xff]
        %v335 = vld [vmem:[%s216 + $0xd8] sm:$0xff]
        %v336 = vld [vmem:[%s216 + $0xe0] sm:$0xff]
        %v337 = vld [vmem:[%s216 + $0xe8] sm:$0xff]
        %v338 = vld [vmem:[%s216 + $0xf0] sm:$0xff]
        %v339 = vld [vmem:[%s216 + $0xf8] sm:$0xff]
        %v340 = vld [vmem:[%s216 + $0x100] sm:$0xff]
        %v341 = vld [vmem:[%s216 + $0x108] sm:$0xff]
        %v342 = vld [vmem:[%s216 + $0x110] sm:$0xff]
        %v343 = vld [vmem:[%s216 + $0x118] sm:$0xff]
        %v344 = vld [vmem:[%s216 + $0x120] sm:$0xff]
        %v345 = vld [vmem:[%s216 + $0x128] sm:$0xff]
        %v346 = vld [vmem:[%s216 + $0x130] sm:$0xff]
        %v347 = vld [vmem:[%s216 + $0x138] sm:$0xff]
        %v348 = vld [vmem:[%s216 + $0x140] sm:$0xff]
        %v349 = vld [vmem:[%s216 + $0x148] sm:$0xff]
        %v350 = vld [vmem:[%s216 + $0x150] sm:$0xff]
        %v351 = vld [vmem:[%s216 + $0x158] sm:$0xff]
        %v352 = vld [vmem:[%s216 + $0x160] sm:$0xff]
        %v353 = vld [vmem:[%s216 + $0x168] sm:$0xff]
        %v354 = vld [vmem:[%s216 + $0x170] sm:$0xff]
        %v355 = vld [vmem:[%s216 + $0x178] sm:$0xff]
        %v356 = vld [vmem:[%s216 + $0x180] sm:$0xff]
        %v357 = vld [vmem:[%s216 + $0x188] sm:$0xff]
        %v358 = vld [vmem:[%s216 + $0x190] sm:$0xff]
        %v359 = vld [vmem:[%s216 + $0x198] sm:$0xff]
        %v360 = vld [vmem:[%s216 + $0x1a0] sm:$0xff]
        %v361 = vld [vmem:[%s216 + $0x1a8] sm:$0xff]
        %v362 = vld [vmem:[%s216 + $0x1b0] sm:$0xff]
        %v363 = vld [vmem:[%s216 + $0x1b8] sm:$0xff]
        %v364 = vld [vmem:[%s216 + $0x1c0] sm:$0xff]
        %v365 = vld [vmem:[%s216 + $0x1c8] sm:$0xff]
        %v366 = vld [vmem:[%s216 + $0x1d0] sm:$0xff]
        %v367 = vld [vmem:[%s216 + $0x1d8] sm:$0xff]
        %v368 = vld [vmem:[%s216 + $0x1e0] sm:$0xff]
        %v369 = vld [vmem:[%s216 + $0x1e8] sm:$0xff]
        %v370 = vld [vmem:[%s216 + $0x1f0] sm:$0xff]
        %v371 = vld [vmem:[%s216 + $0x1f8] sm:$0xff]
        %v372 = vld [vmem:[%s216 + $0x200] sm:$0xff]
        %v373 = vld [vmem:[%s216 + $0x208] sm:$0xff]
        %v374 = vld [vmem:[%s216 + $0x210] sm:$0xff]
        %v375 = vld [vmem:[%s216 + $0x218] sm:$0xff]
        %v376 = vld [vmem:[%s216 + $0x220] sm:$0xff]
        %v377 = vld [vmem:[%s216 + $0x228] sm:$0xff]
        %v378 = vld [vmem:[%s216 + $0x230] sm:$0xff]
        %v379 = vld [vmem:[%s216 + $0x238] sm:$0xff]
        %v380 = vld [vmem:[%s216 + $0x240] sm:$0xff]
        %v381 = vld [vmem:[%s216 + $0x248] sm:$0xff]
        %v382 = vld [vmem:[%s216 + $0x250] sm:$0xff]
        %v383 = vld [vmem:[%s216 + $0x258] sm:$0xff]
        %v384 = vld [vmem:[%s216 + $0x260] sm:$0xff]
        %v385 = vld [vmem:[%s216 + $0x268] sm:$0xff]
        %v386 = vld [vmem:[%s216 + $0x270] sm:$0xff]
        %v387 = vld [vmem:[%s216 + $0x278] sm:$0xff]
        %v388 = vld [vmem:[%s216 + $0x280] sm:$0xff]
        %v389 = vld [vmem:[%s216 + $0x288] sm:$0xff]
        %v390 = vld [vmem:[%s216 + $0x290] sm:$0xff]
        %v391 = vld [vmem:[%s216 + $0x298] sm:$0xff]
        %v392 = vld [vmem:[%s216 + $0x2a0] sm:$0xff]
        %v393 = vld [vmem:[%s216 + $0x2a8] sm:$0xff]
        %v394 = vld [vmem:[%s216 + $0x2b0] sm:$0xff]
        %v395 = vld [vmem:[%s216 + $0x2b8] sm:$0xff]
        %v396 = vld [vmem:[%s216 + $0x2c0] sm:$0xff]
        %v397 = vld [vmem:[%s216 + $0x2c8] sm:$0xff]
        %v398 = vld [vmem:[%s216 + $0x2d0] sm:$0xff]
        %v399 = vld [vmem:[%s216 + $0x2d8] sm:$0xff]
        %v400 = vld [vmem:[%s216 + $0x2e0] sm:$0xff]
        %v401 = vld [vmem:[%s216 + $0x2e8] sm:$0xff]
        %v402 = vld [vmem:[%s216 + $0x2f0] sm:$0xff]
        %v403 = vld [vmem:[%s216 + $0x2f8] sm:$0xff]
        %v404 = vld [vmem:[%s216 + $0x300] sm:$0xff]
        %v405 = vld [vmem:[%s216 + $0x308] sm:$0xff]
        %v406 = vld [vmem:[%s216 + $0x310] sm:$0xff]
        %v407 = vld [vmem:[%s216 + $0x318] sm:$0xff]
        %v408 = vld [vmem:[%s216 + $0x320] sm:$0xff]
        %v409 = vld [vmem:[%s216 + $0x328] sm:$0xff]
        %v410 = vld [vmem:[%s216 + $0x330] sm:$0xff]
        %v411 = vld [vmem:[%s216 + $0x338] sm:$0xff]
        %v412 = vld [vmem:[%s216 + $0x340] sm:$0xff]
        %v413 = vld [vmem:[%s216 + $0x348] sm:$0xff]
        %v414 = vld [vmem:[%s216 + $0x350] sm:$0xff]
        %v415 = vld [vmem:[%s216 + $0x358] sm:$0xff]
        %v416 = vld [vmem:[%s216 + $0x360] sm:$0xff]
        %v417 = vld [vmem:[%s216 + $0x368] sm:$0xff]
        %v418 = vld [vmem:[%s216 + $0x370] sm:$0xff]
        %v419 = vld [vmem:[%s216 + $0x378] sm:$0xff]
        %v420 = vld [vmem:[%s216 + $0x380] sm:$0xff]
        %v421 = vld [vmem:[%s216 + $0x388] sm:$0xff]
        %v422 = vld [vmem:[%s216 + $0x390] sm:$0xff]
        %v423 = vld [vmem:[%s216 + $0x398] sm:$0xff]
        %v424 = vld [vmem:[%s216 + $0x3a0] sm:$0xff]
        %v425 = vld [vmem:[%s216 + $0x3a8] sm:$0xff]
        %v426 = vld [vmem:[%s216 + $0x3b0] sm:$0xff]
        %v427 = vld [vmem:[%s216 + $0x3b8] sm:$0xff]
        %v428 = vld [vmem:[%s216 + $0x3c0] sm:$0xff]
        %v429 = vld [vmem:[%s216 + $0x3c8] sm:$0xff]
        %v430 = vld [vmem:[%s216 + $0x3d0] sm:$0xff]
        %v431 = vld [vmem:[%s216 + $0x3d8] sm:$0xff]
        %v432 = vld [vmem:[%s216 + $0x3e0] sm:$0xff]
        %v433 = vld [vmem:[%s216 + $0x3e8] sm:$0xff]
        %v434 = vld [vmem:[%s216 + $0x3f0] sm:$0xff]
        %v435 = vld [vmem:[%s216 + $0x3f8] sm:$0xff]
        %v436 = vld [vmem:[%s216 + $0x400] sm:$0xff]
        %v437 = vld [vmem:[%s216 + $0x408] sm:$0xff]
        %v438 = vld [vmem:[%s216 + $0x410] sm:$0xff]
        %v439 = vld [vmem:[%s216 + $0x418] sm:$0xff]
        %v440 = vld [vmem:[%s216 + $0x420] sm:$0xff]
        %v441 = vld [vmem:[%s216 + $0x428] sm:$0xff]
        %v442 = vld [vmem:[%s216 + $0x430] sm:$0xff]
        %v443 = vld [vmem:[%s216 + $0x438] sm:$0xff]
        %v444 = vld [vmem:[%s216 + $0x440] sm:$0xff]
        %v445 = vld [vmem:[%s216 + $0x448] sm:$0xff]
        %v446 = vld [vmem:[%s216 + $0x450] sm:$0xff]
        %v447 = vld [vmem:[%s216 + $0x458] sm:$0xff]
        %v448 = vld [vmem:[%s216 + $0x460] sm:$0xff]
        %v449 = vld [vmem:[%s216 + $0x468] sm:$0xff]
        %v450 = vld [vmem:[%s216 + $0x470] sm:$0xff]
        %v451 = vld [vmem:[%s216 + $0x478] sm:$0xff]
        %v452 = vld [vmem:[%s216 + $0x480] sm:$0xff]
        %v453 = vld [vmem:[%s216 + $0x488] sm:$0xff]
        %v454 = vld [vmem:[%s216 + $0x490] sm:$0xff]
        %v455 = vld [vmem:[%s216 + $0x498] sm:$0xff]
        %v456 = vld [vmem:[%s216 + $0x4a0] sm:$0xff]
        %v457 = vld [vmem:[%s216 + $0x4a8] sm:$0xff]
        %v458 = vld [vmem:[%s216 + $0x4b0] sm:$0xff]
        %v459 = vld [vmem:[%s216 + $0x4b8] sm:$0xff]
        %v460 = vld [vmem:[%s216 + $0x4c0] sm:$0xff]
        %v461 = vld [vmem:[%s216 + $0x4c8] sm:$0xff]
        %v462 = vld [vmem:[%s216 + $0x4d0] sm:$0xff]
        %v463 = vld [vmem:[%s216 + $0x4d8] sm:$0xff]
        %v464 = vld [vmem:[%s216 + $0x4e0] sm:$0xff]
        %v465 = vld [vmem:[%s216 + $0x4e8] sm:$0xff]
        %v466 = vld [vmem:[%s216 + $0x4f0] sm:$0xff]
        %v467 = vld [vmem:[%s216 + $0x4f8] sm:$0xff]
        %v468 = vld [vmem:[%s216 + $0x500] sm:$0xff]
        %v469 = vld [vmem:[%s216 + $0x508] sm:$0xff]
        %v470 = vld [vmem:[%s216 + $0x510] sm:$0xff]
        %v471 = vld [vmem:[%s216 + $0x518] sm:$0xff]
        %v472 = vld [vmem:[%s216 + $0x520] sm:$0xff]
        %v473 = vld [vmem:[%s216 + $0x528] sm:$0xff]
        %v474 = vld [vmem:[%s216 + $0x530] sm:$0xff]
        %v475 = vld [vmem:[%s216 + $0x538] sm:$0xff]
        %v476 = vld [vmem:[%s216 + $0x540] sm:$0xff]
        %v477 = vld [vmem:[%s216 + $0x548] sm:$0xff]
        %v478 = vld [vmem:[%s216 + $0x550] sm:$0xff]
        %v479 = vld [vmem:[%s216 + $0x558] sm:$0xff]
        %v480 = vld [vmem:[%s216 + $0x560] sm:$0xff]
        %v481 = vld [vmem:[%s216 + $0x568] sm:$0xff]
        %v482 = vld [vmem:[%s216 + $0x570] sm:$0xff]
        %v483 = vld [vmem:[%s216 + $0x578] sm:$0xff]
        %v484 = vld [vmem:[%s216 + $0x580] sm:$0xff]
        %v485 = vld [vmem:[%s216 + $0x588] sm:$0xff]
        %v486 = vld [vmem:[%s216 + $0x590] sm:$0xff]
        %v487 = vld [vmem:[%s216 + $0x598] sm:$0xff]
        %v488 = vld [vmem:[%s216 + $0x5a0] sm:$0xff]
        %v489 = vld [vmem:[%s216 + $0x5a8] sm:$0xff]
        %v490 = vld [vmem:[%s216 + $0x5b0] sm:$0xff]
        %v491 = vld [vmem:[%s216 + $0x5b8] sm:$0xff]
        %v492 = vld [vmem:[%s216 + $0x5c0] sm:$0xff]
        %v493 = vld [vmem:[%s216 + $0x5c8] sm:$0xff]
        %v494 = vld [vmem:[%s216 + $0x5d0] sm:$0xff]
        %v495 = vld [vmem:[%s216 + $0x5d8] sm:$0xff]
        %v496 = vld [vmem:[%s216 + $0x5e0] sm:$0xff]
        %v497 = vld [vmem:[%s216 + $0x5e8] sm:$0xff]
        %v498 = vld [vmem:[%s216 + $0x5f0] sm:$0xff]
        %v499 = vld [vmem:[%s216 + $0x5f8] sm:$0xff]
        %v500 = vld [vmem:[%s216 + $0x600] sm:$0xff]
        %v501 = vld [vmem:[%s216 + $0x608] sm:$0xff]
        %v502 = vld [vmem:[%s216 + $0x610] sm:$0xff]
        %v503 = vld [vmem:[%s216 + $0x618] sm:$0xff]
        %v504 = vld [vmem:[%s216 + $0x620] sm:$0xff]
        %v505 = vld [vmem:[%s216 + $0x628] sm:$0xff]
        %v506 = vld [vmem:[%s216 + $0x630] sm:$0xff]
        %v507 = vld [vmem:[%s216 + $0x638] sm:$0xff]
        %v508 = vld [vmem:[%s216 + $0x640] sm:$0xff]
        %v509 = vld [vmem:[%s216 + $0x648] sm:$0xff]
        %v510 = vld [vmem:[%s216 + $0x650] sm:$0xff]
        %v511 = vld [vmem:[%s216 + $0x658] sm:$0xff]
        %v512 = vld [vmem:[%s216 + $0x660] sm:$0xff]
        %v513 = vld [vmem:[%s216 + $0x668] sm:$0xff]
        %v514 = vld [vmem:[%s216 + $0x670] sm:$0xff]
        %v515 = vld [vmem:[%s216 + $0x678] sm:$0xff]
        %v516 = vld [vmem:[%s216 + $0x680] sm:$0xff]
        %v517 = vld [vmem:[%s216 + $0x688] sm:$0xff]
        %v518 = vld [vmem:[%s216 + $0x690] sm:$0xff]
        %v519 = vld [vmem:[%s216 + $0x698] sm:$0xff]
        %v520 = vld [vmem:[%s216 + $0x6a0] sm:$0xff]
        %v521 = vld [vmem:[%s216 + $0x6a8] sm:$0xff]
        %v522 = vld [vmem:[%s216 + $0x6b0] sm:$0xff]
        %v523 = vld [vmem:[%s216 + $0x6b8] sm:$0xff]
        %v524 = vld [vmem:[%s216 + $0x6c0] sm:$0xff]
        %v525 = vld [vmem:[%s216 + $0x6c8] sm:$0xff]
        %v526 = vld [vmem:[%s216 + $0x6d0] sm:$0xff]
        %v527 = vld [vmem:[%s216 + $0x6d8] sm:$0xff]
        %v528 = vld [vmem:[%s216 + $0x6e0] sm:$0xff]
        %v529 = vld [vmem:[%s216 + $0x6e8] sm:$0xff]
        %v530 = vld [vmem:[%s216 + $0x6f0] sm:$0xff]
        %v531 = vld [vmem:[%s216 + $0x6f8] sm:$0xff]
        %v532 = vld [vmem:[%s216 + $0x700] sm:$0xff]
        %v533 = vld [vmem:[%s216 + $0x708] sm:$0xff]
        %v534 = vld [vmem:[%s216 + $0x710] sm:$0xff]
        %v535 = vld [vmem:[%s216 + $0x718] sm:$0xff]
        %v536 = vld [vmem:[%s216 + $0x720] sm:$0xff]
        %v537 = vld [vmem:[%s216 + $0x728] sm:$0xff]
        %v538 = vld [vmem:[%s216 + $0x730] sm:$0xff]
        %v539 = vld [vmem:[%s216 + $0x738] sm:$0xff]
        %v540 = vld [vmem:[%s216 + $0x740] sm:$0xff]
        %v541 = vld [vmem:[%s216 + $0x748] sm:$0xff]
        %v542 = vld [vmem:[%s216 + $0x750] sm:$0xff]
        %v543 = vld [vmem:[%s216 + $0x758] sm:$0xff]
        %v544 = vld [vmem:[%s216 + $0x760] sm:$0xff]
        %v545 = vld [vmem:[%s216 + $0x768] sm:$0xff]
        %v546 = vld [vmem:[%s216 + $0x770] sm:$0xff]
        %v547 = vld [vmem:[%s216 + $0x778] sm:$0xff]
        %v548 = vld [vmem:[%s216 + $0x780] sm:$0xff]
        %v549 = vld [vmem:[%s216 + $0x788] sm:$0xff]
        %v550 = vld [vmem:[%s216 + $0x790] sm:$0xff]
        %v551 = vld [vmem:[%s216 + $0x798] sm:$0xff]
        %v552 = vld [vmem:[%s216 + $0x7a0] sm:$0xff]
        %v553 = vld [vmem:[%s216 + $0x7a8] sm:$0xff]
        %v554 = vld [vmem:[%s216 + $0x7b0] sm:$0xff]
        %v555 = vld [vmem:[%s216 + $0x7b8] sm:$0xff]
        %v556 = vld [vmem:[%s216 + $0x7c0] sm:$0xff]
        %v557 = vld [vmem:[%s216 + $0x7c8] sm:$0xff]
        %v558 = vld [vmem:[%s216 + $0x7d0] sm:$0xff]
        %v559 = vld [vmem:[%s216 + $0x7d8] sm:$0xff]
        %v560 = vld [vmem:[%s216 + $0x7e0] sm:$0xff]
        %v561 = vld [vmem:[%s216 + $0x7e8] sm:$0xff]
        %v562 = vld [vmem:[%s216 + $0x7f0] sm:$0xff]
        %v563 = vld [vmem:[%s216 + $0x7f8] sm:$0xff]
        %v564 = vld [vmem:[%s216 + $0x800] sm:$0xff]
        %v565 = vld [vmem:[%s216 + $0x808] sm:$0xff]
        %v566 = vld [vmem:[%s216 + $0x810] sm:$0xff]
        %v567 = vld [vmem:[%s216 + $0x818] sm:$0xff]
        %v568 = vld [vmem:[%s216 + $0x820] sm:$0xff]
        %v569 = vld [vmem:[%s216 + $0x828] sm:$0xff]
        %v570 = vld [vmem:[%s216 + $0x830] sm:$0xff]
        %v571 = vld [vmem:[%s216 + $0x838] sm:$0xff]
        %v572 = vld [vmem:[%s216 + $0x840] sm:$0xff]
        %v573 = vld [vmem:[%s216 + $0x848] sm:$0xff]
        %v574 = vld [vmem:[%s216 + $0x850] sm:$0xff]
        %v575 = vld [vmem:[%s216 + $0x858] sm:$0xff]
        %v576 = vld [vmem:[%s216 + $0x860] sm:$0xff]
        %v577 = vld [vmem:[%s216 + $0x868] sm:$0xff]
        %v578 = vld [vmem:[%s216 + $0x870] sm:$0xff]
        %v579 = vld [vmem:[%s216 + $0x878] sm:$0xff]
        %v580 = vld [vmem:[%s216 + $0x880] sm:$0xff]
        %v581 = vld [vmem:[%s216 + $0x888] sm:$0xff]
        %v582 = vld [vmem:[%s216 + $0x890] sm:$0xff]
        %v583 = vld [vmem:[%s216 + $0x898] sm:$0xff]
        %v584 = vld [vmem:[%s216 + $0x8a0] sm:$0xff]
        %v585 = vld [vmem:[%s216 + $0x8a8] sm:$0xff]
        %v586 = vld [vmem:[%s216 + $0x8b0] sm:$0xff]
        %v587 = vld [vmem:[%s216 + $0x8b8] sm:$0xff]
        %v588 = vld [vmem:[%s216 + $0x8c0] sm:$0xff]
        %v589 = vld [vmem:[%s216 + $0x8c8] sm:$0xff]
        %v590 = vld [vmem:[%s216 + $0x8d0] sm:$0xff]
        %v591 = vld [vmem:[%s216 + $0x8d8] sm:$0xff]
        %v592 = vld [vmem:[%s216 + $0x8e0] sm:$0xff]
        %v593 = vld [vmem:[%s216 + $0x8e8] sm:$0xff]
        %v594 = vld [vmem:[%s216 + $0x8f0] sm:$0xff]
        %v595 = vld [vmem:[%s216 + $0x8f8] sm:$0xff]
        %v596 = vld [vmem:[%s216 + $0x900] sm:$0xff]
        %v597 = vld [vmem:[%s216 + $0x908] sm:$0xff]
        %v598 = vld [vmem:[%s216 + $0x910] sm:$0xff]
        %v599 = vld [vmem:[%s216 + $0x918] sm:$0xff]
        %v600 = vld [vmem:[%s216 + $0x920] sm:$0xff]
        %v601 = vld [vmem:[%s216 + $0x928] sm:$0xff]
        %v602 = vld [vmem:[%s216 + $0x930] sm:$0xff]
        %v603 = vld [vmem:[%s216 + $0x938] sm:$0xff]
        %v604 = vld [vmem:[%s216 + $0x940] sm:$0xff]
        %v605 = vld [vmem:[%s216 + $0x948] sm:$0xff]
        %v606 = vld [vmem:[%s216 + $0x950] sm:$0xff]
        %v607 = vld [vmem:[%s216 + $0x958] sm:$0xff]
        %v608 = vld [vmem:[%s216 + $0x960] sm:$0xff]
        %v609 = vld [vmem:[%s216 + $0x968] sm:$0xff]
        %v610 = vld [vmem:[%s216 + $0x970] sm:$0xff]
        %v611 = vld [vmem:[%s216 + $0x978] sm:$0xff]
        %v612 = vld [vmem:[%s216 + $0x980] sm:$0xff]
        %v613 = vld [vmem:[%s216 + $0x988] sm:$0xff]
        %v614 = vld [vmem:[%s216 + $0x990] sm:$0xff]
        %v615 = vld [vmem:[%s216 + $0x998] sm:$0xff]
        %v616 = vld [vmem:[%s216 + $0x9a0] sm:$0xff]
        %v617 = vld [vmem:[%s216 + $0x9a8] sm:$0xff]
        %v618 = vld [vmem:[%s216 + $0x9b0] sm:$0xff]
        %v619 = vld [vmem:[%s216 + $0x9b8] sm:$0xff]
        %v620 = vld [vmem:[%s216 + $0x9c0] sm:$0xff]
        %v621 = vld [vmem:[%s216 + $0x9c8] sm:$0xff]
        %v622 = vld [vmem:[%s216 + $0x9d0] sm:$0xff]
        %v623 = vld [vmem:[%s216 + $0x9d8] sm:$0xff]
        %v624 = vld [vmem:[%s216 + $0x9e0] sm:$0xff]
        %v625 = vld [vmem:[%s216 + $0x9e8] sm:$0xff]
        %v626 = vld [vmem:[%s216 + $0x9f0] sm:$0xff]
        %v627 = vld [vmem:[%s216 + $0x9f8] sm:$0xff]
        %v628 = vld [vmem:[%s216 + $0xa00] sm:$0xff]
        %v629 = vld [vmem:[%s216 + $0xa08] sm:$0xff]
        %v630 = vld [vmem:[%s216 + $0xa10] sm:$0xff]
        %v631 = vld [vmem:[%s216 + $0xa18] sm:$0xff]
        %v632 = vld [vmem:[%s216 + $0xa20] sm:$0xff]
        %v633 = vld [vmem:[%s216 + $0xa28] sm:$0xff]
        %v634 = vld [vmem:[%s216 + $0xa30] sm:$0xff]
        %v635 = vld [vmem:[%s216 + $0xa38] sm:$0xff]
        %v636 = vld [vmem:[%s216 + $0xa40] sm:$0xff]
        %v637 = vld [vmem:[%s216 + $0xa48] sm:$0xff]
        %v638 = vld [vmem:[%s216 + $0xa50] sm:$0xff]
        %v639 = vld [vmem:[%s216 + $0xa58] sm:$0xff]
        %v640 = vld [vmem:[%s216 + $0xa60] sm:$0xff]
        %v641 = vld [vmem:[%s216 + $0xa68] sm:$0xff]
        %v642 = vld [vmem:[%s216 + $0xa70] sm:$0xff]
        %v643 = vld [vmem:[%s216 + $0xa78] sm:$0xff]
        %v644 = vld [vmem:[%s216 + $0xa80] sm:$0xff]
        %v645 = vld [vmem:[%s216 + $0xa88] sm:$0xff]
        %v646 = vld [vmem:[%s216 + $0xa90] sm:$0xff]
        %v647 = vld [vmem:[%s216 + $0xa98] sm:$0xff]
        %v648 = vld [vmem:[%s216 + $0xaa0] sm:$0xff]
        %v649 = vld [vmem:[%s216 + $0xaa8] sm:$0xff]
        %v650 = vld [vmem:[%s216 + $0xab0] sm:$0xff]
        %v651 = vld [vmem:[%s216 + $0xab8] sm:$0xff]
        %v652 = vld [vmem:[%s216 + $0xac0] sm:$0xff]
        %v653 = vld [vmem:[%s216 + $0xac8] sm:$0xff]
        %v654 = vld [vmem:[%s216 + $0xad0] sm:$0xff]
        %v655 = vld [vmem:[%s216 + $0xad8] sm:$0xff]
        %v656 = vld [vmem:[%s216 + $0xae0] sm:$0xff]
        %v657 = vld [vmem:[%s216 + $0xae8] sm:$0xff]
        %v658 = vld [vmem:[%s216 + $0xaf0] sm:$0xff]
        %v659 = vld [vmem:[%s216 + $0xaf8] sm:$0xff]
        %v660 = vld [vmem:[%s216 + $0xb00] sm:$0xff]
        %v661 = vld [vmem:[%s216 + $0xb08] sm:$0xff]
        %v662 = vld [vmem:[%s216 + $0xb10] sm:$0xff]
        %v663 = vld [vmem:[%s216 + $0xb18] sm:$0xff]
        %v664 = vld [vmem:[%s216 + $0xb20] sm:$0xff]
        %v665 = vld [vmem:[%s216 + $0xb28] sm:$0xff]
        %v666 = vld [vmem:[%s216 + $0xb30] sm:$0xff]
        %v667 = vld [vmem:[%s216 + $0xb38] sm:$0xff]
        %v668 = vld [vmem:[%s216 + $0xb40] sm:$0xff]
        %v669 = vld [vmem:[%s216 + $0xb48] sm:$0xff]
        %v670 = vld [vmem:[%s216 + $0xb50] sm:$0xff]
        %v671 = vld [vmem:[%s216 + $0xb58] sm:$0xff]
        %v672 = vld [vmem:[%s216 + $0xb60] sm:$0xff]
        %v673 = vld [vmem:[%s216 + $0xb68] sm:$0xff]
        %v674 = vld [vmem:[%s216 + $0xb70] sm:$0xff]
        %v675 = vld [vmem:[%s216 + $0xb78] sm:$0xff]
        %v676 = vld [vmem:[%s216 + $0xb80] sm:$0xff]
        %v677 = vld [vmem:[%s216 + $0xb88] sm:$0xff]
        %v678 = vld [vmem:[%s216 + $0xb90] sm:$0xff]
        %v679 = vld [vmem:[%s216 + $0xb98] sm:$0xff]
        %v680 = vld [vmem:[%s216 + $0xba0] sm:$0xff]
        %v681 = vld [vmem:[%s216 + $0xba8] sm:$0xff]
        %v682 = vld [vmem:[%s216 + $0xbb0] sm:$0xff]
        %v683 = vld [vmem:[%s216 + $0xbb8] sm:$0xff]
        %v684 = vld [vmem:[%s216 + $0xbc0] sm:$0xff]
        %v685 = vld [vmem:[%s216 + $0xbc8] sm:$0xff]
        %v686 = vld [vmem:[%s216 + $0xbd0] sm:$0xff]
        %v687 = vld [vmem:[%s216 + $0xbd8] sm:$0xff]
        %v688 = vld [vmem:[%s216 + $0xbe0] sm:$0xff]
        %v689 = vld [vmem:[%s216 + $0xbe8] sm:$0xff]
        %v690 = vld [vmem:[%s216 + $0xbf0] sm:$0xff]
        %v691 = vld [vmem:[%s216 + $0xbf8] sm:$0xff]
        %v692 = vld [vmem:[%s216 + $0xc00] sm:$0xff]
        %v693 = vld [vmem:[%s216 + $0xc08] sm:$0xff]
        %v694 = vld [vmem:[%s216 + $0xc10] sm:$0xff]
        %v695 = vld [vmem:[%s216 + $0xc18] sm:$0xff]
        %v696 = vld [vmem:[%s216 + $0xc20] sm:$0xff]
        %v697 = vld [vmem:[%s216 + $0xc28] sm:$0xff]
        %v698 = vld [vmem:[%s216 + $0xc30] sm:$0xff]
        %v699 = vld [vmem:[%s216 + $0xc38] sm:$0xff]
        %v700 = vld [vmem:[%s216 + $0xc40] sm:$0xff]
        %v701 = vld [vmem:[%s216 + $0xc48] sm:$0xff]
        %v702 = vld [vmem:[%s216 + $0xc50] sm:$0xff]
        %v703 = vld [vmem:[%s216 + $0xc58] sm:$0xff]
        %v704 = vld [vmem:[%s216 + $0xc60] sm:$0xff]
        %v705 = vld [vmem:[%s216 + $0xc68] sm:$0xff]
        %v706 = vld [vmem:[%s216 + $0xc70] sm:$0xff]
        %v707 = vld [vmem:[%s216 + $0xc78] sm:$0xff]
        %v708 = vld [vmem:[%s216 + $0xc80] sm:$0xff]
        %v709 = vld [vmem:[%s216 + $0xc88] sm:$0xff]
        %v710 = vld [vmem:[%s216 + $0xc90] sm:$0xff]
        %v711 = vld [vmem:[%s216 + $0xc98] sm:$0xff]
        %v712 = vld [vmem:[%s216 + $0xca0] sm:$0xff]
        %v713 = vld [vmem:[%s216 + $0xca8] sm:$0xff]
        %v714 = vld [vmem:[%s216 + $0xcb0] sm:$0xff]
        %v715 = vld [vmem:[%s216 + $0xcb8] sm:$0xff]
        %v716 = vld [vmem:[%s216 + $0xcc0] sm:$0xff]
        %v717 = vld [vmem:[%s216 + $0xcc8] sm:$0xff]
        %v718 = vld [vmem:[%s216 + $0xcd0] sm:$0xff]
        %v719 = vld [vmem:[%s216 + $0xcd8] sm:$0xff]
        %v720 = vld [vmem:[%s216 + $0xce0] sm:$0xff]
        %v721 = vld [vmem:[%s216 + $0xce8] sm:$0xff]
        %v722 = vld [vmem:[%s216 + $0xcf0] sm:$0xff]
        %v723 = vld [vmem:[%s216 + $0xcf8] sm:$0xff]
        %v724 = vld [vmem:[%s216 + $0xd00] sm:$0xff]
        %v725 = vld [vmem:[%s216 + $0xd08] sm:$0xff]
        %v726 = vld [vmem:[%s216 + $0xd10] sm:$0xff]
        %v727 = vld [vmem:[%s216 + $0xd18] sm:$0xff]
        %v728 = vld [vmem:[%s216 + $0xd20] sm:$0xff]
        %v729 = vld [vmem:[%s216 + $0xd28] sm:$0xff]
        %v730 = vld [vmem:[%s216 + $0xd30] sm:$0xff]
        %v731 = vld [vmem:[%s216 + $0xd38] sm:$0xff]
        %v732 = vld [vmem:[%s216 + $0xd40] sm:$0xff]
        %v733 = vld [vmem:[%s216 + $0xd48] sm:$0xff]
        %v734 = vld [vmem:[%s216 + $0xd50] sm:$0xff]
        %v735 = vld [vmem:[%s216 + $0xd58] sm:$0xff]
        %v736 = vld [vmem:[%s216 + $0xd60] sm:$0xff]
        %v737 = vld [vmem:[%s216 + $0xd68] sm:$0xff]
        %v738 = vld [vmem:[%s216 + $0xd70] sm:$0xff]
        %v739 = vld [vmem:[%s216 + $0xd78] sm:$0xff]
        %v740 = vld [vmem:[%s216 + $0xd80] sm:$0xff]
        %v741 = vld [vmem:[%s216 + $0xd88] sm:$0xff]
        %v742 = vld [vmem:[%s216 + $0xd90] sm:$0xff]
        %v743 = vld [vmem:[%s216 + $0xd98] sm:$0xff]
        %v744 = vld [vmem:[%s216 + $0xda0] sm:$0xff]
        %v745 = vld [vmem:[%s216 + $0xda8] sm:$0xff]
        %v746 = vld [vmem:[%s216 + $0xdb0] sm:$0xff]
        %v747 = vld [vmem:[%s216 + $0xdb8] sm:$0xff]
        %v748 = vld [vmem:[%s216 + $0xdc0] sm:$0xff]
        %v749 = vld [vmem:[%s216 + $0xdc8] sm:$0xff]
        %v750 = vld [vmem:[%s216 + $0xdd0] sm:$0xff]
        %v751 = vld [vmem:[%s216 + $0xdd8] sm:$0xff]
        %v752 = vld [vmem:[%s216 + $0xde0] sm:$0xff]
        %v753 = vld [vmem:[%s216 + $0xde8] sm:$0xff]
        %v754 = vld [vmem:[%s216 + $0xdf0] sm:$0xff]
        %v755 = vld [vmem:[%s216 + $0xdf8] sm:$0xff]
        %v756 = vld [vmem:[%s216 + $0xe00] sm:$0xff]
        %v757 = vld [vmem:[%s216 + $0xe08] sm:$0xff]
        %v758 = vld [vmem:[%s216 + $0xe10] sm:$0xff]
        %v759 = vld [vmem:[%s216 + $0xe18] sm:$0xff]
        %v760 = vld [vmem:[%s216 + $0xe20] sm:$0xff]
        %v761 = vld [vmem:[%s216 + $0xe28] sm:$0xff]
        %v762 = vld [vmem:[%s216 + $0xe30] sm:$0xff]
        %v763 = vld [vmem:[%s216 + $0xe38] sm:$0xff]
        %v764 = vld [vmem:[%s216 + $0xe40] sm:$0xff]
        %v765 = vld [vmem:[%s216 + $0xe48] sm:$0xff]
        %v766 = vld [vmem:[%s216 + $0xe50] sm:$0xff]
        %v767 = vld [vmem:[%s216 + $0xe58] sm:$0xff]
        %v768 = vld [vmem:[%s216 + $0xe60] sm:$0xff]
        %v769 = vld [vmem:[%s216 + $0xe68] sm:$0xff]
        %v770 = vld [vmem:[%s216 + $0xe70] sm:$0xff]
        %v771 = vld [vmem:[%s216 + $0xe78] sm:$0xff]
        %v772 = vld [vmem:[%s216 + $0xe80] sm:$0xff]
        %v773 = vld [vmem:[%s216 + $0xe88] sm:$0xff]
        %v774 = vld [vmem:[%s216 + $0xe90] sm:$0xff]
        %v775 = vld [vmem:[%s216 + $0xe98] sm:$0xff]
        %v776 = vld [vmem:[%s216 + $0xea0] sm:$0xff]
        %v777 = vld [vmem:[%s216 + $0xea8] sm:$0xff]
        %v778 = vld [vmem:[%s216 + $0xeb0] sm:$0xff]
        %v779 = vld [vmem:[%s216 + $0xeb8] sm:$0xff]
        %v780 = vld [vmem:[%s216 + $0xec0] sm:$0xff]
        %v781 = vld [vmem:[%s216 + $0xec8] sm:$0xff]
        %v782 = vld [vmem:[%s216 + $0xed0] sm:$0xff]
        %v783 = vld [vmem:[%s216 + $0xed8] sm:$0xff]
        %v784 = vld [vmem:[%s216 + $0xee0] sm:$0xff]
        %v785 = vld [vmem:[%s216 + $0xee8] sm:$0xff]
        %v786 = vld [vmem:[%s216 + $0xef0] sm:$0xff]
        %v787 = vld [vmem:[%s216 + $0xef8] sm:$0xff]
        %v788 = vld [vmem:[%s216 + $0xf00] sm:$0xff]
        %v789 = vld [vmem:[%s216 + $0xf08] sm:$0xff]
        %v790 = vld [vmem:[%s216 + $0xf10] sm:$0xff]
        %v791 = vld [vmem:[%s216 + $0xf18] sm:$0xff]
        %v792 = vld [vmem:[%s216 + $0xf20] sm:$0xff]
        %v793 = vld [vmem:[%s216 + $0xf28] sm:$0xff]
        %v794 = vld [vmem:[%s216 + $0xf30] sm:$0xff]
        %v795 = vld [vmem:[%s216 + $0xf38] sm:$0xff]
        %v796 = vld [vmem:[%s216 + $0xf40] sm:$0xff]
        %v797 = vld [vmem:[%s216 + $0xf48] sm:$0xff]
        %v798 = vld [vmem:[%s216 + $0xf50] sm:$0xff]
        %v799 = vld [vmem:[%s216 + $0xf58] sm:$0xff]
        %v800 = vld [vmem:[%s216 + $0xf60] sm:$0xff]
        %v801 = vld [vmem:[%s216 + $0xf68] sm:$0xff]
        %v802 = vld [vmem:[%s216 + $0xf70] sm:$0xff]
        %v803 = vld [vmem:[%s216 + $0xf78] sm:$0xff]
        %v804 = vld [vmem:[%s216 + $0xf80] sm:$0xff]
        %v805 = vld [vmem:[%s216 + $0xf88] sm:$0xff]
        %v806 = vld [vmem:[%s216 + $0xf90] sm:$0xff]
        %v807 = vld [vmem:[%s216 + $0xf98] sm:$0xff]
        %v808 = vld [vmem:[%s216 + $0xfa0] sm:$0xff]
        %v809 = vld [vmem:[%s216 + $0xfa8] sm:$0xff]
        %v810 = vld [vmem:[%s216 + $0xfb0] sm:$0xff]
        %v811 = vld [vmem:[%s216 + $0xfb8] sm:$0xff]
        %v812 = vld [vmem:[%s216 + $0xfc0] sm:$0xff]
        %v813 = vld [vmem:[%s216 + $0xfc8] sm:$0xff]
        %v814 = vld [vmem:[%s216 + $0xfd0] sm:$0xff]
        %v815 = vld [vmem:[%s216 + $0xfd8] sm:$0xff]
        %v816 = vld [vmem:[%s216 + $0xfe0] sm:$0xff]
        %v817 = vld [vmem:[%s216 + $0xfe8] sm:$0xff]
        %v818 = vld [vmem:[%s216 + $0xff0] sm:$0xff]
        %v819 = vld [vmem:[%s216 + $0xff8] sm:$0xff]
        %v820 = vld [vmem:[%s216 + $0x1000] sm:$0xff]
        %v821 = vld [vmem:[%s216 + $0x1008] sm:$0xff]
        %v822 = vld [vmem:[%s216 + $0x1010] sm:$0xff]
        %v823 = vld [vmem:[%s216 + $0x1018] sm:$0xff]
        %v824 = vld [vmem:[%s216 + $0x1020] sm:$0xff]
        %v825 = vld [vmem:[%s216 + $0x1028] sm:$0xff]
        %v826 = vld [vmem:[%s216 + $0x1030] sm:$0xff]
        %v827 = vld [vmem:[%s216 + $0x1038] sm:$0xff]
        %v828 = vld [vmem:[%s216 + $0x1040] sm:$0xff]
        %v829 = vld [vmem:[%s216 + $0x1048] sm:$0xff]
        %v830 = vld [vmem:[%s216 + $0x1050] sm:$0xff]
        %v831 = vld [vmem:[%s216 + $0x1058] sm:$0xff]
        %v832 = vld [vmem:[%s216 + $0x1060] sm:$0xff]
        %v833 = vld [vmem:[%s216 + $0x1068] sm:$0xff]
        %v834 = vld [vmem:[%s216 + $0x1070] sm:$0xff]
        %v835 = vld [vmem:[%s216 + $0x1078] sm:$0xff]
        %v836 = vld [vmem:[%s216 + $0x1080] sm:$0xff]
        %v837 = vld [vmem:[%s216 + $0x1088] sm:$0xff]
        %v838 = vld [vmem:[%s216 + $0x1090] sm:$0xff]
        %v839 = vld [vmem:[%s216 + $0x1098] sm:$0xff]
        %v840 = vld [vmem:[%s216 + $0x10a0] sm:$0xff]
        %v841 = vld [vmem:[%s216 + $0x10a8] sm:$0xff]
        %v842 = vld [vmem:[%s216 + $0x10b0] sm:$0xff]
        %v843 = vld [vmem:[%s216 + $0x10b8] sm:$0xff]
        %v844 = vld [vmem:[%s216 + $0x10c0] sm:$0xff]
        %v845 = vld [vmem:[%s216 + $0x10c8] sm:$0xff]
        %v846 = vld [vmem:[%s216 + $0x10d0] sm:$0xff]
        %v847 = vld [vmem:[%s216 + $0x10d8] sm:$0xff]
        %v848 = vld [vmem:[%s216 + $0x10e0] sm:$0xff]
        %v849 = vld [vmem:[%s216 + $0x10e8] sm:$0xff]
        %v850 = vld [vmem:[%s216 + $0x10f0] sm:$0xff]
        %v851 = vld [vmem:[%s216 + $0x10f8] sm:$0xff]
        %v869 = vunpack.c.l.b16 %v291
        %v870 = vunpack.c.h.b16 %v291
        %v871 = vunpack.c.l.b16 %v292
        %v872 = vunpack.c.h.b16 %v292
        %v873 = vunpack.c.l.b16 %v293
        %v874 = vunpack.c.h.b16 %v293
        %v875 = vunpack.c.l.b16 %v294
        %v876 = vunpack.c.h.b16 %v294
        %v877 = vunpack.c.l.b16 %v295
        %v878 = vunpack.c.h.b16 %v295
        %v879 = vunpack.c.l.b16 %v296
        %v880 = vunpack.c.h.b16 %v296
        %v881 = vunpack.c.l.b16 %v297
        %v882 = vunpack.c.h.b16 %v297
        %v883 = vunpack.c.l.b16 %v298
        %v884 = vunpack.c.h.b16 %v298
        %v885 = vunpack.c.l.b16 %v299
        %v886 = vunpack.c.h.b16 %v299
        %v887 = vunpack.c.l.b16 %v300
        %v888 = vunpack.c.h.b16 %v300
        %v889 = vunpack.c.l.b16 %v301
        %v890 = vunpack.c.h.b16 %v301
        %v891 = vunpack.c.l.b16 %v302
        %v892 = vunpack.c.h.b16 %v302
        %v893 = vunpack.c.l.b16 %v303
        %v894 = vunpack.c.h.b16 %v303
        %v895 = vunpack.c.l.b16 %v304
        %v896 = vunpack.c.h.b16 %v304
        %v897 = vunpack.c.l.b16 %v305
        %v898 = vunpack.c.h.b16 %v305
        %v899 = vunpack.c.l.b16 %v306
        %v900 = vunpack.c.h.b16 %v306
        %v901 = vunpack.c.l.b16 %v307
        %v902 = vunpack.c.h.b16 %v307
        %v903 = vpack.c.b16 %v869, %v869
        %v904 = vpack.c.b16 %v870, %v870
        %v905 = vpack.c.b16 %v871, %v871
        %v906 = vpack.c.b16 %v872, %v872
        %v907 = vpack.c.b16 %v873, %v873
        %v908 = vpack.c.b16 %v874, %v874
        %v909 = vpack.c.b16 %v875, %v875
        %v910 = vpack.c.b16 %v876, %v876
        %v911 = vpack.c.b16 %v877, %v877
        %v912 = vpack.c.b16 %v878, %v878
        %v913 = vpack.c.b16 %v879, %v879
        %v914 = vpack.c.b16 %v880, %v880
        %v915 = vpack.c.b16 %v881, %v881
        %v916 = vpack.c.b16 %v882, %v882
        %v917 = vpack.c.b16 %v883, %v883
        %v918 = vpack.c.b16 %v884, %v884
        %v919 = vpack.c.b16 %v885, %v885
        %v920 = vpack.c.b16 %v886, %v886
        %v921 = vpack.c.b16 %v887, %v887
        %v922 = vpack.c.b16 %v888, %v888
        %v923 = vpack.c.b16 %v889, %v889
        %v924 = vpack.c.b16 %v890, %v890
        %v925 = vpack.c.b16 %v891, %v891
        %v926 = vpack.c.b16 %v892, %v892
        %v927 = vpack.c.b16 %v893, %v893
        %v928 = vpack.c.b16 %v894, %v894
        %v929 = vpack.c.b16 %v895, %v895
        %v930 = vpack.c.b16 %v896, %v896
        %v931 = vpack.c.b16 %v897, %v897
        %v932 = vpack.c.b16 %v898, %v898
        %v933 = vpack.c.b16 %v899, %v899
        %v934 = vpack.c.b16 %v900, %v900
        %v935 = vpack.c.b16 %v901, %v901
        %v936 = vpack.c.b16 %v902, %v902
        %v1515 = vunpack.c.l.b16 %v308
        %v1516 = vunpack.c.h.b16 %v308
        %v1517 = vunpack.c.l.b16 %v309
        %v1518 = vunpack.c.h.b16 %v309
        %v1519 = vunpack.c.l.b16 %v310
        %v1520 = vunpack.c.h.b16 %v310
        %v1521 = vunpack.c.l.b16 %v311
        %v1522 = vunpack.c.h.b16 %v311
        %v1523 = vunpack.c.l.b16 %v312
        %v1524 = vunpack.c.h.b16 %v312
        %v1525 = vunpack.c.l.b16 %v313
        %v1526 = vunpack.c.h.b16 %v313
        %v1527 = vunpack.c.l.b16 %v314
        %v1528 = vunpack.c.h.b16 %v314
        %v1529 = vunpack.c.l.b16 %v315
        %v1530 = vunpack.c.h.b16 %v315
        %v1531 = vunpack.c.l.b16 %v316
        %v1532 = vunpack.c.h.b16 %v316
        %v1533 = vunpack.c.l.b16 %v317
        %v1534 = vunpack.c.h.b16 %v317
        %v1535 = vunpack.c.l.b16 %v318
        %v1536 = vunpack.c.h.b16 %v318
        %v1537 = vunpack.c.l.b16 %v319
        %v1538 = vunpack.c.h.b16 %v319
        %v1539 = vunpack.c.l.b16 %v320
        %v1540 = vunpack.c.h.b16 %v320
        %v1541 = vunpack.c.l.b16 %v321
        %v1542 = vunpack.c.h.b16 %v321
        %v1543 = vunpack.c.l.b16 %v322
        %v1544 = vunpack.c.h.b16 %v322
        %v1545 = vunpack.c.l.b16 %v323
        %v1546 = vunpack.c.h.b16 %v323
        %v1547 = vunpack.c.l.b16 %v324
        %v1548 = vunpack.c.h.b16 %v324
        %v1549 = vunpack.c.l.b16 %v325
        %v1550 = vunpack.c.h.b16 %v325
        %v1551 = vunpack.c.l.b16 %v326
        %v1552 = vunpack.c.h.b16 %v326
        %v1553 = vunpack.c.l.b16 %v327
        %v1554 = vunpack.c.h.b16 %v327
        %v1555 = vunpack.c.l.b16 %v328
        %v1556 = vunpack.c.h.b16 %v328
        %v1557 = vunpack.c.l.b16 %v329
        %v1558 = vunpack.c.h.b16 %v329
        %v1559 = vunpack.c.l.b16 %v330
        %v1560 = vunpack.c.h.b16 %v330
        %v1561 = vunpack.c.l.b16 %v331
        %v1562 = vunpack.c.h.b16 %v331
        %v1563 = vunpack.c.l.b16 %v332
        %v1564 = vunpack.c.h.b16 %v332
        %v1565 = vunpack.c.l.b16 %v333
        %v1566 = vunpack.c.h.b16 %v333
        %v1567 = vunpack.c.l.b16 %v334
        %v1568 = vunpack.c.h.b16 %v334
        %v1569 = vunpack.c.l.b16 %v335
        %v1570 = vunpack.c.h.b16 %v335
        %v1571 = vunpack.c.l.b16 %v336
        %v1572 = vunpack.c.h.b16 %v336
        %v1573 = vunpack.c.l.b16 %v337
        %v1574 = vunpack.c.h.b16 %v337
        %v1575 = vunpack.c.l.b16 %v338
        %v1576 = vunpack.c.h.b16 %v338
        %v1577 = vunpack.c.l.b16 %v339
        %v1578 = vunpack.c.h.b16 %v339
        %v1579 = vunpack.c.l.b16 %v340
        %v1580 = vunpack.c.h.b16 %v340
        %v1581 = vunpack.c.l.b16 %v341
        %v1582 = vunpack.c.h.b16 %v341
        %v1583 = vunpack.c.l.b16 %v342
        %v1584 = vunpack.c.h.b16 %v342
        %v1585 = vunpack.c.l.b16 %v343
        %v1586 = vunpack.c.h.b16 %v343
        %v1587 = vunpack.c.l.b16 %v344
        %v1588 = vunpack.c.h.b16 %v344
        %v1589 = vunpack.c.l.b16 %v345
        %v1590 = vunpack.c.h.b16 %v345
        %v1591 = vunpack.c.l.b16 %v346
        %v1592 = vunpack.c.h.b16 %v346
        %v1593 = vunpack.c.l.b16 %v347
        %v1594 = vunpack.c.h.b16 %v347
        %v1595 = vunpack.c.l.b16 %v348
        %v1596 = vunpack.c.h.b16 %v348
        %v1597 = vunpack.c.l.b16 %v349
        %v1598 = vunpack.c.h.b16 %v349
        %v1599 = vunpack.c.l.b16 %v350
        %v1600 = vunpack.c.h.b16 %v350
        %v1601 = vunpack.c.l.b16 %v351
        %v1602 = vunpack.c.h.b16 %v351
        %v1603 = vunpack.c.l.b16 %v352
        %v1604 = vunpack.c.h.b16 %v352
        %v1605 = vunpack.c.l.b16 %v353
        %v1606 = vunpack.c.h.b16 %v353
        %v1607 = vunpack.c.l.b16 %v354
        %v1608 = vunpack.c.h.b16 %v354
        %v1609 = vunpack.c.l.b16 %v355
        %v1610 = vunpack.c.h.b16 %v355
        %v1611 = vunpack.c.l.b16 %v356
        %v1612 = vunpack.c.h.b16 %v356
        %v1613 = vunpack.c.l.b16 %v357
        %v1614 = vunpack.c.h.b16 %v357
        %v1615 = vunpack.c.l.b16 %v358
        %v1616 = vunpack.c.h.b16 %v358
        %v1617 = vunpack.c.l.b16 %v359
        %v1618 = vunpack.c.h.b16 %v359
        %v1619 = vunpack.c.l.b16 %v360
        %v1620 = vunpack.c.h.b16 %v360
        %v1621 = vunpack.c.l.b16 %v361
        %v1622 = vunpack.c.h.b16 %v361
        %v1623 = vunpack.c.l.b16 %v362
        %v1624 = vunpack.c.h.b16 %v362
        %v1625 = vunpack.c.l.b16 %v363
        %v1626 = vunpack.c.h.b16 %v363
        %v1627 = vunpack.c.l.b16 %v364
        %v1628 = vunpack.c.h.b16 %v364
        %v1629 = vunpack.c.l.b16 %v365
        %v1630 = vunpack.c.h.b16 %v365
        %v1631 = vunpack.c.l.b16 %v366
        %v1632 = vunpack.c.h.b16 %v366
        %v1633 = vunpack.c.l.b16 %v367
        %v1634 = vunpack.c.h.b16 %v367
        %v1635 = vunpack.c.l.b16 %v368
        %v1636 = vunpack.c.h.b16 %v368
        %v1637 = vunpack.c.l.b16 %v369
        %v1638 = vunpack.c.h.b16 %v369
        %v1639 = vunpack.c.l.b16 %v370
        %v1640 = vunpack.c.h.b16 %v370
        %v1641 = vunpack.c.l.b16 %v371
        %v1642 = vunpack.c.h.b16 %v371
        %v1643 = vunpack.c.l.b16 %v372
        %v1644 = vunpack.c.h.b16 %v372
        %v1645 = vunpack.c.l.b16 %v373
        %v1646 = vunpack.c.h.b16 %v373
        %v1647 = vunpack.c.l.b16 %v374
        %v1648 = vunpack.c.h.b16 %v374
        %v1649 = vunpack.c.l.b16 %v375
        %v1650 = vunpack.c.h.b16 %v375
        %v1651 = vunpack.c.l.b16 %v376
        %v1652 = vunpack.c.h.b16 %v376
        %v1653 = vunpack.c.l.b16 %v377
        %v1654 = vunpack.c.h.b16 %v377
        %v1655 = vunpack.c.l.b16 %v378
        %v1656 = vunpack.c.h.b16 %v378
        %v1657 = vunpack.c.l.b16 %v379
        %v1658 = vunpack.c.h.b16 %v379
        %v1659 = vunpack.c.l.b16 %v380
        %v1660 = vunpack.c.h.b16 %v380
        %v1661 = vunpack.c.l.b16 %v381
        %v1662 = vunpack.c.h.b16 %v381
        %v1663 = vunpack.c.l.b16 %v382
        %v1664 = vunpack.c.h.b16 %v382
        %v1665 = vunpack.c.l.b16 %v383
        %v1666 = vunpack.c.h.b16 %v383
        %v1667 = vunpack.c.l.b16 %v384
        %v1668 = vunpack.c.h.b16 %v384
        %v1669 = vunpack.c.l.b16 %v385
        %v1670 = vunpack.c.h.b16 %v385
        %v1671 = vunpack.c.l.b16 %v386
        %v1672 = vunpack.c.h.b16 %v386
        %v1673 = vunpack.c.l.b16 %v387
        %v1674 = vunpack.c.h.b16 %v387
        %v1675 = vunpack.c.l.b16 %v388
        %v1676 = vunpack.c.h.b16 %v388
        %v1677 = vunpack.c.l.b16 %v389
        %v1678 = vunpack.c.h.b16 %v389
        %v1679 = vunpack.c.l.b16 %v390
        %v1680 = vunpack.c.h.b16 %v390
        %v1681 = vunpack.c.l.b16 %v391
        %v1682 = vunpack.c.h.b16 %v391
        %v1683 = vunpack.c.l.b16 %v392
        %v1684 = vunpack.c.h.b16 %v392
        %v1685 = vunpack.c.l.b16 %v393
        %v1686 = vunpack.c.h.b16 %v393
        %v1687 = vunpack.c.l.b16 %v394
        %v1688 = vunpack.c.h.b16 %v394
        %v1689 = vunpack.c.l.b16 %v395
        %v1690 = vunpack.c.h.b16 %v395
        %v1691 = vunpack.c.l.b16 %v396
        %v1692 = vunpack.c.h.b16 %v396
        %v1693 = vunpack.c.l.b16 %v397
        %v1694 = vunpack.c.h.b16 %v397
        %v1695 = vunpack.c.l.b16 %v398
        %v1696 = vunpack.c.h.b16 %v398
        %v1697 = vunpack.c.l.b16 %v399
        %v1698 = vunpack.c.h.b16 %v399
        %v1699 = vunpack.c.l.b16 %v400
        %v1700 = vunpack.c.h.b16 %v400
        %v1701 = vunpack.c.l.b16 %v401
        %v1702 = vunpack.c.h.b16 %v401
        %v1703 = vunpack.c.l.b16 %v402
        %v1704 = vunpack.c.h.b16 %v402
        %v1705 = vunpack.c.l.b16 %v403
        %v1706 = vunpack.c.h.b16 %v403
        %v1707 = vunpack.c.l.b16 %v404
        %v1708 = vunpack.c.h.b16 %v404
        %v1709 = vunpack.c.l.b16 %v405
        %v1710 = vunpack.c.h.b16 %v405
        %v1711 = vunpack.c.l.b16 %v406
        %v1712 = vunpack.c.h.b16 %v406
        %v1713 = vunpack.c.l.b16 %v407
        %v1714 = vunpack.c.h.b16 %v407
        %v1715 = vunpack.c.l.b16 %v408
        %v1716 = vunpack.c.h.b16 %v408
        %v1717 = vunpack.c.l.b16 %v409
        %v1718 = vunpack.c.h.b16 %v409
        %v1719 = vunpack.c.l.b16 %v410
        %v1720 = vunpack.c.h.b16 %v410
        %v1721 = vunpack.c.l.b16 %v411
        %v1722 = vunpack.c.h.b16 %v411
        %v1723 = vunpack.c.l.b16 %v412
        %v1724 = vunpack.c.h.b16 %v412
        %v1725 = vunpack.c.l.b16 %v413
        %v1726 = vunpack.c.h.b16 %v413
        %v1727 = vunpack.c.l.b16 %v414
        %v1728 = vunpack.c.h.b16 %v414
        %v1729 = vunpack.c.l.b16 %v415
        %v1730 = vunpack.c.h.b16 %v415
        %v1731 = vunpack.c.l.b16 %v416
        %v1732 = vunpack.c.h.b16 %v416
        %v1733 = vunpack.c.l.b16 %v417
        %v1734 = vunpack.c.h.b16 %v417
        %v1735 = vunpack.c.l.b16 %v418
        %v1736 = vunpack.c.h.b16 %v418
        %v1737 = vunpack.c.l.b16 %v419
        %v1738 = vunpack.c.h.b16 %v419
        %v1739 = vunpack.c.l.b16 %v420
        %v1740 = vunpack.c.h.b16 %v420
        %v1741 = vunpack.c.l.b16 %v421
        %v1742 = vunpack.c.h.b16 %v421
        %v1743 = vunpack.c.l.b16 %v422
        %v1744 = vunpack.c.h.b16 %v422
        %v1745 = vunpack.c.l.b16 %v423
        %v1746 = vunpack.c.h.b16 %v423
        %v1747 = vunpack.c.l.b16 %v424
        %v1748 = vunpack.c.h.b16 %v424
        %v1749 = vunpack.c.l.b16 %v425
        %v1750 = vunpack.c.h.b16 %v425
        %v1751 = vunpack.c.l.b16 %v426
        %v1752 = vunpack.c.h.b16 %v426
        %v1753 = vunpack.c.l.b16 %v427
        %v1754 = vunpack.c.h.b16 %v427
        %v1755 = vunpack.c.l.b16 %v428
        %v1756 = vunpack.c.h.b16 %v428
        %v1757 = vunpack.c.l.b16 %v429
        %v1758 = vunpack.c.h.b16 %v429
        %v1759 = vunpack.c.l.b16 %v430
        %v1760 = vunpack.c.h.b16 %v430
        %v1761 = vunpack.c.l.b16 %v431
        %v1762 = vunpack.c.h.b16 %v431
        %v1763 = vunpack.c.l.b16 %v432
        %v1764 = vunpack.c.h.b16 %v432
        %v1765 = vunpack.c.l.b16 %v433
        %v1766 = vunpack.c.h.b16 %v433
        %v1767 = vunpack.c.l.b16 %v434
        %v1768 = vunpack.c.h.b16 %v434
        %v1769 = vunpack.c.l.b16 %v435
        %v1770 = vunpack.c.h.b16 %v435
        %v1771 = vunpack.c.l.b16 %v436
        %v1772 = vunpack.c.h.b16 %v436
        %v1773 = vunpack.c.l.b16 %v437
        %v1774 = vunpack.c.h.b16 %v437
        %v1775 = vunpack.c.l.b16 %v438
        %v1776 = vunpack.c.h.b16 %v438
        %v1777 = vunpack.c.l.b16 %v439
        %v1778 = vunpack.c.h.b16 %v439
        %v1779 = vunpack.c.l.b16 %v440
        %v1780 = vunpack.c.h.b16 %v440
        %v1781 = vunpack.c.l.b16 %v441
        %v1782 = vunpack.c.h.b16 %v441
        %v1783 = vunpack.c.l.b16 %v442
        %v1784 = vunpack.c.h.b16 %v442
        %v1785 = vunpack.c.l.b16 %v443
        %v1786 = vunpack.c.h.b16 %v443
        %v1787 = vunpack.c.l.b16 %v444
        %v1788 = vunpack.c.h.b16 %v444
        %v1789 = vunpack.c.l.b16 %v445
        %v1790 = vunpack.c.h.b16 %v445
        %v1791 = vunpack.c.l.b16 %v446
        %v1792 = vunpack.c.h.b16 %v446
        %v1793 = vunpack.c.l.b16 %v447
        %v1794 = vunpack.c.h.b16 %v447
        %v1795 = vunpack.c.l.b16 %v448
        %v1796 = vunpack.c.h.b16 %v448
        %v1797 = vunpack.c.l.b16 %v449
        %v1798 = vunpack.c.h.b16 %v449
        %v1799 = vunpack.c.l.b16 %v450
        %v1800 = vunpack.c.h.b16 %v450
        %v1801 = vunpack.c.l.b16 %v451
        %v1802 = vunpack.c.h.b16 %v451
        %v1803 = vunpack.c.l.b16 %v452
        %v1804 = vunpack.c.h.b16 %v452
        %v1805 = vunpack.c.l.b16 %v453
        %v1806 = vunpack.c.h.b16 %v453
        %v1807 = vunpack.c.l.b16 %v454
        %v1808 = vunpack.c.h.b16 %v454
        %v1809 = vunpack.c.l.b16 %v455
        %v1810 = vunpack.c.h.b16 %v455
        %v1811 = vunpack.c.l.b16 %v456
        %v1812 = vunpack.c.h.b16 %v456
        %v1813 = vunpack.c.l.b16 %v457
        %v1814 = vunpack.c.h.b16 %v457
        %v1815 = vunpack.c.l.b16 %v458
        %v1816 = vunpack.c.h.b16 %v458
        %v1817 = vunpack.c.l.b16 %v459
        %v1818 = vunpack.c.h.b16 %v459
        %v1819 = vunpack.c.l.b16 %v460
        %v1820 = vunpack.c.h.b16 %v460
        %v1821 = vunpack.c.l.b16 %v461
        %v1822 = vunpack.c.h.b16 %v461
        %v1823 = vunpack.c.l.b16 %v462
        %v1824 = vunpack.c.h.b16 %v462
        %v1825 = vunpack.c.l.b16 %v463
        %v1826 = vunpack.c.h.b16 %v463
        %v1827 = vunpack.c.l.b16 %v464
        %v1828 = vunpack.c.h.b16 %v464
        %v1829 = vunpack.c.l.b16 %v465
        %v1830 = vunpack.c.h.b16 %v465
        %v1831 = vunpack.c.l.b16 %v466
        %v1832 = vunpack.c.h.b16 %v466
        %v1833 = vunpack.c.l.b16 %v467
        %v1834 = vunpack.c.h.b16 %v467
        %v1835 = vunpack.c.l.b16 %v468
        %v1836 = vunpack.c.h.b16 %v468
        %v1837 = vunpack.c.l.b16 %v469
        %v1838 = vunpack.c.h.b16 %v469
        %v1839 = vunpack.c.l.b16 %v470
        %v1840 = vunpack.c.h.b16 %v470
        %v1841 = vunpack.c.l.b16 %v471
        %v1842 = vunpack.c.h.b16 %v471
        %v1843 = vunpack.c.l.b16 %v472
        %v1844 = vunpack.c.h.b16 %v472
        %v1845 = vunpack.c.l.b16 %v473
        %v1846 = vunpack.c.h.b16 %v473
        %v1847 = vunpack.c.l.b16 %v474
        %v1848 = vunpack.c.h.b16 %v474
        %v1849 = vunpack.c.l.b16 %v475
        %v1850 = vunpack.c.h.b16 %v475
        %v1851 = vunpack.c.l.b16 %v476
        %v1852 = vunpack.c.h.b16 %v476
        %v1853 = vunpack.c.l.b16 %v477
        %v1854 = vunpack.c.h.b16 %v477
        %v1855 = vunpack.c.l.b16 %v478
        %v1856 = vunpack.c.h.b16 %v478
        %v1857 = vunpack.c.l.b16 %v479
        %v1858 = vunpack.c.h.b16 %v479
        %v1859 = vunpack.c.l.b16 %v480
        %v1860 = vunpack.c.h.b16 %v480
        %v1861 = vunpack.c.l.b16 %v481
        %v1862 = vunpack.c.h.b16 %v481
        %v1863 = vunpack.c.l.b16 %v482
        %v1864 = vunpack.c.h.b16 %v482
        %v1865 = vunpack.c.l.b16 %v483
        %v1866 = vunpack.c.h.b16 %v483
        %v1867 = vunpack.c.l.b16 %v484
        %v1868 = vunpack.c.h.b16 %v484
        %v1869 = vunpack.c.l.b16 %v485
        %v1870 = vunpack.c.h.b16 %v485
        %v1871 = vunpack.c.l.b16 %v486
        %v1872 = vunpack.c.h.b16 %v486
        %v1873 = vunpack.c.l.b16 %v487
        %v1874 = vunpack.c.h.b16 %v487
        %v1875 = vunpack.c.l.b16 %v488
        %v1876 = vunpack.c.h.b16 %v488
        %v1877 = vunpack.c.l.b16 %v489
        %v1878 = vunpack.c.h.b16 %v489
        %v1879 = vunpack.c.l.b16 %v490
        %v1880 = vunpack.c.h.b16 %v490
        %v1881 = vunpack.c.l.b16 %v491
        %v1882 = vunpack.c.h.b16 %v491
        %v1883 = vunpack.c.l.b16 %v492
        %v1884 = vunpack.c.h.b16 %v492
        %v1885 = vunpack.c.l.b16 %v493
        %v1886 = vunpack.c.h.b16 %v493
        %v1887 = vunpack.c.l.b16 %v494
        %v1888 = vunpack.c.h.b16 %v494
        %v1889 = vunpack.c.l.b16 %v495
        %v1890 = vunpack.c.h.b16 %v495
        %v1891 = vunpack.c.l.b16 %v496
        %v1892 = vunpack.c.h.b16 %v496
        %v1893 = vunpack.c.l.b16 %v497
        %v1894 = vunpack.c.h.b16 %v497
        %v1895 = vunpack.c.l.b16 %v498
        %v1896 = vunpack.c.h.b16 %v498
        %v1897 = vunpack.c.l.b16 %v499
        %v1898 = vunpack.c.h.b16 %v499
        %v1899 = vunpack.c.l.b16 %v500
        %v1900 = vunpack.c.h.b16 %v500
        %v1901 = vunpack.c.l.b16 %v501
        %v1902 = vunpack.c.h.b16 %v501
        %v1903 = vunpack.c.l.b16 %v502
        %v1904 = vunpack.c.h.b16 %v502
        %v1905 = vunpack.c.l.b16 %v503
        %v1906 = vunpack.c.h.b16 %v503
        %v1907 = vunpack.c.l.b16 %v504
        %v1908 = vunpack.c.h.b16 %v504
        %v1909 = vunpack.c.l.b16 %v505
        %v1910 = vunpack.c.h.b16 %v505
        %v1911 = vunpack.c.l.b16 %v506
        %v1912 = vunpack.c.h.b16 %v506
        %v1913 = vunpack.c.l.b16 %v507
        %v1914 = vunpack.c.h.b16 %v507
        %v1915 = vunpack.c.l.b16 %v508
        %v1916 = vunpack.c.h.b16 %v508
        %v1917 = vunpack.c.l.b16 %v509
        %v1918 = vunpack.c.h.b16 %v509
        %v1919 = vunpack.c.l.b16 %v510
        %v1920 = vunpack.c.h.b16 %v510
        %v1921 = vunpack.c.l.b16 %v511
        %v1922 = vunpack.c.h.b16 %v511
        %v1923 = vunpack.c.l.b16 %v512
        %v1924 = vunpack.c.h.b16 %v512
        %v1925 = vunpack.c.l.b16 %v513
        %v1926 = vunpack.c.h.b16 %v513
        %v1927 = vunpack.c.l.b16 %v514
        %v1928 = vunpack.c.h.b16 %v514
        %v1929 = vunpack.c.l.b16 %v515
        %v1930 = vunpack.c.h.b16 %v515
        %v1931 = vunpack.c.l.b16 %v516
        %v1932 = vunpack.c.h.b16 %v516
        %v1933 = vunpack.c.l.b16 %v517
        %v1934 = vunpack.c.h.b16 %v517
        %v1935 = vunpack.c.l.b16 %v518
        %v1936 = vunpack.c.h.b16 %v518
        %v1937 = vunpack.c.l.b16 %v519
        %v1938 = vunpack.c.h.b16 %v519
        %v1939 = vunpack.c.l.b16 %v520
        %v1940 = vunpack.c.h.b16 %v520
        %v1941 = vunpack.c.l.b16 %v521
        %v1942 = vunpack.c.h.b16 %v521
        %v1943 = vunpack.c.l.b16 %v522
        %v1944 = vunpack.c.h.b16 %v522
        %v1945 = vunpack.c.l.b16 %v523
        %v1946 = vunpack.c.h.b16 %v523
        %v1947 = vunpack.c.l.b16 %v524
        %v1948 = vunpack.c.h.b16 %v524
        %v1949 = vunpack.c.l.b16 %v525
        %v1950 = vunpack.c.h.b16 %v525
        %v1951 = vunpack.c.l.b16 %v526
        %v1952 = vunpack.c.h.b16 %v526
        %v1953 = vunpack.c.l.b16 %v527
        %v1954 = vunpack.c.h.b16 %v527
        %v1955 = vunpack.c.l.b16 %v528
        %v1956 = vunpack.c.h.b16 %v528
        %v1957 = vunpack.c.l.b16 %v529
        %v1958 = vunpack.c.h.b16 %v529
        %v1959 = vunpack.c.l.b16 %v530
        %v1960 = vunpack.c.h.b16 %v530
        %v1961 = vunpack.c.l.b16 %v531
        %v1962 = vunpack.c.h.b16 %v531
        %v1963 = vunpack.c.l.b16 %v532
        %v1964 = vunpack.c.h.b16 %v532
        %v1965 = vunpack.c.l.b16 %v533
        %v1966 = vunpack.c.h.b16 %v533
        %v1967 = vunpack.c.l.b16 %v534
        %v1968 = vunpack.c.h.b16 %v534
        %v1969 = vunpack.c.l.b16 %v535
        %v1970 = vunpack.c.h.b16 %v535
        %v1971 = vunpack.c.l.b16 %v536
        %v1972 = vunpack.c.h.b16 %v536
        %v1973 = vunpack.c.l.b16 %v537
        %v1974 = vunpack.c.h.b16 %v537
        %v1975 = vunpack.c.l.b16 %v538
        %v1976 = vunpack.c.h.b16 %v538
        %v1977 = vunpack.c.l.b16 %v539
        %v1978 = vunpack.c.h.b16 %v539
        %v1979 = vunpack.c.l.b16 %v540
        %v1980 = vunpack.c.h.b16 %v540
        %v1981 = vunpack.c.l.b16 %v541
        %v1982 = vunpack.c.h.b16 %v541
        %v1983 = vunpack.c.l.b16 %v542
        %v1984 = vunpack.c.h.b16 %v542
        %v1985 = vunpack.c.l.b16 %v543
        %v1986 = vunpack.c.h.b16 %v543
        %v1987 = vunpack.c.l.b16 %v544
        %v1988 = vunpack.c.h.b16 %v544
        %v1989 = vunpack.c.l.b16 %v545
        %v1990 = vunpack.c.h.b16 %v545
        %v1991 = vunpack.c.l.b16 %v546
        %v1992 = vunpack.c.h.b16 %v546
        %v1993 = vunpack.c.l.b16 %v547
        %v1994 = vunpack.c.h.b16 %v547
        %v1995 = vunpack.c.l.b16 %v548
        %v1996 = vunpack.c.h.b16 %v548
        %v1997 = vunpack.c.l.b16 %v549
        %v1998 = vunpack.c.h.b16 %v549
        %v1999 = vunpack.c.l.b16 %v550
        %v2000 = vunpack.c.h.b16 %v550
        %v2001 = vunpack.c.l.b16 %v551
        %v2002 = vunpack.c.h.b16 %v551
        %v2003 = vunpack.c.l.b16 %v552
        %v2004 = vunpack.c.h.b16 %v552
        %v2005 = vunpack.c.l.b16 %v553
        %v2006 = vunpack.c.h.b16 %v553
        %v2007 = vunpack.c.l.b16 %v554
        %v2008 = vunpack.c.h.b16 %v554
        %v2009 = vunpack.c.l.b16 %v555
        %v2010 = vunpack.c.h.b16 %v555
        %v2011 = vunpack.c.l.b16 %v556
        %v2012 = vunpack.c.h.b16 %v556
        %v2013 = vunpack.c.l.b16 %v557
        %v2014 = vunpack.c.h.b16 %v557
        %v2015 = vunpack.c.l.b16 %v558
        %v2016 = vunpack.c.h.b16 %v558
        %v2017 = vunpack.c.l.b16 %v559
        %v2018 = vunpack.c.h.b16 %v559
        %v2019 = vunpack.c.l.b16 %v560
        %v2020 = vunpack.c.h.b16 %v560
        %v2021 = vunpack.c.l.b16 %v561
        %v2022 = vunpack.c.h.b16 %v561
        %v2023 = vunpack.c.l.b16 %v562
        %v2024 = vunpack.c.h.b16 %v562
        %v2025 = vunpack.c.l.b16 %v563
        %v2026 = vunpack.c.h.b16 %v563
        %v2027 = vunpack.c.l.b16 %v564
        %v2028 = vunpack.c.h.b16 %v564
        %v2029 = vunpack.c.l.b16 %v565
        %v2030 = vunpack.c.h.b16 %v565
        %v2031 = vunpack.c.l.b16 %v566
        %v2032 = vunpack.c.h.b16 %v566
        %v2033 = vunpack.c.l.b16 %v567
        %v2034 = vunpack.c.h.b16 %v567
        %v2035 = vunpack.c.l.b16 %v568
        %v2036 = vunpack.c.h.b16 %v568
        %v2037 = vunpack.c.l.b16 %v569
        %v2038 = vunpack.c.h.b16 %v569
        %v2039 = vunpack.c.l.b16 %v570
        %v2040 = vunpack.c.h.b16 %v570
        %v2041 = vunpack.c.l.b16 %v571
        %v2042 = vunpack.c.h.b16 %v571
        %v2043 = vunpack.c.l.b16 %v572
        %v2044 = vunpack.c.h.b16 %v572
        %v2045 = vunpack.c.l.b16 %v573
        %v2046 = vunpack.c.h.b16 %v573
        %v2047 = vunpack.c.l.b16 %v574
        %v2048 = vunpack.c.h.b16 %v574
        %v2049 = vunpack.c.l.b16 %v575
        %v2050 = vunpack.c.h.b16 %v575
        %v2051 = vunpack.c.l.b16 %v576
        %v2052 = vunpack.c.h.b16 %v576
        %v2053 = vunpack.c.l.b16 %v577
        %v2054 = vunpack.c.h.b16 %v577
        %v2055 = vunpack.c.l.b16 %v578
        %v2056 = vunpack.c.h.b16 %v578
        %v2057 = vunpack.c.l.b16 %v579
        %v2058 = vunpack.c.h.b16 %v579
        %v2059 = vunpack.c.l.b16 %v580
        %v2060 = vunpack.c.h.b16 %v580
        %v2061 = vunpack.c.l.b16 %v581
        %v2062 = vunpack.c.h.b16 %v581
        %v2063 = vunpack.c.l.b16 %v582
        %v2064 = vunpack.c.h.b16 %v582
        %v2065 = vunpack.c.l.b16 %v583
        %v2066 = vunpack.c.h.b16 %v583
        %v2067 = vunpack.c.l.b16 %v584
        %v2068 = vunpack.c.h.b16 %v584
        %v2069 = vunpack.c.l.b16 %v585
        %v2070 = vunpack.c.h.b16 %v585
        %v2071 = vunpack.c.l.b16 %v586
        %v2072 = vunpack.c.h.b16 %v586
        %v2073 = vunpack.c.l.b16 %v587
        %v2074 = vunpack.c.h.b16 %v587
        %v2075 = vunpack.c.l.b16 %v588
        %v2076 = vunpack.c.h.b16 %v588
        %v2077 = vunpack.c.l.b16 %v589
        %v2078 = vunpack.c.h.b16 %v589
        %v2079 = vunpack.c.l.b16 %v590
        %v2080 = vunpack.c.h.b16 %v590
        %v2081 = vunpack.c.l.b16 %v591
        %v2082 = vunpack.c.h.b16 %v591
        %v2083 = vunpack.c.l.b16 %v592
        %v2084 = vunpack.c.h.b16 %v592
        %v2085 = vunpack.c.l.b16 %v593
        %v2086 = vunpack.c.h.b16 %v593
        %v2087 = vunpack.c.l.b16 %v594
        %v2088 = vunpack.c.h.b16 %v594
        %v2089 = vunpack.c.l.b16 %v595
        %v2090 = vunpack.c.h.b16 %v595
        %v2091 = vunpack.c.l.b16 %v596
        %v2092 = vunpack.c.h.b16 %v596
        %v2093 = vunpack.c.l.b16 %v597
        %v2094 = vunpack.c.h.b16 %v597
        %v2095 = vunpack.c.l.b16 %v598
        %v2096 = vunpack.c.h.b16 %v598
        %v2097 = vunpack.c.l.b16 %v599
        %v2098 = vunpack.c.h.b16 %v599
        %v2099 = vunpack.c.l.b16 %v600
        %v2100 = vunpack.c.h.b16 %v600
        %v2101 = vunpack.c.l.b16 %v601
        %v2102 = vunpack.c.h.b16 %v601
        %v2103 = vunpack.c.l.b16 %v602
        %v2104 = vunpack.c.h.b16 %v602
        %v2105 = vunpack.c.l.b16 %v603
        %v2106 = vunpack.c.h.b16 %v603
        %v2107 = vunpack.c.l.b16 %v604
        %v2108 = vunpack.c.h.b16 %v604
        %v2109 = vunpack.c.l.b16 %v605
        %v2110 = vunpack.c.h.b16 %v605
        %v2111 = vunpack.c.l.b16 %v606
        %v2112 = vunpack.c.h.b16 %v606
        %v2113 = vunpack.c.l.b16 %v607
        %v2114 = vunpack.c.h.b16 %v607
        %v2115 = vunpack.c.l.b16 %v608
        %v2116 = vunpack.c.h.b16 %v608
        %v2117 = vunpack.c.l.b16 %v609
        %v2118 = vunpack.c.h.b16 %v609
        %v2119 = vunpack.c.l.b16 %v610
        %v2120 = vunpack.c.h.b16 %v610
        %v2121 = vunpack.c.l.b16 %v611
        %v2122 = vunpack.c.h.b16 %v611
        %v2123 = vunpack.c.l.b16 %v612
        %v2124 = vunpack.c.h.b16 %v612
        %v2125 = vunpack.c.l.b16 %v613
        %v2126 = vunpack.c.h.b16 %v613
        %v2127 = vunpack.c.l.b16 %v614
        %v2128 = vunpack.c.h.b16 %v614
        %v2129 = vunpack.c.l.b16 %v615
        %v2130 = vunpack.c.h.b16 %v615
        %v2131 = vunpack.c.l.b16 %v616
        %v2132 = vunpack.c.h.b16 %v616
        %v2133 = vunpack.c.l.b16 %v617
        %v2134 = vunpack.c.h.b16 %v617
        %v2135 = vunpack.c.l.b16 %v618
        %v2136 = vunpack.c.h.b16 %v618
        %v2137 = vunpack.c.l.b16 %v619
        %v2138 = vunpack.c.h.b16 %v619
        %v2139 = vunpack.c.l.b16 %v620
        %v2140 = vunpack.c.h.b16 %v620
        %v2141 = vunpack.c.l.b16 %v621
        %v2142 = vunpack.c.h.b16 %v621
        %v2143 = vunpack.c.l.b16 %v622
        %v2144 = vunpack.c.h.b16 %v622
        %v2145 = vunpack.c.l.b16 %v623
        %v2146 = vunpack.c.h.b16 %v623
        %v2147 = vunpack.c.l.b16 %v624
        %v2148 = vunpack.c.h.b16 %v624
        %v2149 = vunpack.c.l.b16 %v625
        %v2150 = vunpack.c.h.b16 %v625
        %v2151 = vunpack.c.l.b16 %v626
        %v2152 = vunpack.c.h.b16 %v626
        %v2153 = vunpack.c.l.b16 %v627
        %v2154 = vunpack.c.h.b16 %v627
        %v2155 = vunpack.c.l.b16 %v628
        %v2156 = vunpack.c.h.b16 %v628
        %v2157 = vunpack.c.l.b16 %v629
        %v2158 = vunpack.c.h.b16 %v629
        %v2159 = vunpack.c.l.b16 %v630
        %v2160 = vunpack.c.h.b16 %v630
        %v2161 = vunpack.c.l.b16 %v631
        %v2162 = vunpack.c.h.b16 %v631
        %v2163 = vunpack.c.l.b16 %v632
        %v2164 = vunpack.c.h.b16 %v632
        %v2165 = vunpack.c.l.b16 %v633
        %v2166 = vunpack.c.h.b16 %v633
        %v2167 = vunpack.c.l.b16 %v634
        %v2168 = vunpack.c.h.b16 %v634
        %v2169 = vunpack.c.l.b16 %v635
        %v2170 = vunpack.c.h.b16 %v635
        %v2171 = vunpack.c.l.b16 %v636
        %v2172 = vunpack.c.h.b16 %v636
        %v2173 = vunpack.c.l.b16 %v637
        %v2174 = vunpack.c.h.b16 %v637
        %v2175 = vunpack.c.l.b16 %v638
        %v2176 = vunpack.c.h.b16 %v638
        %v2177 = vunpack.c.l.b16 %v639
        %v2178 = vunpack.c.h.b16 %v639
        %v2179 = vunpack.c.l.b16 %v640
        %v2180 = vunpack.c.h.b16 %v640
        %v2181 = vunpack.c.l.b16 %v641
        %v2182 = vunpack.c.h.b16 %v641
        %v2183 = vunpack.c.l.b16 %v642
        %v2184 = vunpack.c.h.b16 %v642
        %v2185 = vunpack.c.l.b16 %v643
        %v2186 = vunpack.c.h.b16 %v643
        %v2187 = vunpack.c.l.b16 %v644
        %v2188 = vunpack.c.h.b16 %v644
        %v2189 = vunpack.c.l.b16 %v645
        %v2190 = vunpack.c.h.b16 %v645
        %v2191 = vunpack.c.l.b16 %v646
        %v2192 = vunpack.c.h.b16 %v646
        %v2193 = vunpack.c.l.b16 %v647
        %v2194 = vunpack.c.h.b16 %v647
        %v2195 = vunpack.c.l.b16 %v648
        %v2196 = vunpack.c.h.b16 %v648
        %v2197 = vunpack.c.l.b16 %v649
        %v2198 = vunpack.c.h.b16 %v649
        %v2199 = vunpack.c.l.b16 %v650
        %v2200 = vunpack.c.h.b16 %v650
        %v2201 = vunpack.c.l.b16 %v651
        %v2202 = vunpack.c.h.b16 %v651
        %v2203 = vunpack.c.l.b16 %v652
        %v2204 = vunpack.c.h.b16 %v652
        %v2205 = vunpack.c.l.b16 %v653
        %v2206 = vunpack.c.h.b16 %v653
        %v2207 = vunpack.c.l.b16 %v654
        %v2208 = vunpack.c.h.b16 %v654
        %v2209 = vunpack.c.l.b16 %v655
        %v2210 = vunpack.c.h.b16 %v655
        %v2211 = vunpack.c.l.b16 %v656
        %v2212 = vunpack.c.h.b16 %v656
        %v2213 = vunpack.c.l.b16 %v657
        %v2214 = vunpack.c.h.b16 %v657
        %v2215 = vunpack.c.l.b16 %v658
        %v2216 = vunpack.c.h.b16 %v658
        %v2217 = vunpack.c.l.b16 %v659
        %v2218 = vunpack.c.h.b16 %v659
        %v2219 = vunpack.c.l.b16 %v660
        %v2220 = vunpack.c.h.b16 %v660
        %v2221 = vunpack.c.l.b16 %v661
        %v2222 = vunpack.c.h.b16 %v661
        %v2223 = vunpack.c.l.b16 %v662
        %v2224 = vunpack.c.h.b16 %v662
        %v2225 = vunpack.c.l.b16 %v663
        %v2226 = vunpack.c.h.b16 %v663
        %v2227 = vunpack.c.l.b16 %v664
        %v2228 = vunpack.c.h.b16 %v664
        %v2229 = vunpack.c.l.b16 %v665
        %v2230 = vunpack.c.h.b16 %v665
        %v2231 = vunpack.c.l.b16 %v666
        %v2232 = vunpack.c.h.b16 %v666
        %v2233 = vunpack.c.l.b16 %v667
        %v2234 = vunpack.c.h.b16 %v667
        %v2235 = vunpack.c.l.b16 %v668
        %v2236 = vunpack.c.h.b16 %v668
        %v2237 = vunpack.c.l.b16 %v669
        %v2238 = vunpack.c.h.b16 %v669
        %v2239 = vunpack.c.l.b16 %v670
        %v2240 = vunpack.c.h.b16 %v670
        %v2241 = vunpack.c.l.b16 %v671
        %v2242 = vunpack.c.h.b16 %v671
        %v2243 = vunpack.c.l.b16 %v672
        %v2244 = vunpack.c.h.b16 %v672
        %v2245 = vunpack.c.l.b16 %v673
        %v2246 = vunpack.c.h.b16 %v673
        %v2247 = vunpack.c.l.b16 %v674
        %v2248 = vunpack.c.h.b16 %v674
        %v2249 = vunpack.c.l.b16 %v675
        %v2250 = vunpack.c.h.b16 %v675
        %v2251 = vunpack.c.l.b16 %v676
        %v2252 = vunpack.c.h.b16 %v676
        %v2253 = vunpack.c.l.b16 %v677
        %v2254 = vunpack.c.h.b16 %v677
        %v2255 = vunpack.c.l.b16 %v678
        %v2256 = vunpack.c.h.b16 %v678
        %v2257 = vunpack.c.l.b16 %v679
        %v2258 = vunpack.c.h.b16 %v679
        %v2259 = vunpack.c.l.b16 %v680
        %v2260 = vunpack.c.h.b16 %v680
        %v2261 = vunpack.c.l.b16 %v681
        %v2262 = vunpack.c.h.b16 %v681
        %v2263 = vunpack.c.l.b16 %v682
        %v2264 = vunpack.c.h.b16 %v682
        %v2265 = vunpack.c.l.b16 %v683
        %v2266 = vunpack.c.h.b16 %v683
        %v2267 = vunpack.c.l.b16 %v684
        %v2268 = vunpack.c.h.b16 %v684
        %v2269 = vunpack.c.l.b16 %v685
        %v2270 = vunpack.c.h.b16 %v685
        %v2271 = vunpack.c.l.b16 %v686
        %v2272 = vunpack.c.h.b16 %v686
        %v2273 = vunpack.c.l.b16 %v687
        %v2274 = vunpack.c.h.b16 %v687
        %v2275 = vunpack.c.l.b16 %v688
        %v2276 = vunpack.c.h.b16 %v688
        %v2277 = vunpack.c.l.b16 %v689
        %v2278 = vunpack.c.h.b16 %v689
        %v2279 = vunpack.c.l.b16 %v690
        %v2280 = vunpack.c.h.b16 %v690
        %v2281 = vunpack.c.l.b16 %v691
        %v2282 = vunpack.c.h.b16 %v691
        %v2283 = vunpack.c.l.b16 %v692
        %v2284 = vunpack.c.h.b16 %v692
        %v2285 = vunpack.c.l.b16 %v693
        %v2286 = vunpack.c.h.b16 %v693
        %v2287 = vunpack.c.l.b16 %v694
        %v2288 = vunpack.c.h.b16 %v694
        %v2289 = vunpack.c.l.b16 %v695
        %v2290 = vunpack.c.h.b16 %v695
        %v2291 = vunpack.c.l.b16 %v696
        %v2292 = vunpack.c.h.b16 %v696
        %v2293 = vunpack.c.l.b16 %v697
        %v2294 = vunpack.c.h.b16 %v697
        %v2295 = vunpack.c.l.b16 %v698
        %v2296 = vunpack.c.h.b16 %v698
        %v2297 = vunpack.c.l.b16 %v699
        %v2298 = vunpack.c.h.b16 %v699
        %v2299 = vunpack.c.l.b16 %v700
        %v2300 = vunpack.c.h.b16 %v700
        %v2301 = vunpack.c.l.b16 %v701
        %v2302 = vunpack.c.h.b16 %v701
        %v2303 = vunpack.c.l.b16 %v702
        %v2304 = vunpack.c.h.b16 %v702
        %v2305 = vunpack.c.l.b16 %v703
        %v2306 = vunpack.c.h.b16 %v703
        %v2307 = vunpack.c.l.b16 %v704
        %v2308 = vunpack.c.h.b16 %v704
        %v2309 = vunpack.c.l.b16 %v705
        %v2310 = vunpack.c.h.b16 %v705
        %v2311 = vunpack.c.l.b16 %v706
        %v2312 = vunpack.c.h.b16 %v706
        %v2313 = vunpack.c.l.b16 %v707
        %v2314 = vunpack.c.h.b16 %v707
        %v2315 = vunpack.c.l.b16 %v708
        %v2316 = vunpack.c.h.b16 %v708
        %v2317 = vunpack.c.l.b16 %v709
        %v2318 = vunpack.c.h.b16 %v709
        %v2319 = vunpack.c.l.b16 %v710
        %v2320 = vunpack.c.h.b16 %v710
        %v2321 = vunpack.c.l.b16 %v711
        %v2322 = vunpack.c.h.b16 %v711
        %v2323 = vunpack.c.l.b16 %v712
        %v2324 = vunpack.c.h.b16 %v712
        %v2325 = vunpack.c.l.b16 %v713
        %v2326 = vunpack.c.h.b16 %v713
        %v2327 = vunpack.c.l.b16 %v714
        %v2328 = vunpack.c.h.b16 %v714
        %v2329 = vunpack.c.l.b16 %v715
        %v2330 = vunpack.c.h.b16 %v715
        %v2331 = vunpack.c.l.b16 %v716
        %v2332 = vunpack.c.h.b16 %v716
        %v2333 = vunpack.c.l.b16 %v717
        %v2334 = vunpack.c.h.b16 %v717
        %v2335 = vunpack.c.l.b16 %v718
        %v2336 = vunpack.c.h.b16 %v718
        %v2337 = vunpack.c.l.b16 %v719
        %v2338 = vunpack.c.h.b16 %v719
        %v2339 = vunpack.c.l.b16 %v720
        %v2340 = vunpack.c.h.b16 %v720
        %v2341 = vunpack.c.l.b16 %v721
        %v2342 = vunpack.c.h.b16 %v721
        %v2343 = vunpack.c.l.b16 %v722
        %v2344 = vunpack.c.h.b16 %v722
        %v2345 = vunpack.c.l.b16 %v723
        %v2346 = vunpack.c.h.b16 %v723
        %v2347 = vunpack.c.l.b16 %v724
        %v2348 = vunpack.c.h.b16 %v724
        %v2349 = vunpack.c.l.b16 %v725
        %v2350 = vunpack.c.h.b16 %v725
        %v2351 = vunpack.c.l.b16 %v726
        %v2352 = vunpack.c.h.b16 %v726
        %v2353 = vunpack.c.l.b16 %v727
        %v2354 = vunpack.c.h.b16 %v727
        %v2355 = vunpack.c.l.b16 %v728
        %v2356 = vunpack.c.h.b16 %v728
        %v2357 = vunpack.c.l.b16 %v729
        %v2358 = vunpack.c.h.b16 %v729
        %v2359 = vunpack.c.l.b16 %v730
        %v2360 = vunpack.c.h.b16 %v730
        %v2361 = vunpack.c.l.b16 %v731
        %v2362 = vunpack.c.h.b16 %v731
        %v2363 = vunpack.c.l.b16 %v732
        %v2364 = vunpack.c.h.b16 %v732
        %v2365 = vunpack.c.l.b16 %v733
        %v2366 = vunpack.c.h.b16 %v733
        %v2367 = vunpack.c.l.b16 %v734
        %v2368 = vunpack.c.h.b16 %v734
        %v2369 = vunpack.c.l.b16 %v735
        %v2370 = vunpack.c.h.b16 %v735
        %v2371 = vunpack.c.l.b16 %v736
        %v2372 = vunpack.c.h.b16 %v736
        %v2373 = vunpack.c.l.b16 %v737
        %v2374 = vunpack.c.h.b16 %v737
        %v2375 = vunpack.c.l.b16 %v738
        %v2376 = vunpack.c.h.b16 %v738
        %v2377 = vunpack.c.l.b16 %v739
        %v2378 = vunpack.c.h.b16 %v739
        %v2379 = vunpack.c.l.b16 %v740
        %v2380 = vunpack.c.h.b16 %v740
        %v2381 = vunpack.c.l.b16 %v741
        %v2382 = vunpack.c.h.b16 %v741
        %v2383 = vunpack.c.l.b16 %v742
        %v2384 = vunpack.c.h.b16 %v742
        %v2385 = vunpack.c.l.b16 %v743
        %v2386 = vunpack.c.h.b16 %v743
        %v2387 = vunpack.c.l.b16 %v744
        %v2388 = vunpack.c.h.b16 %v744
        %v2389 = vunpack.c.l.b16 %v745
        %v2390 = vunpack.c.h.b16 %v745
        %v2391 = vunpack.c.l.b16 %v746
        %v2392 = vunpack.c.h.b16 %v746
        %v2393 = vunpack.c.l.b16 %v747
        %v2394 = vunpack.c.h.b16 %v747
        %v2395 = vunpack.c.l.b16 %v748
        %v2396 = vunpack.c.h.b16 %v748
        %v2397 = vunpack.c.l.b16 %v749
        %v2398 = vunpack.c.h.b16 %v749
        %v2399 = vunpack.c.l.b16 %v750
        %v2400 = vunpack.c.h.b16 %v750
        %v2401 = vunpack.c.l.b16 %v751
        %v2402 = vunpack.c.h.b16 %v751
        %v2403 = vunpack.c.l.b16 %v752
        %v2404 = vunpack.c.h.b16 %v752
        %v2405 = vunpack.c.l.b16 %v753
        %v2406 = vunpack.c.h.b16 %v753
        %v2407 = vunpack.c.l.b16 %v754
        %v2408 = vunpack.c.h.b16 %v754
        %v2409 = vunpack.c.l.b16 %v755
        %v2410 = vunpack.c.h.b16 %v755
        %v2411 = vunpack.c.l.b16 %v756
        %v2412 = vunpack.c.h.b16 %v756
        %v2413 = vunpack.c.l.b16 %v757
        %v2414 = vunpack.c.h.b16 %v757
        %v2415 = vunpack.c.l.b16 %v758
        %v2416 = vunpack.c.h.b16 %v758
        %v2417 = vunpack.c.l.b16 %v759
        %v2418 = vunpack.c.h.b16 %v759
        %v2419 = vunpack.c.l.b16 %v760
        %v2420 = vunpack.c.h.b16 %v760
        %v2421 = vunpack.c.l.b16 %v761
        %v2422 = vunpack.c.h.b16 %v761
        %v2423 = vunpack.c.l.b16 %v762
        %v2424 = vunpack.c.h.b16 %v762
        %v2425 = vunpack.c.l.b16 %v763
        %v2426 = vunpack.c.h.b16 %v763
        %v2427 = vunpack.c.l.b16 %v764
        %v2428 = vunpack.c.h.b16 %v764
        %v2429 = vunpack.c.l.b16 %v765
        %v2430 = vunpack.c.h.b16 %v765
        %v2431 = vunpack.c.l.b16 %v766
        %v2432 = vunpack.c.h.b16 %v766
        %v2433 = vunpack.c.l.b16 %v767
        %v2434 = vunpack.c.h.b16 %v767
        %v2435 = vunpack.c.l.b16 %v768
        %v2436 = vunpack.c.h.b16 %v768
        %v2437 = vunpack.c.l.b16 %v769
        %v2438 = vunpack.c.h.b16 %v769
        %v2439 = vunpack.c.l.b16 %v770
        %v2440 = vunpack.c.h.b16 %v770
        %v2441 = vunpack.c.l.b16 %v771
        %v2442 = vunpack.c.h.b16 %v771
        %v2443 = vunpack.c.l.b16 %v772
        %v2444 = vunpack.c.h.b16 %v772
        %v2445 = vunpack.c.l.b16 %v773
        %v2446 = vunpack.c.h.b16 %v773
        %v2447 = vunpack.c.l.b16 %v774
        %v2448 = vunpack.c.h.b16 %v774
        %v2449 = vunpack.c.l.b16 %v775
        %v2450 = vunpack.c.h.b16 %v775
        %v2451 = vunpack.c.l.b16 %v776
        %v2452 = vunpack.c.h.b16 %v776
        %v2453 = vunpack.c.l.b16 %v777
        %v2454 = vunpack.c.h.b16 %v777
        %v2455 = vunpack.c.l.b16 %v778
        %v2456 = vunpack.c.h.b16 %v778
        %v2457 = vunpack.c.l.b16 %v779
        %v2458 = vunpack.c.h.b16 %v779
        %v2459 = vunpack.c.l.b16 %v780
        %v2460 = vunpack.c.h.b16 %v780
        %v2461 = vunpack.c.l.b16 %v781
        %v2462 = vunpack.c.h.b16 %v781
        %v2463 = vunpack.c.l.b16 %v782
        %v2464 = vunpack.c.h.b16 %v782
        %v2465 = vunpack.c.l.b16 %v783
        %v2466 = vunpack.c.h.b16 %v783
        %v2467 = vunpack.c.l.b16 %v784
        %v2468 = vunpack.c.h.b16 %v784
        %v2469 = vunpack.c.l.b16 %v785
        %v2470 = vunpack.c.h.b16 %v785
        %v2471 = vunpack.c.l.b16 %v786
        %v2472 = vunpack.c.h.b16 %v786
        %v2473 = vunpack.c.l.b16 %v787
        %v2474 = vunpack.c.h.b16 %v787
        %v2475 = vunpack.c.l.b16 %v788
        %v2476 = vunpack.c.h.b16 %v788
        %v2477 = vunpack.c.l.b16 %v789
        %v2478 = vunpack.c.h.b16 %v789
        %v2479 = vunpack.c.l.b16 %v790
        %v2480 = vunpack.c.h.b16 %v790
        %v2481 = vunpack.c.l.b16 %v791
        %v2482 = vunpack.c.h.b16 %v791
        %v2483 = vunpack.c.l.b16 %v792
        %v2484 = vunpack.c.h.b16 %v792
        %v2485 = vunpack.c.l.b16 %v793
        %v2486 = vunpack.c.h.b16 %v793
        %v2487 = vunpack.c.l.b16 %v794
        %v2488 = vunpack.c.h.b16 %v794
        %v2489 = vunpack.c.l.b16 %v795
        %v2490 = vunpack.c.h.b16 %v795
        %v2491 = vunpack.c.l.b16 %v796
        %v2492 = vunpack.c.h.b16 %v796
        %v2493 = vunpack.c.l.b16 %v797
        %v2494 = vunpack.c.h.b16 %v797
        %v2495 = vunpack.c.l.b16 %v798
        %v2496 = vunpack.c.h.b16 %v798
        %v2497 = vunpack.c.l.b16 %v799
        %v2498 = vunpack.c.h.b16 %v799
        %v2499 = vunpack.c.l.b16 %v800
        %v2500 = vunpack.c.h.b16 %v800
        %v2501 = vunpack.c.l.b16 %v801
        %v2502 = vunpack.c.h.b16 %v801
        %v2503 = vunpack.c.l.b16 %v802
        %v2504 = vunpack.c.h.b16 %v802
        %v2505 = vunpack.c.l.b16 %v803
        %v2506 = vunpack.c.h.b16 %v803
        %v2507 = vunpack.c.l.b16 %v804
        %v2508 = vunpack.c.h.b16 %v804
        %v2509 = vunpack.c.l.b16 %v805
        %v2510 = vunpack.c.h.b16 %v805
        %v2511 = vunpack.c.l.b16 %v806
        %v2512 = vunpack.c.h.b16 %v806
        %v2513 = vunpack.c.l.b16 %v807
        %v2514 = vunpack.c.h.b16 %v807
        %v2515 = vunpack.c.l.b16 %v808
        %v2516 = vunpack.c.h.b16 %v808
        %v2517 = vunpack.c.l.b16 %v809
        %v2518 = vunpack.c.h.b16 %v809
        %v2519 = vunpack.c.l.b16 %v810
        %v2520 = vunpack.c.h.b16 %v810
        %v2521 = vunpack.c.l.b16 %v811
        %v2522 = vunpack.c.h.b16 %v811
        %v2523 = vunpack.c.l.b16 %v812
        %v2524 = vunpack.c.h.b16 %v812
        %v2525 = vunpack.c.l.b16 %v813
        %v2526 = vunpack.c.h.b16 %v813
        %v2527 = vunpack.c.l.b16 %v814
        %v2528 = vunpack.c.h.b16 %v814
        %v2529 = vunpack.c.l.b16 %v815
        %v2530 = vunpack.c.h.b16 %v815
        %v2531 = vunpack.c.l.b16 %v816
        %v2532 = vunpack.c.h.b16 %v816
        %v2533 = vunpack.c.l.b16 %v817
        %v2534 = vunpack.c.h.b16 %v817
        %v2535 = vunpack.c.l.b16 %v818
        %v2536 = vunpack.c.h.b16 %v818
        %v2537 = vunpack.c.l.b16 %v819
        %v2538 = vunpack.c.h.b16 %v819
        %v2539 = vunpack.c.l.b16 %v820
        %v2540 = vunpack.c.h.b16 %v820
        %v2541 = vunpack.c.l.b16 %v821
        %v2542 = vunpack.c.h.b16 %v821
        %v2543 = vunpack.c.l.b16 %v822
        %v2544 = vunpack.c.h.b16 %v822
        %v2545 = vunpack.c.l.b16 %v823
        %v2546 = vunpack.c.h.b16 %v823
        %v2547 = vunpack.c.l.b16 %v824
        %v2548 = vunpack.c.h.b16 %v824
        %v2549 = vunpack.c.l.b16 %v825
        %v2550 = vunpack.c.h.b16 %v825
        %v2551 = vunpack.c.l.b16 %v826
        %v2552 = vunpack.c.h.b16 %v826
        %v2553 = vunpack.c.l.b16 %v827
        %v2554 = vunpack.c.h.b16 %v827
        %v2555 = vunpack.c.l.b16 %v828
        %v2556 = vunpack.c.h.b16 %v828
        %v2557 = vunpack.c.l.b16 %v829
        %v2558 = vunpack.c.h.b16 %v829
        %v2559 = vunpack.c.l.b16 %v830
        %v2560 = vunpack.c.h.b16 %v830
        %v2561 = vunpack.c.l.b16 %v831
        %v2562 = vunpack.c.h.b16 %v831
        %v2563 = vunpack.c.l.b16 %v832
        %v2564 = vunpack.c.h.b16 %v832
        %v2565 = vunpack.c.l.b16 %v833
        %v2566 = vunpack.c.h.b16 %v833
        %v2567 = vunpack.c.l.b16 %v834
        %v2568 = vunpack.c.h.b16 %v834
        %v2569 = vunpack.c.l.b16 %v835
        %v2570 = vunpack.c.h.b16 %v835
        %v2571 = vunpack.c.l.b16 %v836
        %v2572 = vunpack.c.h.b16 %v836
        %v2573 = vunpack.c.l.b16 %v837
        %v2574 = vunpack.c.h.b16 %v837
        %v2575 = vunpack.c.l.b16 %v838
        %v2576 = vunpack.c.h.b16 %v838
        %v2577 = vunpack.c.l.b16 %v839
        %v2578 = vunpack.c.h.b16 %v839
        %v2579 = vunpack.c.l.b16 %v840
        %v2580 = vunpack.c.h.b16 %v840
        %v2581 = vunpack.c.l.b16 %v841
        %v2582 = vunpack.c.h.b16 %v841
        %v2583 = vunpack.c.l.b16 %v842
        %v2584 = vunpack.c.h.b16 %v842
        %v2585 = vunpack.c.l.b16 %v843
        %v2586 = vunpack.c.h.b16 %v843
        %v2587 = vunpack.c.l.b16 %v844
        %v2588 = vunpack.c.h.b16 %v844
        %v2589 = vunpack.c.l.b16 %v845
        %v2590 = vunpack.c.h.b16 %v845
        %v2591 = vunpack.c.l.b16 %v846
        %v2592 = vunpack.c.h.b16 %v846
        %v2593 = vunpack.c.l.b16 %v847
        %v2594 = vunpack.c.h.b16 %v847
        %v2595 = vunpack.c.l.b16 %v848
        %v2596 = vunpack.c.h.b16 %v848
        %v2597 = vunpack.c.l.b16 %v849
        %v2598 = vunpack.c.h.b16 %v849
        %v2599 = vunpack.c.l.b16 %v850
        %v2600 = vunpack.c.h.b16 %v850
        %v2601 = vunpack.c.l.b16 %v851
        %v2602 = vunpack.c.h.b16 %v851
        %v2603 = vpack.c.b16 %v1517, %v1515
        %v2604 = vpack.c.b16 %v1518, %v1516
        %v2605 = vpack.c.b16 %v1521, %v1519
        %v2606 = vpack.c.b16 %v1522, %v1520
        %v2607 = vpack.c.b16 %v1525, %v1523
        %v2608 = vpack.c.b16 %v1526, %v1524
        %v2609 = vpack.c.b16 %v1529, %v1527
        %v2610 = vpack.c.b16 %v1530, %v1528
        %v2611 = vpack.c.b16 %v1533, %v1531
        %v2612 = vpack.c.b16 %v1534, %v1532
        %v2613 = vpack.c.b16 %v1537, %v1535
        %v2614 = vpack.c.b16 %v1538, %v1536
        %v2615 = vpack.c.b16 %v1541, %v1539
        %v2616 = vpack.c.b16 %v1542, %v1540
        %v2617 = vpack.c.b16 %v1545, %v1543
        %v2618 = vpack.c.b16 %v1546, %v1544
        %v2619 = vpack.c.b16 %v1549, %v1547
        %v2620 = vpack.c.b16 %v1550, %v1548
        %v2621 = vpack.c.b16 %v1553, %v1551
        %v2622 = vpack.c.b16 %v1554, %v1552
        %v2623 = vpack.c.b16 %v1557, %v1555
        %v2624 = vpack.c.b16 %v1558, %v1556
        %v2625 = vpack.c.b16 %v1561, %v1559
        %v2626 = vpack.c.b16 %v1562, %v1560
        %v2627 = vpack.c.b16 %v1565, %v1563
        %v2628 = vpack.c.b16 %v1566, %v1564
        %v2629 = vpack.c.b16 %v1569, %v1567
        %v2630 = vpack.c.b16 %v1570, %v1568
        %v2631 = vpack.c.b16 %v1573, %v1571
        %v2632 = vpack.c.b16 %v1574, %v1572
        %v2633 = vpack.c.b16 %v1577, %v1575
        %v2634 = vpack.c.b16 %v1578, %v1576
        %v2635 = vpack.c.b16 %v1581, %v1579
        %v2636 = vpack.c.b16 %v1582, %v1580
        %v2637 = vpack.c.b16 %v1585, %v1583
        %v2638 = vpack.c.b16 %v1586, %v1584
        %v2639 = vpack.c.b16 %v1589, %v1587
        %v2640 = vpack.c.b16 %v1590, %v1588
        %v2641 = vpack.c.b16 %v1593, %v1591
        %v2642 = vpack.c.b16 %v1594, %v1592
        %v2643 = vpack.c.b16 %v1597, %v1595
        %v2644 = vpack.c.b16 %v1598, %v1596
        %v2645 = vpack.c.b16 %v1601, %v1599
        %v2646 = vpack.c.b16 %v1602, %v1600
        %v2647 = vpack.c.b16 %v1605, %v1603
        %v2648 = vpack.c.b16 %v1606, %v1604
        %v2649 = vpack.c.b16 %v1609, %v1607
        %v2650 = vpack.c.b16 %v1610, %v1608
        %v2651 = vpack.c.b16 %v1613, %v1611
        %v2652 = vpack.c.b16 %v1614, %v1612
        %v2653 = vpack.c.b16 %v1617, %v1615
        %v2654 = vpack.c.b16 %v1618, %v1616
        %v2655 = vpack.c.b16 %v1621, %v1619
        %v2656 = vpack.c.b16 %v1622, %v1620
        %v2657 = vpack.c.b16 %v1625, %v1623
        %v2658 = vpack.c.b16 %v1626, %v1624
        %v2659 = vpack.c.b16 %v1629, %v1627
        %v2660 = vpack.c.b16 %v1630, %v1628
        %v2661 = vpack.c.b16 %v1633, %v1631
        %v2662 = vpack.c.b16 %v1634, %v1632
        %v2663 = vpack.c.b16 %v1637, %v1635
        %v2664 = vpack.c.b16 %v1638, %v1636
        %v2665 = vpack.c.b16 %v1641, %v1639
        %v2666 = vpack.c.b16 %v1642, %v1640
        %v2667 = vpack.c.b16 %v1645, %v1643
        %v2668 = vpack.c.b16 %v1646, %v1644
        %v2669 = vpack.c.b16 %v1649, %v1647
        %v2670 = vpack.c.b16 %v1650, %v1648
        %v2671 = vpack.c.b16 %v1653, %v1651
        %v2672 = vpack.c.b16 %v1654, %v1652
        %v2673 = vpack.c.b16 %v1657, %v1655
        %v2674 = vpack.c.b16 %v1658, %v1656
        %v2675 = vpack.c.b16 %v1661, %v1659
        %v2676 = vpack.c.b16 %v1662, %v1660
        %v2677 = vpack.c.b16 %v1665, %v1663
        %v2678 = vpack.c.b16 %v1666, %v1664
        %v2679 = vpack.c.b16 %v1669, %v1667
        %v2680 = vpack.c.b16 %v1670, %v1668
        %v2681 = vpack.c.b16 %v1673, %v1671
        %v2682 = vpack.c.b16 %v1674, %v1672
        %v2683 = vpack.c.b16 %v1677, %v1675
        %v2684 = vpack.c.b16 %v1678, %v1676
        %v2685 = vpack.c.b16 %v1681, %v1679
        %v2686 = vpack.c.b16 %v1682, %v1680
        %v2687 = vpack.c.b16 %v1685, %v1683
        %v2688 = vpack.c.b16 %v1686, %v1684
        %v2689 = vpack.c.b16 %v1689, %v1687
        %v2690 = vpack.c.b16 %v1690, %v1688
        %v2691 = vpack.c.b16 %v1693, %v1691
        %v2692 = vpack.c.b16 %v1694, %v1692
        %v2693 = vpack.c.b16 %v1697, %v1695
        %v2694 = vpack.c.b16 %v1698, %v1696
        %v2695 = vpack.c.b16 %v1701, %v1699
        %v2696 = vpack.c.b16 %v1702, %v1700
        %v2697 = vpack.c.b16 %v1705, %v1703
        %v2698 = vpack.c.b16 %v1706, %v1704
        %v2699 = vpack.c.b16 %v1709, %v1707
        %v2700 = vpack.c.b16 %v1710, %v1708
        %v2701 = vpack.c.b16 %v1713, %v1711
        %v2702 = vpack.c.b16 %v1714, %v1712
        %v2703 = vpack.c.b16 %v1717, %v1715
        %v2704 = vpack.c.b16 %v1718, %v1716
        %v2705 = vpack.c.b16 %v1721, %v1719
        %v2706 = vpack.c.b16 %v1722, %v1720
        %v2707 = vpack.c.b16 %v1725, %v1723
        %v2708 = vpack.c.b16 %v1726, %v1724
        %v2709 = vpack.c.b16 %v1729, %v1727
        %v2710 = vpack.c.b16 %v1730, %v1728
        %v2711 = vpack.c.b16 %v1733, %v1731
        %v2712 = vpack.c.b16 %v1734, %v1732
        %v2713 = vpack.c.b16 %v1737, %v1735
        %v2714 = vpack.c.b16 %v1738, %v1736
        %v2715 = vpack.c.b16 %v1741, %v1739
        %v2716 = vpack.c.b16 %v1742, %v1740
        %v2717 = vpack.c.b16 %v1745, %v1743
        %v2718 = vpack.c.b16 %v1746, %v1744
        %v2719 = vpack.c.b16 %v1749, %v1747
        %v2720 = vpack.c.b16 %v1750, %v1748
        %v2721 = vpack.c.b16 %v1753, %v1751
        %v2722 = vpack.c.b16 %v1754, %v1752
        %v2723 = vpack.c.b16 %v1757, %v1755
        %v2724 = vpack.c.b16 %v1758, %v1756
        %v2725 = vpack.c.b16 %v1761, %v1759
        %v2726 = vpack.c.b16 %v1762, %v1760
        %v2727 = vpack.c.b16 %v1765, %v1763
        %v2728 = vpack.c.b16 %v1766, %v1764
        %v2729 = vpack.c.b16 %v1769, %v1767
        %v2730 = vpack.c.b16 %v1770, %v1768
        %v2731 = vpack.c.b16 %v1773, %v1771
        %v2732 = vpack.c.b16 %v1774, %v1772
        %v2733 = vpack.c.b16 %v1777, %v1775
        %v2734 = vpack.c.b16 %v1778, %v1776
        %v2735 = vpack.c.b16 %v1781, %v1779
        %v2736 = vpack.c.b16 %v1782, %v1780
        %v2737 = vpack.c.b16 %v1785, %v1783
        %v2738 = vpack.c.b16 %v1786, %v1784
        %v2739 = vpack.c.b16 %v1789, %v1787
        %v2740 = vpack.c.b16 %v1790, %v1788
        %v2741 = vpack.c.b16 %v1793, %v1791
        %v2742 = vpack.c.b16 %v1794, %v1792
        %v2743 = vpack.c.b16 %v1797, %v1795
        %v2744 = vpack.c.b16 %v1798, %v1796
        %v2745 = vpack.c.b16 %v1801, %v1799
        %v2746 = vpack.c.b16 %v1802, %v1800
        %v2747 = vpack.c.b16 %v1805, %v1803
        %v2748 = vpack.c.b16 %v1806, %v1804
        %v2749 = vpack.c.b16 %v1809, %v1807
        %v2750 = vpack.c.b16 %v1810, %v1808
        %v2751 = vpack.c.b16 %v1813, %v1811
        %v2752 = vpack.c.b16 %v1814, %v1812
        %v2753 = vpack.c.b16 %v1817, %v1815
        %v2754 = vpack.c.b16 %v1818, %v1816
        %v2755 = vpack.c.b16 %v1821, %v1819
        %v2756 = vpack.c.b16 %v1822, %v1820
        %v2757 = vpack.c.b16 %v1825, %v1823
        %v2758 = vpack.c.b16 %v1826, %v1824
        %v2759 = vpack.c.b16 %v1829, %v1827
        %v2760 = vpack.c.b16 %v1830, %v1828
        %v2761 = vpack.c.b16 %v1833, %v1831
        %v2762 = vpack.c.b16 %v1834, %v1832
        %v2763 = vpack.c.b16 %v1837, %v1835
        %v2764 = vpack.c.b16 %v1838, %v1836
        %v2765 = vpack.c.b16 %v1841, %v1839
        %v2766 = vpack.c.b16 %v1842, %v1840
        %v2767 = vpack.c.b16 %v1845, %v1843
        %v2768 = vpack.c.b16 %v1846, %v1844
        %v2769 = vpack.c.b16 %v1849, %v1847
        %v2770 = vpack.c.b16 %v1850, %v1848
        %v2771 = vpack.c.b16 %v1853, %v1851
        %v2772 = vpack.c.b16 %v1854, %v1852
        %v2773 = vpack.c.b16 %v1857, %v1855
        %v2774 = vpack.c.b16 %v1858, %v1856
        %v2775 = vpack.c.b16 %v1861, %v1859
        %v2776 = vpack.c.b16 %v1862, %v1860
        %v2777 = vpack.c.b16 %v1865, %v1863
        %v2778 = vpack.c.b16 %v1866, %v1864
        %v2779 = vpack.c.b16 %v1869, %v1867
        %v2780 = vpack.c.b16 %v1870, %v1868
        %v2781 = vpack.c.b16 %v1873, %v1871
        %v2782 = vpack.c.b16 %v1874, %v1872
        %v2783 = vpack.c.b16 %v1877, %v1875
        %v2784 = vpack.c.b16 %v1878, %v1876
        %v2785 = vpack.c.b16 %v1881, %v1879
        %v2786 = vpack.c.b16 %v1882, %v1880
        %v2787 = vpack.c.b16 %v1885, %v1883
        %v2788 = vpack.c.b16 %v1886, %v1884
        %v2789 = vpack.c.b16 %v1889, %v1887
        %v2790 = vpack.c.b16 %v1890, %v1888
        %v2791 = vpack.c.b16 %v1893, %v1891
        %v2792 = vpack.c.b16 %v1894, %v1892
        %v2793 = vpack.c.b16 %v1897, %v1895
        %v2794 = vpack.c.b16 %v1898, %v1896
        %v2795 = vpack.c.b16 %v1901, %v1899
        %v2796 = vpack.c.b16 %v1902, %v1900
        %v2797 = vpack.c.b16 %v1905, %v1903
        %v2798 = vpack.c.b16 %v1906, %v1904
        %v2799 = vpack.c.b16 %v1909, %v1907
        %v2800 = vpack.c.b16 %v1910, %v1908
        %v2801 = vpack.c.b16 %v1913, %v1911
        %v2802 = vpack.c.b16 %v1914, %v1912
        %v2803 = vpack.c.b16 %v1917, %v1915
        %v2804 = vpack.c.b16 %v1918, %v1916
        %v2805 = vpack.c.b16 %v1921, %v1919
        %v2806 = vpack.c.b16 %v1922, %v1920
        %v2807 = vpack.c.b16 %v1925, %v1923
        %v2808 = vpack.c.b16 %v1926, %v1924
        %v2809 = vpack.c.b16 %v1929, %v1927
        %v2810 = vpack.c.b16 %v1930, %v1928
        %v2811 = vpack.c.b16 %v1933, %v1931
        %v2812 = vpack.c.b16 %v1934, %v1932
        %v2813 = vpack.c.b16 %v1937, %v1935
        %v2814 = vpack.c.b16 %v1938, %v1936
        %v2815 = vpack.c.b16 %v1941, %v1939
        %v2816 = vpack.c.b16 %v1942, %v1940
        %v2817 = vpack.c.b16 %v1945, %v1943
        %v2818 = vpack.c.b16 %v1946, %v1944
        %v2819 = vpack.c.b16 %v1949, %v1947
        %v2820 = vpack.c.b16 %v1950, %v1948
        %v2821 = vpack.c.b16 %v1953, %v1951
        %v2822 = vpack.c.b16 %v1954, %v1952
        %v2823 = vpack.c.b16 %v1957, %v1955
        %v2824 = vpack.c.b16 %v1958, %v1956
        %v2825 = vpack.c.b16 %v1961, %v1959
        %v2826 = vpack.c.b16 %v1962, %v1960
        %v2827 = vpack.c.b16 %v1965, %v1963
        %v2828 = vpack.c.b16 %v1966, %v1964
        %v2829 = vpack.c.b16 %v1969, %v1967
        %v2830 = vpack.c.b16 %v1970, %v1968
        %v2831 = vpack.c.b16 %v1973, %v1971
        %v2832 = vpack.c.b16 %v1974, %v1972
        %v2833 = vpack.c.b16 %v1977, %v1975
        %v2834 = vpack.c.b16 %v1978, %v1976
        %v2835 = vpack.c.b16 %v1981, %v1979
        %v2836 = vpack.c.b16 %v1982, %v1980
        %v2837 = vpack.c.b16 %v1985, %v1983
        %v2838 = vpack.c.b16 %v1986, %v1984
        %v2839 = vpack.c.b16 %v1989, %v1987
        %v2840 = vpack.c.b16 %v1990, %v1988
        %v2841 = vpack.c.b16 %v1993, %v1991
        %v2842 = vpack.c.b16 %v1994, %v1992
        %v2843 = vpack.c.b16 %v1997, %v1995
        %v2844 = vpack.c.b16 %v1998, %v1996
        %v2845 = vpack.c.b16 %v2001, %v1999
        %v2846 = vpack.c.b16 %v2002, %v2000
        %v2847 = vpack.c.b16 %v2005, %v2003
        %v2848 = vpack.c.b16 %v2006, %v2004
        %v2849 = vpack.c.b16 %v2009, %v2007
        %v2850 = vpack.c.b16 %v2010, %v2008
        %v2851 = vpack.c.b16 %v2013, %v2011
        %v2852 = vpack.c.b16 %v2014, %v2012
        %v2853 = vpack.c.b16 %v2017, %v2015
        %v2854 = vpack.c.b16 %v2018, %v2016
        %v2855 = vpack.c.b16 %v2021, %v2019
        %v2856 = vpack.c.b16 %v2022, %v2020
        %v2857 = vpack.c.b16 %v2025, %v2023
        %v2858 = vpack.c.b16 %v2026, %v2024
        %v2859 = vpack.c.b16 %v2029, %v2027
        %v2860 = vpack.c.b16 %v2030, %v2028
        %v2861 = vpack.c.b16 %v2033, %v2031
        %v2862 = vpack.c.b16 %v2034, %v2032
        %v2863 = vpack.c.b16 %v2037, %v2035
        %v2864 = vpack.c.b16 %v2038, %v2036
        %v2865 = vpack.c.b16 %v2041, %v2039
        %v2866 = vpack.c.b16 %v2042, %v2040
        %v2867 = vpack.c.b16 %v2045, %v2043
        %v2868 = vpack.c.b16 %v2046, %v2044
        %v2869 = vpack.c.b16 %v2049, %v2047
        %v2870 = vpack.c.b16 %v2050, %v2048
        %v2871 = vpack.c.b16 %v2053, %v2051
        %v2872 = vpack.c.b16 %v2054, %v2052
        %v2873 = vpack.c.b16 %v2057, %v2055
        %v2874 = vpack.c.b16 %v2058, %v2056
        %v2875 = vpack.c.b16 %v2061, %v2059
        %v2876 = vpack.c.b16 %v2062, %v2060
        %v2877 = vpack.c.b16 %v2065, %v2063
        %v2878 = vpack.c.b16 %v2066, %v2064
        %v2879 = vpack.c.b16 %v2069, %v2067
        %v2880 = vpack.c.b16 %v2070, %v2068
        %v2881 = vpack.c.b16 %v2073, %v2071
        %v2882 = vpack.c.b16 %v2074, %v2072
        %v2883 = vpack.c.b16 %v2077, %v2075
        %v2884 = vpack.c.b16 %v2078, %v2076
        %v2885 = vpack.c.b16 %v2081, %v2079
        %v2886 = vpack.c.b16 %v2082, %v2080
        %v2887 = vpack.c.b16 %v2085, %v2083
        %v2888 = vpack.c.b16 %v2086, %v2084
        %v2889 = vpack.c.b16 %v2089, %v2087
        %v2890 = vpack.c.b16 %v2090, %v2088
        %v2891 = vpack.c.b16 %v2093, %v2091
        %v2892 = vpack.c.b16 %v2094, %v2092
        %v2893 = vpack.c.b16 %v2097, %v2095
        %v2894 = vpack.c.b16 %v2098, %v2096
        %v2895 = vpack.c.b16 %v2101, %v2099
        %v2896 = vpack.c.b16 %v2102, %v2100
        %v2897 = vpack.c.b16 %v2105, %v2103
        %v2898 = vpack.c.b16 %v2106, %v2104
        %v2899 = vpack.c.b16 %v2109, %v2107
        %v2900 = vpack.c.b16 %v2110, %v2108
        %v2901 = vpack.c.b16 %v2113, %v2111
        %v2902 = vpack.c.b16 %v2114, %v2112
        %v2903 = vpack.c.b16 %v2117, %v2115
        %v2904 = vpack.c.b16 %v2118, %v2116
        %v2905 = vpack.c.b16 %v2121, %v2119
        %v2906 = vpack.c.b16 %v2122, %v2120
        %v2907 = vpack.c.b16 %v2125, %v2123
        %v2908 = vpack.c.b16 %v2126, %v2124
        %v2909 = vpack.c.b16 %v2129, %v2127
        %v2910 = vpack.c.b16 %v2130, %v2128
        %v2911 = vpack.c.b16 %v2133, %v2131
        %v2912 = vpack.c.b16 %v2134, %v2132
        %v2913 = vpack.c.b16 %v2137, %v2135
        %v2914 = vpack.c.b16 %v2138, %v2136
        %v2915 = vpack.c.b16 %v2141, %v2139
        %v2916 = vpack.c.b16 %v2142, %v2140
        %v2917 = vpack.c.b16 %v2145, %v2143
        %v2918 = vpack.c.b16 %v2146, %v2144
        %v2919 = vpack.c.b16 %v2149, %v2147
        %v2920 = vpack.c.b16 %v2150, %v2148
        %v2921 = vpack.c.b16 %v2153, %v2151
        %v2922 = vpack.c.b16 %v2154, %v2152
        %v2923 = vpack.c.b16 %v2157, %v2155
        %v2924 = vpack.c.b16 %v2158, %v2156
        %v2925 = vpack.c.b16 %v2161, %v2159
        %v2926 = vpack.c.b16 %v2162, %v2160
        %v2927 = vpack.c.b16 %v2165, %v2163
        %v2928 = vpack.c.b16 %v2166, %v2164
        %v2929 = vpack.c.b16 %v2169, %v2167
        %v2930 = vpack.c.b16 %v2170, %v2168
        %v2931 = vpack.c.b16 %v2173, %v2171
        %v2932 = vpack.c.b16 %v2174, %v2172
        %v2933 = vpack.c.b16 %v2177, %v2175
        %v2934 = vpack.c.b16 %v2178, %v2176
        %v2935 = vpack.c.b16 %v2181, %v2179
        %v2936 = vpack.c.b16 %v2182, %v2180
        %v2937 = vpack.c.b16 %v2185, %v2183
        %v2938 = vpack.c.b16 %v2186, %v2184
        %v2939 = vpack.c.b16 %v2189, %v2187
        %v2940 = vpack.c.b16 %v2190, %v2188
        %v2941 = vpack.c.b16 %v2193, %v2191
        %v2942 = vpack.c.b16 %v2194, %v2192
        %v2943 = vpack.c.b16 %v2197, %v2195
        %v2944 = vpack.c.b16 %v2198, %v2196
        %v2945 = vpack.c.b16 %v2201, %v2199
        %v2946 = vpack.c.b16 %v2202, %v2200
        %v2947 = vpack.c.b16 %v2205, %v2203
        %v2948 = vpack.c.b16 %v2206, %v2204
        %v2949 = vpack.c.b16 %v2209, %v2207
        %v2950 = vpack.c.b16 %v2210, %v2208
        %v2951 = vpack.c.b16 %v2213, %v2211
        %v2952 = vpack.c.b16 %v2214, %v2212
        %v2953 = vpack.c.b16 %v2217, %v2215
        %v2954 = vpack.c.b16 %v2218, %v2216
        %v2955 = vpack.c.b16 %v2221, %v2219
        %v2956 = vpack.c.b16 %v2222, %v2220
        %v2957 = vpack.c.b16 %v2225, %v2223
        %v2958 = vpack.c.b16 %v2226, %v2224
        %v2959 = vpack.c.b16 %v2229, %v2227
        %v2960 = vpack.c.b16 %v2230, %v2228
        %v2961 = vpack.c.b16 %v2233, %v2231
        %v2962 = vpack.c.b16 %v2234, %v2232
        %v2963 = vpack.c.b16 %v2237, %v2235
        %v2964 = vpack.c.b16 %v2238, %v2236
        %v2965 = vpack.c.b16 %v2241, %v2239
        %v2966 = vpack.c.b16 %v2242, %v2240
        %v2967 = vpack.c.b16 %v2245, %v2243
        %v2968 = vpack.c.b16 %v2246, %v2244
        %v2969 = vpack.c.b16 %v2249, %v2247
        %v2970 = vpack.c.b16 %v2250, %v2248
        %v2971 = vpack.c.b16 %v2253, %v2251
        %v2972 = vpack.c.b16 %v2254, %v2252
        %v2973 = vpack.c.b16 %v2257, %v2255
        %v2974 = vpack.c.b16 %v2258, %v2256
        %v2975 = vpack.c.b16 %v2261, %v2259
        %v2976 = vpack.c.b16 %v2262, %v2260
        %v2977 = vpack.c.b16 %v2265, %v2263
        %v2978 = vpack.c.b16 %v2266, %v2264
        %v2979 = vpack.c.b16 %v2269, %v2267
        %v2980 = vpack.c.b16 %v2270, %v2268
        %v2981 = vpack.c.b16 %v2273, %v2271
        %v2982 = vpack.c.b16 %v2274, %v2272
        %v2983 = vpack.c.b16 %v2277, %v2275
        %v2984 = vpack.c.b16 %v2278, %v2276
        %v2985 = vpack.c.b16 %v2281, %v2279
        %v2986 = vpack.c.b16 %v2282, %v2280
        %v2987 = vpack.c.b16 %v2285, %v2283
        %v2988 = vpack.c.b16 %v2286, %v2284
        %v2989 = vpack.c.b16 %v2289, %v2287
        %v2990 = vpack.c.b16 %v2290, %v2288
        %v2991 = vpack.c.b16 %v2293, %v2291
        %v2992 = vpack.c.b16 %v2294, %v2292
        %v2993 = vpack.c.b16 %v2297, %v2295
        %v2994 = vpack.c.b16 %v2298, %v2296
        %v2995 = vpack.c.b16 %v2301, %v2299
        %v2996 = vpack.c.b16 %v2302, %v2300
        %v2997 = vpack.c.b16 %v2305, %v2303
        %v2998 = vpack.c.b16 %v2306, %v2304
        %v2999 = vpack.c.b16 %v2309, %v2307
        %v3000 = vpack.c.b16 %v2310, %v2308
        %v3001 = vpack.c.b16 %v2313, %v2311
        %v3002 = vpack.c.b16 %v2314, %v2312
        %v3003 = vpack.c.b16 %v2317, %v2315
        %v3004 = vpack.c.b16 %v2318, %v2316
        %v3005 = vpack.c.b16 %v2321, %v2319
        %v3006 = vpack.c.b16 %v2322, %v2320
        %v3007 = vpack.c.b16 %v2325, %v2323
        %v3008 = vpack.c.b16 %v2326, %v2324
        %v3009 = vpack.c.b16 %v2329, %v2327
        %v3010 = vpack.c.b16 %v2330, %v2328
        %v3011 = vpack.c.b16 %v2333, %v2331
        %v3012 = vpack.c.b16 %v2334, %v2332
        %v3013 = vpack.c.b16 %v2337, %v2335
        %v3014 = vpack.c.b16 %v2338, %v2336
        %v3015 = vpack.c.b16 %v2341, %v2339
        %v3016 = vpack.c.b16 %v2342, %v2340
        %v3017 = vpack.c.b16 %v2345, %v2343
        %v3018 = vpack.c.b16 %v2346, %v2344
        %v3019 = vpack.c.b16 %v2349, %v2347
        %v3020 = vpack.c.b16 %v2350, %v2348
        %v3021 = vpack.c.b16 %v2353, %v2351
        %v3022 = vpack.c.b16 %v2354, %v2352
        %v3023 = vpack.c.b16 %v2357, %v2355
        %v3024 = vpack.c.b16 %v2358, %v2356
        %v3025 = vpack.c.b16 %v2361, %v2359
        %v3026 = vpack.c.b16 %v2362, %v2360
        %v3027 = vpack.c.b16 %v2365, %v2363
        %v3028 = vpack.c.b16 %v2366, %v2364
        %v3029 = vpack.c.b16 %v2369, %v2367
        %v3030 = vpack.c.b16 %v2370, %v2368
        %v3031 = vpack.c.b16 %v2373, %v2371
        %v3032 = vpack.c.b16 %v2374, %v2372
        %v3033 = vpack.c.b16 %v2377, %v2375
        %v3034 = vpack.c.b16 %v2378, %v2376
        %v3035 = vpack.c.b16 %v2381, %v2379
        %v3036 = vpack.c.b16 %v2382, %v2380
        %v3037 = vpack.c.b16 %v2385, %v2383
        %v3038 = vpack.c.b16 %v2386, %v2384
        %v3039 = vpack.c.b16 %v2389, %v2387
        %v3040 = vpack.c.b16 %v2390, %v2388
        %v3041 = vpack.c.b16 %v2393, %v2391
        %v3042 = vpack.c.b16 %v2394, %v2392
        %v3043 = vpack.c.b16 %v2397, %v2395
        %v3044 = vpack.c.b16 %v2398, %v2396
        %v3045 = vpack.c.b16 %v2401, %v2399
        %v3046 = vpack.c.b16 %v2402, %v2400
        %v3047 = vpack.c.b16 %v2405, %v2403
        %v3048 = vpack.c.b16 %v2406, %v2404
        %v3049 = vpack.c.b16 %v2409, %v2407
        %v3050 = vpack.c.b16 %v2410, %v2408
        %v3051 = vpack.c.b16 %v2413, %v2411
        %v3052 = vpack.c.b16 %v2414, %v2412
        %v3053 = vpack.c.b16 %v2417, %v2415
        %v3054 = vpack.c.b16 %v2418, %v2416
        %v3055 = vpack.c.b16 %v2421, %v2419
        %v3056 = vpack.c.b16 %v2422, %v2420
        %v3057 = vpack.c.b16 %v2425, %v2423
        %v3058 = vpack.c.b16 %v2426, %v2424
        %v3059 = vpack.c.b16 %v2429, %v2427
        %v3060 = vpack.c.b16 %v2430, %v2428
        %v3061 = vpack.c.b16 %v2433, %v2431
        %v3062 = vpack.c.b16 %v2434, %v2432
        %v3063 = vpack.c.b16 %v2437, %v2435
        %v3064 = vpack.c.b16 %v2438, %v2436
        %v3065 = vpack.c.b16 %v2441, %v2439
        %v3066 = vpack.c.b16 %v2442, %v2440
        %v3067 = vpack.c.b16 %v2445, %v2443
        %v3068 = vpack.c.b16 %v2446, %v2444
        %v3069 = vpack.c.b16 %v2449, %v2447
        %v3070 = vpack.c.b16 %v2450, %v2448
        %v3071 = vpack.c.b16 %v2453, %v2451
        %v3072 = vpack.c.b16 %v2454, %v2452
        %v3073 = vpack.c.b16 %v2457, %v2455
        %v3074 = vpack.c.b16 %v2458, %v2456
        %v3075 = vpack.c.b16 %v2461, %v2459
        %v3076 = vpack.c.b16 %v2462, %v2460
        %v3077 = vpack.c.b16 %v2465, %v2463
        %v3078 = vpack.c.b16 %v2466, %v2464
        %v3079 = vpack.c.b16 %v2469, %v2467
        %v3080 = vpack.c.b16 %v2470, %v2468
        %v3081 = vpack.c.b16 %v2473, %v2471
        %v3082 = vpack.c.b16 %v2474, %v2472
        %v3083 = vpack.c.b16 %v2477, %v2475
        %v3084 = vpack.c.b16 %v2478, %v2476
        %v3085 = vpack.c.b16 %v2481, %v2479
        %v3086 = vpack.c.b16 %v2482, %v2480
        %v3087 = vpack.c.b16 %v2485, %v2483
        %v3088 = vpack.c.b16 %v2486, %v2484
        %v3089 = vpack.c.b16 %v2489, %v2487
        %v3090 = vpack.c.b16 %v2490, %v2488
        %v3091 = vpack.c.b16 %v2493, %v2491
        %v3092 = vpack.c.b16 %v2494, %v2492
        %v3093 = vpack.c.b16 %v2497, %v2495
        %v3094 = vpack.c.b16 %v2498, %v2496
        %v3095 = vpack.c.b16 %v2501, %v2499
        %v3096 = vpack.c.b16 %v2502, %v2500
        %v3097 = vpack.c.b16 %v2505, %v2503
        %v3098 = vpack.c.b16 %v2506, %v2504
        %v3099 = vpack.c.b16 %v2509, %v2507
        %v3100 = vpack.c.b16 %v2510, %v2508
        %v3101 = vpack.c.b16 %v2513, %v2511
        %v3102 = vpack.c.b16 %v2514, %v2512
        %v3103 = vpack.c.b16 %v2517, %v2515
        %v3104 = vpack.c.b16 %v2518, %v2516
        %v3105 = vpack.c.b16 %v2521, %v2519
        %v3106 = vpack.c.b16 %v2522, %v2520
        %v3107 = vpack.c.b16 %v2525, %v2523
        %v3108 = vpack.c.b16 %v2526, %v2524
        %v3109 = vpack.c.b16 %v2529, %v2527
        %v3110 = vpack.c.b16 %v2530, %v2528
        %v3111 = vpack.c.b16 %v2533, %v2531
        %v3112 = vpack.c.b16 %v2534, %v2532
        %v3113 = vpack.c.b16 %v2537, %v2535
        %v3114 = vpack.c.b16 %v2538, %v2536
        %v3115 = vpack.c.b16 %v2541, %v2539
        %v3116 = vpack.c.b16 %v2542, %v2540
        %v3117 = vpack.c.b16 %v2545, %v2543
        %v3118 = vpack.c.b16 %v2546, %v2544
        %v3119 = vpack.c.b16 %v2549, %v2547
        %v3120 = vpack.c.b16 %v2550, %v2548
        %v3121 = vpack.c.b16 %v2553, %v2551
        %v3122 = vpack.c.b16 %v2554, %v2552
        %v3123 = vpack.c.b16 %v2557, %v2555
        %v3124 = vpack.c.b16 %v2558, %v2556
        %v3125 = vpack.c.b16 %v2561, %v2559
        %v3126 = vpack.c.b16 %v2562, %v2560
        %v3127 = vpack.c.b16 %v2565, %v2563
        %v3128 = vpack.c.b16 %v2566, %v2564
        %v3129 = vpack.c.b16 %v2569, %v2567
        %v3130 = vpack.c.b16 %v2570, %v2568
        %v3131 = vpack.c.b16 %v2573, %v2571
        %v3132 = vpack.c.b16 %v2574, %v2572
        %v3133 = vpack.c.b16 %v2577, %v2575
        %v3134 = vpack.c.b16 %v2578, %v2576
        %v3135 = vpack.c.b16 %v2581, %v2579
        %v3136 = vpack.c.b16 %v2582, %v2580
        %v3137 = vpack.c.b16 %v2585, %v2583
        %v3138 = vpack.c.b16 %v2586, %v2584
        %v3139 = vpack.c.b16 %v2589, %v2587
        %v3140 = vpack.c.b16 %v2590, %v2588
        %v3141 = vpack.c.b16 %v2593, %v2591
        %v3142 = vpack.c.b16 %v2594, %v2592
        %v3143 = vpack.c.b16 %v2597, %v2595
        %v3144 = vpack.c.b16 %v2598, %v2596
        %v3145 = vpack.c.b16 %v2601, %v2599
        %v3146 = vpack.c.b16 %v2602, %v2600
        %3691 = vmatprep.subr.bf16.mxu0 %v2604
        %3692 = vmatpush1.bf16.msra.mxu0 %v2603
        %3693 = vmatprep.subr.bf16.mxu0 %v2606
        %3694 = vmatpush1.bf16.msra.mxu0 %v2605
        %3695 = vmatprep.subr.bf16.mxu0 %v2608
        %3696 = vmatpush1.bf16.msra.mxu0 %v2607
        %3697 = vmatprep.subr.bf16.mxu0 %v2610
        %3698 = vmatpush1.bf16.msra.mxu0 %v2609
        %3699 = vmatprep.subr.bf16.mxu0 %v2612
        %3700 = vmatpush1.bf16.msra.mxu0 %v2611
        %3701 = vmatprep.subr.bf16.mxu0 %v2614
        %3702 = vmatpush1.bf16.msra.mxu0 %v2613
        %3703 = vmatprep.subr.bf16.mxu0 %v2616
        %3704 = vmatpush1.bf16.msra.mxu0 %v2615
        %3705 = vmatprep.subr.bf16.mxu0 %v2618
        %3706 = vmatpush1.bf16.msra.mxu0 %v2617
        %3707 = vmatprep.subr.bf16.mxu0 %v2620
        %3708 = vmatpush1.bf16.msra.mxu0 %v2619
        %3709 = vmatprep.subr.bf16.mxu0 %v2622
        %3710 = vmatpush1.bf16.msra.mxu0 %v2621
        %3711 = vmatprep.subr.bf16.mxu0 %v2624
        %3712 = vmatpush1.bf16.msra.mxu0 %v2623
        %3713 = vmatprep.subr.bf16.mxu0 %v2626
        %3714 = vmatpush1.bf16.msra.mxu0 %v2625
        %3715 = vmatprep.subr.bf16.mxu0 %v2628
        %3716 = vmatpush1.bf16.msra.mxu0 %v2627
        %3717 = vmatprep.subr.bf16.mxu0 %v2630
        %3718 = vmatpush1.bf16.msra.mxu0 %v2629
        %3719 = vmatprep.subr.bf16.mxu0 %v2632
        %3720 = vmatpush1.bf16.msra.mxu0 %v2631
        %3721 = vmatprep.subr.bf16.mxu0 %v2634
        %3722 = vmatpush1.bf16.msra.mxu0 %v2633
        %3723 = vmatprep.mubr.bf16.mxu0 %v904
        %3724 = vmatmul.mubr.bf16.gmra.mrb[0].mxu0 %v903
        %v3725 = vpop.f32.mrb[0].mxu0
        %v3726 = vadd.f32 0.0, %v3725
        %v3727 = vpop.f32.mrb[0].mxu0
        %v3728 = vadd.f32 0.0, %v3727
        %v3729 = vpop.f32.mrb[0].mxu0
        %v3730 = vpop.f32.mrb[0].mxu0
        %3731 = vdwg.mxu0
        %3732 = vmatprep.subr.bf16.mxu0 %v2636
        %3733 = vmatpush1.bf16.msra.mxu0 %v2635
        %3734 = vmatprep.subr.bf16.mxu0 %v2638
        %3735 = vmatpush1.bf16.msra.mxu0 %v2637
        %3736 = vmatprep.subr.bf16.mxu0 %v2640
        %3737 = vmatpush1.bf16.msra.mxu0 %v2639
        %3738 = vmatprep.subr.bf16.mxu0 %v2642
        %3739 = vmatpush1.bf16.msra.mxu0 %v2641
        %3740 = vmatprep.subr.bf16.mxu0 %v2644
        %3741 = vmatpush1.bf16.msra.mxu0 %v2643
        %3742 = vmatprep.subr.bf16.mxu0 %v2646
        %3743 = vmatpush1.bf16.msra.mxu0 %v2645
        %3744 = vmatprep.subr.bf16.mxu0 %v2648
        %3745 = vmatpush1.bf16.msra.mxu0 %v2647
        %3746 = vmatprep.subr.bf16.mxu0 %v2650
        %3747 = vmatpush1.bf16.msra.mxu0 %v2649
        %3748 = vmatprep.subr.bf16.mxu0 %v2652
        %3749 = vmatpush1.bf16.msra.mxu0 %v2651
        %3750 = vmatprep.subr.bf16.mxu0 %v2654
        %3751 = vmatpush1.bf16.msra.mxu0 %v2653
        %3752 = vmatprep.subr.bf16.mxu0 %v2656
        %3753 = vmatpush1.bf16.msra.mxu0 %v2655
        %3754 = vmatprep.subr.bf16.mxu0 %v2658
        %3755 = vmatpush1.bf16.msra.mxu0 %v2657
        %3756 = vmatprep.subr.bf16.mxu0 %v2660
        %3757 = vmatpush1.bf16.msra.mxu0 %v2659
        %3758 = vmatprep.subr.bf16.mxu0 %v2662
        %3759 = vmatpush1.bf16.msra.mxu0 %v2661
        %3760 = vmatprep.subr.bf16.mxu0 %v2664
        %3761 = vmatpush1.bf16.msra.mxu0 %v2663
        %3762 = vmatprep.subr.bf16.mxu0 %v2666
        %3763 = vmatpush1.bf16.msra.mxu0 %v2665
        %3764 = vmatprep.mubr.bf16.mxu0 %v906
        %3765 = vmatmul.mubr.bf16.gmra.mrb[0].mxu0 %v905
        %v3766 = vpop.f32.mrb[0].mxu0
        %v3767 = vadd.f32 %v3726, %v3766
        %v3768 = vpop.f32.mrb[0].mxu0
        %v3769 = vadd.f32 %v3728, %v3768
        %v3770 = vpop.f32.mrb[0].mxu0
        %v3771 = vpop.f32.mrb[0].mxu0
        %3772 = vdwg.mxu0
        %3773 = vmatprep.subr.bf16.mxu0 %v2668
        %3774 = vmatpush1.bf16.msra.mxu0 %v2667
        %3775 = vmatprep.subr.bf16.mxu0 %v2670
        %3776 = vmatpush1.bf16.msra.mxu0 %v2669
        %3777 = vmatprep.subr.bf16.mxu0 %v2672
        %3778 = vmatpush1.bf16.msra.mxu0 %v2671
        %3779 = vmatprep.subr.bf16.mxu0 %v2674
        %3780 = vmatpush1.bf16.msra.mxu0 %v2673
        %3781 = vmatprep.subr.bf16.mxu0 %v2676
        %3782 = vmatpush1.bf16.msra.mxu0 %v2675
        %3783 = vmatprep.subr.bf16.mxu0 %v2678
        %3784 = vmatpush1.bf16.msra.mxu0 %v2677
        %3785 = vmatprep.subr.bf16.mxu0 %v2680
        %3786 = vmatpush1.bf16.msra.mxu0 %v2679
        %3787 = vmatprep.subr.bf16.mxu0 %v2682
        %3788 = vmatpush1.bf16.msra.mxu0 %v2681
        %3789 = vmatprep.subr.bf16.mxu0 %v2684
        %3790 = vmatpush1.bf16.msra.mxu0 %v2683
        %3791 = vmatprep.subr.bf16.mxu0 %v2686
        %3792 = vmatpush1.bf16.msra.mxu0 %v2685
        %3793 = vmatprep.subr.bf16.mxu0 %v2688
        %3794 = vmatpush1.bf16.msra.mxu0 %v2687
        %3795 = vmatprep.subr.bf16.mxu0 %v2690
        %3796 = vmatpush1.bf16.msra.mxu0 %v2689
        %3797 = vmatprep.subr.bf16.mxu0 %v2692
        %3798 = vmatpush1.bf16.msra.mxu0 %v2691
        %3799 = vmatprep.subr.bf16.mxu0 %v2694
        %3800 = vmatpush1.bf16.msra.mxu0 %v2693
        %3801 = vmatprep.subr.bf16.mxu0 %v2696
        %3802 = vmatpush1.bf16.msra.mxu0 %v2695
        %3803 = vmatprep.subr.bf16.mxu0 %v2698
        %3804 = vmatpush1.bf16.msra.mxu0 %v2697
        %3805 = vmatprep.mubr.bf16.mxu0 %v908
        %3806 = vmatmul.mubr.bf16.gmra.mrb[0].mxu0 %v907
        %v3807 = vpop.f32.mrb[0].mxu0
        %v3808 = vadd.f32 %v3767, %v3807
        %v3809 = vpop.f32.mrb[0].mxu0
        %v3810 = vadd.f32 %v3769, %v3809
        %v3811 = vpop.f32.mrb[0].mxu0
        %v3812 = vpop.f32.mrb[0].mxu0
        %3813 = vdwg.mxu0
        %3814 = vmatprep.subr.bf16.mxu0 %v2700
        %3815 = vmatpush1.bf16.msra.mxu0 %v2699
        %3816 = vmatprep.subr.bf16.mxu0 %v2702
        %3817 = vmatpush1.bf16.msra.mxu0 %v2701
        %3818 = vmatprep.subr.bf16.mxu0 %v2704
        %3819 = vmatpush1.bf16.msra.mxu0 %v2703
        %3820 = vmatprep.subr.bf16.mxu0 %v2706
        %3821 = vmatpush1.bf16.msra.mxu0 %v2705
        %3822 = vmatprep.subr.bf16.mxu0 %v2708
        %3823 = vmatpush1.bf16.msra.mxu0 %v2707
        %3824 = vmatprep.subr.bf16.mxu0 %v2710
        %3825 = vmatpush1.bf16.msra.mxu0 %v2709
        %3826 = vmatprep.subr.bf16.mxu0 %v2712
        %3827 = vmatpush1.bf16.msra.mxu0 %v2711
        %3828 = vmatprep.subr.bf16.mxu0 %v2714
        %3829 = vmatpush1.bf16.msra.mxu0 %v2713
        %3830 = vmatprep.subr.bf16.mxu0 %v2716
        %3831 = vmatpush1.bf16.msra.mxu0 %v2715
        %3832 = vmatprep.subr.bf16.mxu0 %v2718
        %3833 = vmatpush1.bf16.msra.mxu0 %v2717
        %3834 = vmatprep.subr.bf16.mxu0 %v2720
        %3835 = vmatpush1.bf16.msra.mxu0 %v2719
        %3836 = vmatprep.subr.bf16.mxu0 %v2722
        %3837 = vmatpush1.bf16.msra.mxu0 %v2721
        %3838 = vmatprep.subr.bf16.mxu0 %v2724
        %3839 = vmatpush1.bf16.msra.mxu0 %v2723
        %3840 = vmatprep.subr.bf16.mxu0 %v2726
        %3841 = vmatpush1.bf16.msra.mxu0 %v2725
        %3842 = vmatprep.subr.bf16.mxu0 %v2728
        %3843 = vmatpush1.bf16.msra.mxu0 %v2727
        %3844 = vmatprep.subr.bf16.mxu0 %v2730
        %3845 = vmatpush1.bf16.msra.mxu0 %v2729
        %3846 = vmatprep.mubr.bf16.mxu0 %v910
        %3847 = vmatmul.mubr.bf16.gmra.mrb[0].mxu0 %v909
        %v3848 = vpop.f32.mrb[0].mxu0
        %v3849 = vadd.f32 %v3808, %v3848
        %v3850 = vpop.f32.mrb[0].mxu0
        %v3851 = vadd.f32 %v3810, %v3850
        %v3852 = vpop.f32.mrb[0].mxu0
        %v3853 = vpop.f32.mrb[0].mxu0
        %3854 = vdwg.mxu0
        %3855 = vmatprep.subr.bf16.mxu0 %v2732
        %3856 = vmatpush1.bf16.msra.mxu0 %v2731
        %3857 = vmatprep.subr.bf16.mxu0 %v2734
        %3858 = vmatpush1.bf16.msra.mxu0 %v2733
        %3859 = vmatprep.subr.bf16.mxu0 %v2736
        %3860 = vmatpush1.bf16.msra.mxu0 %v2735
        %3861 = vmatprep.subr.bf16.mxu0 %v2738
        %3862 = vmatpush1.bf16.msra.mxu0 %v2737
        %3863 = vmatprep.subr.bf16.mxu0 %v2740
        %3864 = vmatpush1.bf16.msra.mxu0 %v2739
        %3865 = vmatprep.subr.bf16.mxu0 %v2742
        %3866 = vmatpush1.bf16.msra.mxu0 %v2741
        %3867 = vmatprep.subr.bf16.mxu0 %v2744
        %3868 = vmatpush1.bf16.msra.mxu0 %v2743
        %3869 = vmatprep.subr.bf16.mxu0 %v2746
        %3870 = vmatpush1.bf16.msra.mxu0 %v2745
        %3871 = vmatprep.subr.bf16.mxu0 %v2748
        %3872 = vmatpush1.bf16.msra.mxu0 %v2747
        %3873 = vmatprep.subr.bf16.mxu0 %v2750
        %3874 = vmatpush1.bf16.msra.mxu0 %v2749
        %3875 = vmatprep.subr.bf16.mxu0 %v2752
        %3876 = vmatpush1.bf16.msra.mxu0 %v2751
        %3877 = vmatprep.subr.bf16.mxu0 %v2754
        %3878 = vmatpush1.bf16.msra.mxu0 %v2753
        %3879 = vmatprep.subr.bf16.mxu0 %v2756
        %3880 = vmatpush1.bf16.msra.mxu0 %v2755
        %3881 = vmatprep.subr.bf16.mxu0 %v2758
        %3882 = vmatpush1.bf16.msra.mxu0 %v2757
        %3883 = vmatprep.subr.bf16.mxu0 %v2760
        %3884 = vmatpush1.bf16.msra.mxu0 %v2759
        %3885 = vmatprep.subr.bf16.mxu0 %v2762
        %3886 = vmatpush1.bf16.msra.mxu0 %v2761
        %3887 = vmatprep.mubr.bf16.mxu0 %v912
        %3888 = vmatmul.mubr.bf16.gmra.mrb[0].mxu0 %v911
        %v3889 = vpop.f32.mrb[0].mxu0
        %v3890 = vadd.f32 %v3849, %v3889
        %v3891 = vpop.f32.mrb[0].mxu0
        %v3892 = vadd.f32 %v3851, %v3891
        %v3893 = vpop.f32.mrb[0].mxu0
        %v3894 = vpop.f32.mrb[0].mxu0
        %3895 = vdwg.mxu0
        %3896 = vmatprep.subr.bf16.mxu0 %v2764
        %3897 = vmatpush1.bf16.msra.mxu0 %v2763
        %3898 = vmatprep.subr.bf16.mxu0 %v2766
        %3899 = vmatpush1.bf16.msra.mxu0 %v2765
        %3900 = vmatprep.subr.bf16.mxu0 %v2768
        %3901 = vmatpush1.bf16.msra.mxu0 %v2767
        %3902 = vmatprep.subr.bf16.mxu0 %v2770
        %3903 = vmatpush1.bf16.msra.mxu0 %v2769
        %3904 = vmatprep.subr.bf16.mxu0 %v2772
        %3905 = vmatpush1.bf16.msra.mxu0 %v2771
        %3906 = vmatprep.subr.bf16.mxu0 %v2774
        %3907 = vmatpush1.bf16.msra.mxu0 %v2773
        %3908 = vmatprep.subr.bf16.mxu0 %v2776
        %3909 = vmatpush1.bf16.msra.mxu0 %v2775
        %3910 = vmatprep.subr.bf16.mxu0 %v2778
        %3911 = vmatpush1.bf16.msra.mxu0 %v2777
        %3912 = vmatprep.subr.bf16.mxu0 %v2780
        %3913 = vmatpush1.bf16.msra.mxu0 %v2779
        %3914 = vmatprep.subr.bf16.mxu0 %v2782
        %3915 = vmatpush1.bf16.msra.mxu0 %v2781
        %3916 = vmatprep.subr.bf16.mxu0 %v2784
        %3917 = vmatpush1.bf16.msra.mxu0 %v2783
        %3918 = vmatprep.subr.bf16.mxu0 %v2786
        %3919 = vmatpush1.bf16.msra.mxu0 %v2785
        %3920 = vmatprep.subr.bf16.mxu0 %v2788
        %3921 = vmatpush1.bf16.msra.mxu0 %v2787
        %3922 = vmatprep.subr.bf16.mxu0 %v2790
        %3923 = vmatpush1.bf16.msra.mxu0 %v2789
        %3924 = vmatprep.subr.bf16.mxu0 %v2792
        %3925 = vmatpush1.bf16.msra.mxu0 %v2791
        %3926 = vmatprep.subr.bf16.mxu0 %v2794
        %3927 = vmatpush1.bf16.msra.mxu0 %v2793
        %3928 = vmatprep.mubr.bf16.mxu0 %v914
        %3929 = vmatmul.mubr.bf16.gmra.mrb[0].mxu0 %v913
        %v3930 = vpop.f32.mrb[0].mxu0
        %v3931 = vadd.f32 %v3890, %v3930
        %v3932 = vpop.f32.mrb[0].mxu0
        %v3933 = vadd.f32 %v3892, %v3932
        %v3934 = vpop.f32.mrb[0].mxu0
        %v3935 = vpop.f32.mrb[0].mxu0
        %3936 = vdwg.mxu0
        %3937 = vmatprep.subr.bf16.mxu0 %v2796
        %3938 = vmatpush1.bf16.msra.mxu0 %v2795
        %3939 = vmatprep.subr.bf16.mxu0 %v2798
        %3940 = vmatpush1.bf16.msra.mxu0 %v2797
        %3941 = vmatprep.subr.bf16.mxu0 %v2800
        %3942 = vmatpush1.bf16.msra.mxu0 %v2799
        %3943 = vmatprep.subr.bf16.mxu0 %v2802
        %3944 = vmatpush1.bf16.msra.mxu0 %v2801
        %3945 = vmatprep.subr.bf16.mxu0 %v2804
        %3946 = vmatpush1.bf16.msra.mxu0 %v2803
        %3947 = vmatprep.subr.bf16.mxu0 %v2806
        %3948 = vmatpush1.bf16.msra.mxu0 %v2805
        %3949 = vmatprep.subr.bf16.mxu0 %v2808
        %3950 = vmatpush1.bf16.msra.mxu0 %v2807
        %3951 = vmatprep.subr.bf16.mxu0 %v2810
        %3952 = vmatpush1.bf16.msra.mxu0 %v2809
        %3953 = vmatprep.subr.bf16.mxu0 %v2812
        %3954 = vmatpush1.bf16.msra.mxu0 %v2811
        %3955 = vmatprep.subr.bf16.mxu0 %v2814
        %3956 = vmatpush1.bf16.msra.mxu0 %v2813
        %3957 = vmatprep.subr.bf16.mxu0 %v2816
        %3958 = vmatpush1.bf16.msra.mxu0 %v2815
        %3959 = vmatprep.subr.bf16.mxu0 %v2818
        %3960 = vmatpush1.bf16.msra.mxu0 %v2817
        %3961 = vmatprep.subr.bf16.mxu0 %v2820
        %3962 = vmatpush1.bf16.msra.mxu0 %v2819
        %3963 = vmatprep.subr.bf16.mxu0 %v2822
        %3964 = vmatpush1.bf16.msra.mxu0 %v2821
        %3965 = vmatprep.subr.bf16.mxu0 %v2824
        %3966 = vmatpush1.bf16.msra.mxu0 %v2823
        %3967 = vmatprep.subr.bf16.mxu0 %v2826
        %3968 = vmatpush1.bf16.msra.mxu0 %v2825
        %3969 = vmatprep.mubr.bf16.mxu0 %v916
        %3970 = vmatmul.mubr.bf16.gmra.mrb[0].mxu0 %v915
        %v3971 = vpop.f32.mrb[0].mxu0
        %v3972 = vadd.f32 %v3931, %v3971
        %v3973 = vpop.f32.mrb[0].mxu0
        %v3974 = vadd.f32 %v3933, %v3973
        %v3975 = vpop.f32.mrb[0].mxu0
        %v3976 = vpop.f32.mrb[0].mxu0
        %3977 = vdwg.mxu0
        %3978 = vmatprep.subr.bf16.mxu0 %v2828
        %3979 = vmatpush1.bf16.msra.mxu0 %v2827
        %3980 = vmatprep.subr.bf16.mxu0 %v2830
        %3981 = vmatpush1.bf16.msra.mxu0 %v2829
        %3982 = vmatprep.subr.bf16.mxu0 %v2832
        %3983 = vmatpush1.bf16.msra.mxu0 %v2831
        %3984 = vmatprep.subr.bf16.mxu0 %v2834
        %3985 = vmatpush1.bf16.msra.mxu0 %v2833
        %3986 = vmatprep.subr.bf16.mxu0 %v2836
        %3987 = vmatpush1.bf16.msra.mxu0 %v2835
        %3988 = vmatprep.subr.bf16.mxu0 %v2838
        %3989 = vmatpush1.bf16.msra.mxu0 %v2837
        %3990 = vmatprep.subr.bf16.mxu0 %v2840
        %3991 = vmatpush1.bf16.msra.mxu0 %v2839
        %3992 = vmatprep.subr.bf16.mxu0 %v2842
        %3993 = vmatpush1.bf16.msra.mxu0 %v2841
        %3994 = vmatprep.subr.bf16.mxu0 %v2844
        %3995 = vmatpush1.bf16.msra.mxu0 %v2843
        %3996 = vmatprep.subr.bf16.mxu0 %v2846
        %3997 = vmatpush1.bf16.msra.mxu0 %v2845
        %3998 = vmatprep.subr.bf16.mxu0 %v2848
        %3999 = vmatpush1.bf16.msra.mxu0 %v2847
        %4000 = vmatprep.subr.bf16.mxu0 %v2850
        %4001 = vmatpush1.bf16.msra.mxu0 %v2849
        %4002 = vmatprep.subr.bf16.mxu0 %v2852
        %4003 = vmatpush1.bf16.msra.mxu0 %v2851
        %4004 = vmatprep.subr.bf16.mxu0 %v2854
        %4005 = vmatpush1.bf16.msra.mxu0 %v2853
        %4006 = vmatprep.subr.bf16.mxu0 %v2856
        %4007 = vmatpush1.bf16.msra.mxu0 %v2855
        %4008 = vmatprep.subr.bf16.mxu0 %v2858
        %4009 = vmatpush1.bf16.msra.mxu0 %v2857
        %4010 = vmatprep.mubr.bf16.mxu0 %v918
        %4011 = vmatmul.mubr.bf16.gmra.mrb[0].mxu0 %v917
        %v4012 = vpop.f32.mrb[0].mxu0
        %v4013 = vadd.f32 %v3972, %v4012
        %v4014 = vpop.f32.mrb[0].mxu0
        %v4015 = vadd.f32 %v3974, %v4014
        %v4016 = vpop.f32.mrb[0].mxu0
        %v4017 = vpop.f32.mrb[0].mxu0
        %4018 = vdwg.mxu0
        %4019 = vmatprep.subr.bf16.mxu0 %v2860
        %4020 = vmatpush1.bf16.msra.mxu0 %v2859
        %4021 = vmatprep.subr.bf16.mxu0 %v2862
        %4022 = vmatpush1.bf16.msra.mxu0 %v2861
        %4023 = vmatprep.subr.bf16.mxu0 %v2864
        %4024 = vmatpush1.bf16.msra.mxu0 %v2863
        %4025 = vmatprep.subr.bf16.mxu0 %v2866
        %4026 = vmatpush1.bf16.msra.mxu0 %v2865
        %4027 = vmatprep.subr.bf16.mxu0 %v2868
        %4028 = vmatpush1.bf16.msra.mxu0 %v2867
        %4029 = vmatprep.subr.bf16.mxu0 %v2870
        %4030 = vmatpush1.bf16.msra.mxu0 %v2869
        %4031 = vmatprep.subr.bf16.mxu0 %v2872
        %4032 = vmatpush1.bf16.msra.mxu0 %v2871
        %4033 = vmatprep.subr.bf16.mxu0 %v2874
        %4034 = vmatpush1.bf16.msra.mxu0 %v2873
        %4035 = vmatprep.subr.bf16.mxu0 %v2876
        %4036 = vmatpush1.bf16.msra.mxu0 %v2875
        %4037 = vmatprep.subr.bf16.mxu0 %v2878
        %4038 = vmatpush1.bf16.msra.mxu0 %v2877
        %4039 = vmatprep.subr.bf16.mxu0 %v2880
        %4040 = vmatpush1.bf16.msra.mxu0 %v2879
        %4041 = vmatprep.subr.bf16.mxu0 %v2882
        %4042 = vmatpush1.bf16.msra.mxu0 %v2881
        %4043 = vmatprep.subr.bf16.mxu0 %v2884
        %4044 = vmatpush1.bf16.msra.mxu0 %v2883
        %4045 = vmatprep.subr.bf16.mxu0 %v2886
        %4046 = vmatpush1.bf16.msra.mxu0 %v2885
        %4047 = vmatprep.subr.bf16.mxu0 %v2888
        %4048 = vmatpush1.bf16.msra.mxu0 %v2887
        %4049 = vmatprep.subr.bf16.mxu0 %v2890
        %4050 = vmatpush1.bf16.msra.mxu0 %v2889
        %4051 = vmatprep.mubr.bf16.mxu0 %v920
        %4052 = vmatmul.mubr.bf16.gmra.mrb[0].mxu0 %v919
        %v4053 = vpop.f32.mrb[0].mxu0
        %v4054 = vadd.f32 %v4013, %v4053
        %v4055 = vpop.f32.mrb[0].mxu0
        %v4056 = vadd.f32 %v4015, %v4055
        %v4057 = vpop.f32.mrb[0].mxu0
        %v4058 = vpop.f32.mrb[0].mxu0
        %4059 = vdwg.mxu0
        %4060 = vmatprep.subr.bf16.mxu0 %v2892
        %4061 = vmatpush1.bf16.msra.mxu0 %v2891
        %4062 = vmatprep.subr.bf16.mxu0 %v2894
        %4063 = vmatpush1.bf16.msra.mxu0 %v2893
        %4064 = vmatprep.subr.bf16.mxu0 %v2896
        %4065 = vmatpush1.bf16.msra.mxu0 %v2895
        %4066 = vmatprep.subr.bf16.mxu0 %v2898
        %4067 = vmatpush1.bf16.msra.mxu0 %v2897
        %4068 = vmatprep.subr.bf16.mxu0 %v2900
        %4069 = vmatpush1.bf16.msra.mxu0 %v2899
        %4070 = vmatprep.subr.bf16.mxu0 %v2902
        %4071 = vmatpush1.bf16.msra.mxu0 %v2901
        %4072 = vmatprep.subr.bf16.mxu0 %v2904
        %4073 = vmatpush1.bf16.msra.mxu0 %v2903
        %4074 = vmatprep.subr.bf16.mxu0 %v2906
        %4075 = vmatpush1.bf16.msra.mxu0 %v2905
        %4076 = vmatprep.subr.bf16.mxu0 %v2908
        %4077 = vmatpush1.bf16.msra.mxu0 %v2907
        %4078 = vmatprep.subr.bf16.mxu0 %v2910
        %4079 = vmatpush1.bf16.msra.mxu0 %v2909
        %4080 = vmatprep.subr.bf16.mxu0 %v2912
        %4081 = vmatpush1.bf16.msra.mxu0 %v2911
        %4082 = vmatprep.subr.bf16.mxu0 %v2914
        %4083 = vmatpush1.bf16.msra.mxu0 %v2913
        %4084 = vmatprep.subr.bf16.mxu0 %v2916
        %4085 = vmatpush1.bf16.msra.mxu0 %v2915
        %4086 = vmatprep.subr.bf16.mxu0 %v2918
        %4087 = vmatpush1.bf16.msra.mxu0 %v2917
        %4088 = vmatprep.subr.bf16.mxu0 %v2920
        %4089 = vmatpush1.bf16.msra.mxu0 %v2919
        %4090 = vmatprep.subr.bf16.mxu0 %v2922
        %4091 = vmatpush1.bf16.msra.mxu0 %v2921
        %4092 = vmatprep.mubr.bf16.mxu0 %v922
        %4093 = vmatmul.mubr.bf16.gmra.mrb[0].mxu0 %v921
        %v4094 = vpop.f32.mrb[0].mxu0
        %v4095 = vadd.f32 %v4054, %v4094
        %v4096 = vpop.f32.mrb[0].mxu0
        %v4097 = vadd.f32 %v4056, %v4096
        %v4098 = vpop.f32.mrb[0].mxu0
        %v4099 = vpop.f32.mrb[0].mxu0
        %4100 = vdwg.mxu0
        %4101 = vmatprep.subr.bf16.mxu0 %v2924
        %4102 = vmatpush1.bf16.msra.mxu0 %v2923
        %4103 = vmatprep.subr.bf16.mxu0 %v2926
        %4104 = vmatpush1.bf16.msra.mxu0 %v2925
        %4105 = vmatprep.subr.bf16.mxu0 %v2928
        %4106 = vmatpush1.bf16.msra.mxu0 %v2927
        %4107 = vmatprep.subr.bf16.mxu0 %v2930
        %4108 = vmatpush1.bf16.msra.mxu0 %v2929
        %4109 = vmatprep.subr.bf16.mxu0 %v2932
        %4110 = vmatpush1.bf16.msra.mxu0 %v2931
        %4111 = vmatprep.subr.bf16.mxu0 %v2934
        %4112 = vmatpush1.bf16.msra.mxu0 %v2933
        %4113 = vmatprep.subr.bf16.mxu0 %v2936
        %4114 = vmatpush1.bf16.msra.mxu0 %v2935
        %4115 = vmatprep.subr.bf16.mxu0 %v2938
        %4116 = vmatpush1.bf16.msra.mxu0 %v2937
        %4117 = vmatprep.subr.bf16.mxu0 %v2940
        %4118 = vmatpush1.bf16.msra.mxu0 %v2939
        %4119 = vmatprep.subr.bf16.mxu0 %v2942
        %4120 = vmatpush1.bf16.msra.mxu0 %v2941
        %4121 = vmatprep.subr.bf16.mxu0 %v2944
        %4122 = vmatpush1.bf16.msra.mxu0 %v2943
        %4123 = vmatprep.subr.bf16.mxu0 %v2946
        %4124 = vmatpush1.bf16.msra.mxu0 %v2945
        %4125 = vmatprep.subr.bf16.mxu0 %v2948
        %4126 = vmatpush1.bf16.msra.mxu0 %v2947
        %4127 = vmatprep.subr.bf16.mxu0 %v2950
        %4128 = vmatpush1.bf16.msra.mxu0 %v2949
        %4129 = vmatprep.subr.bf16.mxu0 %v2952
        %4130 = vmatpush1.bf16.msra.mxu0 %v2951
        %4131 = vmatprep.subr.bf16.mxu0 %v2954
        %4132 = vmatpush1.bf16.msra.mxu0 %v2953
        %4133 = vmatprep.mubr.bf16.mxu0 %v924
        %4134 = vmatmul.mubr.bf16.gmra.mrb[0].mxu0 %v923
        %v4135 = vpop.f32.mrb[0].mxu0
        %v4136 = vadd.f32 %v4095, %v4135
        %v4137 = vpop.f32.mrb[0].mxu0
        %v4138 = vadd.f32 %v4097, %v4137
        %v4139 = vpop.f32.mrb[0].mxu0
        %v4140 = vpop.f32.mrb[0].mxu0
        %4141 = vdwg.mxu0
        %4142 = vmatprep.subr.bf16.mxu0 %v2956
        %4143 = vmatpush1.bf16.msra.mxu0 %v2955
        %4144 = vmatprep.subr.bf16.mxu0 %v2958
        %4145 = vmatpush1.bf16.msra.mxu0 %v2957
        %4146 = vmatprep.subr.bf16.mxu0 %v2960
        %4147 = vmatpush1.bf16.msra.mxu0 %v2959
        %4148 = vmatprep.subr.bf16.mxu0 %v2962
        %4149 = vmatpush1.bf16.msra.mxu0 %v2961
        %4150 = vmatprep.subr.bf16.mxu0 %v2964
        %4151 = vmatpush1.bf16.msra.mxu0 %v2963
        %4152 = vmatprep.subr.bf16.mxu0 %v2966
        %4153 = vmatpush1.bf16.msra.mxu0 %v2965
        %4154 = vmatprep.subr.bf16.mxu0 %v2968
        %4155 = vmatpush1.bf16.msra.mxu0 %v2967
        %4156 = vmatprep.subr.bf16.mxu0 %v2970
        %4157 = vmatpush1.bf16.msra.mxu0 %v2969
        %4158 = vmatprep.subr.bf16.mxu0 %v2972
        %4159 = vmatpush1.bf16.msra.mxu0 %v2971
        %4160 = vmatprep.subr.bf16.mxu0 %v2974
        %4161 = vmatpush1.bf16.msra.mxu0 %v2973
        %4162 = vmatprep.subr.bf16.mxu0 %v2976
        %4163 = vmatpush1.bf16.msra.mxu0 %v2975
        %4164 = vmatprep.subr.bf16.mxu0 %v2978
        %4165 = vmatpush1.bf16.msra.mxu0 %v2977
        %4166 = vmatprep.subr.bf16.mxu0 %v2980
        %4167 = vmatpush1.bf16.msra.mxu0 %v2979
        %4168 = vmatprep.subr.bf16.mxu0 %v2982
        %4169 = vmatpush1.bf16.msra.mxu0 %v2981
        %4170 = vmatprep.subr.bf16.mxu0 %v2984
        %4171 = vmatpush1.bf16.msra.mxu0 %v2983
        %4172 = vmatprep.subr.bf16.mxu0 %v2986
        %4173 = vmatpush1.bf16.msra.mxu0 %v2985
        %4174 = vmatprep.mubr.bf16.mxu0 %v926
        %4175 = vmatmul.mubr.bf16.gmra.mrb[0].mxu0 %v925
        %v4176 = vpop.f32.mrb[0].mxu0
        %v4177 = vadd.f32 %v4136, %v4176
        %v4178 = vpop.f32.mrb[0].mxu0
        %v4179 = vadd.f32 %v4138, %v4178
        %v4180 = vpop.f32.mrb[0].mxu0
        %v4181 = vpop.f32.mrb[0].mxu0
        %4182 = vdwg.mxu0
        %4183 = vmatprep.subr.bf16.mxu0 %v2988
        %4184 = vmatpush1.bf16.msra.mxu0 %v2987
        %4185 = vmatprep.subr.bf16.mxu0 %v2990
        %4186 = vmatpush1.bf16.msra.mxu0 %v2989
        %4187 = vmatprep.subr.bf16.mxu0 %v2992
        %4188 = vmatpush1.bf16.msra.mxu0 %v2991
        %4189 = vmatprep.subr.bf16.mxu0 %v2994
        %4190 = vmatpush1.bf16.msra.mxu0 %v2993
        %4191 = vmatprep.subr.bf16.mxu0 %v2996
        %4192 = vmatpush1.bf16.msra.mxu0 %v2995
        %4193 = vmatprep.subr.bf16.mxu0 %v2998
        %4194 = vmatpush1.bf16.msra.mxu0 %v2997
        %4195 = vmatprep.subr.bf16.mxu0 %v3000
        %4196 = vmatpush1.bf16.msra.mxu0 %v2999
        %4197 = vmatprep.subr.bf16.mxu0 %v3002
        %4198 = vmatpush1.bf16.msra.mxu0 %v3001
        %4199 = vmatprep.subr.bf16.mxu0 %v3004
        %4200 = vmatpush1.bf16.msra.mxu0 %v3003
        %4201 = vmatprep.subr.bf16.mxu0 %v3006
        %4202 = vmatpush1.bf16.msra.mxu0 %v3005
        %4203 = vmatprep.subr.bf16.mxu0 %v3008
        %4204 = vmatpush1.bf16.msra.mxu0 %v3007
        %4205 = vmatprep.subr.bf16.mxu0 %v3010
        %4206 = vmatpush1.bf16.msra.mxu0 %v3009
        %4207 = vmatprep.subr.bf16.mxu0 %v3012
        %4208 = vmatpush1.bf16.msra.mxu0 %v3011
        %4209 = vmatprep.subr.bf16.mxu0 %v3014
        %4210 = vmatpush1.bf16.msra.mxu0 %v3013
        %4211 = vmatprep.subr.bf16.mxu0 %v3016
        %4212 = vmatpush1.bf16.msra.mxu0 %v3015
        %4213 = vmatprep.subr.bf16.mxu0 %v3018
        %4214 = vmatpush1.bf16.msra.mxu0 %v3017
        %4215 = vmatprep.mubr.bf16.mxu0 %v928
        %4216 = vmatmul.mubr.bf16.gmra.mrb[0].mxu0 %v927
        %v4217 = vpop.f32.mrb[0].mxu0
        %v4218 = vadd.f32 %v4177, %v4217
        %v4219 = vpop.f32.mrb[0].mxu0
        %v4220 = vadd.f32 %v4179, %v4219
        %v4221 = vpop.f32.mrb[0].mxu0
        %v4222 = vpop.f32.mrb[0].mxu0
        %4223 = vdwg.mxu0
        %4224 = vmatprep.subr.bf16.mxu0 %v3020
        %4225 = vmatpush1.bf16.msra.mxu0 %v3019
        %4226 = vmatprep.subr.bf16.mxu0 %v3022
        %4227 = vmatpush1.bf16.msra.mxu0 %v3021
        %4228 = vmatprep.subr.bf16.mxu0 %v3024
        %4229 = vmatpush1.bf16.msra.mxu0 %v3023
        %4230 = vmatprep.subr.bf16.mxu0 %v3026
        %4231 = vmatpush1.bf16.msra.mxu0 %v3025
        %4232 = vmatprep.subr.bf16.mxu0 %v3028
        %4233 = vmatpush1.bf16.msra.mxu0 %v3027
        %4234 = vmatprep.subr.bf16.mxu0 %v3030
        %4235 = vmatpush1.bf16.msra.mxu0 %v3029
        %4236 = vmatprep.subr.bf16.mxu0 %v3032
        %4237 = vmatpush1.bf16.msra.mxu0 %v3031
        %4238 = vmatprep.subr.bf16.mxu0 %v3034
        %4239 = vmatpush1.bf16.msra.mxu0 %v3033
        %4240 = vmatprep.subr.bf16.mxu0 %v3036
        %4241 = vmatpush1.bf16.msra.mxu0 %v3035
        %4242 = vmatprep.subr.bf16.mxu0 %v3038
        %4243 = vmatpush1.bf16.msra.mxu0 %v3037
        %4244 = vmatprep.subr.bf16.mxu0 %v3040
        %4245 = vmatpush1.bf16.msra.mxu0 %v3039
        %4246 = vmatprep.subr.bf16.mxu0 %v3042
        %4247 = vmatpush1.bf16.msra.mxu0 %v3041
        %4248 = vmatprep.subr.bf16.mxu0 %v3044
        %4249 = vmatpush1.bf16.msra.mxu0 %v3043
        %4250 = vmatprep.subr.bf16.mxu0 %v3046
        %4251 = vmatpush1.bf16.msra.mxu0 %v3045
        %4252 = vmatprep.subr.bf16.mxu0 %v3048
        %4253 = vmatpush1.bf16.msra.mxu0 %v3047
        %4254 = vmatprep.subr.bf16.mxu0 %v3050
        %4255 = vmatpush1.bf16.msra.mxu0 %v3049
        %4256 = vmatprep.mubr.bf16.mxu0 %v930
        %4257 = vmatmul.mubr.bf16.gmra.mrb[0].mxu0 %v929
        %v4258 = vpop.f32.mrb[0].mxu0
        %v4259 = vadd.f32 %v4218, %v4258
        %v4260 = vpop.f32.mrb[0].mxu0
        %v4261 = vadd.f32 %v4220, %v4260
        %v4262 = vpop.f32.mrb[0].mxu0
        %v4263 = vpop.f32.mrb[0].mxu0
        %4264 = vdwg.mxu0
        %4265 = vmatprep.subr.bf16.mxu0 %v3052
        %4266 = vmatpush1.bf16.msra.mxu0 %v3051
        %4267 = vmatprep.subr.bf16.mxu0 %v3054
        %4268 = vmatpush1.bf16.msra.mxu0 %v3053
        %4269 = vmatprep.subr.bf16.mxu0 %v3056
        %4270 = vmatpush1.bf16.msra.mxu0 %v3055
        %4271 = vmatprep.subr.bf16.mxu0 %v3058
        %4272 = vmatpush1.bf16.msra.mxu0 %v3057
        %4273 = vmatprep.subr.bf16.mxu0 %v3060
        %4274 = vmatpush1.bf16.msra.mxu0 %v3059
        %4275 = vmatprep.subr.bf16.mxu0 %v3062
        %4276 = vmatpush1.bf16.msra.mxu0 %v3061
        %4277 = vmatprep.subr.bf16.mxu0 %v3064
        %4278 = vmatpush1.bf16.msra.mxu0 %v3063
        %4279 = vmatprep.subr.bf16.mxu0 %v3066
        %4280 = vmatpush1.bf16.msra.mxu0 %v3065
        %4281 = vmatprep.subr.bf16.mxu0 %v3068
        %4282 = vmatpush1.bf16.msra.mxu0 %v3067
        %4283 = vmatprep.subr.bf16.mxu0 %v3070
        %4284 = vmatpush1.bf16.msra.mxu0 %v3069
        %4285 = vmatprep.subr.bf16.mxu0 %v3072
        %4286 = vmatpush1.bf16.msra.mxu0 %v3071
        %4287 = vmatprep.subr.bf16.mxu0 %v3074
        %4288 = vmatpush1.bf16.msra.mxu0 %v3073
        %4289 = vmatprep.subr.bf16.mxu0 %v3076
        %4290 = vmatpush1.bf16.msra.mxu0 %v3075
        %4291 = vmatprep.subr.bf16.mxu0 %v3078
        %4292 = vmatpush1.bf16.msra.mxu0 %v3077
        %4293 = vmatprep.subr.bf16.mxu0 %v3080
        %4294 = vmatpush1.bf16.msra.mxu0 %v3079
        %4295 = vmatprep.subr.bf16.mxu0 %v3082
        %4296 = vmatpush1.bf16.msra.mxu0 %v3081
        %4297 = vmatprep.mubr.bf16.mxu0 %v932
        %4298 = vmatmul.mubr.bf16.gmra.mrb[0].mxu0 %v931
        %v4299 = vpop.f32.mrb[0].mxu0
        %v4300 = vadd.f32 %v4259, %v4299
        %v4301 = vpop.f32.mrb[0].mxu0
        %v4302 = vadd.f32 %v4261, %v4301
        %v4303 = vpop.f32.mrb[0].mxu0
        %v4304 = vpop.f32.mrb[0].mxu0
        %4305 = vdwg.mxu0
        %4306 = vmatprep.subr.bf16.mxu0 %v3084
        %4307 = vmatpush1.bf16.msra.mxu0 %v3083
        %4308 = vmatprep.subr.bf16.mxu0 %v3086
        %4309 = vmatpush1.bf16.msra.mxu0 %v3085
        %4310 = vmatprep.subr.bf16.mxu0 %v3088
        %4311 = vmatpush1.bf16.msra.mxu0 %v3087
        %4312 = vmatprep.subr.bf16.mxu0 %v3090
        %4313 = vmatpush1.bf16.msra.mxu0 %v3089
        %4314 = vmatprep.subr.bf16.mxu0 %v3092
        %4315 = vmatpush1.bf16.msra.mxu0 %v3091
        %4316 = vmatprep.subr.bf16.mxu0 %v3094
        %4317 = vmatpush1.bf16.msra.mxu0 %v3093
        %4318 = vmatprep.subr.bf16.mxu0 %v3096
        %4319 = vmatpush1.bf16.msra.mxu0 %v3095
        %4320 = vmatprep.subr.bf16.mxu0 %v3098
        %4321 = vmatpush1.bf16.msra.mxu0 %v3097
        %4322 = vmatprep.subr.bf16.mxu0 %v3100
        %4323 = vmatpush1.bf16.msra.mxu0 %v3099
        %4324 = vmatprep.subr.bf16.mxu0 %v3102
        %4325 = vmatpush1.bf16.msra.mxu0 %v3101
        %4326 = vmatprep.subr.bf16.mxu0 %v3104
        %4327 = vmatpush1.bf16.msra.mxu0 %v3103
        %4328 = vmatprep.subr.bf16.mxu0 %v3106
        %4329 = vmatpush1.bf16.msra.mxu0 %v3105
        %4330 = vmatprep.subr.bf16.mxu0 %v3108
        %4331 = vmatpush1.bf16.msra.mxu0 %v3107
        %4332 = vmatprep.subr.bf16.mxu0 %v3110
        %4333 = vmatpush1.bf16.msra.mxu0 %v3109
        %4334 = vmatprep.subr.bf16.mxu0 %v3112
        %4335 = vmatpush1.bf16.msra.mxu0 %v3111
        %4336 = vmatprep.subr.bf16.mxu0 %v3114
        %4337 = vmatpush1.bf16.msra.mxu0 %v3113
        %4338 = vmatprep.mubr.bf16.mxu0 %v934
        %4339 = vmatmul.mubr.bf16.gmra.mrb[0].mxu0 %v933
        %v4340 = vpop.f32.mrb[0].mxu0
        %v4341 = vadd.f32 %v4300, %v4340
        %v4342 = vpop.f32.mrb[0].mxu0
        %v4343 = vadd.f32 %v4302, %v4342
        %v4344 = vpop.f32.mrb[0].mxu0
        %v4345 = vpop.f32.mrb[0].mxu0
        %4346 = vdwg.mxu0
        %4347 = vmatprep.subr.bf16.mxu0 %v3116
        %4348 = vmatpush1.bf16.msra.mxu0 %v3115
        %4349 = vmatprep.subr.bf16.mxu0 %v3118
        %4350 = vmatpush1.bf16.msra.mxu0 %v3117
        %4351 = vmatprep.subr.bf16.mxu0 %v3120
        %4352 = vmatpush1.bf16.msra.mxu0 %v3119
        %4353 = vmatprep.subr.bf16.mxu0 %v3122
        %4354 = vmatpush1.bf16.msra.mxu0 %v3121
        %4355 = vmatprep.subr.bf16.mxu0 %v3124
        %4356 = vmatpush1.bf16.msra.mxu0 %v3123
        %4357 = vmatprep.subr.bf16.mxu0 %v3126
        %4358 = vmatpush1.bf16.msra.mxu0 %v3125
        %4359 = vmatprep.subr.bf16.mxu0 %v3128
        %4360 = vmatpush1.bf16.msra.mxu0 %v3127
        %4361 = vmatprep.subr.bf16.mxu0 %v3130
        %4362 = vmatpush1.bf16.msra.mxu0 %v3129
        %4363 = vmatprep.subr.bf16.mxu0 %v3132
        %4364 = vmatpush1.bf16.msra.mxu0 %v3131
        %4365 = vmatprep.subr.bf16.mxu0 %v3134
        %4366 = vmatpush1.bf16.msra.mxu0 %v3133
        %4367 = vmatprep.subr.bf16.mxu0 %v3136
        %4368 = vmatpush1.bf16.msra.mxu0 %v3135
        %4369 = vmatprep.subr.bf16.mxu0 %v3138
        %4370 = vmatpush1.bf16.msra.mxu0 %v3137
        %4371 = vmatprep.subr.bf16.mxu0 %v3140
        %4372 = vmatpush1.bf16.msra.mxu0 %v3139
        %4373 = vmatprep.subr.bf16.mxu0 %v3142
        %4374 = vmatpush1.bf16.msra.mxu0 %v3141
        %4375 = vmatprep.subr.bf16.mxu0 %v3144
        %4376 = vmatpush1.bf16.msra.mxu0 %v3143
        %4377 = vmatprep.subr.bf16.mxu0 %v3146
        %4378 = vmatpush1.bf16.msra.mxu0 %v3145
        %4379 = vmatprep.mubr.bf16.mxu0 %v936
        %4380 = vmatmul.mubr.bf16.gmra.mrb[0].mxu0 %v935
        %v4381 = vpop.f32.mrb[0].mxu0
        %v4382 = vadd.f32 %v4341, %v4381
        %v4383 = vpop.f32.mrb[0].mxu0
        %v4384 = vadd.f32 %v4343, %v4383
        %v4385 = vpop.f32.mrb[0].mxu0
        %v4386 = vpop.f32.mrb[0].mxu0
        %4387 = vdwg.mxu0
        %v4388 = vadd.f32 %v289, %v4382
        %v4389 = vadd.f32 %v290, %v4384
        %4390 = vst [vmem:[#allocation2] sm:$0xff] %v4388
        %4391 = vst [vmem:[#allocation2 + $0x8] sm:$0xff] %v4389
        %p4392 = scmp.eq.s32.totalorder %s24, 16
        // Predicated region
        $region41: #{dqn_forward.7} parent=31 // pred_check
          %p4393 = pneg %p4392
        $region42: #{dqn_forward.7} parent=31 // pred_check_branch
          %4395 = sbr.rel (%p4393) target = $region44
        $region43: #{dqn_forward.7} parent=31 // pred_region
          %v4396 = vld [vmem:[#allocation2] sm:$0xff]
          %v4397 = vld [vmem:[#allocation2 + $0x8] sm:$0xff]
          %v4398 = vld [vmem:[%s271] sm:$0x3]
          %v4400 = vlaneseq
          %v4401 = vshrl.u32 %v4400, 7
          %v4402 = vsub.s32 0, %v4401
          %v4403 = vrot.slane %v4398, %v4402
          %v4404 = vlaneseq
          %v4405 = vshrl.u32 %v4404, 7
          %v4406 = vsub.s32 1, %v4405
          %v4407 = vrot.slane %v4398, %v4406
          %v4410 = vadd.f32 %v4396, %v4403
          %v4411 = vadd.f32 %v4397, %v4407
          %v4412 = vmax.f32 %v4410, 0.0
          %v4413 = vmax.f32 %v4411, 0.0
          %4414 = vst [vmem:[%s281] sm:$0xff] %v4412
          %4415 = vst [vmem:[%s281 + $0x8] sm:$0xff] %v4413
        $region44: #{dqn_forward.7} parent=31 // pred_fallthru
          _
        %s4416 = smul.u32 2, %s23
        %p4417 = scmp.lt.s32.totalorder %s22, 0
        %s4418 = scalar_select %p4417, %s22, 0
        %p4419 = scmp.lt.s32.totalorder %s4416, 3
        %s4420 = scalar_select %p4419, %s4416, 3
        %s4421 = smul.addr %s4418, 4
        %s4422 = sadd.s32 %s4420, %s4421
        %s4423 = smul.addr %s4422, 8
        %s4424 = scalar_lea.vmem %s3, %s4423
        // Predicated region
        $region45: #{dqn_forward.7} parent=31 // pred_check
          %p4425 = pneg %p138
        $region46: #{dqn_forward.7} parent=31 // pred_check_branch
          %4427 = sbr.rel (%p4425) target = $region48
        $region47: #{dqn_forward.7} parent=31 // pred_region
          %s4428 = smul.u32 2, %s23
        $region48: #{dqn_forward.7} parent=31 // pred_fallthru
          _
      $region32: #{dqn_forward.7} parent=5 // pred_fallthru
        _
      %p4429 = scmp.le.s32.totalorder 2, %s12
      // Predicated region
      $region49: #{dqn_forward.7} parent=5 // pred_check
        %p4430 = pneg %p4429
      $region50: #{dqn_forward.7} parent=5 // pred_check_branch
        %4432 = sbr.rel (%p4430) target = $region52
      $region51: #{dqn_forward.7} parent=5 // pred_region
        %s4433 = ssub.s32 %s12, 2
        // Predicated region
        $region53: #{dqn_forward.7} parent=51 // pred_check
          %p4434 = pneg %p144
        $region54: #{dqn_forward.7} parent=51 // pred_check_branch
          %4436 = sbr.rel (%p4434) target = $region56
        $region55: #{dqn_forward.7} parent=51 // pred_region
          %s4437 = smul.u32 2, %s26
          %p4438 = scmp.lt.s32.totalorder %s25, 0
          %s4439 = scalar_select %p4438, %s25, 0
          %p4440 = scmp.lt.s32.totalorder %s4437, 3
          %s4441 = scalar_select %p4440, %s4437, 3
          %s4442 = smul.addr %s4439, 4
          %s4443 = sadd.s32 %s4441, %s4442
          %s4444 = smul.addr %s4443, 8
          %s4445 = scalar_lea.vmem %s3, %s4444
        $region56: #{dqn_forward.7} parent=51 // pred_fallthru
          _
      $region52: #{dqn_forward.7} parent=5 // pred_fallthru
        _
    $region6: #{dqn_forward.7} parent=1 // loop_footer
      %s16 = sadd.s32 1, %s12
    $region7: #{dqn_forward.7} parent=1 // loop_footer_branch
      %11 = sbr.rel target = $region3
    $region8: #{dqn_forward.7} parent=1 // loop_exit
      _
    %4446 = vsyncpa [#allocation4], 1
    %s4447 = scalar_lea.sflag [#allocation4], 1
    %4448 = vsyncpa %s4447, 1

</llo_original>
